<compile_context>
chip_gen: v6e
topology: v6e:2x2x1
jax: 0.10.0
libtpu: 0.0.40
codegen_flags: <defaults>
</compile_context>

<pallas_src>
import numpy as np
import jax
import jax.numpy as jnp
from jax.experimental import pallas as pl
from jax.experimental.pallas import tpu as pltpu

_EPS = 1e-5
# Set to jnp.bfloat16 on v6e/v7x for fewer MXU passes (f32 accumulation kept).
_MM_DTYPE = jnp.float32


# ----------------------------- in-kernel helpers ----------------------------

def _gn_relu(y, s_ref, bc_ref, g_ref, b_ref):
    """GroupNorm(num_groups == channels) + ReLU on a [B, C*M] slab.

    s_ref : [C*M, C]  per-channel averaging matrix (1/M one-hot blocks)
    bc_ref: [C, C*M]  per-channel broadcast matrix (one-hot blocks)
    g_ref, b_ref: [1, C] affine params.
    Single reduction pass: mean and E[x^2] via two small MXU matmuls,
    var = E[x^2] - mean^2 (review item: one-pass GN).
    """
    mean = jnp.dot(y, s_ref[...], preferred_element_type=jnp.float32)       # [B, C]
    msq = jnp.dot(y * y, s_ref[...], preferred_element_type=jnp.float32)    # [B, C]
    var = msq - mean * mean
    scale = g_ref[...] * jax.lax.rsqrt(var + _EPS)                          # [B, C]
    shift = b_ref[...] - mean * scale                                       # [B, C]
    yn = (y * jnp.dot(scale, bc_ref[...], preferred_element_type=jnp.float32)
          + jnp.dot(shift, bc_ref[...], preferred_element_type=jnp.float32))
    return jnp.maximum(yn, 0.0)


def _fused_kernel(x_ref,
                  a0_ref, b0_ref,
                  s1_ref, bc1_ref, g1_ref, be1_ref,
                  a1_ref, b1_ref,
                  s2_ref, bc2_ref, g2_ref, be2_ref,
                  a2_ref, b2_ref,
                  o_ref):
    # One grid step == one batch block.  Each conv is ONE MXU matmul against a
    # host-precomputed (im2col-gather x weight) matrix; everything stays in
    # VMEM/vregs, and all tensors are lane-dense [B, C*spatial].
    def mm(u, v):
        return jnp.dot(u.astype(_MM_DTYPE), v.astype(_MM_DTYPE),
                       preferred_element_type=jnp.float32)

    y = mm(x_ref[...], a0_ref[...]) + b0_ref[...]           # Conv2d k3 s1 p0
    y = _gn_relu(y, s1_ref, bc1_ref, g1_ref, be1_ref)        # GN + ReLU
    y = mm(y, a1_ref[...]) + b1_ref[...]                     # Conv2d k3 s2 p1
    y = _gn_relu(y, s2_ref, bc2_ref, g2_ref, be2_ref)        # GN + ReLU
    y = mm(y, a2_ref[...]) + b2_ref[...]                     # Conv2d k3 s2 p1
    o_ref[...] = y                                           # [B, Cout*H2*W2] lane-dense


# ------------------------------ host-side glue -------------------------------

def _conv_out(sz, stride, pad):
    return (sz + 2 * pad - 3) // stride + 1


def _tap_onehot(hin, win, ho, wo, stride, pad):
    """T[p, t, m] = 1 iff input position p feeds tap t of output position m."""
    P, M = hin * win, ho * wo
    T = np.zeros((P, 9, M), np.float32)
    for kh in range(3):
        for kw in range(3):
            t = kh * 3 + kw
            for oh in range(ho):
                h = stride * oh + kh - pad
                if h < 0 or h >= hin:
                    continue
                for ow in range(wo):
                    w = stride * ow + kw - pad
                    if 0 <= w < win:
                        T[h * win + w, t, oh * wo + ow] = 1.0
    return T


def _conv_matrix(w, hin, win, ho, wo, stride, pad):
    """Dense linear map of a 3x3 conv: A[c*P + p, o*M + m] (exact in f32)."""
    cout, cin = int(w.shape[0]), int(w.shape[1])
    P, M = hin * win, ho * wo
    T = jnp.asarray(_tap_onehot(hin, win, ho, wo, stride, pad))         # [P, 9, M]
    wr = jnp.transpose(w.astype(jnp.float32), (1, 0, 2, 3)).reshape(cin, cout, 9)
    # At most one tap hits a given (p, m), so the contraction over t selects a
    # single weight value -> A is exact; HIGHEST keeps it bit-faithful.
    a4 = jnp.einsum('cot,ptm->cpom', wr, T,
                    precision=jax.lax.Precision.HIGHEST)                # [Cin,P,Cout,M]
    return a4.reshape(cin * P, cout * M)


def _gn_matrices(c, m):
    s = np.kron(np.eye(c, dtype=np.float32), np.ones((m, 1), np.float32)) / m  # [C*M, C]
    bc = np.kron(np.eye(c, dtype=np.float32), np.ones((1, m), np.float32))     # [C, C*M]
    return jnp.asarray(s), jnp.asarray(bc)


def _bias_row(b, m):
    return jnp.repeat(b.astype(jnp.float32), m)[None, :]   # [1, C*M], col = c*M + m


def _row(v):
    return v.astype(jnp.float32)[None, :]                   # [1, C]


def conv_downsampler_forward(x, params, *, batch_block=None):
    n, cin, h, w = x.shape
    cout = params["w0"].shape[0]
    bb = n if batch_block is None else batch_block           # whole batch per step (toy size)
    assert n % bb == 0, "batch_block must divide the batch size"

    ha, wa = _conv_out(h, 1, 0), _conv_out(w, 1, 0)
    hb, wb = _conv_out(ha, 2, 1), _conv_out(wa, 2, 1)
    hc, wc = _conv_out(hb, 2, 1), _conv_out(wb, 2, 1)
    m0, m1, m2 = ha * wa, hb * wb, hc * wc

    # Host-precomputed constants (outside the Pallas kernel).
    a0 = _conv_matrix(params["w0"], h, w, ha, wa, 1, 0)
    a1 = _conv_matrix(params["w1"], ha, wa, hb, wb, 2, 1)
    a2 = _conv_matrix(params["w2"], hb, wb, hc, wc, 2, 1)
    s1, bc1 = _gn_matrices(cout, m0)
    s2, bc2 = _gn_matrices(cout, m1)

    x2 = x.reshape(n, cin * h * w).astype(jnp.float32)        # lane-dense [B, Cin*H*W]

    consts = (a0, _bias_row(params["b0"], m0),
              s1, bc1, _row(params["gn1_g"]), _row(params["gn1_b"]),
              a1, _bias_row(params["b1"], m1),
              s2, bc2, _row(params["gn2_g"]), _row(params["gn2_b"]),
              a2, _bias_row(params["b2"], m2))

    def const_spec(a):   # replicated constant: same block for every grid step
        return pl.BlockSpec(a.shape, lambda i: (0, 0))

    in_specs = [pl.BlockSpec((bb, cin * h * w), lambda i: (i, 0))]
    in_specs += [const_spec(a) for a in consts]

    out = pl.pallas_call(
        _fused_kernel,
        out_shape=jax.ShapeDtypeStruct((n, cout * m2), jnp.float32),
        grid=(n // bb,),
        in_specs=in_specs,
        out_specs=pl.BlockSpec((bb, cout * m2), lambda i: (i, 0)),
        compiler_params=pltpu.CompilerParams(
            # "parallel" so multiple batch blocks shard across v7x's two TCs.
            dimension_semantics=("parallel",),
            vmem_limit_bytes=32 * 1024 * 1024),
    )(x2, *consts)
    return out.reshape(n, cout, hc, wc)


# --------------------------- pure-JAX reference -----------------------------

def _ref_conv(x, w, b, stride, pad):
    y = jax.lax.conv_general_dilated(
        x, w, (stride, stride), [(pad, pad), (pad, pad)],
        dimension_numbers=("NCHW", "OIHW", "NCHW"),
        precision=jax.lax.Precision.HIGHEST)
    return y + b[None, :, None, None]


def _ref_gn_relu(x, g, b):
    mean = x.mean(axis=(2, 3), keepdims=True)
    var = ((x - mean) ** 2).mean(axis=(2, 3), keepdims=True)
    xhat = (x - mean) / jnp.sqrt(var + _EPS)
    y = xhat * g[None, :, None, None] + b[None, :, None, None]
    return jnp.maximum(y, 0.0)


# --------------------------------- main --------------------------------------

if __name__ == "__main__":
    key = jax.random.PRNGKey(0)
    N, CIN, COUT, H, W = 2, 4, 8, 16, 16
    ks = jax.random.split(key, 10)

    x = jax.random.normal(ks[0], (N, CIN, H, W), jnp.float32)
    params = {
        "w0": 0.2 * jax.random.normal(ks[1], (COUT, CIN, 3, 3), jnp.float32),
        "b0": 0.1 * jax.random.normal(ks[2], (COUT,), jnp.float32),
        "gn1_g": 1.0 + 0.1 * jax.random.normal(ks[3], (COUT,), jnp.float32),
        "gn1_b": 0.1 * jax.random.normal(ks[4], (COUT,), jnp.float32),
        "w1": 0.2 * jax.random.normal(ks[5], (COUT, COUT, 3, 3), jnp.float32),
        "b1": 0.1 * jax.random.normal(ks[6], (COUT,), jnp.float32),
        "gn2_g": 1.0 + 0.1 * jax.random.normal(ks[7], (COUT,), jnp.float32),
        "gn2_b": 0.1 * jax.random.normal(ks[8], (COUT,), jnp.float32),
        "w2": 0.2 * jax.random.normal(ks[9], (COUT, COUT, 3, 3), jnp.float32),
        "b2": jnp.zeros((COUT,), jnp.float32),
    }

    fwd = jax.jit(conv_downsampler_forward)
    out = jax.block_until_ready(fwd(x, params))
    # 16 --(k3,s1,p0)--> 14 --(k3,s2,p1)--> 7 --(k3,s2,p1)--> 4
    assert out.shape == (N, COUT, 4, 4), out.shape
    assert bool(jnp.all(jnp.isfinite(out)))

    ref = _ref_conv(x, params["w0"], params["b0"], 1, 0)
    ref = _ref_gn_relu(ref, params["gn1_g"], params["gn1_b"])
    ref = _ref_conv(ref, params["w1"], params["b1"], 2, 1)
    ref = _ref_gn_relu(ref, params["gn2_g"], params["gn2_b"])
    ref = _ref_conv(ref, params["w2"], params["b2"], 2, 1)
    assert jnp.allclose(out, ref, atol=1e-2, rtol=1e-2), float(jnp.abs(out - ref).max())

    print("KERNEL_OK")
</pallas_src>

<mosaic_0001>
module attributes {stable_mosaic.version = 11 : i64} {
  func.func @_fused_kernel(%arg0: i32, %arg1: memref<2x1024xf32, #tpu.memory_space<vmem>>, %arg2: memref<1024x1568xf32, #tpu.memory_space<vmem>>, %arg3: memref<1x1568xf32, #tpu.memory_space<vmem>>, %arg4: memref<1568x8xf32, #tpu.memory_space<vmem>>, %arg5: memref<8x1568xf32, #tpu.memory_space<vmem>>, %arg6: memref<1x8xf32, #tpu.memory_space<vmem>>, %arg7: memref<1x8xf32, #tpu.memory_space<vmem>>, %arg8: memref<1568x392xf32, #tpu.memory_space<vmem>>, %arg9: memref<1x392xf32, #tpu.memory_space<vmem>>, %arg10: memref<392x8xf32, #tpu.memory_space<vmem>>, %arg11: memref<8x392xf32, #tpu.memory_space<vmem>>, %arg12: memref<1x8xf32, #tpu.memory_space<vmem>>, %arg13: memref<1x8xf32, #tpu.memory_space<vmem>>, %arg14: memref<392x128xf32, #tpu.memory_space<vmem>>, %arg15: memref<1x128xf32, #tpu.memory_space<vmem>>, %arg16: memref<2x128xf32, #tpu.memory_space<vmem>>) attributes {dimension_semantics = [#tpu.dimension_semantics<parallel>], iteration_bounds = array<i64: 1>, scalar_prefetch = 0 : i64, scratch_operands = 0 : i64, tpu.core_type = #tpu.core_type<tc>, window_params = [{transform_indices = @transform_0, window_bounds = array<i64: 2, 1024>}, {pipeline_mode = #tpu.pipeline_mode<synchronous>, transform_indices = @transform_1, window_bounds = array<i64: 1024, 1568>}, {pipeline_mode = #tpu.pipeline_mode<synchronous>, transform_indices = @transform_2, window_bounds = array<i64: 1, 1568>}, {pipeline_mode = #tpu.pipeline_mode<synchronous>, transform_indices = @transform_3, window_bounds = array<i64: 1568, 8>}, {pipeline_mode = #tpu.pipeline_mode<synchronous>, transform_indices = @transform_4, window_bounds = array<i64: 8, 1568>}, {pipeline_mode = #tpu.pipeline_mode<synchronous>, transform_indices = @transform_5, window_bounds = array<i64: 1, 8>}, {pipeline_mode = #tpu.pipeline_mode<synchronous>, transform_indices = @transform_6, window_bounds = array<i64: 1, 8>}, {pipeline_mode = #tpu.pipeline_mode<synchronous>, transform_indices = @transform_7, window_bounds = array<i64: 1568, 392>}, {pipeline_mode = #tpu.pipeline_mode<synchronous>, transform_indices = @transform_8, window_bounds = array<i64: 1, 392>}, {pipeline_mode = #tpu.pipeline_mode<synchronous>, transform_indices = @transform_9, window_bounds = array<i64: 392, 8>}, {pipeline_mode = #tpu.pipeline_mode<synchronous>, transform_indices = @transform_10, window_bounds = array<i64: 8, 392>}, {pipeline_mode = #tpu.pipeline_mode<synchronous>, transform_indices = @transform_11, window_bounds = array<i64: 1, 8>}, {pipeline_mode = #tpu.pipeline_mode<synchronous>, transform_indices = @transform_12, window_bounds = array<i64: 1, 8>}, {pipeline_mode = #tpu.pipeline_mode<synchronous>, transform_indices = @transform_13, window_bounds = array<i64: 392, 128>}, {pipeline_mode = #tpu.pipeline_mode<synchronous>, transform_indices = @transform_14, window_bounds = array<i64: 1, 128>}, {transform_indices = @transform_15, window_bounds = array<i64: 2, 128>}]} {
    %c0 = arith.constant 0 : index
    %c0_0 = arith.constant 0 : index
    %0 = vector.load %arg1[%c0, %c0_0] : memref<2x1024xf32, #tpu.memory_space<vmem>>, vector<2x1024xf32>
    %c0_1 = arith.constant 0 : index
    %c0_2 = arith.constant 0 : index
    %1 = vector.load %arg2[%c0_1, %c0_2] : memref<1024x1568xf32, #tpu.memory_space<vmem>>, vector<1024x1568xf32>
    %cst = arith.constant dense<0.000000e+00> : vector<2x1568xf32>
    %2 = tpu.matmul %0, %1, %cst {dimension_numbers = #tpu.dot_dimension_numbers<[1], [0], [0], [1], [0, 0, 1, 1], [], []>} : vector<2x1024xf32>, vector<1024x1568xf32>, vector<2x1568xf32> -> vector<2x1568xf32>
    %c0_3 = arith.constant 0 : index
    %c0_4 = arith.constant 0 : index
    %3 = vector.load %arg3[%c0_3, %c0_4] : memref<1x1568xf32, #tpu.memory_space<vmem>>, vector<1x1568xf32>
    %4 = vector.broadcast %3 : vector<1x1568xf32> to vector<2x1568xf32>
    %5 = arith.addf %2, %4 : vector<2x1568xf32>
    %c0_5 = arith.constant 0 : index
    %c0_6 = arith.constant 0 : index
    %6 = vector.load %arg4[%c0_5, %c0_6] : memref<1568x8xf32, #tpu.memory_space<vmem>>, vector<1568x8xf32>
    %cst_7 = arith.constant dense<0.000000e+00> : vector<2x8xf32>
    %7 = tpu.matmul %5, %6, %cst_7 {dimension_numbers = #tpu.dot_dimension_numbers<[1], [0], [0], [1], [0, 0, 1, 1], [], []>} : vector<2x1568xf32>, vector<1568x8xf32>, vector<2x8xf32> -> vector<2x8xf32>
    %8 = arith.mulf %5, %5 : vector<2x1568xf32>
    %c0_8 = arith.constant 0 : index
    %c0_9 = arith.constant 0 : index
    %9 = vector.load %arg4[%c0_8, %c0_9] : memref<1568x8xf32, #tpu.memory_space<vmem>>, vector<1568x8xf32>
    %cst_10 = arith.constant dense<0.000000e+00> : vector<2x8xf32>
    %10 = tpu.matmul %8, %9, %cst_10 {dimension_numbers = #tpu.dot_dimension_numbers<[1], [0], [0], [1], [0, 0, 1, 1], [], []>} : vector<2x1568xf32>, vector<1568x8xf32>, vector<2x8xf32> -> vector<2x8xf32>
    %11 = arith.mulf %7, %7 : vector<2x8xf32>
    %12 = arith.subf %10, %11 : vector<2x8xf32>
    %c0_11 = arith.constant 0 : index
    %c0_12 = arith.constant 0 : index
    %13 = vector.load %arg6[%c0_11, %c0_12] : memref<1x8xf32, #tpu.memory_space<vmem>>, vector<1x8xf32>
    %cst_13 = arith.constant 9.99999974E-6 : f32
    %14 = vector.broadcast %cst_13 : f32 to vector<2x8xf32>
    %15 = arith.addf %12, %14 : vector<2x8xf32>
    %16 = math.rsqrt %15 : vector<2x8xf32>
    %17 = vector.broadcast %13 : vector<1x8xf32> to vector<2x8xf32>
    %18 = arith.mulf %17, %16 : vector<2x8xf32>
    %c0_14 = arith.constant 0 : index
    %c0_15 = arith.constant 0 : index
    %19 = vector.load %arg7[%c0_14, %c0_15] : memref<1x8xf32, #tpu.memory_space<vmem>>, vector<1x8xf32>
    %20 = arith.mulf %7, %18 : vector<2x8xf32>
    %21 = vector.broadcast %19 : vector<1x8xf32> to vector<2x8xf32>
    %22 = arith.subf %21, %20 : vector<2x8xf32>
    %c0_16 = arith.constant 0 : index
    %c0_17 = arith.constant 0 : index
    %23 = vector.load %arg5[%c0_16, %c0_17] : memref<8x1568xf32, #tpu.memory_space<vmem>>, vector<8x1568xf32>
    %cst_18 = arith.constant dense<0.000000e+00> : vector<2x1568xf32>
    %24 = tpu.matmul %18, %23, %cst_18 {dimension_numbers = #tpu.dot_dimension_numbers<[1], [0], [0], [1], [0, 0, 1, 1], [], []>} : vector<2x8xf32>, vector<8x1568xf32>, vector<2x1568xf32> -> vector<2x1568xf32>
    %25 = arith.mulf %5, %24 : vector<2x1568xf32>
    %c0_19 = arith.constant 0 : index
    %c0_20 = arith.constant 0 : index
    %26 = vector.load %arg5[%c0_19, %c0_20] : memref<8x1568xf32, #tpu.memory_space<vmem>>, vector<8x1568xf32>
    %cst_21 = arith.constant dense<0.000000e+00> : vector<2x1568xf32>
    %27 = tpu.matmul %22, %26, %cst_21 {dimension_numbers = #tpu.dot_dimension_numbers<[1], [0], [0], [1], [0, 0, 1, 1], [], []>} : vector<2x8xf32>, vector<8x1568xf32>, vector<2x1568xf32> -> vector<2x1568xf32>
    %28 = arith.addf %25, %27 : vector<2x1568xf32>
    %cst_22 = arith.constant 0.000000e+00 : f32
    %29 = vector.broadcast %cst_22 : f32 to vector<2x1568xf32>
    %30 = arith.maximumf %28, %29 : vector<2x1568xf32>
    %c0_23 = arith.constant 0 : index
    %c0_24 = arith.constant 0 : index
    %31 = vector.load %arg8[%c0_23, %c0_24] : memref<1568x392xf32, #tpu.memory_space<vmem>>, vector<1568x392xf32>
    %cst_25 = arith.constant dense<0.000000e+00> : vector<2x392xf32>
    %32 = tpu.matmul %30, %31, %cst_25 {dimension_numbers = #tpu.dot_dimension_numbers<[1], [0], [0], [1], [0, 0, 1, 1], [], []>} : vector<2x1568xf32>, vector<1568x392xf32>, vector<2x392xf32> -> vector<2x392xf32>
    %c0_26 = arith.constant 0 : index
    %c0_27 = arith.constant 0 : index
    %33 = vector.load %arg9[%c0_26, %c0_27] : memref<1x392xf32, #tpu.memory_space<vmem>>, vector<1x392xf32>
    %34 = vector.broadcast %33 : vector<1x392xf32> to vector<2x392xf32>
    %35 = arith.addf %32, %34 : vector<2x392xf32>
    %c0_28 = arith.constant 0 : index
    %c0_29 = arith.constant 0 : index
    %36 = vector.load %arg10[%c0_28, %c0_29] : memref<392x8xf32, #tpu.memory_space<vmem>>, vector<392x8xf32>
    %cst_30 = arith.constant dense<0.000000e+00> : vector<2x8xf32>
    %37 = tpu.matmul %35, %36, %cst_30 {dimension_numbers = #tpu.dot_dimension_numbers<[1], [0], [0], [1], [0, 0, 1, 1], [], []>} : vector<2x392xf32>, vector<392x8xf32>, vector<2x8xf32> -> vector<2x8xf32>
    %38 = arith.mulf %35, %35 : vector<2x392xf32>
    %c0_31 = arith.constant 0 : index
    %c0_32 = arith.constant 0 : index
    %39 = vector.load %arg10[%c0_31, %c0_32] : memref<392x8xf32, #tpu.memory_space<vmem>>, vector<392x8xf32>
    %cst_33 = arith.constant dense<0.000000e+00> : vector<2x8xf32>
    %40 = tpu.matmul %38, %39, %cst_33 {dimension_numbers = #tpu.dot_dimension_numbers<[1], [0], [0], [1], [0, 0, 1, 1], [], []>} : vector<2x392xf32>, vector<392x8xf32>, vector<2x8xf32> -> vector<2x8xf32>
    %41 = arith.mulf %37, %37 : vector<2x8xf32>
    %42 = arith.subf %40, %41 : vector<2x8xf32>
    %c0_34 = arith.constant 0 : index
    %c0_35 = arith.constant 0 : index
    %43 = vector.load %arg12[%c0_34, %c0_35] : memref<1x8xf32, #tpu.memory_space<vmem>>, vector<1x8xf32>
    %cst_36 = arith.constant 9.99999974E-6 : f32
    %44 = vector.broadcast %cst_36 : f32 to vector<2x8xf32>
    %45 = arith.addf %42, %44 : vector<2x8xf32>
    %46 = math.rsqrt %45 : vector<2x8xf32>
    %47 = vector.broadcast %43 : vector<1x8xf32> to vector<2x8xf32>
    %48 = arith.mulf %47, %46 : vector<2x8xf32>
    %c0_37 = arith.constant 0 : index
    %c0_38 = arith.constant 0 : index
    %49 = vector.load %arg13[%c0_37, %c0_38] : memref<1x8xf32, #tpu.memory_space<vmem>>, vector<1x8xf32>
    %50 = arith.mulf %37, %48 : vector<2x8xf32>
    %51 = vector.broadcast %49 : vector<1x8xf32> to vector<2x8xf32>
    %52 = arith.subf %51, %50 : vector<2x8xf32>
    %c0_39 = arith.constant 0 : index
    %c0_40 = arith.constant 0 : index
    %53 = vector.load %arg11[%c0_39, %c0_40] : memref<8x392xf32, #tpu.memory_space<vmem>>, vector<8x392xf32>
    %cst_41 = arith.constant dense<0.000000e+00> : vector<2x392xf32>
    %54 = tpu.matmul %48, %53, %cst_41 {dimension_numbers = #tpu.dot_dimension_numbers<[1], [0], [0], [1], [0, 0, 1, 1], [], []>} : vector<2x8xf32>, vector<8x392xf32>, vector<2x392xf32> -> vector<2x392xf32>
    %55 = arith.mulf %35, %54 : vector<2x392xf32>
    %c0_42 = arith.constant 0 : index
    %c0_43 = arith.constant 0 : index
    %56 = vector.load %arg11[%c0_42, %c0_43] : memref<8x392xf32, #tpu.memory_space<vmem>>, vector<8x392xf32>
    %cst_44 = arith.constant dense<0.000000e+00> : vector<2x392xf32>
    %57 = tpu.matmul %52, %56, %cst_44 {dimension_numbers = #tpu.dot_dimension_numbers<[1], [0], [0], [1], [0, 0, 1, 1], [], []>} : vector<2x8xf32>, vector<8x392xf32>, vector<2x392xf32> -> vector<2x392xf32>
    %58 = arith.addf %55, %57 : vector<2x392xf32>
    %cst_45 = arith.constant 0.000000e+00 : f32
    %59 = vector.broadcast %cst_45 : f32 to vector<2x392xf32>
    %60 = arith.maximumf %58, %59 : vector<2x392xf32>
    %c0_46 = arith.constant 0 : index
    %c0_47 = arith.constant 0 : index
    %61 = vector.load %arg14[%c0_46, %c0_47] : memref<392x128xf32, #tpu.memory_space<vmem>>, vector<392x128xf32>
    %cst_48 = arith.constant dense<0.000000e+00> : vector<2x128xf32>
    %62 = tpu.matmul %60, %61, %cst_48 {dimension_numbers = #tpu.dot_dimension_numbers<[1], [0], [0], [1], [0, 0, 1, 1], [], []>} : vector<2x392xf32>, vector<392x128xf32>, vector<2x128xf32> -> vector<2x128xf32>
    %c0_49 = arith.constant 0 : index
    %c0_50 = arith.constant 0 : index
    %63 = vector.load %arg15[%c0_49, %c0_50] : memref<1x128xf32, #tpu.memory_space<vmem>>, vector<1x128xf32>
    %64 = vector.broadcast %63 : vector<1x128xf32> to vector<2x128xf32>
    %65 = arith.addf %62, %64 : vector<2x128xf32>
    %c0_51 = arith.constant 0 : index
    %c0_52 = arith.constant 0 : index
    %66 = vector.load %arg16[%c0_51, %c0_52] : memref<2x128xf32, #tpu.memory_space<vmem>>, vector<2x128xf32>
    tpu.vector_store %arg16[%c0_51, %c0_52], %65 {strides = array<i32>} : memref<2x128xf32, #tpu.memory_space<vmem>>, vector<2x128xf32>,
    return
  }
  func.func @transform_0(%arg0: i32) -> (i32, i32) {
    %c0_i32 = arith.constant 0 : i32
    %c0_i32_0 = arith.constant 0 : i32
    return %arg0, %c0_i32 : i32, i32
  }
  func.func @transform_1(%arg0: i32) -> (i32, i32) {
    %c0_i32 = arith.constant 0 : i32
    %c0_i32_0 = arith.constant 0 : i32
    %c0_i32_1 = arith.constant 0 : i32
    return %c0_i32, %c0_i32_0 : i32, i32
  }
  func.func @transform_2(%arg0: i32) -> (i32, i32) {
    %c0_i32 = arith.constant 0 : i32
    %c0_i32_0 = arith.constant 0 : i32
    %c0_i32_1 = arith.constant 0 : i32
    return %c0_i32, %c0_i32_0 : i32, i32
  }
  func.func @transform_3(%arg0: i32) -> (i32, i32) {
    %c0_i32 = arith.constant 0 : i32
    %c0_i32_0 = arith.constant 0 : i32
    %c0_i32_1 = arith.constant 0 : i32
    return %c0_i32, %c0_i32_0 : i32, i32
  }
  func.func @transform_4(%arg0: i32) -> (i32, i32) {
    %c0_i32 = arith.constant 0 : i32
    %c0_i32_0 = arith.constant 0 : i32
    %c0_i32_1 = arith.constant 0 : i32
    return %c0_i32, %c0_i32_0 : i32, i32
  }
  func.func @transform_5(%arg0: i32) -> (i32, i32) {
    %c0_i32 = arith.constant 0 : i32
    %c0_i32_0 = arith.constant 0 : i32
    %c0_i32_1 = arith.constant 0 : i32
    return %c0_i32, %c0_i32_0 : i32, i32
  }
  func.func @transform_6(%arg0: i32) -> (i32, i32) {
    %c0_i32 = arith.constant 0 : i32
    %c0_i32_0 = arith.constant 0 : i32
    %c0_i32_1 = arith.constant 0 : i32
    return %c0_i32, %c0_i32_0 : i32, i32
  }
  func.func @transform_7(%arg0: i32) -> (i32, i32) {
    %c0_i32 = arith.constant 0 : i32
    %c0_i32_0 = arith.constant 0 : i32
    %c0_i32_1 = arith.constant 0 : i32
    return %c0_i32, %c0_i32_0 : i32, i32
  }
  func.func @transform_8(%arg0: i32) -> (i32, i32) {
    %c0_i32 = arith.constant 0 : i32
    %c0_i32_0 = arith.constant 0 : i32
    %c0_i32_1 = arith.constant 0 : i32
    return %c0_i32, %c0_i32_0 : i32, i32
  }
  func.func @transform_9(%arg0: i32) -> (i32, i32) {
    %c0_i32 = arith.constant 0 : i32
    %c0_i32_0 = arith.constant 0 : i32
    %c0_i32_1 = arith.constant 0 : i32
    return %c0_i32, %c0_i32_0 : i32, i32
  }
  func.func @transform_10(%arg0: i32) -> (i32, i32) {
    %c0_i32 = arith.constant 0 : i32
    %c0_i32_0 = arith.constant 0 : i32
    %c0_i32_1 = arith.constant 0 : i32
    return %c0_i32, %c0_i32_0 : i32, i32
  }
  func.func @transform_11(%arg0: i32) -> (i32, i32) {
    %c0_i32 = arith.constant 0 : i32
    %c0_i32_0 = arith.constant 0 : i32
    %c0_i32_1 = arith.constant 0 : i32
    return %c0_i32, %c0_i32_0 : i32, i32
  }
  func.func @transform_12(%arg0: i32) -> (i32, i32) {
    %c0_i32 = arith.constant 0 : i32
    %c0_i32_0 = arith.constant 0 : i32
    %c0_i32_1 = arith.constant 0 : i32
    return %c0_i32, %c0_i32_0 : i32, i32
  }
  func.func @transform_13(%arg0: i32) -> (i32, i32) {
    %c0_i32 = arith.constant 0 : i32
    %c0_i32_0 = arith.constant 0 : i32
    %c0_i32_1 = arith.constant 0 : i32
    return %c0_i32, %c0_i32_0 : i32, i32
  }
  func.func @transform_14(%arg0: i32) -> (i32, i32) {
    %c0_i32 = arith.constant 0 : i32
    %c0_i32_0 = arith.constant 0 : i32
    %c0_i32_1 = arith.constant 0 : i32
    return %c0_i32, %c0_i32_0 : i32, i32
  }
  func.func @transform_15(%arg0: i32) -> (i32, i32) {
    %c0_i32 = arith.constant 0 : i32
    %c0_i32_0 = arith.constant 0 : i32
    return %arg0, %c0_i32 : i32, i32
  }
}

</mosaic_0001>

<llo_original>
// kernel: conv_downsampler_forward.1
$region0: #{conv_downsampler_forward.1}
  #allocation0 [shape = 'u32[]', space=smem, size = 0x4, offset = 0x4, fixed_abs, tag = 'smem constant byte address 0x4 - core index']
  #allocation1 [shape = 'u32[144,128]{1,0:T(1,128)}', space=vmem, size = 0x12000, scoped, tag = 'internal scratch']
  %s0 = inlined_call_operand.vmem [shape: f32[2,1024], index: 0, kind: input, shape index: {}]
  %s1 = inlined_call_operand.vmem [shape: f32[1024,1568], index: 1, kind: input, shape index: {}]
  %s2 = inlined_call_operand.vmem [shape: f32[1,1568], index: 2, kind: input, shape index: {}]
  %s3 = inlined_call_operand.vmem [shape: f32[1568,8], index: 3, kind: input, shape index: {}]
  %s4 = inlined_call_operand.vmem [shape: f32[8,1568], index: 4, kind: input, shape index: {}]
  %s5 = inlined_call_operand.vmem [shape: f32[1,8], index: 5, kind: input, shape index: {}]
  %s6 = inlined_call_operand.vmem [shape: f32[1,8], index: 6, kind: input, shape index: {}]
  %s7 = inlined_call_operand.vmem [shape: f32[1568,392], index: 7, kind: input, shape index: {}]
  %s8 = inlined_call_operand.vmem [shape: f32[1,392], index: 8, kind: input, shape index: {}]
  %s9 = inlined_call_operand.vmem [shape: f32[392,8], index: 9, kind: input, shape index: {}]
  %s10 = inlined_call_operand.vmem [shape: f32[8,392], index: 10, kind: input, shape index: {}]
  %s11 = inlined_call_operand.vmem [shape: f32[1,8], index: 11, kind: input, shape index: {}]
  %s12 = inlined_call_operand.vmem [shape: f32[1,8], index: 12, kind: input, shape index: {}]
  %s13 = inlined_call_operand.vmem [shape: f32[392,128], index: 13, kind: input, shape index: {}]
  %s14 = inlined_call_operand.vmem [shape: f32[1,128], index: 14, kind: input, shape index: {}]
  %s15 = inlined_call_operand.vmem [shape: f32[2,128], index: 15, kind: output, shape index: {}]
  %s16 = sld [smem:[#allocation0]]
  $region70: #{conv_downsampler_forward.1} parent=0
    _
  %s18 = ssub.s32 1, %s16
  %s19 = scalar_select 0, %s18, %s16
  // Predicated region
  $region2: #{conv_downsampler_forward.1} parent=0 // pred_check
    _
  $region3: #{conv_downsampler_forward.1} parent=0 // pred_check_branch
    %21 = sbr.rel (0) target = $region5
  $region4: #{conv_downsampler_forward.1} parent=0 // pred_region
    _
  $region5: #{conv_downsampler_forward.1} parent=0 // pred_fallthru
    _
  // Predicated region
  $region6: #{conv_downsampler_forward.1} parent=0 // pred_check
    _
  $region7: #{conv_downsampler_forward.1} parent=0 // pred_check_branch
    %23 = sbr.rel (0) target = $region9
  $region8: #{conv_downsampler_forward.1} parent=0 // pred_region
    _
  $region9: #{conv_downsampler_forward.1} parent=0 // pred_fallthru
    _
  // Predicated region
  $region10: #{conv_downsampler_forward.1} parent=0 // pred_check
    _
  $region11: #{conv_downsampler_forward.1} parent=0 // pred_check_branch
    %25 = sbr.rel (0) target = $region13
  $region12: #{conv_downsampler_forward.1} parent=0 // pred_region
    _
  $region13: #{conv_downsampler_forward.1} parent=0 // pred_fallthru
    _
  // Predicated region
  $region14: #{conv_downsampler_forward.1} parent=0 // pred_check
    _
  $region15: #{conv_downsampler_forward.1} parent=0 // pred_check_branch
    %27 = sbr.rel (0) target = $region17
  $region16: #{conv_downsampler_forward.1} parent=0 // pred_region
    _
  $region17: #{conv_downsampler_forward.1} parent=0 // pred_fallthru
    _
  // Predicated region
  $region18: #{conv_downsampler_forward.1} parent=0 // pred_check
    _
  $region19: #{conv_downsampler_forward.1} parent=0 // pred_check_branch
    %29 = sbr.rel (0) target = $region21
  $region20: #{conv_downsampler_forward.1} parent=0 // pred_region
    _
  $region21: #{conv_downsampler_forward.1} parent=0 // pred_fallthru
    _
  // Predicated region
  $region22: #{conv_downsampler_forward.1} parent=0 // pred_check
    _
  $region23: #{conv_downsampler_forward.1} parent=0 // pred_check_branch
    %31 = sbr.rel (0) target = $region25
  $region24: #{conv_downsampler_forward.1} parent=0 // pred_region
    _
  $region25: #{conv_downsampler_forward.1} parent=0 // pred_fallthru
    _
  // Predicated region
  $region26: #{conv_downsampler_forward.1} parent=0 // pred_check
    _
  $region27: #{conv_downsampler_forward.1} parent=0 // pred_check_branch
    %33 = sbr.rel (0) target = $region29
  $region28: #{conv_downsampler_forward.1} parent=0 // pred_region
    _
  $region29: #{conv_downsampler_forward.1} parent=0 // pred_fallthru
    _
  // Predicated region
  $region30: #{conv_downsampler_forward.1} parent=0 // pred_check
    _
  $region31: #{conv_downsampler_forward.1} parent=0 // pred_check_branch
    %35 = sbr.rel (0) target = $region33
  $region32: #{conv_downsampler_forward.1} parent=0 // pred_region
    _
  $region33: #{conv_downsampler_forward.1} parent=0 // pred_fallthru
    _
  // Predicated region
  $region34: #{conv_downsampler_forward.1} parent=0 // pred_check
    _
  $region35: #{conv_downsampler_forward.1} parent=0 // pred_check_branch
    %37 = sbr.rel (0) target = $region37
  $region36: #{conv_downsampler_forward.1} parent=0 // pred_region
    _
  $region37: #{conv_downsampler_forward.1} parent=0 // pred_fallthru
    _
  // Predicated region
  $region38: #{conv_downsampler_forward.1} parent=0 // pred_check
    _
  $region39: #{conv_downsampler_forward.1} parent=0 // pred_check_branch
    %39 = sbr.rel (0) target = $region41
  $region40: #{conv_downsampler_forward.1} parent=0 // pred_region
    _
  $region41: #{conv_downsampler_forward.1} parent=0 // pred_fallthru
    _
  // Predicated region
  $region42: #{conv_downsampler_forward.1} parent=0 // pred_check
    _
  $region43: #{conv_downsampler_forward.1} parent=0 // pred_check_branch
    %41 = sbr.rel (0) target = $region45
  $region44: #{conv_downsampler_forward.1} parent=0 // pred_region
    _
  $region45: #{conv_downsampler_forward.1} parent=0 // pred_fallthru
    _
  // Predicated region
  $region46: #{conv_downsampler_forward.1} parent=0 // pred_check
    _
  $region47: #{conv_downsampler_forward.1} parent=0 // pred_check_branch
    %43 = sbr.rel (0) target = $region49
  $region48: #{conv_downsampler_forward.1} parent=0 // pred_region
    _
  $region49: #{conv_downsampler_forward.1} parent=0 // pred_fallthru
    _
  // Predicated region
  $region50: #{conv_downsampler_forward.1} parent=0 // pred_check
    _
  $region51: #{conv_downsampler_forward.1} parent=0 // pred_check_branch
    %45 = sbr.rel (0) target = $region53
  $region52: #{conv_downsampler_forward.1} parent=0 // pred_region
    _
  $region53: #{conv_downsampler_forward.1} parent=0 // pred_fallthru
    _
  // Predicated region
  $region54: #{conv_downsampler_forward.1} parent=0 // pred_check
    _
  $region55: #{conv_downsampler_forward.1} parent=0 // pred_check_branch
    %47 = sbr.rel (0) target = $region57
  $region56: #{conv_downsampler_forward.1} parent=0 // pred_region
    _
  $region57: #{conv_downsampler_forward.1} parent=0 // pred_fallthru
    _
  // Predicated region
  $region58: #{conv_downsampler_forward.1} parent=0 // pred_check
    _
  $region59: #{conv_downsampler_forward.1} parent=0 // pred_check_branch
    %49 = sbr.rel (0) target = $region61
  $region60: #{conv_downsampler_forward.1} parent=0 // pred_region
    _
  $region61: #{conv_downsampler_forward.1} parent=0 // pred_fallthru
    _
  %v50 = vld [vmem:[%s0] sm:$0xff]
  %v51 = vld [vmem:[%s0 + $0x8] sm:$0xff]
  %v52 = vld [vmem:[%s1] sm:$0xff]
  %v53 = vld [vmem:[%s1 + $0x8] sm:$0xff]
  %v54 = vld [vmem:[%s1 + $0x10] sm:$0xff]
  %v55 = vld [vmem:[%s1 + $0x18] sm:$0xff]
  %v56 = vld [vmem:[%s1 + $0x20] sm:$0xff]
  %v57 = vld [vmem:[%s1 + $0x28] sm:$0xff]
  %v58 = vld [vmem:[%s1 + $0x30] sm:$0xff]
  %v59 = vld [vmem:[%s1 + $0x38] sm:$0xff]
  %v60 = vld [vmem:[%s1 + $0x40] sm:$0xff]
  %v61 = vld [vmem:[%s1 + $0x48] sm:$0xff]
  %v62 = vld [vmem:[%s1 + $0x50] sm:$0xff]
  %v63 = vld [vmem:[%s1 + $0x58] sm:$0xff]
  %v64 = vld [vmem:[%s1 + $0x60] sm:$0xff]
  %v65 = vld [vmem:[%s1 + $0x68] sm:$0xff]
  %v66 = vld [vmem:[%s1 + $0x70] sm:$0xff]
  %v67 = vld [vmem:[%s1 + $0x78] sm:$0xff]
  %v68 = vld [vmem:[%s1 + $0x80] sm:$0xff]
  %v69 = vld [vmem:[%s1 + $0x88] sm:$0xff]
  %v70 = vld [vmem:[%s1 + $0x90] sm:$0xff]
  %v71 = vld [vmem:[%s1 + $0x98] sm:$0xff]
  %v72 = vld [vmem:[%s1 + $0xa0] sm:$0xff]
  %v73 = vld [vmem:[%s1 + $0xa8] sm:$0xff]
  %v74 = vld [vmem:[%s1 + $0xb0] sm:$0xff]
  %v75 = vld [vmem:[%s1 + $0xb8] sm:$0xff]
  %v76 = vld [vmem:[%s1 + $0xc0] sm:$0xff]
  %v77 = vld [vmem:[%s1 + $0xc8] sm:$0xff]
  %v78 = vld [vmem:[%s1 + $0xd0] sm:$0xff]
  %v79 = vld [vmem:[%s1 + $0xd8] sm:$0xff]
  %v80 = vld [vmem:[%s1 + $0xe0] sm:$0xff]
  %v81 = vld [vmem:[%s1 + $0xe8] sm:$0xff]
  %v82 = vld [vmem:[%s1 + $0xf0] sm:$0xff]
  %v83 = vld [vmem:[%s1 + $0xf8] sm:$0xff]
  %v84 = vld [vmem:[%s1 + $0x100] sm:$0xff]
  %v85 = vld [vmem:[%s1 + $0x108] sm:$0xff]
  %v86 = vld [vmem:[%s1 + $0x110] sm:$0xff]
  %v87 = vld [vmem:[%s1 + $0x118] sm:$0xff]
  %v88 = vld [vmem:[%s1 + $0x120] sm:$0xff]
  %v89 = vld [vmem:[%s1 + $0x128] sm:$0xff]
  %v90 = vld [vmem:[%s1 + $0x130] sm:$0xff]
  %v91 = vld [vmem:[%s1 + $0x138] sm:$0xff]
  %v92 = vld [vmem:[%s1 + $0x140] sm:$0xff]
  %v93 = vld [vmem:[%s1 + $0x148] sm:$0xff]
  %v94 = vld [vmem:[%s1 + $0x150] sm:$0xff]
  %v95 = vld [vmem:[%s1 + $0x158] sm:$0xff]
  %v96 = vld [vmem:[%s1 + $0x160] sm:$0xff]
  %v97 = vld [vmem:[%s1 + $0x168] sm:$0xff]
  %v98 = vld [vmem:[%s1 + $0x170] sm:$0xff]
  %v99 = vld [vmem:[%s1 + $0x178] sm:$0xff]
  %v100 = vld [vmem:[%s1 + $0x180] sm:$0xff]
  %v101 = vld [vmem:[%s1 + $0x188] sm:$0xff]
  %v102 = vld [vmem:[%s1 + $0x190] sm:$0xff]
  %v103 = vld [vmem:[%s1 + $0x198] sm:$0xff]
  %v104 = vld [vmem:[%s1 + $0x1a0] sm:$0xff]
  %v105 = vld [vmem:[%s1 + $0x1a8] sm:$0xff]
  %v106 = vld [vmem:[%s1 + $0x1b0] sm:$0xff]
  %v107 = vld [vmem:[%s1 + $0x1b8] sm:$0xff]
  %v108 = vld [vmem:[%s1 + $0x1c0] sm:$0xff]
  %v109 = vld [vmem:[%s1 + $0x1c8] sm:$0xff]
  %v110 = vld [vmem:[%s1 + $0x1d0] sm:$0xff]
  %v111 = vld [vmem:[%s1 + $0x1d8] sm:$0xff]
  %v112 = vld [vmem:[%s1 + $0x1e0] sm:$0xff]
  %v113 = vld [vmem:[%s1 + $0x1e8] sm:$0xff]
  %v114 = vld [vmem:[%s1 + $0x1f0] sm:$0xff]
  %v115 = vld [vmem:[%s1 + $0x1f8] sm:$0xff]
  %v116 = vld [vmem:[%s1 + $0x200] sm:$0xff]
  %v117 = vld [vmem:[%s1 + $0x208] sm:$0xff]
  %v118 = vld [vmem:[%s1 + $0x210] sm:$0xff]
  %v119 = vld [vmem:[%s1 + $0x218] sm:$0xff]
  %v120 = vld [vmem:[%s1 + $0x220] sm:$0xff]
  %v121 = vld [vmem:[%s1 + $0x228] sm:$0xff]
  %v122 = vld [vmem:[%s1 + $0x230] sm:$0xff]
  %v123 = vld [vmem:[%s1 + $0x238] sm:$0xff]
  %v124 = vld [vmem:[%s1 + $0x240] sm:$0xff]
  %v125 = vld [vmem:[%s1 + $0x248] sm:$0xff]
  %v126 = vld [vmem:[%s1 + $0x250] sm:$0xff]
  %v127 = vld [vmem:[%s1 + $0x258] sm:$0xff]
  %v128 = vld [vmem:[%s1 + $0x260] sm:$0xff]
  %v129 = vld [vmem:[%s1 + $0x268] sm:$0xff]
  %v130 = vld [vmem:[%s1 + $0x270] sm:$0xff]
  %v131 = vld [vmem:[%s1 + $0x278] sm:$0xff]
  %v132 = vld [vmem:[%s1 + $0x280] sm:$0xff]
  %v133 = vld [vmem:[%s1 + $0x288] sm:$0xff]
  %v134 = vld [vmem:[%s1 + $0x290] sm:$0xff]
  %v135 = vld [vmem:[%s1 + $0x298] sm:$0xff]
  %v136 = vld [vmem:[%s1 + $0x2a0] sm:$0xff]
  %v137 = vld [vmem:[%s1 + $0x2a8] sm:$0xff]
  %v138 = vld [vmem:[%s1 + $0x2b0] sm:$0xff]
  %v139 = vld [vmem:[%s1 + $0x2b8] sm:$0xff]
  %v140 = vld [vmem:[%s1 + $0x2c0] sm:$0xff]
  %v141 = vld [vmem:[%s1 + $0x2c8] sm:$0xff]
  %v142 = vld [vmem:[%s1 + $0x2d0] sm:$0xff]
  %v143 = vld [vmem:[%s1 + $0x2d8] sm:$0xff]
  %v144 = vld [vmem:[%s1 + $0x2e0] sm:$0xff]
  %v145 = vld [vmem:[%s1 + $0x2e8] sm:$0xff]
  %v146 = vld [vmem:[%s1 + $0x2f0] sm:$0xff]
  %v147 = vld [vmem:[%s1 + $0x2f8] sm:$0xff]
  %v148 = vld [vmem:[%s1 + $0x300] sm:$0xff]
  %v149 = vld [vmem:[%s1 + $0x308] sm:$0xff]
  %v150 = vld [vmem:[%s1 + $0x310] sm:$0xff]
  %v151 = vld [vmem:[%s1 + $0x318] sm:$0xff]
  %v152 = vld [vmem:[%s1 + $0x320] sm:$0xff]
  %v153 = vld [vmem:[%s1 + $0x328] sm:$0xff]
  %v154 = vld [vmem:[%s1 + $0x330] sm:$0xff]
  %v155 = vld [vmem:[%s1 + $0x338] sm:$0xff]
  %v156 = vld [vmem:[%s1 + $0x340] sm:$0xff]
  %v157 = vld [vmem:[%s1 + $0x348] sm:$0xff]
  %v158 = vld [vmem:[%s1 + $0x350] sm:$0xff]
  %v159 = vld [vmem:[%s1 + $0x358] sm:$0xff]
  %v160 = vld [vmem:[%s1 + $0x360] sm:$0xff]
  %v161 = vld [vmem:[%s1 + $0x368] sm:$0xff]
  %v162 = vld [vmem:[%s1 + $0x370] sm:$0xff]
  %v163 = vld [vmem:[%s1 + $0x378] sm:$0xff]
  %v164 = vld [vmem:[%s1 + $0x380] sm:$0xff]
  %v165 = vld [vmem:[%s1 + $0x388] sm:$0xff]
  %v166 = vld [vmem:[%s1 + $0x390] sm:$0xff]
  %v167 = vld [vmem:[%s1 + $0x398] sm:$0xff]
  %v168 = vld [vmem:[%s1 + $0x3a0] sm:$0xff]
  %v169 = vld [vmem:[%s1 + $0x3a8] sm:$0xff]
  %v170 = vld [vmem:[%s1 + $0x3b0] sm:$0xff]
  %v171 = vld [vmem:[%s1 + $0x3b8] sm:$0xff]
  %v172 = vld [vmem:[%s1 + $0x3c0] sm:$0xff]
  %v173 = vld [vmem:[%s1 + $0x3c8] sm:$0xff]
  %v174 = vld [vmem:[%s1 + $0x3d0] sm:$0xff]
  %v175 = vld [vmem:[%s1 + $0x3d8] sm:$0xff]
  %v176 = vld [vmem:[%s1 + $0x3e0] sm:$0xff]
  %v177 = vld [vmem:[%s1 + $0x3e8] sm:$0xff]
  %v178 = vld [vmem:[%s1 + $0x3f0] sm:$0xff]
  %v179 = vld [vmem:[%s1 + $0x3f8] sm:$0xff]
  %v180 = vld [vmem:[%s1 + $0x400] sm:$0xff]
  %v181 = vld [vmem:[%s1 + $0x408] sm:$0xff]
  %v182 = vld [vmem:[%s1 + $0x410] sm:$0xff]
  %v183 = vld [vmem:[%s1 + $0x418] sm:$0xff]
  %v184 = vld [vmem:[%s1 + $0x420] sm:$0xff]
  %v185 = vld [vmem:[%s1 + $0x428] sm:$0xff]
  %v186 = vld [vmem:[%s1 + $0x430] sm:$0xff]
  %v187 = vld [vmem:[%s1 + $0x438] sm:$0xff]
  %v188 = vld [vmem:[%s1 + $0x440] sm:$0xff]
  %v189 = vld [vmem:[%s1 + $0x448] sm:$0xff]
  %v190 = vld [vmem:[%s1 + $0x450] sm:$0xff]
  %v191 = vld [vmem:[%s1 + $0x458] sm:$0xff]
  %v192 = vld [vmem:[%s1 + $0x460] sm:$0xff]
  %v193 = vld [vmem:[%s1 + $0x468] sm:$0xff]
  %v194 = vld [vmem:[%s1 + $0x470] sm:$0xff]
  %v195 = vld [vmem:[%s1 + $0x478] sm:$0xff]
  %v196 = vld [vmem:[%s1 + $0x480] sm:$0xff]
  %v197 = vld [vmem:[%s1 + $0x488] sm:$0xff]
  %v198 = vld [vmem:[%s1 + $0x490] sm:$0xff]
  %v199 = vld [vmem:[%s1 + $0x498] sm:$0xff]
  %v200 = vld [vmem:[%s1 + $0x4a0] sm:$0xff]
  %v201 = vld [vmem:[%s1 + $0x4a8] sm:$0xff]
  %v202 = vld [vmem:[%s1 + $0x4b0] sm:$0xff]
  %v203 = vld [vmem:[%s1 + $0x4b8] sm:$0xff]
  %v204 = vld [vmem:[%s1 + $0x4c0] sm:$0xff]
  %v205 = vld [vmem:[%s1 + $0x4c8] sm:$0xff]
  %v206 = vld [vmem:[%s1 + $0x4d0] sm:$0xff]
  %v207 = vld [vmem:[%s1 + $0x4d8] sm:$0xff]
  %v208 = vld [vmem:[%s1 + $0x4e0] sm:$0xff]
  %v209 = vld [vmem:[%s1 + $0x4e8] sm:$0xff]
  %v210 = vld [vmem:[%s1 + $0x4f0] sm:$0xff]
  %v211 = vld [vmem:[%s1 + $0x4f8] sm:$0xff]
  %v212 = vld [vmem:[%s1 + $0x500] sm:$0xff]
  %v213 = vld [vmem:[%s1 + $0x508] sm:$0xff]
  %v214 = vld [vmem:[%s1 + $0x510] sm:$0xff]
  %v215 = vld [vmem:[%s1 + $0x518] sm:$0xff]
  %v216 = vld [vmem:[%s1 + $0x520] sm:$0xff]
  %v217 = vld [vmem:[%s1 + $0x528] sm:$0xff]
  %v218 = vld [vmem:[%s1 + $0x530] sm:$0xff]
  %v219 = vld [vmem:[%s1 + $0x538] sm:$0xff]
  %v220 = vld [vmem:[%s1 + $0x540] sm:$0xff]
  %v221 = vld [vmem:[%s1 + $0x548] sm:$0xff]
  %v222 = vld [vmem:[%s1 + $0x550] sm:$0xff]
  %v223 = vld [vmem:[%s1 + $0x558] sm:$0xff]
  %v224 = vld [vmem:[%s1 + $0x560] sm:$0xff]
  %v225 = vld [vmem:[%s1 + $0x568] sm:$0xff]
  %v226 = vld [vmem:[%s1 + $0x570] sm:$0xff]
  %v227 = vld [vmem:[%s1 + $0x578] sm:$0xff]
  %v228 = vld [vmem:[%s1 + $0x580] sm:$0xff]
  %v229 = vld [vmem:[%s1 + $0x588] sm:$0xff]
  %v230 = vld [vmem:[%s1 + $0x590] sm:$0xff]
  %v231 = vld [vmem:[%s1 + $0x598] sm:$0xff]
  %v232 = vld [vmem:[%s1 + $0x5a0] sm:$0xff]
  %v233 = vld [vmem:[%s1 + $0x5a8] sm:$0xff]
  %v234 = vld [vmem:[%s1 + $0x5b0] sm:$0xff]
  %v235 = vld [vmem:[%s1 + $0x5b8] sm:$0xff]
  %v236 = vld [vmem:[%s1 + $0x5c0] sm:$0xff]
  %v237 = vld [vmem:[%s1 + $0x5c8] sm:$0xff]
  %v238 = vld [vmem:[%s1 + $0x5d0] sm:$0xff]
  %v239 = vld [vmem:[%s1 + $0x5d8] sm:$0xff]
  %v240 = vld [vmem:[%s1 + $0x5e0] sm:$0xff]
  %v241 = vld [vmem:[%s1 + $0x5e8] sm:$0xff]
  %v242 = vld [vmem:[%s1 + $0x5f0] sm:$0xff]
  %v243 = vld [vmem:[%s1 + $0x5f8] sm:$0xff]
  %v244 = vld [vmem:[%s1 + $0x600] sm:$0xff]
  %v245 = vld [vmem:[%s1 + $0x608] sm:$0xff]
  %v246 = vld [vmem:[%s1 + $0x610] sm:$0xff]
  %v247 = vld [vmem:[%s1 + $0x618] sm:$0xff]
  %v248 = vld [vmem:[%s1 + $0x620] sm:$0xff]
  %v249 = vld [vmem:[%s1 + $0x628] sm:$0xff]
  %v250 = vld [vmem:[%s1 + $0x630] sm:$0xff]
  %v251 = vld [vmem:[%s1 + $0x638] sm:$0xff]
  %v252 = vld [vmem:[%s1 + $0x640] sm:$0xff]
  %v253 = vld [vmem:[%s1 + $0x648] sm:$0xff]
  %v254 = vld [vmem:[%s1 + $0x650] sm:$0xff]
  %v255 = vld [vmem:[%s1 + $0x658] sm:$0xff]
  %v256 = vld [vmem:[%s1 + $0x660] sm:$0xff]
  %v257 = vld [vmem:[%s1 + $0x668] sm:$0xff]
  %v258 = vld [vmem:[%s1 + $0x670] sm:$0xff]
  %v259 = vld [vmem:[%s1 + $0x678] sm:$0xff]
  %v260 = vld [vmem:[%s1 + $0x680] sm:$0xff]
  %v261 = vld [vmem:[%s1 + $0x688] sm:$0xff]
  %v262 = vld [vmem:[%s1 + $0x690] sm:$0xff]
  %v263 = vld [vmem:[%s1 + $0x698] sm:$0xff]
  %v264 = vld [vmem:[%s1 + $0x6a0] sm:$0xff]
  %v265 = vld [vmem:[%s1 + $0x6a8] sm:$0xff]
  %v266 = vld [vmem:[%s1 + $0x6b0] sm:$0xff]
  %v267 = vld [vmem:[%s1 + $0x6b8] sm:$0xff]
  %v268 = vld [vmem:[%s1 + $0x6c0] sm:$0xff]
  %v269 = vld [vmem:[%s1 + $0x6c8] sm:$0xff]
  %v270 = vld [vmem:[%s1 + $0x6d0] sm:$0xff]
  %v271 = vld [vmem:[%s1 + $0x6d8] sm:$0xff]
  %v272 = vld [vmem:[%s1 + $0x6e0] sm:$0xff]
  %v273 = vld [vmem:[%s1 + $0x6e8] sm:$0xff]
  %v274 = vld [vmem:[%s1 + $0x6f0] sm:$0xff]
  %v275 = vld [vmem:[%s1 + $0x6f8] sm:$0xff]
  %v276 = vld [vmem:[%s1 + $0x700] sm:$0xff]
  %v277 = vld [vmem:[%s1 + $0x708] sm:$0xff]
  %v278 = vld [vmem:[%s1 + $0x710] sm:$0xff]
  %v279 = vld [vmem:[%s1 + $0x718] sm:$0xff]
  %v280 = vld [vmem:[%s1 + $0x720] sm:$0xff]
  %v281 = vld [vmem:[%s1 + $0x728] sm:$0xff]
  %v282 = vld [vmem:[%s1 + $0x730] sm:$0xff]
  %v283 = vld [vmem:[%s1 + $0x738] sm:$0xff]
  %v284 = vld [vmem:[%s1 + $0x740] sm:$0xff]
  %v285 = vld [vmem:[%s1 + $0x748] sm:$0xff]
  %v286 = vld [vmem:[%s1 + $0x750] sm:$0xff]
  %v287 = vld [vmem:[%s1 + $0x758] sm:$0xff]
  %v288 = vld [vmem:[%s1 + $0x760] sm:$0xff]
  %v289 = vld [vmem:[%s1 + $0x768] sm:$0xff]
  %v290 = vld [vmem:[%s1 + $0x770] sm:$0xff]
  %v291 = vld [vmem:[%s1 + $0x778] sm:$0xff]
  %v292 = vld [vmem:[%s1 + $0x780] sm:$0xff]
  %v293 = vld [vmem:[%s1 + $0x788] sm:$0xff]
  %v294 = vld [vmem:[%s1 + $0x790] sm:$0xff]
  %v295 = vld [vmem:[%s1 + $0x798] sm:$0xff]
  %v296 = vld [vmem:[%s1 + $0x7a0] sm:$0xff]
  %v297 = vld [vmem:[%s1 + $0x7a8] sm:$0xff]
  %v298 = vld [vmem:[%s1 + $0x7b0] sm:$0xff]
  %v299 = vld [vmem:[%s1 + $0x7b8] sm:$0xff]
  %v300 = vld [vmem:[%s1 + $0x7c0] sm:$0xff]
  %v301 = vld [vmem:[%s1 + $0x7c8] sm:$0xff]
  %v302 = vld [vmem:[%s1 + $0x7d0] sm:$0xff]
  %v303 = vld [vmem:[%s1 + $0x7d8] sm:$0xff]
  %v304 = vld [vmem:[%s1 + $0x7e0] sm:$0xff]
  %v305 = vld [vmem:[%s1 + $0x7e8] sm:$0xff]
  %v306 = vld [vmem:[%s1 + $0x7f0] sm:$0xff]
  %v307 = vld [vmem:[%s1 + $0x7f8] sm:$0xff]
  %v308 = vld [vmem:[%s1 + $0x800] sm:$0xff]
  %v309 = vld [vmem:[%s1 + $0x808] sm:$0xff]
  %v310 = vld [vmem:[%s1 + $0x810] sm:$0xff]
  %v311 = vld [vmem:[%s1 + $0x818] sm:$0xff]
  %v312 = vld [vmem:[%s1 + $0x820] sm:$0xff]
  %v313 = vld [vmem:[%s1 + $0x828] sm:$0xff]
  %v314 = vld [vmem:[%s1 + $0x830] sm:$0xff]
  %v315 = vld [vmem:[%s1 + $0x838] sm:$0xff]
  %v316 = vld [vmem:[%s1 + $0x840] sm:$0xff]
  %v317 = vld [vmem:[%s1 + $0x848] sm:$0xff]
  %v318 = vld [vmem:[%s1 + $0x850] sm:$0xff]
  %v319 = vld [vmem:[%s1 + $0x858] sm:$0xff]
  %v320 = vld [vmem:[%s1 + $0x860] sm:$0xff]
  %v321 = vld [vmem:[%s1 + $0x868] sm:$0xff]
  %v322 = vld [vmem:[%s1 + $0x870] sm:$0xff]
  %v323 = vld [vmem:[%s1 + $0x878] sm:$0xff]
  %v324 = vld [vmem:[%s1 + $0x880] sm:$0xff]
  %v325 = vld [vmem:[%s1 + $0x888] sm:$0xff]
  %v326 = vld [vmem:[%s1 + $0x890] sm:$0xff]
  %v327 = vld [vmem:[%s1 + $0x898] sm:$0xff]
  %v328 = vld [vmem:[%s1 + $0x8a0] sm:$0xff]
  %v329 = vld [vmem:[%s1 + $0x8a8] sm:$0xff]
  %v330 = vld [vmem:[%s1 + $0x8b0] sm:$0xff]
  %v331 = vld [vmem:[%s1 + $0x8b8] sm:$0xff]
  %v332 = vld [vmem:[%s1 + $0x8c0] sm:$0xff]
  %v333 = vld [vmem:[%s1 + $0x8c8] sm:$0xff]
  %v334 = vld [vmem:[%s1 + $0x8d0] sm:$0xff]
  %v335 = vld [vmem:[%s1 + $0x8d8] sm:$0xff]
  %v336 = vld [vmem:[%s1 + $0x8e0] sm:$0xff]
  %v337 = vld [vmem:[%s1 + $0x8e8] sm:$0xff]
  %v338 = vld [vmem:[%s1 + $0x8f0] sm:$0xff]
  %v339 = vld [vmem:[%s1 + $0x8f8] sm:$0xff]
  %v340 = vld [vmem:[%s1 + $0x900] sm:$0xff]
  %v341 = vld [vmem:[%s1 + $0x908] sm:$0xff]
  %v342 = vld [vmem:[%s1 + $0x910] sm:$0xff]
  %v343 = vld [vmem:[%s1 + $0x918] sm:$0xff]
  %v344 = vld [vmem:[%s1 + $0x920] sm:$0xff]
  %v345 = vld [vmem:[%s1 + $0x928] sm:$0xff]
  %v346 = vld [vmem:[%s1 + $0x930] sm:$0xff]
  %v347 = vld [vmem:[%s1 + $0x938] sm:$0xff]
  %v348 = vld [vmem:[%s1 + $0x940] sm:$0xff]
  %v349 = vld [vmem:[%s1 + $0x948] sm:$0xff]
  %v350 = vld [vmem:[%s1 + $0x950] sm:$0xff]
  %v351 = vld [vmem:[%s1 + $0x958] sm:$0xff]
  %v352 = vld [vmem:[%s1 + $0x960] sm:$0xff]
  %v353 = vld [vmem:[%s1 + $0x968] sm:$0xff]
  %v354 = vld [vmem:[%s1 + $0x970] sm:$0xff]
  %v355 = vld [vmem:[%s1 + $0x978] sm:$0xff]
  %v356 = vld [vmem:[%s1 + $0x980] sm:$0xff]
  %v357 = vld [vmem:[%s1 + $0x988] sm:$0xff]
  %v358 = vld [vmem:[%s1 + $0x990] sm:$0xff]
  %v359 = vld [vmem:[%s1 + $0x998] sm:$0xff]
  %v360 = vld [vmem:[%s1 + $0x9a0] sm:$0xff]
  %v361 = vld [vmem:[%s1 + $0x9a8] sm:$0xff]
  %v362 = vld [vmem:[%s1 + $0x9b0] sm:$0xff]
  %v363 = vld [vmem:[%s1 + $0x9b8] sm:$0xff]
  %v364 = vld [vmem:[%s1 + $0x9c0] sm:$0xff]
  %v365 = vld [vmem:[%s1 + $0x9c8] sm:$0xff]
  %v366 = vld [vmem:[%s1 + $0x9d0] sm:$0xff]
  %v367 = vld [vmem:[%s1 + $0x9d8] sm:$0xff]
  %v368 = vld [vmem:[%s1 + $0x9e0] sm:$0xff]
  %v369 = vld [vmem:[%s1 + $0x9e8] sm:$0xff]
  %v370 = vld [vmem:[%s1 + $0x9f0] sm:$0xff]
  %v371 = vld [vmem:[%s1 + $0x9f8] sm:$0xff]
  %v372 = vld [vmem:[%s1 + $0xa00] sm:$0xff]
  %v373 = vld [vmem:[%s1 + $0xa08] sm:$0xff]
  %v374 = vld [vmem:[%s1 + $0xa10] sm:$0xff]
  %v375 = vld [vmem:[%s1 + $0xa18] sm:$0xff]
  %v376 = vld [vmem:[%s1 + $0xa20] sm:$0xff]
  %v377 = vld [vmem:[%s1 + $0xa28] sm:$0xff]
  %v378 = vld [vmem:[%s1 + $0xa30] sm:$0xff]
  %v379 = vld [vmem:[%s1 + $0xa38] sm:$0xff]
  %v380 = vld [vmem:[%s1 + $0xa40] sm:$0xff]
  %v381 = vld [vmem:[%s1 + $0xa48] sm:$0xff]
  %v382 = vld [vmem:[%s1 + $0xa50] sm:$0xff]
  %v383 = vld [vmem:[%s1 + $0xa58] sm:$0xff]
  %v384 = vld [vmem:[%s1 + $0xa60] sm:$0xff]
  %v385 = vld [vmem:[%s1 + $0xa68] sm:$0xff]
  %v386 = vld [vmem:[%s1 + $0xa70] sm:$0xff]
  %v387 = vld [vmem:[%s1 + $0xa78] sm:$0xff]
  %v388 = vld [vmem:[%s1 + $0xa80] sm:$0xff]
  %v389 = vld [vmem:[%s1 + $0xa88] sm:$0xff]
  %v390 = vld [vmem:[%s1 + $0xa90] sm:$0xff]
  %v391 = vld [vmem:[%s1 + $0xa98] sm:$0xff]
  %v392 = vld [vmem:[%s1 + $0xaa0] sm:$0xff]
  %v393 = vld [vmem:[%s1 + $0xaa8] sm:$0xff]
  %v394 = vld [vmem:[%s1 + $0xab0] sm:$0xff]
  %v395 = vld [vmem:[%s1 + $0xab8] sm:$0xff]
  %v396 = vld [vmem:[%s1 + $0xac0] sm:$0xff]
  %v397 = vld [vmem:[%s1 + $0xac8] sm:$0xff]
  %v398 = vld [vmem:[%s1 + $0xad0] sm:$0xff]
  %v399 = vld [vmem:[%s1 + $0xad8] sm:$0xff]
  %v400 = vld [vmem:[%s1 + $0xae0] sm:$0xff]
  %v401 = vld [vmem:[%s1 + $0xae8] sm:$0xff]
  %v402 = vld [vmem:[%s1 + $0xaf0] sm:$0xff]
  %v403 = vld [vmem:[%s1 + $0xaf8] sm:$0xff]
  %v404 = vld [vmem:[%s1 + $0xb00] sm:$0xff]
  %v405 = vld [vmem:[%s1 + $0xb08] sm:$0xff]
  %v406 = vld [vmem:[%s1 + $0xb10] sm:$0xff]
  %v407 = vld [vmem:[%s1 + $0xb18] sm:$0xff]
  %v408 = vld [vmem:[%s1 + $0xb20] sm:$0xff]
  %v409 = vld [vmem:[%s1 + $0xb28] sm:$0xff]
  %v410 = vld [vmem:[%s1 + $0xb30] sm:$0xff]
  %v411 = vld [vmem:[%s1 + $0xb38] sm:$0xff]
  %v412 = vld [vmem:[%s1 + $0xb40] sm:$0xff]
  %v413 = vld [vmem:[%s1 + $0xb48] sm:$0xff]
  %v414 = vld [vmem:[%s1 + $0xb50] sm:$0xff]
  %v415 = vld [vmem:[%s1 + $0xb58] sm:$0xff]
  %v416 = vld [vmem:[%s1 + $0xb60] sm:$0xff]
  %v417 = vld [vmem:[%s1 + $0xb68] sm:$0xff]
  %v418 = vld [vmem:[%s1 + $0xb70] sm:$0xff]
  %v419 = vld [vmem:[%s1 + $0xb78] sm:$0xff]
  %v420 = vld [vmem:[%s1 + $0xb80] sm:$0xff]
  %v421 = vld [vmem:[%s1 + $0xb88] sm:$0xff]
  %v422 = vld [vmem:[%s1 + $0xb90] sm:$0xff]
  %v423 = vld [vmem:[%s1 + $0xb98] sm:$0xff]
  %v424 = vld [vmem:[%s1 + $0xba0] sm:$0xff]
  %v425 = vld [vmem:[%s1 + $0xba8] sm:$0xff]
  %v426 = vld [vmem:[%s1 + $0xbb0] sm:$0xff]
  %v427 = vld [vmem:[%s1 + $0xbb8] sm:$0xff]
  %v428 = vld [vmem:[%s1 + $0xbc0] sm:$0xff]
  %v429 = vld [vmem:[%s1 + $0xbc8] sm:$0xff]
  %v430 = vld [vmem:[%s1 + $0xbd0] sm:$0xff]
  %v431 = vld [vmem:[%s1 + $0xbd8] sm:$0xff]
  %v432 = vld [vmem:[%s1 + $0xbe0] sm:$0xff]
  %v433 = vld [vmem:[%s1 + $0xbe8] sm:$0xff]
  %v434 = vld [vmem:[%s1 + $0xbf0] sm:$0xff]
  %v435 = vld [vmem:[%s1 + $0xbf8] sm:$0xff]
  %v436 = vld [vmem:[%s1 + $0xc00] sm:$0xff]
  %v437 = vld [vmem:[%s1 + $0xc08] sm:$0xff]
  %v438 = vld [vmem:[%s1 + $0xc10] sm:$0xff]
  %v439 = vld [vmem:[%s1 + $0xc18] sm:$0xff]
  %v440 = vld [vmem:[%s1 + $0xc20] sm:$0xff]
  %v441 = vld [vmem:[%s1 + $0xc28] sm:$0xff]
  %v442 = vld [vmem:[%s1 + $0xc30] sm:$0xff]
  %v443 = vld [vmem:[%s1 + $0xc38] sm:$0xff]
  %v444 = vld [vmem:[%s1 + $0xc40] sm:$0xff]
  %v445 = vld [vmem:[%s1 + $0xc48] sm:$0xff]
  %v446 = vld [vmem:[%s1 + $0xc50] sm:$0xff]
  %v447 = vld [vmem:[%s1 + $0xc58] sm:$0xff]
  %v448 = vld [vmem:[%s1 + $0xc60] sm:$0xff]
  %v449 = vld [vmem:[%s1 + $0xc68] sm:$0xff]
  %v450 = vld [vmem:[%s1 + $0xc70] sm:$0xff]
  %v451 = vld [vmem:[%s1 + $0xc78] sm:$0xff]
  %v452 = vld [vmem:[%s1 + $0xc80] sm:$0xff]
  %v453 = vld [vmem:[%s1 + $0xc88] sm:$0xff]
  %v454 = vld [vmem:[%s1 + $0xc90] sm:$0xff]
  %v455 = vld [vmem:[%s1 + $0xc98] sm:$0xff]
  %v456 = vld [vmem:[%s1 + $0xca0] sm:$0xff]
  %v457 = vld [vmem:[%s1 + $0xca8] sm:$0xff]
  %v458 = vld [vmem:[%s1 + $0xcb0] sm:$0xff]
  %v459 = vld [vmem:[%s1 + $0xcb8] sm:$0xff]
  %v460 = vld [vmem:[%s1 + $0xcc0] sm:$0xff]
  %v461 = vld [vmem:[%s1 + $0xcc8] sm:$0xff]
  %v462 = vld [vmem:[%s1 + $0xcd0] sm:$0xff]
  %v463 = vld [vmem:[%s1 + $0xcd8] sm:$0xff]
  %v464 = vld [vmem:[%s1 + $0xce0] sm:$0xff]
  %v465 = vld [vmem:[%s1 + $0xce8] sm:$0xff]
  %v466 = vld [vmem:[%s1 + $0xcf0] sm:$0xff]
  %v467 = vld [vmem:[%s1 + $0xcf8] sm:$0xff]
  %v468 = vld [vmem:[%s1 + $0xd00] sm:$0xff]
  %v469 = vld [vmem:[%s1 + $0xd08] sm:$0xff]
  %v470 = vld [vmem:[%s1 + $0xd10] sm:$0xff]
  %v471 = vld [vmem:[%s1 + $0xd18] sm:$0xff]
  %v472 = vld [vmem:[%s1 + $0xd20] sm:$0xff]
  %v473 = vld [vmem:[%s1 + $0xd28] sm:$0xff]
  %v474 = vld [vmem:[%s1 + $0xd30] sm:$0xff]
  %v475 = vld [vmem:[%s1 + $0xd38] sm:$0xff]
  %v476 = vld [vmem:[%s1 + $0xd40] sm:$0xff]
  %v477 = vld [vmem:[%s1 + $0xd48] sm:$0xff]
  %v478 = vld [vmem:[%s1 + $0xd50] sm:$0xff]
  %v479 = vld [vmem:[%s1 + $0xd58] sm:$0xff]
  %v480 = vld [vmem:[%s1 + $0xd60] sm:$0xff]
  %v481 = vld [vmem:[%s1 + $0xd68] sm:$0xff]
  %v482 = vld [vmem:[%s1 + $0xd70] sm:$0xff]
  %v483 = vld [vmem:[%s1 + $0xd78] sm:$0xff]
  %v484 = vld [vmem:[%s1 + $0xd80] sm:$0xff]
  %v485 = vld [vmem:[%s1 + $0xd88] sm:$0xff]
  %v486 = vld [vmem:[%s1 + $0xd90] sm:$0xff]
  %v487 = vld [vmem:[%s1 + $0xd98] sm:$0xff]
  %v488 = vld [vmem:[%s1 + $0xda0] sm:$0xff]
  %v489 = vld [vmem:[%s1 + $0xda8] sm:$0xff]
  %v490 = vld [vmem:[%s1 + $0xdb0] sm:$0xff]
  %v491 = vld [vmem:[%s1 + $0xdb8] sm:$0xff]
  %v492 = vld [vmem:[%s1 + $0xdc0] sm:$0xff]
  %v493 = vld [vmem:[%s1 + $0xdc8] sm:$0xff]
  %v494 = vld [vmem:[%s1 + $0xdd0] sm:$0xff]
  %v495 = vld [vmem:[%s1 + $0xdd8] sm:$0xff]
  %v496 = vld [vmem:[%s1 + $0xde0] sm:$0xff]
  %v497 = vld [vmem:[%s1 + $0xde8] sm:$0xff]
  %v498 = vld [vmem:[%s1 + $0xdf0] sm:$0xff]
  %v499 = vld [vmem:[%s1 + $0xdf8] sm:$0xff]
  %v500 = vld [vmem:[%s1 + $0xe00] sm:$0xff]
  %v501 = vld [vmem:[%s1 + $0xe08] sm:$0xff]
  %v502 = vld [vmem:[%s1 + $0xe10] sm:$0xff]
  %v503 = vld [vmem:[%s1 + $0xe18] sm:$0xff]
  %v504 = vld [vmem:[%s1 + $0xe20] sm:$0xff]
  %v505 = vld [vmem:[%s1 + $0xe28] sm:$0xff]
  %v506 = vld [vmem:[%s1 + $0xe30] sm:$0xff]
  %v507 = vld [vmem:[%s1 + $0xe38] sm:$0xff]
  %v508 = vld [vmem:[%s1 + $0xe40] sm:$0xff]
  %v509 = vld [vmem:[%s1 + $0xe48] sm:$0xff]
  %v510 = vld [vmem:[%s1 + $0xe50] sm:$0xff]
  %v511 = vld [vmem:[%s1 + $0xe58] sm:$0xff]
  %v512 = vld [vmem:[%s1 + $0xe60] sm:$0xff]
  %v513 = vld [vmem:[%s1 + $0xe68] sm:$0xff]
  %v514 = vld [vmem:[%s1 + $0xe70] sm:$0xff]
  %v515 = vld [vmem:[%s1 + $0xe78] sm:$0xff]
  %v516 = vld [vmem:[%s1 + $0xe80] sm:$0xff]
  %v517 = vld [vmem:[%s1 + $0xe88] sm:$0xff]
  %v518 = vld [vmem:[%s1 + $0xe90] sm:$0xff]
  %v519 = vld [vmem:[%s1 + $0xe98] sm:$0xff]
  %v520 = vld [vmem:[%s1 + $0xea0] sm:$0xff]
  %v521 = vld [vmem:[%s1 + $0xea8] sm:$0xff]
  %v522 = vld [vmem:[%s1 + $0xeb0] sm:$0xff]
  %v523 = vld [vmem:[%s1 + $0xeb8] sm:$0xff]
  %v524 = vld [vmem:[%s1 + $0xec0] sm:$0xff]
  %v525 = vld [vmem:[%s1 + $0xec8] sm:$0xff]
  %v526 = vld [vmem:[%s1 + $0xed0] sm:$0xff]
  %v527 = vld [vmem:[%s1 + $0xed8] sm:$0xff]
  %v528 = vld [vmem:[%s1 + $0xee0] sm:$0xff]
  %v529 = vld [vmem:[%s1 + $0xee8] sm:$0xff]
  %v530 = vld [vmem:[%s1 + $0xef0] sm:$0xff]
  %v531 = vld [vmem:[%s1 + $0xef8] sm:$0xff]
  %v532 = vld [vmem:[%s1 + $0xf00] sm:$0xff]
  %v533 = vld [vmem:[%s1 + $0xf08] sm:$0xff]
  %v534 = vld [vmem:[%s1 + $0xf10] sm:$0xff]
  %v535 = vld [vmem:[%s1 + $0xf18] sm:$0xff]
  %v536 = vld [vmem:[%s1 + $0xf20] sm:$0xff]
  %v537 = vld [vmem:[%s1 + $0xf28] sm:$0xff]
  %v538 = vld [vmem:[%s1 + $0xf30] sm:$0xff]
  %v539 = vld [vmem:[%s1 + $0xf38] sm:$0xff]
  %v540 = vld [vmem:[%s1 + $0xf40] sm:$0xff]
  %v541 = vld [vmem:[%s1 + $0xf48] sm:$0xff]
  %v542 = vld [vmem:[%s1 + $0xf50] sm:$0xff]
  %v543 = vld [vmem:[%s1 + $0xf58] sm:$0xff]
  %v544 = vld [vmem:[%s1 + $0xf60] sm:$0xff]
  %v545 = vld [vmem:[%s1 + $0xf68] sm:$0xff]
  %v546 = vld [vmem:[%s1 + $0xf70] sm:$0xff]
  %v547 = vld [vmem:[%s1 + $0xf78] sm:$0xff]
  %v548 = vld [vmem:[%s1 + $0xf80] sm:$0xff]
  %v549 = vld [vmem:[%s1 + $0xf88] sm:$0xff]
  %v550 = vld [vmem:[%s1 + $0xf90] sm:$0xff]
  %v551 = vld [vmem:[%s1 + $0xf98] sm:$0xff]
  %v552 = vld [vmem:[%s1 + $0xfa0] sm:$0xff]
  %v553 = vld [vmem:[%s1 + $0xfa8] sm:$0xff]
  %v554 = vld [vmem:[%s1 + $0xfb0] sm:$0xff]
  %v555 = vld [vmem:[%s1 + $0xfb8] sm:$0xff]
  %v556 = vld [vmem:[%s1 + $0xfc0] sm:$0xff]
  %v557 = vld [vmem:[%s1 + $0xfc8] sm:$0xff]
  %v558 = vld [vmem:[%s1 + $0xfd0] sm:$0xff]
  %v559 = vld [vmem:[%s1 + $0xfd8] sm:$0xff]
  %v560 = vld [vmem:[%s1 + $0xfe0] sm:$0xff]
  %v561 = vld [vmem:[%s1 + $0xfe8] sm:$0xff]
  %v562 = vld [vmem:[%s1 + $0xff0] sm:$0xff]
  %v563 = vld [vmem:[%s1 + $0xff8] sm:$0xff]
  %v564 = vld [vmem:[%s1 + $0x1000] sm:$0xff]
  %v565 = vld [vmem:[%s1 + $0x1008] sm:$0xff]
  %v566 = vld [vmem:[%s1 + $0x1010] sm:$0xff]
  %v567 = vld [vmem:[%s1 + $0x1018] sm:$0xff]
  %v568 = vld [vmem:[%s1 + $0x1020] sm:$0xff]
  %v569 = vld [vmem:[%s1 + $0x1028] sm:$0xff]
  %v570 = vld [vmem:[%s1 + $0x1030] sm:$0xff]
  %v571 = vld [vmem:[%s1 + $0x1038] sm:$0xff]
  %v572 = vld [vmem:[%s1 + $0x1040] sm:$0xff]
  %v573 = vld [vmem:[%s1 + $0x1048] sm:$0xff]
  %v574 = vld [vmem:[%s1 + $0x1050] sm:$0xff]
  %v575 = vld [vmem:[%s1 + $0x1058] sm:$0xff]
  %v576 = vld [vmem:[%s1 + $0x1060] sm:$0xff]
  %v577 = vld [vmem:[%s1 + $0x1068] sm:$0xff]
  %v578 = vld [vmem:[%s1 + $0x1070] sm:$0xff]
  %v579 = vld [vmem:[%s1 + $0x1078] sm:$0xff]
  %v580 = vld [vmem:[%s1 + $0x1080] sm:$0xff]
  %v581 = vld [vmem:[%s1 + $0x1088] sm:$0xff]
  %v582 = vld [vmem:[%s1 + $0x1090] sm:$0xff]
  %v583 = vld [vmem:[%s1 + $0x1098] sm:$0xff]
  %v584 = vld [vmem:[%s1 + $0x10a0] sm:$0xff]
  %v585 = vld [vmem:[%s1 + $0x10a8] sm:$0xff]
  %v586 = vld [vmem:[%s1 + $0x10b0] sm:$0xff]
  %v587 = vld [vmem:[%s1 + $0x10b8] sm:$0xff]
  %v588 = vld [vmem:[%s1 + $0x10c0] sm:$0xff]
  %v589 = vld [vmem:[%s1 + $0x10c8] sm:$0xff]
  %v590 = vld [vmem:[%s1 + $0x10d0] sm:$0xff]
  %v591 = vld [vmem:[%s1 + $0x10d8] sm:$0xff]
  %v592 = vld [vmem:[%s1 + $0x10e0] sm:$0xff]
  %v593 = vld [vmem:[%s1 + $0x10e8] sm:$0xff]
  %v594 = vld [vmem:[%s1 + $0x10f0] sm:$0xff]
  %v595 = vld [vmem:[%s1 + $0x10f8] sm:$0xff]
  %v596 = vld [vmem:[%s1 + $0x1100] sm:$0xff]
  %v597 = vld [vmem:[%s1 + $0x1108] sm:$0xff]
  %v598 = vld [vmem:[%s1 + $0x1110] sm:$0xff]
  %v599 = vld [vmem:[%s1 + $0x1118] sm:$0xff]
  %v600 = vld [vmem:[%s1 + $0x1120] sm:$0xff]
  %v601 = vld [vmem:[%s1 + $0x1128] sm:$0xff]
  %v602 = vld [vmem:[%s1 + $0x1130] sm:$0xff]
  %v603 = vld [vmem:[%s1 + $0x1138] sm:$0xff]
  %v604 = vld [vmem:[%s1 + $0x1140] sm:$0xff]
  %v605 = vld [vmem:[%s1 + $0x1148] sm:$0xff]
  %v606 = vld [vmem:[%s1 + $0x1150] sm:$0xff]
  %v607 = vld [vmem:[%s1 + $0x1158] sm:$0xff]
  %v608 = vld [vmem:[%s1 + $0x1160] sm:$0xff]
  %v609 = vld [vmem:[%s1 + $0x1168] sm:$0xff]
  %v610 = vld [vmem:[%s1 + $0x1170] sm:$0xff]
  %v611 = vld [vmem:[%s1 + $0x1178] sm:$0xff]
  %v612 = vld [vmem:[%s1 + $0x1180] sm:$0xff]
  %v613 = vld [vmem:[%s1 + $0x1188] sm:$0xff]
  %v614 = vld [vmem:[%s1 + $0x1190] sm:$0xff]
  %v615 = vld [vmem:[%s1 + $0x1198] sm:$0xff]
  %v616 = vld [vmem:[%s1 + $0x11a0] sm:$0xff]
  %v617 = vld [vmem:[%s1 + $0x11a8] sm:$0xff]
  %v618 = vld [vmem:[%s1 + $0x11b0] sm:$0xff]
  %v619 = vld [vmem:[%s1 + $0x11b8] sm:$0xff]
  %v620 = vld [vmem:[%s1 + $0x11c0] sm:$0xff]
  %v621 = vld [vmem:[%s1 + $0x11c8] sm:$0xff]
  %v622 = vld [vmem:[%s1 + $0x11d0] sm:$0xff]
  %v623 = vld [vmem:[%s1 + $0x11d8] sm:$0xff]
  %v624 = vld [vmem:[%s1 + $0x11e0] sm:$0xff]
  %v625 = vld [vmem:[%s1 + $0x11e8] sm:$0xff]
  %v626 = vld [vmem:[%s1 + $0x11f0] sm:$0xff]
  %v627 = vld [vmem:[%s1 + $0x11f8] sm:$0xff]
  %v628 = vld [vmem:[%s1 + $0x1200] sm:$0xff]
  %v629 = vld [vmem:[%s1 + $0x1208] sm:$0xff]
  %v630 = vld [vmem:[%s1 + $0x1210] sm:$0xff]
  %v631 = vld [vmem:[%s1 + $0x1218] sm:$0xff]
  %v632 = vld [vmem:[%s1 + $0x1220] sm:$0xff]
  %v633 = vld [vmem:[%s1 + $0x1228] sm:$0xff]
  %v634 = vld [vmem:[%s1 + $0x1230] sm:$0xff]
  %v635 = vld [vmem:[%s1 + $0x1238] sm:$0xff]
  %v636 = vld [vmem:[%s1 + $0x1240] sm:$0xff]
  %v637 = vld [vmem:[%s1 + $0x1248] sm:$0xff]
  %v638 = vld [vmem:[%s1 + $0x1250] sm:$0xff]
  %v639 = vld [vmem:[%s1 + $0x1258] sm:$0xff]
  %v640 = vld [vmem:[%s1 + $0x1260] sm:$0xff]
  %v641 = vld [vmem:[%s1 + $0x1268] sm:$0xff]
  %v642 = vld [vmem:[%s1 + $0x1270] sm:$0xff]
  %v643 = vld [vmem:[%s1 + $0x1278] sm:$0xff]
  %v644 = vld [vmem:[%s1 + $0x1280] sm:$0xff]
  %v645 = vld [vmem:[%s1 + $0x1288] sm:$0xff]
  %v646 = vld [vmem:[%s1 + $0x1290] sm:$0xff]
  %v647 = vld [vmem:[%s1 + $0x1298] sm:$0xff]
  %v648 = vld [vmem:[%s1 + $0x12a0] sm:$0xff]
  %v649 = vld [vmem:[%s1 + $0x12a8] sm:$0xff]
  %v650 = vld [vmem:[%s1 + $0x12b0] sm:$0xff]
  %v651 = vld [vmem:[%s1 + $0x12b8] sm:$0xff]
  %v652 = vld [vmem:[%s1 + $0x12c0] sm:$0xff]
  %v653 = vld [vmem:[%s1 + $0x12c8] sm:$0xff]
  %v654 = vld [vmem:[%s1 + $0x12d0] sm:$0xff]
  %v655 = vld [vmem:[%s1 + $0x12d8] sm:$0xff]
  %v656 = vld [vmem:[%s1 + $0x12e0] sm:$0xff]
  %v657 = vld [vmem:[%s1 + $0x12e8] sm:$0xff]
  %v658 = vld [vmem:[%s1 + $0x12f0] sm:$0xff]
  %v659 = vld [vmem:[%s1 + $0x12f8] sm:$0xff]
  %v660 = vld [vmem:[%s1 + $0x1300] sm:$0xff]
  %v661 = vld [vmem:[%s1 + $0x1308] sm:$0xff]
  %v662 = vld [vmem:[%s1 + $0x1310] sm:$0xff]
  %v663 = vld [vmem:[%s1 + $0x1318] sm:$0xff]
  %v664 = vld [vmem:[%s1 + $0x1320] sm:$0xff]
  %v665 = vld [vmem:[%s1 + $0x1328] sm:$0xff]
  %v666 = vld [vmem:[%s1 + $0x1330] sm:$0xff]
  %v667 = vld [vmem:[%s1 + $0x1338] sm:$0xff]
  %v668 = vld [vmem:[%s1 + $0x1340] sm:$0xff]
  %v669 = vld [vmem:[%s1 + $0x1348] sm:$0xff]
  %v670 = vld [vmem:[%s1 + $0x1350] sm:$0xff]
  %v671 = vld [vmem:[%s1 + $0x1358] sm:$0xff]
  %v672 = vld [vmem:[%s1 + $0x1360] sm:$0xff]
  %v673 = vld [vmem:[%s1 + $0x1368] sm:$0xff]
  %v674 = vld [vmem:[%s1 + $0x1370] sm:$0xff]
  %v675 = vld [vmem:[%s1 + $0x1378] sm:$0xff]
  %v676 = vld [vmem:[%s1 + $0x1380] sm:$0xff]
  %v677 = vld [vmem:[%s1 + $0x1388] sm:$0xff]
  %v678 = vld [vmem:[%s1 + $0x1390] sm:$0xff]
  %v679 = vld [vmem:[%s1 + $0x1398] sm:$0xff]
  %v680 = vld [vmem:[%s1 + $0x13a0] sm:$0xff]
  %v681 = vld [vmem:[%s1 + $0x13a8] sm:$0xff]
  %v682 = vld [vmem:[%s1 + $0x13b0] sm:$0xff]
  %v683 = vld [vmem:[%s1 + $0x13b8] sm:$0xff]
  %v684 = vld [vmem:[%s1 + $0x13c0] sm:$0xff]
  %v685 = vld [vmem:[%s1 + $0x13c8] sm:$0xff]
  %v686 = vld [vmem:[%s1 + $0x13d0] sm:$0xff]
  %v687 = vld [vmem:[%s1 + $0x13d8] sm:$0xff]
  %v688 = vld [vmem:[%s1 + $0x13e0] sm:$0xff]
  %v689 = vld [vmem:[%s1 + $0x13e8] sm:$0xff]
  %v690 = vld [vmem:[%s1 + $0x13f0] sm:$0xff]
  %v691 = vld [vmem:[%s1 + $0x13f8] sm:$0xff]
  %v692 = vld [vmem:[%s1 + $0x1400] sm:$0xff]
  %v693 = vld [vmem:[%s1 + $0x1408] sm:$0xff]
  %v694 = vld [vmem:[%s1 + $0x1410] sm:$0xff]
  %v695 = vld [vmem:[%s1 + $0x1418] sm:$0xff]
  %v696 = vld [vmem:[%s1 + $0x1420] sm:$0xff]
  %v697 = vld [vmem:[%s1 + $0x1428] sm:$0xff]
  %v698 = vld [vmem:[%s1 + $0x1430] sm:$0xff]
  %v699 = vld [vmem:[%s1 + $0x1438] sm:$0xff]
  %v700 = vld [vmem:[%s1 + $0x1440] sm:$0xff]
  %v701 = vld [vmem:[%s1 + $0x1448] sm:$0xff]
  %v702 = vld [vmem:[%s1 + $0x1450] sm:$0xff]
  %v703 = vld [vmem:[%s1 + $0x1458] sm:$0xff]
  %v704 = vld [vmem:[%s1 + $0x1460] sm:$0xff]
  %v705 = vld [vmem:[%s1 + $0x1468] sm:$0xff]
  %v706 = vld [vmem:[%s1 + $0x1470] sm:$0xff]
  %v707 = vld [vmem:[%s1 + $0x1478] sm:$0xff]
  %v708 = vld [vmem:[%s1 + $0x1480] sm:$0xff]
  %v709 = vld [vmem:[%s1 + $0x1488] sm:$0xff]
  %v710 = vld [vmem:[%s1 + $0x1490] sm:$0xff]
  %v711 = vld [vmem:[%s1 + $0x1498] sm:$0xff]
  %v712 = vld [vmem:[%s1 + $0x14a0] sm:$0xff]
  %v713 = vld [vmem:[%s1 + $0x14a8] sm:$0xff]
  %v714 = vld [vmem:[%s1 + $0x14b0] sm:$0xff]
  %v715 = vld [vmem:[%s1 + $0x14b8] sm:$0xff]
  %v716 = vld [vmem:[%s1 + $0x14c0] sm:$0xff]
  %v717 = vld [vmem:[%s1 + $0x14c8] sm:$0xff]
  %v718 = vld [vmem:[%s1 + $0x14d0] sm:$0xff]
  %v719 = vld [vmem:[%s1 + $0x14d8] sm:$0xff]
  %v720 = vld [vmem:[%s1 + $0x14e0] sm:$0xff]
  %v721 = vld [vmem:[%s1 + $0x14e8] sm:$0xff]
  %v722 = vld [vmem:[%s1 + $0x14f0] sm:$0xff]
  %v723 = vld [vmem:[%s1 + $0x14f8] sm:$0xff]
  %v724 = vld [vmem:[%s1 + $0x1500] sm:$0xff]
  %v725 = vld [vmem:[%s1 + $0x1508] sm:$0xff]
  %v726 = vld [vmem:[%s1 + $0x1510] sm:$0xff]
  %v727 = vld [vmem:[%s1 + $0x1518] sm:$0xff]
  %v728 = vld [vmem:[%s1 + $0x1520] sm:$0xff]
  %v729 = vld [vmem:[%s1 + $0x1528] sm:$0xff]
  %v730 = vld [vmem:[%s1 + $0x1530] sm:$0xff]
  %v731 = vld [vmem:[%s1 + $0x1538] sm:$0xff]
  %v732 = vld [vmem:[%s1 + $0x1540] sm:$0xff]
  %v733 = vld [vmem:[%s1 + $0x1548] sm:$0xff]
  %v734 = vld [vmem:[%s1 + $0x1550] sm:$0xff]
  %v735 = vld [vmem:[%s1 + $0x1558] sm:$0xff]
  %v736 = vld [vmem:[%s1 + $0x1560] sm:$0xff]
  %v737 = vld [vmem:[%s1 + $0x1568] sm:$0xff]
  %v738 = vld [vmem:[%s1 + $0x1570] sm:$0xff]
  %v739 = vld [vmem:[%s1 + $0x1578] sm:$0xff]
  %v740 = vld [vmem:[%s1 + $0x1580] sm:$0xff]
  %v741 = vld [vmem:[%s1 + $0x1588] sm:$0xff]
  %v742 = vld [vmem:[%s1 + $0x1590] sm:$0xff]
  %v743 = vld [vmem:[%s1 + $0x1598] sm:$0xff]
  %v744 = vld [vmem:[%s1 + $0x15a0] sm:$0xff]
  %v745 = vld [vmem:[%s1 + $0x15a8] sm:$0xff]
  %v746 = vld [vmem:[%s1 + $0x15b0] sm:$0xff]
  %v747 = vld [vmem:[%s1 + $0x15b8] sm:$0xff]
  %v748 = vld [vmem:[%s1 + $0x15c0] sm:$0xff]
  %v749 = vld [vmem:[%s1 + $0x15c8] sm:$0xff]
  %v750 = vld [vmem:[%s1 + $0x15d0] sm:$0xff]
  %v751 = vld [vmem:[%s1 + $0x15d8] sm:$0xff]
  %v752 = vld [vmem:[%s1 + $0x15e0] sm:$0xff]
  %v753 = vld [vmem:[%s1 + $0x15e8] sm:$0xff]
  %v754 = vld [vmem:[%s1 + $0x15f0] sm:$0xff]
  %v755 = vld [vmem:[%s1 + $0x15f8] sm:$0xff]
  %v756 = vld [vmem:[%s1 + $0x1600] sm:$0xff]
  %v757 = vld [vmem:[%s1 + $0x1608] sm:$0xff]
  %v758 = vld [vmem:[%s1 + $0x1610] sm:$0xff]
  %v759 = vld [vmem:[%s1 + $0x1618] sm:$0xff]
  %v760 = vld [vmem:[%s1 + $0x1620] sm:$0xff]
  %v761 = vld [vmem:[%s1 + $0x1628] sm:$0xff]
  %v762 = vld [vmem:[%s1 + $0x1630] sm:$0xff]
  %v763 = vld [vmem:[%s1 + $0x1638] sm:$0xff]
  %v764 = vld [vmem:[%s1 + $0x1640] sm:$0xff]
  %v765 = vld [vmem:[%s1 + $0x1648] sm:$0xff]
  %v766 = vld [vmem:[%s1 + $0x1650] sm:$0xff]
  %v767 = vld [vmem:[%s1 + $0x1658] sm:$0xff]
  %v768 = vld [vmem:[%s1 + $0x1660] sm:$0xff]
  %v769 = vld [vmem:[%s1 + $0x1668] sm:$0xff]
  %v770 = vld [vmem:[%s1 + $0x1670] sm:$0xff]
  %v771 = vld [vmem:[%s1 + $0x1678] sm:$0xff]
  %v772 = vld [vmem:[%s1 + $0x1680] sm:$0xff]
  %v773 = vld [vmem:[%s1 + $0x1688] sm:$0xff]
  %v774 = vld [vmem:[%s1 + $0x1690] sm:$0xff]
  %v775 = vld [vmem:[%s1 + $0x1698] sm:$0xff]
  %v776 = vld [vmem:[%s1 + $0x16a0] sm:$0xff]
  %v777 = vld [vmem:[%s1 + $0x16a8] sm:$0xff]
  %v778 = vld [vmem:[%s1 + $0x16b0] sm:$0xff]
  %v779 = vld [vmem:[%s1 + $0x16b8] sm:$0xff]
  %v780 = vld [vmem:[%s1 + $0x16c0] sm:$0xff]
  %v781 = vld [vmem:[%s1 + $0x16c8] sm:$0xff]
  %v782 = vld [vmem:[%s1 + $0x16d0] sm:$0xff]
  %v783 = vld [vmem:[%s1 + $0x16d8] sm:$0xff]
  %v784 = vld [vmem:[%s1 + $0x16e0] sm:$0xff]
  %v785 = vld [vmem:[%s1 + $0x16e8] sm:$0xff]
  %v786 = vld [vmem:[%s1 + $0x16f0] sm:$0xff]
  %v787 = vld [vmem:[%s1 + $0x16f8] sm:$0xff]
  %v788 = vld [vmem:[%s1 + $0x1700] sm:$0xff]
  %v789 = vld [vmem:[%s1 + $0x1708] sm:$0xff]
  %v790 = vld [vmem:[%s1 + $0x1710] sm:$0xff]
  %v791 = vld [vmem:[%s1 + $0x1718] sm:$0xff]
  %v792 = vld [vmem:[%s1 + $0x1720] sm:$0xff]
  %v793 = vld [vmem:[%s1 + $0x1728] sm:$0xff]
  %v794 = vld [vmem:[%s1 + $0x1730] sm:$0xff]
  %v795 = vld [vmem:[%s1 + $0x1738] sm:$0xff]
  %v796 = vld [vmem:[%s1 + $0x1740] sm:$0xff]
  %v797 = vld [vmem:[%s1 + $0x1748] sm:$0xff]
  %v798 = vld [vmem:[%s1 + $0x1750] sm:$0xff]
  %v799 = vld [vmem:[%s1 + $0x1758] sm:$0xff]
  %v800 = vld [vmem:[%s1 + $0x1760] sm:$0xff]
  %v801 = vld [vmem:[%s1 + $0x1768] sm:$0xff]
  %v802 = vld [vmem:[%s1 + $0x1770] sm:$0xff]
  %v803 = vld [vmem:[%s1 + $0x1778] sm:$0xff]
  %v804 = vld [vmem:[%s1 + $0x1780] sm:$0xff]
  %v805 = vld [vmem:[%s1 + $0x1788] sm:$0xff]
  %v806 = vld [vmem:[%s1 + $0x1790] sm:$0xff]
  %v807 = vld [vmem:[%s1 + $0x1798] sm:$0xff]
  %v808 = vld [vmem:[%s1 + $0x17a0] sm:$0xff]
  %v809 = vld [vmem:[%s1 + $0x17a8] sm:$0xff]
  %v810 = vld [vmem:[%s1 + $0x17b0] sm:$0xff]
  %v811 = vld [vmem:[%s1 + $0x17b8] sm:$0xff]
  %v812 = vld [vmem:[%s1 + $0x17c0] sm:$0xff]
  %v813 = vld [vmem:[%s1 + $0x17c8] sm:$0xff]
  %v814 = vld [vmem:[%s1 + $0x17d0] sm:$0xff]
  %v815 = vld [vmem:[%s1 + $0x17d8] sm:$0xff]
  %v816 = vld [vmem:[%s1 + $0x17e0] sm:$0xff]
  %v817 = vld [vmem:[%s1 + $0x17e8] sm:$0xff]
  %v818 = vld [vmem:[%s1 + $0x17f0] sm:$0xff]
  %v819 = vld [vmem:[%s1 + $0x17f8] sm:$0xff]
  %v820 = vld [vmem:[%s1 + $0x1800] sm:$0xff]
  %v821 = vld [vmem:[%s1 + $0x1808] sm:$0xff]
  %v822 = vld [vmem:[%s1 + $0x1810] sm:$0xff]
  %v823 = vld [vmem:[%s1 + $0x1818] sm:$0xff]
  %v824 = vld [vmem:[%s1 + $0x1820] sm:$0xff]
  %v825 = vld [vmem:[%s1 + $0x1828] sm:$0xff]
  %v826 = vld [vmem:[%s1 + $0x1830] sm:$0xff]
  %v827 = vld [vmem:[%s1 + $0x1838] sm:$0xff]
  %v828 = vld [vmem:[%s1 + $0x1840] sm:$0xff]
  %v829 = vld [vmem:[%s1 + $0x1848] sm:$0xff]
  %v830 = vld [vmem:[%s1 + $0x1850] sm:$0xff]
  %v831 = vld [vmem:[%s1 + $0x1858] sm:$0xff]
  %v832 = vld [vmem:[%s1 + $0x1860] sm:$0xff]
  %v833 = vld [vmem:[%s1 + $0x1868] sm:$0xff]
  %v834 = vld [vmem:[%s1 + $0x1870] sm:$0xff]
  %v835 = vld [vmem:[%s1 + $0x1878] sm:$0xff]
  %v836 = vld [vmem:[%s1 + $0x1880] sm:$0xff]
  %v837 = vld [vmem:[%s1 + $0x1888] sm:$0xff]
  %v838 = vld [vmem:[%s1 + $0x1890] sm:$0xff]
  %v839 = vld [vmem:[%s1 + $0x1898] sm:$0xff]
  %v840 = vld [vmem:[%s1 + $0x18a0] sm:$0xff]
  %v841 = vld [vmem:[%s1 + $0x18a8] sm:$0xff]
  %v842 = vld [vmem:[%s1 + $0x18b0] sm:$0xff]
  %v843 = vld [vmem:[%s1 + $0x18b8] sm:$0xff]
  %v844 = vld [vmem:[%s1 + $0x18c0] sm:$0xff]
  %v845 = vld [vmem:[%s1 + $0x18c8] sm:$0xff]
  %v846 = vld [vmem:[%s1 + $0x18d0] sm:$0xff]
  %v847 = vld [vmem:[%s1 + $0x18d8] sm:$0xff]
  %v848 = vld [vmem:[%s1 + $0x18e0] sm:$0xff]
  %v849 = vld [vmem:[%s1 + $0x18e8] sm:$0xff]
  %v850 = vld [vmem:[%s1 + $0x18f0] sm:$0xff]
  %v851 = vld [vmem:[%s1 + $0x18f8] sm:$0xff]
  %v852 = vld [vmem:[%s1 + $0x1900] sm:$0xff]
  %v853 = vld [vmem:[%s1 + $0x1908] sm:$0xff]
  %v854 = vld [vmem:[%s1 + $0x1910] sm:$0xff]
  %v855 = vld [vmem:[%s1 + $0x1918] sm:$0xff]
  %v856 = vld [vmem:[%s1 + $0x1920] sm:$0xff]
  %v857 = vld [vmem:[%s1 + $0x1928] sm:$0xff]
  %v858 = vld [vmem:[%s1 + $0x1930] sm:$0xff]
  %v859 = vld [vmem:[%s1 + $0x1938] sm:$0xff]
  %v860 = vld [vmem:[%s1 + $0x1940] sm:$0xff]
  %v861 = vld [vmem:[%s1 + $0x1948] sm:$0xff]
  %v862 = vld [vmem:[%s1 + $0x1950] sm:$0xff]
  %v863 = vld [vmem:[%s1 + $0x1958] sm:$0xff]
  %v864 = vld [vmem:[%s1 + $0x1960] sm:$0xff]
  %v865 = vld [vmem:[%s1 + $0x1968] sm:$0xff]
  %v866 = vld [vmem:[%s1 + $0x1970] sm:$0xff]
  %v867 = vld [vmem:[%s1 + $0x1978] sm:$0xff]
  %v868 = vld [vmem:[%s1 + $0x1980] sm:$0xff]
  %v869 = vld [vmem:[%s1 + $0x1988] sm:$0xff]
  %v870 = vld [vmem:[%s1 + $0x1990] sm:$0xff]
  %v871 = vld [vmem:[%s1 + $0x1998] sm:$0xff]
  %v872 = vld [vmem:[%s1 + $0x19a0] sm:$0xff]
  %v873 = vld [vmem:[%s1 + $0x19a8] sm:$0xff]
  %v874 = vld [vmem:[%s1 + $0x19b0] sm:$0xff]
  %v875 = vld [vmem:[%s1 + $0x19b8] sm:$0xff]
  %v876 = vld [vmem:[%s1 + $0x19c0] sm:$0xff]
  %v877 = vld [vmem:[%s1 + $0x19c8] sm:$0xff]
  %v878 = vld [vmem:[%s1 + $0x19d0] sm:$0xff]
  %v879 = vld [vmem:[%s1 + $0x19d8] sm:$0xff]
  %v880 = vld [vmem:[%s1 + $0x19e0] sm:$0xff]
  %v881 = vld [vmem:[%s1 + $0x19e8] sm:$0xff]
  %v882 = vld [vmem:[%s1 + $0x19f0] sm:$0xff]
  %v883 = vld [vmem:[%s1 + $0x19f8] sm:$0xff]
  %v884 = vld [vmem:[%s1 + $0x1a00] sm:$0xff]
  %v885 = vld [vmem:[%s1 + $0x1a08] sm:$0xff]
  %v886 = vld [vmem:[%s1 + $0x1a10] sm:$0xff]
  %v887 = vld [vmem:[%s1 + $0x1a18] sm:$0xff]
  %v888 = vld [vmem:[%s1 + $0x1a20] sm:$0xff]
  %v889 = vld [vmem:[%s1 + $0x1a28] sm:$0xff]
  %v890 = vld [vmem:[%s1 + $0x1a30] sm:$0xff]
  %v891 = vld [vmem:[%s1 + $0x1a38] sm:$0xff]
  %v892 = vld [vmem:[%s1 + $0x1a40] sm:$0xff]
  %v893 = vld [vmem:[%s1 + $0x1a48] sm:$0xff]
  %v894 = vld [vmem:[%s1 + $0x1a50] sm:$0xff]
  %v895 = vld [vmem:[%s1 + $0x1a58] sm:$0xff]
  %v896 = vld [vmem:[%s1 + $0x1a60] sm:$0xff]
  %v897 = vld [vmem:[%s1 + $0x1a68] sm:$0xff]
  %v898 = vld [vmem:[%s1 + $0x1a70] sm:$0xff]
  %v899 = vld [vmem:[%s1 + $0x1a78] sm:$0xff]
  %v900 = vld [vmem:[%s1 + $0x1a80] sm:$0xff]
  %v901 = vld [vmem:[%s1 + $0x1a88] sm:$0xff]
  %v902 = vld [vmem:[%s1 + $0x1a90] sm:$0xff]
  %v903 = vld [vmem:[%s1 + $0x1a98] sm:$0xff]
  %v904 = vld [vmem:[%s1 + $0x1aa0] sm:$0xff]
  %v905 = vld [vmem:[%s1 + $0x1aa8] sm:$0xff]
  %v906 = vld [vmem:[%s1 + $0x1ab0] sm:$0xff]
  %v907 = vld [vmem:[%s1 + $0x1ab8] sm:$0xff]
  %v908 = vld [vmem:[%s1 + $0x1ac0] sm:$0xff]
  %v909 = vld [vmem:[%s1 + $0x1ac8] sm:$0xff]
  %v910 = vld [vmem:[%s1 + $0x1ad0] sm:$0xff]
  %v911 = vld [vmem:[%s1 + $0x1ad8] sm:$0xff]
  %v912 = vld [vmem:[%s1 + $0x1ae0] sm:$0xff]
  %v913 = vld [vmem:[%s1 + $0x1ae8] sm:$0xff]
  %v914 = vld [vmem:[%s1 + $0x1af0] sm:$0xff]
  %v915 = vld [vmem:[%s1 + $0x1af8] sm:$0xff]
  %v916 = vld [vmem:[%s1 + $0x1b00] sm:$0xff]
  %v917 = vld [vmem:[%s1 + $0x1b08] sm:$0xff]
  %v918 = vld [vmem:[%s1 + $0x1b10] sm:$0xff]
  %v919 = vld [vmem:[%s1 + $0x1b18] sm:$0xff]
  %v920 = vld [vmem:[%s1 + $0x1b20] sm:$0xff]
  %v921 = vld [vmem:[%s1 + $0x1b28] sm:$0xff]
  %v922 = vld [vmem:[%s1 + $0x1b30] sm:$0xff]
  %v923 = vld [vmem:[%s1 + $0x1b38] sm:$0xff]
  %v924 = vld [vmem:[%s1 + $0x1b40] sm:$0xff]
  %v925 = vld [vmem:[%s1 + $0x1b48] sm:$0xff]
  %v926 = vld [vmem:[%s1 + $0x1b50] sm:$0xff]
  %v927 = vld [vmem:[%s1 + $0x1b58] sm:$0xff]
  %v928 = vld [vmem:[%s1 + $0x1b60] sm:$0xff]
  %v929 = vld [vmem:[%s1 + $0x1b68] sm:$0xff]
  %v930 = vld [vmem:[%s1 + $0x1b70] sm:$0xff]
  %v931 = vld [vmem:[%s1 + $0x1b78] sm:$0xff]
  %v932 = vld [vmem:[%s1 + $0x1b80] sm:$0xff]
  %v933 = vld [vmem:[%s1 + $0x1b88] sm:$0xff]
  %v934 = vld [vmem:[%s1 + $0x1b90] sm:$0xff]
  %v935 = vld [vmem:[%s1 + $0x1b98] sm:$0xff]
  %v936 = vld [vmem:[%s1 + $0x1ba0] sm:$0xff]
  %v937 = vld [vmem:[%s1 + $0x1ba8] sm:$0xff]
  %v938 = vld [vmem:[%s1 + $0x1bb0] sm:$0xff]
  %v939 = vld [vmem:[%s1 + $0x1bb8] sm:$0xff]
  %v940 = vld [vmem:[%s1 + $0x1bc0] sm:$0xff]
  %v941 = vld [vmem:[%s1 + $0x1bc8] sm:$0xff]
  %v942 = vld [vmem:[%s1 + $0x1bd0] sm:$0xff]
  %v943 = vld [vmem:[%s1 + $0x1bd8] sm:$0xff]
  %v944 = vld [vmem:[%s1 + $0x1be0] sm:$0xff]
  %v945 = vld [vmem:[%s1 + $0x1be8] sm:$0xff]
  %v946 = vld [vmem:[%s1 + $0x1bf0] sm:$0xff]
  %v947 = vld [vmem:[%s1 + $0x1bf8] sm:$0xff]
  %v948 = vld [vmem:[%s1 + $0x1c00] sm:$0xff]
  %v949 = vld [vmem:[%s1 + $0x1c08] sm:$0xff]
  %v950 = vld [vmem:[%s1 + $0x1c10] sm:$0xff]
  %v951 = vld [vmem:[%s1 + $0x1c18] sm:$0xff]
  %v952 = vld [vmem:[%s1 + $0x1c20] sm:$0xff]
  %v953 = vld [vmem:[%s1 + $0x1c28] sm:$0xff]
  %v954 = vld [vmem:[%s1 + $0x1c30] sm:$0xff]
  %v955 = vld [vmem:[%s1 + $0x1c38] sm:$0xff]
  %v956 = vld [vmem:[%s1 + $0x1c40] sm:$0xff]
  %v957 = vld [vmem:[%s1 + $0x1c48] sm:$0xff]
  %v958 = vld [vmem:[%s1 + $0x1c50] sm:$0xff]
  %v959 = vld [vmem:[%s1 + $0x1c58] sm:$0xff]
  %v960 = vld [vmem:[%s1 + $0x1c60] sm:$0xff]
  %v961 = vld [vmem:[%s1 + $0x1c68] sm:$0xff]
  %v962 = vld [vmem:[%s1 + $0x1c70] sm:$0xff]
  %v963 = vld [vmem:[%s1 + $0x1c78] sm:$0xff]
  %v964 = vld [vmem:[%s1 + $0x1c80] sm:$0xff]
  %v965 = vld [vmem:[%s1 + $0x1c88] sm:$0xff]
  %v966 = vld [vmem:[%s1 + $0x1c90] sm:$0xff]
  %v967 = vld [vmem:[%s1 + $0x1c98] sm:$0xff]
  %v968 = vld [vmem:[%s1 + $0x1ca0] sm:$0xff]
  %v969 = vld [vmem:[%s1 + $0x1ca8] sm:$0xff]
  %v970 = vld [vmem:[%s1 + $0x1cb0] sm:$0xff]
  %v971 = vld [vmem:[%s1 + $0x1cb8] sm:$0xff]
  %v972 = vld [vmem:[%s1 + $0x1cc0] sm:$0xff]
  %v973 = vld [vmem:[%s1 + $0x1cc8] sm:$0xff]
  %v974 = vld [vmem:[%s1 + $0x1cd0] sm:$0xff]
  %v975 = vld [vmem:[%s1 + $0x1cd8] sm:$0xff]
  %v976 = vld [vmem:[%s1 + $0x1ce0] sm:$0xff]
  %v977 = vld [vmem:[%s1 + $0x1ce8] sm:$0xff]
  %v978 = vld [vmem:[%s1 + $0x1cf0] sm:$0xff]
  %v979 = vld [vmem:[%s1 + $0x1cf8] sm:$0xff]
  %v980 = vld [vmem:[%s1 + $0x1d00] sm:$0xff]
  %v981 = vld [vmem:[%s1 + $0x1d08] sm:$0xff]
  %v982 = vld [vmem:[%s1 + $0x1d10] sm:$0xff]
  %v983 = vld [vmem:[%s1 + $0x1d18] sm:$0xff]
  %v984 = vld [vmem:[%s1 + $0x1d20] sm:$0xff]
  %v985 = vld [vmem:[%s1 + $0x1d28] sm:$0xff]
  %v986 = vld [vmem:[%s1 + $0x1d30] sm:$0xff]
  %v987 = vld [vmem:[%s1 + $0x1d38] sm:$0xff]
  %v988 = vld [vmem:[%s1 + $0x1d40] sm:$0xff]
  %v989 = vld [vmem:[%s1 + $0x1d48] sm:$0xff]
  %v990 = vld [vmem:[%s1 + $0x1d50] sm:$0xff]
  %v991 = vld [vmem:[%s1 + $0x1d58] sm:$0xff]
  %v992 = vld [vmem:[%s1 + $0x1d60] sm:$0xff]
  %v993 = vld [vmem:[%s1 + $0x1d68] sm:$0xff]
  %v994 = vld [vmem:[%s1 + $0x1d70] sm:$0xff]
  %v995 = vld [vmem:[%s1 + $0x1d78] sm:$0xff]
  %v996 = vld [vmem:[%s1 + $0x1d80] sm:$0xff]
  %v997 = vld [vmem:[%s1 + $0x1d88] sm:$0xff]
  %v998 = vld [vmem:[%s1 + $0x1d90] sm:$0xff]
  %v999 = vld [vmem:[%s1 + $0x1d98] sm:$0xff]
  %v1000 = vld [vmem:[%s1 + $0x1da0] sm:$0xff]
  %v1001 = vld [vmem:[%s1 + $0x1da8] sm:$0xff]
  %v1002 = vld [vmem:[%s1 + $0x1db0] sm:$0xff]
  %v1003 = vld [vmem:[%s1 + $0x1db8] sm:$0xff]
  %v1004 = vld [vmem:[%s1 + $0x1dc0] sm:$0xff]
  %v1005 = vld [vmem:[%s1 + $0x1dc8] sm:$0xff]
  %v1006 = vld [vmem:[%s1 + $0x1dd0] sm:$0xff]
  %v1007 = vld [vmem:[%s1 + $0x1dd8] sm:$0xff]
  %v1008 = vld [vmem:[%s1 + $0x1de0] sm:$0xff]
  %v1009 = vld [vmem:[%s1 + $0x1de8] sm:$0xff]
  %v1010 = vld [vmem:[%s1 + $0x1df0] sm:$0xff]
  %v1011 = vld [vmem:[%s1 + $0x1df8] sm:$0xff]
  %v1012 = vld [vmem:[%s1 + $0x1e00] sm:$0xff]
  %v1013 = vld [vmem:[%s1 + $0x1e08] sm:$0xff]
  %v1014 = vld [vmem:[%s1 + $0x1e10] sm:$0xff]
  %v1015 = vld [vmem:[%s1 + $0x1e18] sm:$0xff]
  %v1016 = vld [vmem:[%s1 + $0x1e20] sm:$0xff]
  %v1017 = vld [vmem:[%s1 + $0x1e28] sm:$0xff]
  %v1018 = vld [vmem:[%s1 + $0x1e30] sm:$0xff]
  %v1019 = vld [vmem:[%s1 + $0x1e38] sm:$0xff]
  %v1020 = vld [vmem:[%s1 + $0x1e40] sm:$0xff]
  %v1021 = vld [vmem:[%s1 + $0x1e48] sm:$0xff]
  %v1022 = vld [vmem:[%s1 + $0x1e50] sm:$0xff]
  %v1023 = vld [vmem:[%s1 + $0x1e58] sm:$0xff]
  %v1024 = vld [vmem:[%s1 + $0x1e60] sm:$0xff]
  %v1025 = vld [vmem:[%s1 + $0x1e68] sm:$0xff]
  %v1026 = vld [vmem:[%s1 + $0x1e70] sm:$0xff]
  %v1027 = vld [vmem:[%s1 + $0x1e78] sm:$0xff]
  %v1028 = vld [vmem:[%s1 + $0x1e80] sm:$0xff]
  %v1029 = vld [vmem:[%s1 + $0x1e88] sm:$0xff]
  %v1030 = vld [vmem:[%s1 + $0x1e90] sm:$0xff]
  %v1031 = vld [vmem:[%s1 + $0x1e98] sm:$0xff]
  %v1032 = vld [vmem:[%s1 + $0x1ea0] sm:$0xff]
  %v1033 = vld [vmem:[%s1 + $0x1ea8] sm:$0xff]
  %v1034 = vld [vmem:[%s1 + $0x1eb0] sm:$0xff]
  %v1035 = vld [vmem:[%s1 + $0x1eb8] sm:$0xff]
  %v1036 = vld [vmem:[%s1 + $0x1ec0] sm:$0xff]
  %v1037 = vld [vmem:[%s1 + $0x1ec8] sm:$0xff]
  %v1038 = vld [vmem:[%s1 + $0x1ed0] sm:$0xff]
  %v1039 = vld [vmem:[%s1 + $0x1ed8] sm:$0xff]
  %v1040 = vld [vmem:[%s1 + $0x1ee0] sm:$0xff]
  %v1041 = vld [vmem:[%s1 + $0x1ee8] sm:$0xff]
  %v1042 = vld [vmem:[%s1 + $0x1ef0] sm:$0xff]
  %v1043 = vld [vmem:[%s1 + $0x1ef8] sm:$0xff]
  %v1044 = vld [vmem:[%s1 + $0x1f00] sm:$0xff]
  %v1045 = vld [vmem:[%s1 + $0x1f08] sm:$0xff]
  %v1046 = vld [vmem:[%s1 + $0x1f10] sm:$0xff]
  %v1047 = vld [vmem:[%s1 + $0x1f18] sm:$0xff]
  %v1048 = vld [vmem:[%s1 + $0x1f20] sm:$0xff]
  %v1049 = vld [vmem:[%s1 + $0x1f28] sm:$0xff]
  %v1050 = vld [vmem:[%s1 + $0x1f30] sm:$0xff]
  %v1051 = vld [vmem:[%s1 + $0x1f38] sm:$0xff]
  %v1052 = vld [vmem:[%s1 + $0x1f40] sm:$0xff]
  %v1053 = vld [vmem:[%s1 + $0x1f48] sm:$0xff]
  %v1054 = vld [vmem:[%s1 + $0x1f50] sm:$0xff]
  %v1055 = vld [vmem:[%s1 + $0x1f58] sm:$0xff]
  %v1056 = vld [vmem:[%s1 + $0x1f60] sm:$0xff]
  %v1057 = vld [vmem:[%s1 + $0x1f68] sm:$0xff]
  %v1058 = vld [vmem:[%s1 + $0x1f70] sm:$0xff]
  %v1059 = vld [vmem:[%s1 + $0x1f78] sm:$0xff]
  %v1060 = vld [vmem:[%s1 + $0x1f80] sm:$0xff]
  %v1061 = vld [vmem:[%s1 + $0x1f88] sm:$0xff]
  %v1062 = vld [vmem:[%s1 + $0x1f90] sm:$0xff]
  %v1063 = vld [vmem:[%s1 + $0x1f98] sm:$0xff]
  %v1064 = vld [vmem:[%s1 + $0x1fa0] sm:$0xff]
  %v1065 = vld [vmem:[%s1 + $0x1fa8] sm:$0xff]
  %v1066 = vld [vmem:[%s1 + $0x1fb0] sm:$0xff]
  %v1067 = vld [vmem:[%s1 + $0x1fb8] sm:$0xff]
  %v1068 = vld [vmem:[%s1 + $0x1fc0] sm:$0xff]
  %v1069 = vld [vmem:[%s1 + $0x1fc8] sm:$0xff]
  %v1070 = vld [vmem:[%s1 + $0x1fd0] sm:$0xff]
  %v1071 = vld [vmem:[%s1 + $0x1fd8] sm:$0xff]
  %v1072 = vld [vmem:[%s1 + $0x1fe0] sm:$0xff]
  %v1073 = vld [vmem:[%s1 + $0x1fe8] sm:$0xff]
  %v1074 = vld [vmem:[%s1 + $0x1ff0] sm:$0xff]
  %v1075 = vld [vmem:[%s1 + $0x1ff8] sm:$0xff]
  %v1076 = vld [vmem:[%s1 + $0x2000] sm:$0xff]
  %v1077 = vld [vmem:[%s1 + $0x2008] sm:$0xff]
  %v1078 = vld [vmem:[%s1 + $0x2010] sm:$0xff]
  %v1079 = vld [vmem:[%s1 + $0x2018] sm:$0xff]
  %v1080 = vld [vmem:[%s1 + $0x2020] sm:$0xff]
  %v1081 = vld [vmem:[%s1 + $0x2028] sm:$0xff]
  %v1082 = vld [vmem:[%s1 + $0x2030] sm:$0xff]
  %v1083 = vld [vmem:[%s1 + $0x2038] sm:$0xff]
  %v1084 = vld [vmem:[%s1 + $0x2040] sm:$0xff]
  %v1085 = vld [vmem:[%s1 + $0x2048] sm:$0xff]
  %v1086 = vld [vmem:[%s1 + $0x2050] sm:$0xff]
  %v1087 = vld [vmem:[%s1 + $0x2058] sm:$0xff]
  %v1088 = vld [vmem:[%s1 + $0x2060] sm:$0xff]
  %v1089 = vld [vmem:[%s1 + $0x2068] sm:$0xff]
  %v1090 = vld [vmem:[%s1 + $0x2070] sm:$0xff]
  %v1091 = vld [vmem:[%s1 + $0x2078] sm:$0xff]
  %v1092 = vld [vmem:[%s1 + $0x2080] sm:$0xff]
  %v1093 = vld [vmem:[%s1 + $0x2088] sm:$0xff]
  %v1094 = vld [vmem:[%s1 + $0x2090] sm:$0xff]
  %v1095 = vld [vmem:[%s1 + $0x2098] sm:$0xff]
  %v1096 = vld [vmem:[%s1 + $0x20a0] sm:$0xff]
  %v1097 = vld [vmem:[%s1 + $0x20a8] sm:$0xff]
  %v1098 = vld [vmem:[%s1 + $0x20b0] sm:$0xff]
  %v1099 = vld [vmem:[%s1 + $0x20b8] sm:$0xff]
  %v1100 = vld [vmem:[%s1 + $0x20c0] sm:$0xff]
  %v1101 = vld [vmem:[%s1 + $0x20c8] sm:$0xff]
  %v1102 = vld [vmem:[%s1 + $0x20d0] sm:$0xff]
  %v1103 = vld [vmem:[%s1 + $0x20d8] sm:$0xff]
  %v1104 = vld [vmem:[%s1 + $0x20e0] sm:$0xff]
  %v1105 = vld [vmem:[%s1 + $0x20e8] sm:$0xff]
  %v1106 = vld [vmem:[%s1 + $0x20f0] sm:$0xff]
  %v1107 = vld [vmem:[%s1 + $0x20f8] sm:$0xff]
  %v1108 = vld [vmem:[%s1 + $0x2100] sm:$0xff]
  %v1109 = vld [vmem:[%s1 + $0x2108] sm:$0xff]
  %v1110 = vld [vmem:[%s1 + $0x2110] sm:$0xff]
  %v1111 = vld [vmem:[%s1 + $0x2118] sm:$0xff]
  %v1112 = vld [vmem:[%s1 + $0x2120] sm:$0xff]
  %v1113 = vld [vmem:[%s1 + $0x2128] sm:$0xff]
  %v1114 = vld [vmem:[%s1 + $0x2130] sm:$0xff]
  %v1115 = vld [vmem:[%s1 + $0x2138] sm:$0xff]
  %v1116 = vld [vmem:[%s1 + $0x2140] sm:$0xff]
  %v1117 = vld [vmem:[%s1 + $0x2148] sm:$0xff]
  %v1118 = vld [vmem:[%s1 + $0x2150] sm:$0xff]
  %v1119 = vld [vmem:[%s1 + $0x2158] sm:$0xff]
  %v1120 = vld [vmem:[%s1 + $0x2160] sm:$0xff]
  %v1121 = vld [vmem:[%s1 + $0x2168] sm:$0xff]
  %v1122 = vld [vmem:[%s1 + $0x2170] sm:$0xff]
  %v1123 = vld [vmem:[%s1 + $0x2178] sm:$0xff]
  %v1124 = vld [vmem:[%s1 + $0x2180] sm:$0xff]
  %v1125 = vld [vmem:[%s1 + $0x2188] sm:$0xff]
  %v1126 = vld [vmem:[%s1 + $0x2190] sm:$0xff]
  %v1127 = vld [vmem:[%s1 + $0x2198] sm:$0xff]
  %v1128 = vld [vmem:[%s1 + $0x21a0] sm:$0xff]
  %v1129 = vld [vmem:[%s1 + $0x21a8] sm:$0xff]
  %v1130 = vld [vmem:[%s1 + $0x21b0] sm:$0xff]
  %v1131 = vld [vmem:[%s1 + $0x21b8] sm:$0xff]
  %v1132 = vld [vmem:[%s1 + $0x21c0] sm:$0xff]
  %v1133 = vld [vmem:[%s1 + $0x21c8] sm:$0xff]
  %v1134 = vld [vmem:[%s1 + $0x21d0] sm:$0xff]
  %v1135 = vld [vmem:[%s1 + $0x21d8] sm:$0xff]
  %v1136 = vld [vmem:[%s1 + $0x21e0] sm:$0xff]
  %v1137 = vld [vmem:[%s1 + $0x21e8] sm:$0xff]
  %v1138 = vld [vmem:[%s1 + $0x21f0] sm:$0xff]
  %v1139 = vld [vmem:[%s1 + $0x21f8] sm:$0xff]
  %v1140 = vld [vmem:[%s1 + $0x2200] sm:$0xff]
  %v1141 = vld [vmem:[%s1 + $0x2208] sm:$0xff]
  %v1142 = vld [vmem:[%s1 + $0x2210] sm:$0xff]
  %v1143 = vld [vmem:[%s1 + $0x2218] sm:$0xff]
  %v1144 = vld [vmem:[%s1 + $0x2220] sm:$0xff]
  %v1145 = vld [vmem:[%s1 + $0x2228] sm:$0xff]
  %v1146 = vld [vmem:[%s1 + $0x2230] sm:$0xff]
  %v1147 = vld [vmem:[%s1 + $0x2238] sm:$0xff]
  %v1148 = vld [vmem:[%s1 + $0x2240] sm:$0xff]
  %v1149 = vld [vmem:[%s1 + $0x2248] sm:$0xff]
  %v1150 = vld [vmem:[%s1 + $0x2250] sm:$0xff]
  %v1151 = vld [vmem:[%s1 + $0x2258] sm:$0xff]
  %v1152 = vld [vmem:[%s1 + $0x2260] sm:$0xff]
  %v1153 = vld [vmem:[%s1 + $0x2268] sm:$0xff]
  %v1154 = vld [vmem:[%s1 + $0x2270] sm:$0xff]
  %v1155 = vld [vmem:[%s1 + $0x2278] sm:$0xff]
  %v1156 = vld [vmem:[%s1 + $0x2280] sm:$0xff]
  %v1157 = vld [vmem:[%s1 + $0x2288] sm:$0xff]
  %v1158 = vld [vmem:[%s1 + $0x2290] sm:$0xff]
  %v1159 = vld [vmem:[%s1 + $0x2298] sm:$0xff]
  %v1160 = vld [vmem:[%s1 + $0x22a0] sm:$0xff]
  %v1161 = vld [vmem:[%s1 + $0x22a8] sm:$0xff]
  %v1162 = vld [vmem:[%s1 + $0x22b0] sm:$0xff]
  %v1163 = vld [vmem:[%s1 + $0x22b8] sm:$0xff]
  %v1164 = vld [vmem:[%s1 + $0x22c0] sm:$0xff]
  %v1165 = vld [vmem:[%s1 + $0x22c8] sm:$0xff]
  %v1166 = vld [vmem:[%s1 + $0x22d0] sm:$0xff]
  %v1167 = vld [vmem:[%s1 + $0x22d8] sm:$0xff]
  %v1168 = vld [vmem:[%s1 + $0x22e0] sm:$0xff]
  %v1169 = vld [vmem:[%s1 + $0x22e8] sm:$0xff]
  %v1170 = vld [vmem:[%s1 + $0x22f0] sm:$0xff]
  %v1171 = vld [vmem:[%s1 + $0x22f8] sm:$0xff]
  %v1172 = vld [vmem:[%s1 + $0x2300] sm:$0xff]
  %v1173 = vld [vmem:[%s1 + $0x2308] sm:$0xff]
  %v1174 = vld [vmem:[%s1 + $0x2310] sm:$0xff]
  %v1175 = vld [vmem:[%s1 + $0x2318] sm:$0xff]
  %v1176 = vld [vmem:[%s1 + $0x2320] sm:$0xff]
  %v1177 = vld [vmem:[%s1 + $0x2328] sm:$0xff]
  %v1178 = vld [vmem:[%s1 + $0x2330] sm:$0xff]
  %v1179 = vld [vmem:[%s1 + $0x2338] sm:$0xff]
  %v1180 = vld [vmem:[%s1 + $0x2340] sm:$0xff]
  %v1181 = vld [vmem:[%s1 + $0x2348] sm:$0xff]
  %v1182 = vld [vmem:[%s1 + $0x2350] sm:$0xff]
  %v1183 = vld [vmem:[%s1 + $0x2358] sm:$0xff]
  %v1184 = vld [vmem:[%s1 + $0x2360] sm:$0xff]
  %v1185 = vld [vmem:[%s1 + $0x2368] sm:$0xff]
  %v1186 = vld [vmem:[%s1 + $0x2370] sm:$0xff]
  %v1187 = vld [vmem:[%s1 + $0x2378] sm:$0xff]
  %v1188 = vld [vmem:[%s1 + $0x2380] sm:$0xff]
  %v1189 = vld [vmem:[%s1 + $0x2388] sm:$0xff]
  %v1190 = vld [vmem:[%s1 + $0x2390] sm:$0xff]
  %v1191 = vld [vmem:[%s1 + $0x2398] sm:$0xff]
  %v1192 = vld [vmem:[%s1 + $0x23a0] sm:$0xff]
  %v1193 = vld [vmem:[%s1 + $0x23a8] sm:$0xff]
  %v1194 = vld [vmem:[%s1 + $0x23b0] sm:$0xff]
  %v1195 = vld [vmem:[%s1 + $0x23b8] sm:$0xff]
  %v1196 = vld [vmem:[%s1 + $0x23c0] sm:$0xff]
  %v1197 = vld [vmem:[%s1 + $0x23c8] sm:$0xff]
  %v1198 = vld [vmem:[%s1 + $0x23d0] sm:$0xff]
  %v1199 = vld [vmem:[%s1 + $0x23d8] sm:$0xff]
  %v1200 = vld [vmem:[%s1 + $0x23e0] sm:$0xff]
  %v1201 = vld [vmem:[%s1 + $0x23e8] sm:$0xff]
  %v1202 = vld [vmem:[%s1 + $0x23f0] sm:$0xff]
  %v1203 = vld [vmem:[%s1 + $0x23f8] sm:$0xff]
  %v1204 = vld [vmem:[%s1 + $0x2400] sm:$0xff]
  %v1205 = vld [vmem:[%s1 + $0x2408] sm:$0xff]
  %v1206 = vld [vmem:[%s1 + $0x2410] sm:$0xff]
  %v1207 = vld [vmem:[%s1 + $0x2418] sm:$0xff]
  %v1208 = vld [vmem:[%s1 + $0x2420] sm:$0xff]
  %v1209 = vld [vmem:[%s1 + $0x2428] sm:$0xff]
  %v1210 = vld [vmem:[%s1 + $0x2430] sm:$0xff]
  %v1211 = vld [vmem:[%s1 + $0x2438] sm:$0xff]
  %v1212 = vld [vmem:[%s1 + $0x2440] sm:$0xff]
  %v1213 = vld [vmem:[%s1 + $0x2448] sm:$0xff]
  %v1214 = vld [vmem:[%s1 + $0x2450] sm:$0xff]
  %v1215 = vld [vmem:[%s1 + $0x2458] sm:$0xff]
  %v1216 = vld [vmem:[%s1 + $0x2460] sm:$0xff]
  %v1217 = vld [vmem:[%s1 + $0x2468] sm:$0xff]
  %v1218 = vld [vmem:[%s1 + $0x2470] sm:$0xff]
  %v1219 = vld [vmem:[%s1 + $0x2478] sm:$0xff]
  %v1220 = vld [vmem:[%s1 + $0x2480] sm:$0xff]
  %v1221 = vld [vmem:[%s1 + $0x2488] sm:$0xff]
  %v1222 = vld [vmem:[%s1 + $0x2490] sm:$0xff]
  %v1223 = vld [vmem:[%s1 + $0x2498] sm:$0xff]
  %v1224 = vld [vmem:[%s1 + $0x24a0] sm:$0xff]
  %v1225 = vld [vmem:[%s1 + $0x24a8] sm:$0xff]
  %v1226 = vld [vmem:[%s1 + $0x24b0] sm:$0xff]
  %v1227 = vld [vmem:[%s1 + $0x24b8] sm:$0xff]
  %v1228 = vld [vmem:[%s1 + $0x24c0] sm:$0xff]
  %v1229 = vld [vmem:[%s1 + $0x24c8] sm:$0xff]
  %v1230 = vld [vmem:[%s1 + $0x24d0] sm:$0xff]
  %v1231 = vld [vmem:[%s1 + $0x24d8] sm:$0xff]
  %v1232 = vld [vmem:[%s1 + $0x24e0] sm:$0xff]
  %v1233 = vld [vmem:[%s1 + $0x24e8] sm:$0xff]
  %v1234 = vld [vmem:[%s1 + $0x24f0] sm:$0xff]
  %v1235 = vld [vmem:[%s1 + $0x24f8] sm:$0xff]
  %v1236 = vld [vmem:[%s1 + $0x2500] sm:$0xff]
  %v1237 = vld [vmem:[%s1 + $0x2508] sm:$0xff]
  %v1238 = vld [vmem:[%s1 + $0x2510] sm:$0xff]
  %v1239 = vld [vmem:[%s1 + $0x2518] sm:$0xff]
  %v1240 = vld [vmem:[%s1 + $0x2520] sm:$0xff]
  %v1241 = vld [vmem:[%s1 + $0x2528] sm:$0xff]
  %v1242 = vld [vmem:[%s1 + $0x2530] sm:$0xff]
  %v1243 = vld [vmem:[%s1 + $0x2538] sm:$0xff]
  %v1244 = vld [vmem:[%s1 + $0x2540] sm:$0xff]
  %v1245 = vld [vmem:[%s1 + $0x2548] sm:$0xff]
  %v1246 = vld [vmem:[%s1 + $0x2550] sm:$0xff]
  %v1247 = vld [vmem:[%s1 + $0x2558] sm:$0xff]
  %v1248 = vld [vmem:[%s1 + $0x2560] sm:$0xff]
  %v1249 = vld [vmem:[%s1 + $0x2568] sm:$0xff]
  %v1250 = vld [vmem:[%s1 + $0x2570] sm:$0xff]
  %v1251 = vld [vmem:[%s1 + $0x2578] sm:$0xff]
  %v1252 = vld [vmem:[%s1 + $0x2580] sm:$0xff]
  %v1253 = vld [vmem:[%s1 + $0x2588] sm:$0xff]
  %v1254 = vld [vmem:[%s1 + $0x2590] sm:$0xff]
  %v1255 = vld [vmem:[%s1 + $0x2598] sm:$0xff]
  %v1256 = vld [vmem:[%s1 + $0x25a0] sm:$0xff]
  %v1257 = vld [vmem:[%s1 + $0x25a8] sm:$0xff]
  %v1258 = vld [vmem:[%s1 + $0x25b0] sm:$0xff]
  %v1259 = vld [vmem:[%s1 + $0x25b8] sm:$0xff]
  %v1260 = vld [vmem:[%s1 + $0x25c0] sm:$0xff]
  %v1261 = vld [vmem:[%s1 + $0x25c8] sm:$0xff]
  %v1262 = vld [vmem:[%s1 + $0x25d0] sm:$0xff]
  %v1263 = vld [vmem:[%s1 + $0x25d8] sm:$0xff]
  %v1264 = vld [vmem:[%s1 + $0x25e0] sm:$0xff]
  %v1265 = vld [vmem:[%s1 + $0x25e8] sm:$0xff]
  %v1266 = vld [vmem:[%s1 + $0x25f0] sm:$0xff]
  %v1267 = vld [vmem:[%s1 + $0x25f8] sm:$0xff]
  %v1268 = vld [vmem:[%s1 + $0x2600] sm:$0xff]
  %v1269 = vld [vmem:[%s1 + $0x2608] sm:$0xff]
  %v1270 = vld [vmem:[%s1 + $0x2610] sm:$0xff]
  %v1271 = vld [vmem:[%s1 + $0x2618] sm:$0xff]
  %v1272 = vld [vmem:[%s1 + $0x2620] sm:$0xff]
  %v1273 = vld [vmem:[%s1 + $0x2628] sm:$0xff]
  %v1274 = vld [vmem:[%s1 + $0x2630] sm:$0xff]
  %v1275 = vld [vmem:[%s1 + $0x2638] sm:$0xff]
  %v1276 = vld [vmem:[%s1 + $0x2640] sm:$0xff]
  %v1277 = vld [vmem:[%s1 + $0x2648] sm:$0xff]
  %v1278 = vld [vmem:[%s1 + $0x2650] sm:$0xff]
  %v1279 = vld [vmem:[%s1 + $0x2658] sm:$0xff]
  %v1280 = vld [vmem:[%s1 + $0x2660] sm:$0xff]
  %v1281 = vld [vmem:[%s1 + $0x2668] sm:$0xff]
  %v1282 = vld [vmem:[%s1 + $0x2670] sm:$0xff]
  %v1283 = vld [vmem:[%s1 + $0x2678] sm:$0xff]
  %v1284 = vld [vmem:[%s1 + $0x2680] sm:$0xff]
  %v1285 = vld [vmem:[%s1 + $0x2688] sm:$0xff]
  %v1286 = vld [vmem:[%s1 + $0x2690] sm:$0xff]
  %v1287 = vld [vmem:[%s1 + $0x2698] sm:$0xff]
  %v1288 = vld [vmem:[%s1 + $0x26a0] sm:$0xff]
  %v1289 = vld [vmem:[%s1 + $0x26a8] sm:$0xff]
  %v1290 = vld [vmem:[%s1 + $0x26b0] sm:$0xff]
  %v1291 = vld [vmem:[%s1 + $0x26b8] sm:$0xff]
  %v1292 = vld [vmem:[%s1 + $0x26c0] sm:$0xff]
  %v1293 = vld [vmem:[%s1 + $0x26c8] sm:$0xff]
  %v1294 = vld [vmem:[%s1 + $0x26d0] sm:$0xff]
  %v1295 = vld [vmem:[%s1 + $0x26d8] sm:$0xff]
  %v1296 = vld [vmem:[%s1 + $0x26e0] sm:$0xff]
  %v1297 = vld [vmem:[%s1 + $0x26e8] sm:$0xff]
  %v1298 = vld [vmem:[%s1 + $0x26f0] sm:$0xff]
  %v1299 = vld [vmem:[%s1 + $0x26f8] sm:$0xff]
  %v1300 = vld [vmem:[%s1 + $0x2700] sm:$0xff]
  %v1301 = vld [vmem:[%s1 + $0x2708] sm:$0xff]
  %v1302 = vld [vmem:[%s1 + $0x2710] sm:$0xff]
  %v1303 = vld [vmem:[%s1 + $0x2718] sm:$0xff]
  %v1304 = vld [vmem:[%s1 + $0x2720] sm:$0xff]
  %v1305 = vld [vmem:[%s1 + $0x2728] sm:$0xff]
  %v1306 = vld [vmem:[%s1 + $0x2730] sm:$0xff]
  %v1307 = vld [vmem:[%s1 + $0x2738] sm:$0xff]
  %v1308 = vld [vmem:[%s1 + $0x2740] sm:$0xff]
  %v1309 = vld [vmem:[%s1 + $0x2748] sm:$0xff]
  %v1310 = vld [vmem:[%s1 + $0x2750] sm:$0xff]
  %v1311 = vld [vmem:[%s1 + $0x2758] sm:$0xff]
  %v1312 = vld [vmem:[%s1 + $0x2760] sm:$0xff]
  %v1313 = vld [vmem:[%s1 + $0x2768] sm:$0xff]
  %v1314 = vld [vmem:[%s1 + $0x2770] sm:$0xff]
  %v1315 = vld [vmem:[%s1 + $0x2778] sm:$0xff]
  %v1316 = vld [vmem:[%s1 + $0x2780] sm:$0xff]
  %v1317 = vld [vmem:[%s1 + $0x2788] sm:$0xff]
  %v1318 = vld [vmem:[%s1 + $0x2790] sm:$0xff]
  %v1319 = vld [vmem:[%s1 + $0x2798] sm:$0xff]
  %v1320 = vld [vmem:[%s1 + $0x27a0] sm:$0xff]
  %v1321 = vld [vmem:[%s1 + $0x27a8] sm:$0xff]
  %v1322 = vld [vmem:[%s1 + $0x27b0] sm:$0xff]
  %v1323 = vld [vmem:[%s1 + $0x27b8] sm:$0xff]
  %v1324 = vld [vmem:[%s1 + $0x27c0] sm:$0xff]
  %v1325 = vld [vmem:[%s1 + $0x27c8] sm:$0xff]
  %v1326 = vld [vmem:[%s1 + $0x27d0] sm:$0xff]
  %v1327 = vld [vmem:[%s1 + $0x27d8] sm:$0xff]
  %v1328 = vld [vmem:[%s1 + $0x27e0] sm:$0xff]
  %v1329 = vld [vmem:[%s1 + $0x27e8] sm:$0xff]
  %v1330 = vld [vmem:[%s1 + $0x27f0] sm:$0xff]
  %v1331 = vld [vmem:[%s1 + $0x27f8] sm:$0xff]
  %v1332 = vld [vmem:[%s1 + $0x2800] sm:$0xff]
  %v1333 = vld [vmem:[%s1 + $0x2808] sm:$0xff]
  %v1334 = vld [vmem:[%s1 + $0x2810] sm:$0xff]
  %v1335 = vld [vmem:[%s1 + $0x2818] sm:$0xff]
  %v1336 = vld [vmem:[%s1 + $0x2820] sm:$0xff]
  %v1337 = vld [vmem:[%s1 + $0x2828] sm:$0xff]
  %v1338 = vld [vmem:[%s1 + $0x2830] sm:$0xff]
  %v1339 = vld [vmem:[%s1 + $0x2838] sm:$0xff]
  %v1340 = vld [vmem:[%s1 + $0x2840] sm:$0xff]
  %v1341 = vld [vmem:[%s1 + $0x2848] sm:$0xff]
  %v1342 = vld [vmem:[%s1 + $0x2850] sm:$0xff]
  %v1343 = vld [vmem:[%s1 + $0x2858] sm:$0xff]
  %v1344 = vld [vmem:[%s1 + $0x2860] sm:$0xff]
  %v1345 = vld [vmem:[%s1 + $0x2868] sm:$0xff]
  %v1346 = vld [vmem:[%s1 + $0x2870] sm:$0xff]
  %v1347 = vld [vmem:[%s1 + $0x2878] sm:$0xff]
  %v1348 = vld [vmem:[%s1 + $0x2880] sm:$0xff]
  %v1349 = vld [vmem:[%s1 + $0x2888] sm:$0xff]
  %v1350 = vld [vmem:[%s1 + $0x2890] sm:$0xff]
  %v1351 = vld [vmem:[%s1 + $0x2898] sm:$0xff]
  %v1352 = vld [vmem:[%s1 + $0x28a0] sm:$0xff]
  %v1353 = vld [vmem:[%s1 + $0x28a8] sm:$0xff]
  %v1354 = vld [vmem:[%s1 + $0x28b0] sm:$0xff]
  %v1355 = vld [vmem:[%s1 + $0x28b8] sm:$0xff]
  %v1356 = vld [vmem:[%s1 + $0x28c0] sm:$0xff]
  %v1357 = vld [vmem:[%s1 + $0x28c8] sm:$0xff]
  %v1358 = vld [vmem:[%s1 + $0x28d0] sm:$0xff]
  %v1359 = vld [vmem:[%s1 + $0x28d8] sm:$0xff]
  %v1360 = vld [vmem:[%s1 + $0x28e0] sm:$0xff]
  %v1361 = vld [vmem:[%s1 + $0x28e8] sm:$0xff]
  %v1362 = vld [vmem:[%s1 + $0x28f0] sm:$0xff]
  %v1363 = vld [vmem:[%s1 + $0x28f8] sm:$0xff]
  %v1364 = vld [vmem:[%s1 + $0x2900] sm:$0xff]
  %v1365 = vld [vmem:[%s1 + $0x2908] sm:$0xff]
  %v1366 = vld [vmem:[%s1 + $0x2910] sm:$0xff]
  %v1367 = vld [vmem:[%s1 + $0x2918] sm:$0xff]
  %v1368 = vld [vmem:[%s1 + $0x2920] sm:$0xff]
  %v1369 = vld [vmem:[%s1 + $0x2928] sm:$0xff]
  %v1370 = vld [vmem:[%s1 + $0x2930] sm:$0xff]
  %v1371 = vld [vmem:[%s1 + $0x2938] sm:$0xff]
  %v1372 = vld [vmem:[%s1 + $0x2940] sm:$0xff]
  %v1373 = vld [vmem:[%s1 + $0x2948] sm:$0xff]
  %v1374 = vld [vmem:[%s1 + $0x2950] sm:$0xff]
  %v1375 = vld [vmem:[%s1 + $0x2958] sm:$0xff]
  %v1376 = vld [vmem:[%s1 + $0x2960] sm:$0xff]
  %v1377 = vld [vmem:[%s1 + $0x2968] sm:$0xff]
  %v1378 = vld [vmem:[%s1 + $0x2970] sm:$0xff]
  %v1379 = vld [vmem:[%s1 + $0x2978] sm:$0xff]
  %v1380 = vld [vmem:[%s1 + $0x2980] sm:$0xff]
  %v1381 = vld [vmem:[%s1 + $0x2988] sm:$0xff]
  %v1382 = vld [vmem:[%s1 + $0x2990] sm:$0xff]
  %v1383 = vld [vmem:[%s1 + $0x2998] sm:$0xff]
  %v1384 = vld [vmem:[%s1 + $0x29a0] sm:$0xff]
  %v1385 = vld [vmem:[%s1 + $0x29a8] sm:$0xff]
  %v1386 = vld [vmem:[%s1 + $0x29b0] sm:$0xff]
  %v1387 = vld [vmem:[%s1 + $0x29b8] sm:$0xff]
  %v1388 = vld [vmem:[%s1 + $0x29c0] sm:$0xff]
  %v1389 = vld [vmem:[%s1 + $0x29c8] sm:$0xff]
  %v1390 = vld [vmem:[%s1 + $0x29d0] sm:$0xff]
  %v1391 = vld [vmem:[%s1 + $0x29d8] sm:$0xff]
  %v1392 = vld [vmem:[%s1 + $0x29e0] sm:$0xff]
  %v1393 = vld [vmem:[%s1 + $0x29e8] sm:$0xff]
  %v1394 = vld [vmem:[%s1 + $0x29f0] sm:$0xff]
  %v1395 = vld [vmem:[%s1 + $0x29f8] sm:$0xff]
  %v1396 = vld [vmem:[%s1 + $0x2a00] sm:$0xff]
  %v1397 = vld [vmem:[%s1 + $0x2a08] sm:$0xff]
  %v1398 = vld [vmem:[%s1 + $0x2a10] sm:$0xff]
  %v1399 = vld [vmem:[%s1 + $0x2a18] sm:$0xff]
  %v1400 = vld [vmem:[%s1 + $0x2a20] sm:$0xff]
  %v1401 = vld [vmem:[%s1 + $0x2a28] sm:$0xff]
  %v1402 = vld [vmem:[%s1 + $0x2a30] sm:$0xff]
  %v1403 = vld [vmem:[%s1 + $0x2a38] sm:$0xff]
  %v1404 = vld [vmem:[%s1 + $0x2a40] sm:$0xff]
  %v1405 = vld [vmem:[%s1 + $0x2a48] sm:$0xff]
  %v1406 = vld [vmem:[%s1 + $0x2a50] sm:$0xff]
  %v1407 = vld [vmem:[%s1 + $0x2a58] sm:$0xff]
  %v1408 = vld [vmem:[%s1 + $0x2a60] sm:$0xff]
  %v1409 = vld [vmem:[%s1 + $0x2a68] sm:$0xff]
  %v1410 = vld [vmem:[%s1 + $0x2a70] sm:$0xff]
  %v1411 = vld [vmem:[%s1 + $0x2a78] sm:$0xff]
  %v1412 = vld [vmem:[%s1 + $0x2a80] sm:$0xff]
  %v1413 = vld [vmem:[%s1 + $0x2a88] sm:$0xff]
  %v1414 = vld [vmem:[%s1 + $0x2a90] sm:$0xff]
  %v1415 = vld [vmem:[%s1 + $0x2a98] sm:$0xff]
  %v1416 = vld [vmem:[%s1 + $0x2aa0] sm:$0xff]
  %v1417 = vld [vmem:[%s1 + $0x2aa8] sm:$0xff]
  %v1418 = vld [vmem:[%s1 + $0x2ab0] sm:$0xff]
  %v1419 = vld [vmem:[%s1 + $0x2ab8] sm:$0xff]
  %v1420 = vld [vmem:[%s1 + $0x2ac0] sm:$0xff]
  %v1421 = vld [vmem:[%s1 + $0x2ac8] sm:$0xff]
  %v1422 = vld [vmem:[%s1 + $0x2ad0] sm:$0xff]
  %v1423 = vld [vmem:[%s1 + $0x2ad8] sm:$0xff]
  %v1424 = vld [vmem:[%s1 + $0x2ae0] sm:$0xff]
  %v1425 = vld [vmem:[%s1 + $0x2ae8] sm:$0xff]
  %v1426 = vld [vmem:[%s1 + $0x2af0] sm:$0xff]
  %v1427 = vld [vmem:[%s1 + $0x2af8] sm:$0xff]
  %v1428 = vld [vmem:[%s1 + $0x2b00] sm:$0xff]
  %v1429 = vld [vmem:[%s1 + $0x2b08] sm:$0xff]
  %v1430 = vld [vmem:[%s1 + $0x2b10] sm:$0xff]
  %v1431 = vld [vmem:[%s1 + $0x2b18] sm:$0xff]
  %v1432 = vld [vmem:[%s1 + $0x2b20] sm:$0xff]
  %v1433 = vld [vmem:[%s1 + $0x2b28] sm:$0xff]
  %v1434 = vld [vmem:[%s1 + $0x2b30] sm:$0xff]
  %v1435 = vld [vmem:[%s1 + $0x2b38] sm:$0xff]
  %v1436 = vld [vmem:[%s1 + $0x2b40] sm:$0xff]
  %v1437 = vld [vmem:[%s1 + $0x2b48] sm:$0xff]
  %v1438 = vld [vmem:[%s1 + $0x2b50] sm:$0xff]
  %v1439 = vld [vmem:[%s1 + $0x2b58] sm:$0xff]
  %v1440 = vld [vmem:[%s1 + $0x2b60] sm:$0xff]
  %v1441 = vld [vmem:[%s1 + $0x2b68] sm:$0xff]
  %v1442 = vld [vmem:[%s1 + $0x2b70] sm:$0xff]
  %v1443 = vld [vmem:[%s1 + $0x2b78] sm:$0xff]
  %v1444 = vld [vmem:[%s1 + $0x2b80] sm:$0xff]
  %v1445 = vld [vmem:[%s1 + $0x2b88] sm:$0xff]
  %v1446 = vld [vmem:[%s1 + $0x2b90] sm:$0xff]
  %v1447 = vld [vmem:[%s1 + $0x2b98] sm:$0xff]
  %v1448 = vld [vmem:[%s1 + $0x2ba0] sm:$0xff]
  %v1449 = vld [vmem:[%s1 + $0x2ba8] sm:$0xff]
  %v1450 = vld [vmem:[%s1 + $0x2bb0] sm:$0xff]
  %v1451 = vld [vmem:[%s1 + $0x2bb8] sm:$0xff]
  %v1452 = vld [vmem:[%s1 + $0x2bc0] sm:$0xff]
  %v1453 = vld [vmem:[%s1 + $0x2bc8] sm:$0xff]
  %v1454 = vld [vmem:[%s1 + $0x2bd0] sm:$0xff]
  %v1455 = vld [vmem:[%s1 + $0x2bd8] sm:$0xff]
  %v1456 = vld [vmem:[%s1 + $0x2be0] sm:$0xff]
  %v1457 = vld [vmem:[%s1 + $0x2be8] sm:$0xff]
  %v1458 = vld [vmem:[%s1 + $0x2bf0] sm:$0xff]
  %v1459 = vld [vmem:[%s1 + $0x2bf8] sm:$0xff]
  %v1460 = vld [vmem:[%s1 + $0x2c00] sm:$0xff]
  %v1461 = vld [vmem:[%s1 + $0x2c08] sm:$0xff]
  %v1462 = vld [vmem:[%s1 + $0x2c10] sm:$0xff]
  %v1463 = vld [vmem:[%s1 + $0x2c18] sm:$0xff]
  %v1464 = vld [vmem:[%s1 + $0x2c20] sm:$0xff]
  %v1465 = vld [vmem:[%s1 + $0x2c28] sm:$0xff]
  %v1466 = vld [vmem:[%s1 + $0x2c30] sm:$0xff]
  %v1467 = vld [vmem:[%s1 + $0x2c38] sm:$0xff]
  %v1468 = vld [vmem:[%s1 + $0x2c40] sm:$0xff]
  %v1469 = vld [vmem:[%s1 + $0x2c48] sm:$0xff]
  %v1470 = vld [vmem:[%s1 + $0x2c50] sm:$0xff]
  %v1471 = vld [vmem:[%s1 + $0x2c58] sm:$0xff]
  %v1472 = vld [vmem:[%s1 + $0x2c60] sm:$0xff]
  %v1473 = vld [vmem:[%s1 + $0x2c68] sm:$0xff]
  %v1474 = vld [vmem:[%s1 + $0x2c70] sm:$0xff]
  %v1475 = vld [vmem:[%s1 + $0x2c78] sm:$0xff]
  %v1476 = vld [vmem:[%s1 + $0x2c80] sm:$0xff]
  %v1477 = vld [vmem:[%s1 + $0x2c88] sm:$0xff]
  %v1478 = vld [vmem:[%s1 + $0x2c90] sm:$0xff]
  %v1479 = vld [vmem:[%s1 + $0x2c98] sm:$0xff]
  %v1480 = vld [vmem:[%s1 + $0x2ca0] sm:$0xff]
  %v1481 = vld [vmem:[%s1 + $0x2ca8] sm:$0xff]
  %v1482 = vld [vmem:[%s1 + $0x2cb0] sm:$0xff]
  %v1483 = vld [vmem:[%s1 + $0x2cb8] sm:$0xff]
  %v1484 = vld [vmem:[%s1 + $0x2cc0] sm:$0xff]
  %v1485 = vld [vmem:[%s1 + $0x2cc8] sm:$0xff]
  %v1486 = vld [vmem:[%s1 + $0x2cd0] sm:$0xff]
  %v1487 = vld [vmem:[%s1 + $0x2cd8] sm:$0xff]
  %v1488 = vld [vmem:[%s1 + $0x2ce0] sm:$0xff]
  %v1489 = vld [vmem:[%s1 + $0x2ce8] sm:$0xff]
  %v1490 = vld [vmem:[%s1 + $0x2cf0] sm:$0xff]
  %v1491 = vld [vmem:[%s1 + $0x2cf8] sm:$0xff]
  %v1492 = vld [vmem:[%s1 + $0x2d00] sm:$0xff]
  %v1493 = vld [vmem:[%s1 + $0x2d08] sm:$0xff]
  %v1494 = vld [vmem:[%s1 + $0x2d10] sm:$0xff]
  %v1495 = vld [vmem:[%s1 + $0x2d18] sm:$0xff]
  %v1496 = vld [vmem:[%s1 + $0x2d20] sm:$0xff]
  %v1497 = vld [vmem:[%s1 + $0x2d28] sm:$0xff]
  %v1498 = vld [vmem:[%s1 + $0x2d30] sm:$0xff]
  %v1499 = vld [vmem:[%s1 + $0x2d38] sm:$0xff]
  %v1500 = vld [vmem:[%s1 + $0x2d40] sm:$0xff]
  %v1501 = vld [vmem:[%s1 + $0x2d48] sm:$0xff]
  %v1502 = vld [vmem:[%s1 + $0x2d50] sm:$0xff]
  %v1503 = vld [vmem:[%s1 + $0x2d58] sm:$0xff]
  %v1504 = vld [vmem:[%s1 + $0x2d60] sm:$0xff]
  %v1505 = vld [vmem:[%s1 + $0x2d68] sm:$0xff]
  %v1506 = vld [vmem:[%s1 + $0x2d70] sm:$0xff]
  %v1507 = vld [vmem:[%s1 + $0x2d78] sm:$0xff]
  %v1508 = vld [vmem:[%s1 + $0x2d80] sm:$0xff]
  %v1509 = vld [vmem:[%s1 + $0x2d88] sm:$0xff]
  %v1510 = vld [vmem:[%s1 + $0x2d90] sm:$0xff]
  %v1511 = vld [vmem:[%s1 + $0x2d98] sm:$0xff]
  %v1512 = vld [vmem:[%s1 + $0x2da0] sm:$0xff]
  %v1513 = vld [vmem:[%s1 + $0x2da8] sm:$0xff]
  %v1514 = vld [vmem:[%s1 + $0x2db0] sm:$0xff]
  %v1515 = vld [vmem:[%s1 + $0x2db8] sm:$0xff]
  %v1516 = vld [vmem:[%s1 + $0x2dc0] sm:$0xff]
  %v1517 = vld [vmem:[%s1 + $0x2dc8] sm:$0xff]
  %v1518 = vld [vmem:[%s1 + $0x2dd0] sm:$0xff]
  %v1519 = vld [vmem:[%s1 + $0x2dd8] sm:$0xff]
  %v1520 = vld [vmem:[%s1 + $0x2de0] sm:$0xff]
  %v1521 = vld [vmem:[%s1 + $0x2de8] sm:$0xff]
  %v1522 = vld [vmem:[%s1 + $0x2df0] sm:$0xff]
  %v1523 = vld [vmem:[%s1 + $0x2df8] sm:$0xff]
  %v1524 = vld [vmem:[%s1 + $0x2e00] sm:$0xff]
  %v1525 = vld [vmem:[%s1 + $0x2e08] sm:$0xff]
  %v1526 = vld [vmem:[%s1 + $0x2e10] sm:$0xff]
  %v1527 = vld [vmem:[%s1 + $0x2e18] sm:$0xff]
  %v1528 = vld [vmem:[%s1 + $0x2e20] sm:$0xff]
  %v1529 = vld [vmem:[%s1 + $0x2e28] sm:$0xff]
  %v1530 = vld [vmem:[%s1 + $0x2e30] sm:$0xff]
  %v1531 = vld [vmem:[%s1 + $0x2e38] sm:$0xff]
  %v1532 = vld [vmem:[%s1 + $0x2e40] sm:$0xff]
  %v1533 = vld [vmem:[%s1 + $0x2e48] sm:$0xff]
  %v1534 = vld [vmem:[%s1 + $0x2e50] sm:$0xff]
  %v1535 = vld [vmem:[%s1 + $0x2e58] sm:$0xff]
  %v1536 = vld [vmem:[%s1 + $0x2e60] sm:$0xff]
  %v1537 = vld [vmem:[%s1 + $0x2e68] sm:$0xff]
  %v1538 = vld [vmem:[%s1 + $0x2e70] sm:$0xff]
  %v1539 = vld [vmem:[%s1 + $0x2e78] sm:$0xff]
  %v1540 = vld [vmem:[%s1 + $0x2e80] sm:$0xff]
  %v1541 = vld [vmem:[%s1 + $0x2e88] sm:$0xff]
  %v1542 = vld [vmem:[%s1 + $0x2e90] sm:$0xff]
  %v1543 = vld [vmem:[%s1 + $0x2e98] sm:$0xff]
  %v1544 = vld [vmem:[%s1 + $0x2ea0] sm:$0xff]
  %v1545 = vld [vmem:[%s1 + $0x2ea8] sm:$0xff]
  %v1546 = vld [vmem:[%s1 + $0x2eb0] sm:$0xff]
  %v1547 = vld [vmem:[%s1 + $0x2eb8] sm:$0xff]
  %v1548 = vld [vmem:[%s1 + $0x2ec0] sm:$0xff]
  %v1549 = vld [vmem:[%s1 + $0x2ec8] sm:$0xff]
  %v1550 = vld [vmem:[%s1 + $0x2ed0] sm:$0xff]
  %v1551 = vld [vmem:[%s1 + $0x2ed8] sm:$0xff]
  %v1552 = vld [vmem:[%s1 + $0x2ee0] sm:$0xff]
  %v1553 = vld [vmem:[%s1 + $0x2ee8] sm:$0xff]
  %v1554 = vld [vmem:[%s1 + $0x2ef0] sm:$0xff]
  %v1555 = vld [vmem:[%s1 + $0x2ef8] sm:$0xff]
  %v1556 = vld [vmem:[%s1 + $0x2f00] sm:$0xff]
  %v1557 = vld [vmem:[%s1 + $0x2f08] sm:$0xff]
  %v1558 = vld [vmem:[%s1 + $0x2f10] sm:$0xff]
  %v1559 = vld [vmem:[%s1 + $0x2f18] sm:$0xff]
  %v1560 = vld [vmem:[%s1 + $0x2f20] sm:$0xff]
  %v1561 = vld [vmem:[%s1 + $0x2f28] sm:$0xff]
  %v1562 = vld [vmem:[%s1 + $0x2f30] sm:$0xff]
  %v1563 = vld [vmem:[%s1 + $0x2f38] sm:$0xff]
  %v1564 = vld [vmem:[%s1 + $0x2f40] sm:$0xff]
  %v1565 = vld [vmem:[%s1 + $0x2f48] sm:$0xff]
  %v1566 = vld [vmem:[%s1 + $0x2f50] sm:$0xff]
  %v1567 = vld [vmem:[%s1 + $0x2f58] sm:$0xff]
  %v1568 = vld [vmem:[%s1 + $0x2f60] sm:$0xff]
  %v1569 = vld [vmem:[%s1 + $0x2f68] sm:$0xff]
  %v1570 = vld [vmem:[%s1 + $0x2f70] sm:$0xff]
  %v1571 = vld [vmem:[%s1 + $0x2f78] sm:$0xff]
  %v1572 = vld [vmem:[%s1 + $0x2f80] sm:$0xff]
  %v1573 = vld [vmem:[%s1 + $0x2f88] sm:$0xff]
  %v1574 = vld [vmem:[%s1 + $0x2f90] sm:$0xff]
  %v1575 = vld [vmem:[%s1 + $0x2f98] sm:$0xff]
  %v1576 = vld [vmem:[%s1 + $0x2fa0] sm:$0xff]
  %v1577 = vld [vmem:[%s1 + $0x2fa8] sm:$0xff]
  %v1578 = vld [vmem:[%s1 + $0x2fb0] sm:$0xff]
  %v1579 = vld [vmem:[%s1 + $0x2fb8] sm:$0xff]
  %v1580 = vld [vmem:[%s1 + $0x2fc0] sm:$0xff]
  %v1581 = vld [vmem:[%s1 + $0x2fc8] sm:$0xff]
  %v1582 = vld [vmem:[%s1 + $0x2fd0] sm:$0xff]
  %v1583 = vld [vmem:[%s1 + $0x2fd8] sm:$0xff]
  %v1584 = vld [vmem:[%s1 + $0x2fe0] sm:$0xff]
  %v1585 = vld [vmem:[%s1 + $0x2fe8] sm:$0xff]
  %v1586 = vld [vmem:[%s1 + $0x2ff0] sm:$0xff]
  %v1587 = vld [vmem:[%s1 + $0x2ff8] sm:$0xff]
  %v1588 = vld [vmem:[%s1 + $0x3000] sm:$0xff]
  %v1589 = vld [vmem:[%s1 + $0x3008] sm:$0xff]
  %v1590 = vld [vmem:[%s1 + $0x3010] sm:$0xff]
  %v1591 = vld [vmem:[%s1 + $0x3018] sm:$0xff]
  %v1592 = vld [vmem:[%s1 + $0x3020] sm:$0xff]
  %v1593 = vld [vmem:[%s1 + $0x3028] sm:$0xff]
  %v1594 = vld [vmem:[%s1 + $0x3030] sm:$0xff]
  %v1595 = vld [vmem:[%s1 + $0x3038] sm:$0xff]
  %v1596 = vld [vmem:[%s1 + $0x3040] sm:$0xff]
  %v1597 = vld [vmem:[%s1 + $0x3048] sm:$0xff]
  %v1598 = vld [vmem:[%s1 + $0x3050] sm:$0xff]
  %v1599 = vld [vmem:[%s1 + $0x3058] sm:$0xff]
  %v1600 = vld [vmem:[%s1 + $0x3060] sm:$0xff]
  %v1601 = vld [vmem:[%s1 + $0x3068] sm:$0xff]
  %v1602 = vld [vmem:[%s1 + $0x3070] sm:$0xff]
  %v1603 = vld [vmem:[%s1 + $0x3078] sm:$0xff]
  %v1604 = vld [vmem:[%s1 + $0x3080] sm:$0xff]
  %v1605 = vld [vmem:[%s1 + $0x3088] sm:$0xff]
  %v1606 = vld [vmem:[%s1 + $0x3090] sm:$0xff]
  %v1607 = vld [vmem:[%s1 + $0x3098] sm:$0xff]
  %v1608 = vld [vmem:[%s1 + $0x30a0] sm:$0xff]
  %v1609 = vld [vmem:[%s1 + $0x30a8] sm:$0xff]
  %v1610 = vld [vmem:[%s1 + $0x30b0] sm:$0xff]
  %v1611 = vld [vmem:[%s1 + $0x30b8] sm:$0xff]
  %v1612 = vld [vmem:[%s1 + $0x30c0] sm:$0xff]
  %v1613 = vld [vmem:[%s1 + $0x30c8] sm:$0xff]
  %v1614 = vld [vmem:[%s1 + $0x30d0] sm:$0xff]
  %v1615 = vld [vmem:[%s1 + $0x30d8] sm:$0xff]
  %v1616 = vld [vmem:[%s1 + $0x30e0] sm:$0xff]
  %v1617 = vld [vmem:[%s1 + $0x30e8] sm:$0xff]
  %v1618 = vld [vmem:[%s1 + $0x30f0] sm:$0xff]
  %v1619 = vld [vmem:[%s1 + $0x30f8] sm:$0xff]
  %v1620 = vld [vmem:[%s1 + $0x3100] sm:$0xff]
  %v1621 = vld [vmem:[%s1 + $0x3108] sm:$0xff]
  %v1622 = vld [vmem:[%s1 + $0x3110] sm:$0xff]
  %v1623 = vld [vmem:[%s1 + $0x3118] sm:$0xff]
  %v1624 = vld [vmem:[%s1 + $0x3120] sm:$0xff]
  %v1625 = vld [vmem:[%s1 + $0x3128] sm:$0xff]
  %v1626 = vld [vmem:[%s1 + $0x3130] sm:$0xff]
  %v1627 = vld [vmem:[%s1 + $0x3138] sm:$0xff]
  %v1628 = vld [vmem:[%s1 + $0x3140] sm:$0xff]
  %v1629 = vld [vmem:[%s1 + $0x3148] sm:$0xff]
  %v1630 = vld [vmem:[%s1 + $0x3150] sm:$0xff]
  %v1631 = vld [vmem:[%s1 + $0x3158] sm:$0xff]
  %v1632 = vld [vmem:[%s1 + $0x3160] sm:$0xff]
  %v1633 = vld [vmem:[%s1 + $0x3168] sm:$0xff]
  %v1634 = vld [vmem:[%s1 + $0x3170] sm:$0xff]
  %v1635 = vld [vmem:[%s1 + $0x3178] sm:$0xff]
  %v1636 = vld [vmem:[%s1 + $0x3180] sm:$0xff]
  %v1637 = vld [vmem:[%s1 + $0x3188] sm:$0xff]
  %v1638 = vld [vmem:[%s1 + $0x3190] sm:$0xff]
  %v1639 = vld [vmem:[%s1 + $0x3198] sm:$0xff]
  %v1640 = vld [vmem:[%s1 + $0x31a0] sm:$0xff]
  %v1641 = vld [vmem:[%s1 + $0x31a8] sm:$0xff]
  %v1642 = vld [vmem:[%s1 + $0x31b0] sm:$0xff]
  %v1643 = vld [vmem:[%s1 + $0x31b8] sm:$0xff]
  %v1644 = vld [vmem:[%s1 + $0x31c0] sm:$0xff]
  %v1645 = vld [vmem:[%s1 + $0x31c8] sm:$0xff]
  %v1646 = vld [vmem:[%s1 + $0x31d0] sm:$0xff]
  %v1647 = vld [vmem:[%s1 + $0x31d8] sm:$0xff]
  %v1648 = vld [vmem:[%s1 + $0x31e0] sm:$0xff]
  %v1649 = vld [vmem:[%s1 + $0x31e8] sm:$0xff]
  %v1650 = vld [vmem:[%s1 + $0x31f0] sm:$0xff]
  %v1651 = vld [vmem:[%s1 + $0x31f8] sm:$0xff]
  %v1652 = vld [vmem:[%s1 + $0x3200] sm:$0xff]
  %v1653 = vld [vmem:[%s1 + $0x3208] sm:$0xff]
  %v1654 = vld [vmem:[%s1 + $0x3210] sm:$0xff]
  %v1655 = vld [vmem:[%s1 + $0x3218] sm:$0xff]
  %v1656 = vld [vmem:[%s1 + $0x3220] sm:$0xff]
  %v1657 = vld [vmem:[%s1 + $0x3228] sm:$0xff]
  %v1658 = vld [vmem:[%s1 + $0x3230] sm:$0xff]
  %v1659 = vld [vmem:[%s1 + $0x3238] sm:$0xff]
  %v1660 = vld [vmem:[%s1 + $0x3240] sm:$0xff]
  %v1661 = vld [vmem:[%s1 + $0x3248] sm:$0xff]
  %v1662 = vld [vmem:[%s1 + $0x3250] sm:$0xff]
  %v1663 = vld [vmem:[%s1 + $0x3258] sm:$0xff]
  %v1664 = vld [vmem:[%s1 + $0x3260] sm:$0xff]
  %v1665 = vld [vmem:[%s1 + $0x3268] sm:$0xff]
  %v1666 = vld [vmem:[%s1 + $0x3270] sm:$0xff]
  %v1667 = vld [vmem:[%s1 + $0x3278] sm:$0xff]
  %v1668 = vld [vmem:[%s1 + $0x3280] sm:$0xff]
  %v1669 = vld [vmem:[%s1 + $0x3288] sm:$0xff]
  %v1670 = vld [vmem:[%s1 + $0x3290] sm:$0xff]
  %v1671 = vld [vmem:[%s1 + $0x3298] sm:$0xff]
  %v1672 = vld [vmem:[%s1 + $0x32a0] sm:$0xff]
  %v1673 = vld [vmem:[%s1 + $0x32a8] sm:$0xff]
  %v1674 = vld [vmem:[%s1 + $0x32b0] sm:$0xff]
  %v1675 = vld [vmem:[%s1 + $0x32b8] sm:$0xff]
  %v1676 = vld [vmem:[%s1 + $0x32c0] sm:$0xff]
  %v1677 = vld [vmem:[%s1 + $0x32c8] sm:$0xff]
  %v1678 = vld [vmem:[%s1 + $0x32d0] sm:$0xff]
  %v1679 = vld [vmem:[%s1 + $0x32d8] sm:$0xff]
  %v1680 = vld [vmem:[%s1 + $0x32e0] sm:$0xff]
  %v1681 = vld [vmem:[%s1 + $0x32e8] sm:$0xff]
  %v1682 = vld [vmem:[%s1 + $0x32f0] sm:$0xff]
  %v1683 = vld [vmem:[%s1 + $0x32f8] sm:$0xff]
  %v1684 = vld [vmem:[%s1 + $0x3300] sm:$0xff]
  %v1685 = vld [vmem:[%s1 + $0x3308] sm:$0xff]
  %v1686 = vld [vmem:[%s1 + $0x3310] sm:$0xff]
  %v1687 = vld [vmem:[%s1 + $0x3318] sm:$0xff]
  %v1688 = vld [vmem:[%s1 + $0x3320] sm:$0xff]
  %v1689 = vld [vmem:[%s1 + $0x3328] sm:$0xff]
  %v1690 = vld [vmem:[%s1 + $0x3330] sm:$0xff]
  %v1691 = vld [vmem:[%s1 + $0x3338] sm:$0xff]
  %v1692 = vld [vmem:[%s1 + $0x3340] sm:$0xff]
  %v1693 = vld [vmem:[%s1 + $0x3348] sm:$0xff]
  %v1694 = vld [vmem:[%s1 + $0x3350] sm:$0xff]
  %v1695 = vld [vmem:[%s1 + $0x3358] sm:$0xff]
  %v1696 = vld [vmem:[%s1 + $0x3360] sm:$0xff]
  %v1697 = vld [vmem:[%s1 + $0x3368] sm:$0xff]
  %v1698 = vld [vmem:[%s1 + $0x3370] sm:$0xff]
  %v1699 = vld [vmem:[%s1 + $0x3378] sm:$0xff]
  %v1700 = vld [vmem:[%s1 + $0x3380] sm:$0xff]
  %v1701 = vld [vmem:[%s1 + $0x3388] sm:$0xff]
  %v1702 = vld [vmem:[%s1 + $0x3390] sm:$0xff]
  %v1703 = vld [vmem:[%s1 + $0x3398] sm:$0xff]
  %v1704 = vld [vmem:[%s1 + $0x33a0] sm:$0xff]
  %v1705 = vld [vmem:[%s1 + $0x33a8] sm:$0xff]
  %v1706 = vld [vmem:[%s1 + $0x33b0] sm:$0xff]
  %v1707 = vld [vmem:[%s1 + $0x33b8] sm:$0xff]
  %v1708 = vld [vmem:[%s1 + $0x33c0] sm:$0xff]
  %v1709 = vld [vmem:[%s1 + $0x33c8] sm:$0xff]
  %v1710 = vld [vmem:[%s1 + $0x33d0] sm:$0xff]
  %v1711 = vld [vmem:[%s1 + $0x33d8] sm:$0xff]
  %v1712 = vld [vmem:[%s1 + $0x33e0] sm:$0xff]
  %v1713 = vld [vmem:[%s1 + $0x33e8] sm:$0xff]
  %v1714 = vld [vmem:[%s1 + $0x33f0] sm:$0xff]
  %v1715 = vld [vmem:[%s1 + $0x33f8] sm:$0xff]
  %v1716 = vld [vmem:[%s2] sm:$0xff]
  %v1717 = vld [vmem:[%s2 + $0x8] sm:$0x1f]
  %v1720 = vlaneseq
  %v1721 = vshrl.u32 %v1720, 7
  %v1722 = vsub.s32 0, %v1721
  %v1723 = vrot.slane %v1716, %v1722
  %v1724 = vlaneseq
  %v1725 = vshrl.u32 %v1724, 7
  %v1726 = vsub.s32 1, %v1725
  %v1727 = vrot.slane %v1716, %v1726
  %v1728 = vlaneseq
  %v1729 = vshrl.u32 %v1728, 7
  %v1730 = vsub.s32 2, %v1729
  %v1731 = vrot.slane %v1716, %v1730
  %v1732 = vlaneseq
  %v1733 = vshrl.u32 %v1732, 7
  %v1734 = vsub.s32 3, %v1733
  %v1735 = vrot.slane %v1716, %v1734
  %v1736 = vlaneseq
  %v1737 = vshrl.u32 %v1736, 7
  %v1738 = vsub.s32 4, %v1737
  %v1739 = vrot.slane %v1716, %v1738
  %v1740 = vlaneseq
  %v1741 = vshrl.u32 %v1740, 7
  %v1742 = vsub.s32 5, %v1741
  %v1743 = vrot.slane %v1716, %v1742
  %v1744 = vlaneseq
  %v1745 = vshrl.u32 %v1744, 7
  %v1746 = vsub.s32 6, %v1745
  %v1747 = vrot.slane %v1716, %v1746
  %v1748 = vlaneseq
  %v1749 = vshrl.u32 %v1748, 7
  %v1750 = vsub.s32 7, %v1749
  %v1751 = vrot.slane %v1716, %v1750
  %v1752 = vlaneseq
  %v1753 = vshrl.u32 %v1752, 7
  %v1754 = vsub.s32 0, %v1753
  %v1755 = vrot.slane %v1717, %v1754
  %v1756 = vlaneseq
  %v1757 = vshrl.u32 %v1756, 7
  %v1758 = vsub.s32 1, %v1757
  %v1759 = vrot.slane %v1717, %v1758
  %v1760 = vlaneseq
  %v1761 = vshrl.u32 %v1760, 7
  %v1762 = vsub.s32 2, %v1761
  %v1763 = vrot.slane %v1717, %v1762
  %v1764 = vlaneseq
  %v1765 = vshrl.u32 %v1764, 7
  %v1766 = vsub.s32 3, %v1765
  %v1767 = vrot.slane %v1717, %v1766
  %v1768 = vlaneseq
  %v1769 = vshrl.u32 %v1768, 7
  %v1770 = vsub.s32 4, %v1769
  %v1771 = vrot.slane %v1717, %v1770
  %v1787 = vcombine.high %v50, %v50
  %v1789 = vunpack.c.l.s4 1983009808
  %v1790 = vunpack.c.0.s8 %v1789
  %v1791 = vlaneseq
  %v1792 = vshrl.u32 %v1791, 7
  %v1793 = vsub.s32 %v1790, %v1792
  %v1794 = vrot.slane %v50, %v1793
  %v1796 = vunpack.c.l.s4 1983009808
  %v1797 = vunpack.c.0.s8 %v1796
  %v1798 = vlaneseq
  %v1799 = vshrl.u32 %v1798, 7
  %v1800 = vsub.s32 %v1797, %v1799
  %v1801 = vrot.slane %v1787, %v1800
  %v1802 = vcombine.high %v1794, %v1794
  %v1803 = vcombine.high %v1801, %v1801
  %v1804 = vcombine.high %v51, %v51
  %v1806 = vunpack.c.l.s4 1983009808
  %v1807 = vunpack.c.0.s8 %v1806
  %v1808 = vlaneseq
  %v1809 = vshrl.u32 %v1808, 7
  %v1810 = vsub.s32 %v1807, %v1809
  %v1811 = vrot.slane %v51, %v1810
  %v1813 = vunpack.c.l.s4 1983009808
  %v1814 = vunpack.c.0.s8 %v1813
  %v1815 = vlaneseq
  %v1816 = vshrl.u32 %v1815, 7
  %v1817 = vsub.s32 %v1814, %v1816
  %v1818 = vrot.slane %v1804, %v1817
  %v1819 = vcombine.high %v1811, %v1811
  %v1820 = vcombine.high %v1818, %v1818
  %1829 = vmatprep.subr.mxu0 %v248
  %1830 = vmatpush1.msra.mxu0 %v247
  %1831 = vmatprep.subr.mxu0 %v235
  %1832 = vmatpush1.msra.mxu0 %v234
  %1833 = vmatprep.subr.mxu0 %v222
  %1834 = vmatpush1.msra.mxu0 %v221
  %1835 = vmatprep.subr.mxu0 %v209
  %1836 = vmatpush1.msra.mxu0 %v208
  %1837 = vmatprep.subr.mxu0 %v196
  %1838 = vmatpush1.msra.mxu0 %v195
  %1839 = vmatprep.subr.mxu0 %v183
  %1840 = vmatpush1.msra.mxu0 %v182
  %1841 = vmatprep.subr.mxu0 %v170
  %1842 = vmatpush1.msra.mxu0 %v169
  %1843 = vmatprep.subr.mxu0 %v157
  %1844 = vmatpush1.msra.mxu0 %v156
  %1845 = vmatprep.subr.mxu0 %v144
  %1846 = vmatpush1.msra.mxu0 %v143
  %1847 = vmatprep.subr.mxu0 %v131
  %1848 = vmatpush1.msra.mxu0 %v130
  %1849 = vmatprep.subr.mxu0 %v118
  %1850 = vmatpush1.msra.mxu0 %v117
  %1851 = vmatprep.subr.mxu0 %v105
  %1852 = vmatpush1.msra.mxu0 %v104
  %1853 = vmatprep.subr.mxu0 %v92
  %1854 = vmatpush1.msra.mxu0 %v91
  %1855 = vmatprep.subr.mxu0 %v79
  %1856 = vmatpush1.msra.mxu0 %v78
  %1857 = vmatprep.subr.mxu0 %v66
  %1858 = vmatpush1.msra.mxu0 %v65
  %1859 = vmatprep.subr.mxu0 %v53
  %1860 = vmatpush1.msra.mxu0 %v52
  %1861 = vmatprep.subr.mxu0 %v456
  %1862 = vmatpush2.msra.mxu0 %v455
  %1863 = vmatprep.subr.mxu0 %v443
  %1864 = vmatpush2.msra.mxu0 %v442
  %1865 = vmatprep.subr.mxu0 %v430
  %1866 = vmatpush2.msra.mxu0 %v429
  %1867 = vmatprep.subr.mxu0 %v417
  %1868 = vmatpush2.msra.mxu0 %v416
  %1869 = vmatprep.subr.mxu0 %v404
  %1870 = vmatpush2.msra.mxu0 %v403
  %1871 = vmatprep.subr.mxu0 %v391
  %1872 = vmatpush2.msra.mxu0 %v390
  %1873 = vmatprep.subr.mxu0 %v378
  %1874 = vmatpush2.msra.mxu0 %v377
  %1875 = vmatprep.subr.mxu0 %v365
  %1876 = vmatpush2.msra.mxu0 %v364
  %1877 = vmatprep.subr.mxu0 %v352
  %1878 = vmatpush2.msra.mxu0 %v351
  %1879 = vmatprep.subr.mxu0 %v339
  %1880 = vmatpush2.msra.mxu0 %v338
  %1881 = vmatprep.subr.mxu0 %v326
  %1882 = vmatpush2.msra.mxu0 %v325
  %1883 = vmatprep.subr.mxu0 %v313
  %1884 = vmatpush2.msra.mxu0 %v312
  %1885 = vmatprep.subr.mxu0 %v300
  %1886 = vmatpush2.msra.mxu0 %v299
  %1887 = vmatprep.subr.mxu0 %v287
  %1888 = vmatpush2.msra.mxu0 %v286
  %1889 = vmatprep.subr.mxu0 %v274
  %1890 = vmatpush2.msra.mxu0 %v273
  %1891 = vmatprep.subr.mxu0 %v261
  %1892 = vmatpush2.msra.mxu0 %v260
  %1893 = vmatprep.mubr.f32.mxu0 %v1802
  %1894 = vmatmul.mubr.f32.gmra.mxu0 %v1794
  %v1895 = vpop.f32.mrf.mxu0
  %v1896 = vadd.f32 %v1723, %v1895
  %v1897 = vpop.f32.mrf.mxu0
  %v1898 = vadd.f32 %v1727, %v1897
  %1899 = vdwg.mxu0
  %1900 = vmatprep.subr.mxu0 %v664
  %1901 = vmatpush1.msra.mxu0 %v663
  %1902 = vmatprep.subr.mxu0 %v651
  %1903 = vmatpush1.msra.mxu0 %v650
  %1904 = vmatprep.subr.mxu0 %v638
  %1905 = vmatpush1.msra.mxu0 %v637
  %1906 = vmatprep.subr.mxu0 %v625
  %1907 = vmatpush1.msra.mxu0 %v624
  %1908 = vmatprep.subr.mxu0 %v612
  %1909 = vmatpush1.msra.mxu0 %v611
  %1910 = vmatprep.subr.mxu0 %v599
  %1911 = vmatpush1.msra.mxu0 %v598
  %1912 = vmatprep.subr.mxu0 %v586
  %1913 = vmatpush1.msra.mxu0 %v585
  %1914 = vmatprep.subr.mxu0 %v573
  %1915 = vmatpush1.msra.mxu0 %v572
  %1916 = vmatprep.subr.mxu0 %v560
  %1917 = vmatpush1.msra.mxu0 %v559
  %1918 = vmatprep.subr.mxu0 %v547
  %1919 = vmatpush1.msra.mxu0 %v546
  %1920 = vmatprep.subr.mxu0 %v534
  %1921 = vmatpush1.msra.mxu0 %v533
  %1922 = vmatprep.subr.mxu0 %v521
  %1923 = vmatpush1.msra.mxu0 %v520
  %1924 = vmatprep.subr.mxu0 %v508
  %1925 = vmatpush1.msra.mxu0 %v507
  %1926 = vmatprep.subr.mxu0 %v495
  %1927 = vmatpush1.msra.mxu0 %v494
  %1928 = vmatprep.subr.mxu0 %v482
  %1929 = vmatpush1.msra.mxu0 %v481
  %1930 = vmatprep.subr.mxu0 %v469
  %1931 = vmatpush1.msra.mxu0 %v468
  %1932 = vmatprep.subr.mxu0 %v872
  %1933 = vmatpush2.msra.mxu0 %v871
  %1934 = vmatprep.subr.mxu0 %v859
  %1935 = vmatpush2.msra.mxu0 %v858
  %1936 = vmatprep.subr.mxu0 %v846
  %1937 = vmatpush2.msra.mxu0 %v845
  %1938 = vmatprep.subr.mxu0 %v833
  %1939 = vmatpush2.msra.mxu0 %v832
  %1940 = vmatprep.subr.mxu0 %v820
  %1941 = vmatpush2.msra.mxu0 %v819
  %1942 = vmatprep.subr.mxu0 %v807
  %1943 = vmatpush2.msra.mxu0 %v806
  %1944 = vmatprep.subr.mxu0 %v794
  %1945 = vmatpush2.msra.mxu0 %v793
  %1946 = vmatprep.subr.mxu0 %v781
  %1947 = vmatpush2.msra.mxu0 %v780
  %1948 = vmatprep.subr.mxu0 %v768
  %1949 = vmatpush2.msra.mxu0 %v767
  %1950 = vmatprep.subr.mxu0 %v755
  %1951 = vmatpush2.msra.mxu0 %v754
  %1952 = vmatprep.subr.mxu0 %v742
  %1953 = vmatpush2.msra.mxu0 %v741
  %1954 = vmatprep.subr.mxu0 %v729
  %1955 = vmatpush2.msra.mxu0 %v728
  %1956 = vmatprep.subr.mxu0 %v716
  %1957 = vmatpush2.msra.mxu0 %v715
  %1958 = vmatprep.subr.mxu0 %v703
  %1959 = vmatpush2.msra.mxu0 %v702
  %1960 = vmatprep.subr.mxu0 %v690
  %1961 = vmatpush2.msra.mxu0 %v689
  %1962 = vmatprep.subr.mxu0 %v677
  %1963 = vmatpush2.msra.mxu0 %v676
  %1964 = vmatprep.mubr.f32.mxu0 %v1803
  %1965 = vmatmul.mubr.f32.gmra.mxu0 %v1801
  %v1966 = vpop.f32.mrf.mxu0
  %v1967 = vadd.f32 %v1896, %v1966
  %v1968 = vpop.f32.mrf.mxu0
  %v1969 = vadd.f32 %v1898, %v1968
  %1970 = vdwg.mxu0
  %1971 = vmatprep.subr.mxu0 %v1080
  %1972 = vmatpush1.msra.mxu0 %v1079
  %1973 = vmatprep.subr.mxu0 %v1067
  %1974 = vmatpush1.msra.mxu0 %v1066
  %1975 = vmatprep.subr.mxu0 %v1054
  %1976 = vmatpush1.msra.mxu0 %v1053
  %1977 = vmatprep.subr.mxu0 %v1041
  %1978 = vmatpush1.msra.mxu0 %v1040
  %1979 = vmatprep.subr.mxu0 %v1028
  %1980 = vmatpush1.msra.mxu0 %v1027
  %1981 = vmatprep.subr.mxu0 %v1015
  %1982 = vmatpush1.msra.mxu0 %v1014
  %1983 = vmatprep.subr.mxu0 %v1002
  %1984 = vmatpush1.msra.mxu0 %v1001
  %1985 = vmatprep.subr.mxu0 %v989
  %1986 = vmatpush1.msra.mxu0 %v988
  %1987 = vmatprep.subr.mxu0 %v976
  %1988 = vmatpush1.msra.mxu0 %v975
  %1989 = vmatprep.subr.mxu0 %v963
  %1990 = vmatpush1.msra.mxu0 %v962
  %1991 = vmatprep.subr.mxu0 %v950
  %1992 = vmatpush1.msra.mxu0 %v949
  %1993 = vmatprep.subr.mxu0 %v937
  %1994 = vmatpush1.msra.mxu0 %v936
  %1995 = vmatprep.subr.mxu0 %v924
  %1996 = vmatpush1.msra.mxu0 %v923
  %1997 = vmatprep.subr.mxu0 %v911
  %1998 = vmatpush1.msra.mxu0 %v910
  %1999 = vmatprep.subr.mxu0 %v898
  %2000 = vmatpush1.msra.mxu0 %v897
  %2001 = vmatprep.subr.mxu0 %v885
  %2002 = vmatpush1.msra.mxu0 %v884
  %2003 = vmatprep.subr.mxu0 %v1288
  %2004 = vmatpush2.msra.mxu0 %v1287
  %2005 = vmatprep.subr.mxu0 %v1275
  %2006 = vmatpush2.msra.mxu0 %v1274
  %2007 = vmatprep.subr.mxu0 %v1262
  %2008 = vmatpush2.msra.mxu0 %v1261
  %2009 = vmatprep.subr.mxu0 %v1249
  %2010 = vmatpush2.msra.mxu0 %v1248
  %2011 = vmatprep.subr.mxu0 %v1236
  %2012 = vmatpush2.msra.mxu0 %v1235
  %2013 = vmatprep.subr.mxu0 %v1223
  %2014 = vmatpush2.msra.mxu0 %v1222
  %2015 = vmatprep.subr.mxu0 %v1210
  %2016 = vmatpush2.msra.mxu0 %v1209
  %2017 = vmatprep.subr.mxu0 %v1197
  %2018 = vmatpush2.msra.mxu0 %v1196
  %2019 = vmatprep.subr.mxu0 %v1184
  %2020 = vmatpush2.msra.mxu0 %v1183
  %2021 = vmatprep.subr.mxu0 %v1171
  %2022 = vmatpush2.msra.mxu0 %v1170
  %2023 = vmatprep.subr.mxu0 %v1158
  %2024 = vmatpush2.msra.mxu0 %v1157
  %2025 = vmatprep.subr.mxu0 %v1145
  %2026 = vmatpush2.msra.mxu0 %v1144
  %2027 = vmatprep.subr.mxu0 %v1132
  %2028 = vmatpush2.msra.mxu0 %v1131
  %2029 = vmatprep.subr.mxu0 %v1119
  %2030 = vmatpush2.msra.mxu0 %v1118
  %2031 = vmatprep.subr.mxu0 %v1106
  %2032 = vmatpush2.msra.mxu0 %v1105
  %2033 = vmatprep.subr.mxu0 %v1093
  %2034 = vmatpush2.msra.mxu0 %v1092
  %2035 = vmatprep.mubr.f32.mxu0 %v1819
  %2036 = vmatmul.mubr.f32.gmra.mxu0 %v1811
  %v2037 = vpop.f32.mrf.mxu0
  %v2038 = vadd.f32 %v1967, %v2037
  %v2039 = vpop.f32.mrf.mxu0
  %v2040 = vadd.f32 %v1969, %v2039
  %2041 = vdwg.mxu0
  %2042 = vmatprep.subr.mxu0 %v1496
  %2043 = vmatpush1.msra.mxu0 %v1495
  %2044 = vmatprep.subr.mxu0 %v1483
  %2045 = vmatpush1.msra.mxu0 %v1482
  %2046 = vmatprep.subr.mxu0 %v1470
  %2047 = vmatpush1.msra.mxu0 %v1469
  %2048 = vmatprep.subr.mxu0 %v1457
  %2049 = vmatpush1.msra.mxu0 %v1456
  %2050 = vmatprep.subr.mxu0 %v1444
  %2051 = vmatpush1.msra.mxu0 %v1443
  %2052 = vmatprep.subr.mxu0 %v1431
  %2053 = vmatpush1.msra.mxu0 %v1430
  %2054 = vmatprep.subr.mxu0 %v1418
  %2055 = vmatpush1.msra.mxu0 %v1417
  %2056 = vmatprep.subr.mxu0 %v1405
  %2057 = vmatpush1.msra.mxu0 %v1404
  %2058 = vmatprep.subr.mxu0 %v1392
  %2059 = vmatpush1.msra.mxu0 %v1391
  %2060 = vmatprep.subr.mxu0 %v1379
  %2061 = vmatpush1.msra.mxu0 %v1378
  %2062 = vmatprep.subr.mxu0 %v1366
  %2063 = vmatpush1.msra.mxu0 %v1365
  %2064 = vmatprep.subr.mxu0 %v1353
  %2065 = vmatpush1.msra.mxu0 %v1352
  %2066 = vmatprep.subr.mxu0 %v1340
  %2067 = vmatpush1.msra.mxu0 %v1339
  %2068 = vmatprep.subr.mxu0 %v1327
  %2069 = vmatpush1.msra.mxu0 %v1326
  %2070 = vmatprep.subr.mxu0 %v1314
  %2071 = vmatpush1.msra.mxu0 %v1313
  %2072 = vmatprep.subr.mxu0 %v1301
  %2073 = vmatpush1.msra.mxu0 %v1300
  %2074 = vmatprep.subr.mxu0 %v1704
  %2075 = vmatpush2.msra.mxu0 %v1703
  %2076 = vmatprep.subr.mxu0 %v1691
  %2077 = vmatpush2.msra.mxu0 %v1690
  %2078 = vmatprep.subr.mxu0 %v1678
  %2079 = vmatpush2.msra.mxu0 %v1677
  %2080 = vmatprep.subr.mxu0 %v1665
  %2081 = vmatpush2.msra.mxu0 %v1664
  %2082 = vmatprep.subr.mxu0 %v1652
  %2083 = vmatpush2.msra.mxu0 %v1651
  %2084 = vmatprep.subr.mxu0 %v1639
  %2085 = vmatpush2.msra.mxu0 %v1638
  %2086 = vmatprep.subr.mxu0 %v1626
  %2087 = vmatpush2.msra.mxu0 %v1625
  %2088 = vmatprep.subr.mxu0 %v1613
  %2089 = vmatpush2.msra.mxu0 %v1612
  %2090 = vmatprep.subr.mxu0 %v1600
  %2091 = vmatpush2.msra.mxu0 %v1599
  %2092 = vmatprep.subr.mxu0 %v1587
  %2093 = vmatpush2.msra.mxu0 %v1586
  %2094 = vmatprep.subr.mxu0 %v1574
  %2095 = vmatpush2.msra.mxu0 %v1573
  %2096 = vmatprep.subr.mxu0 %v1561
  %2097 = vmatpush2.msra.mxu0 %v1560
  %2098 = vmatprep.subr.mxu0 %v1548
  %2099 = vmatpush2.msra.mxu0 %v1547
  %2100 = vmatprep.subr.mxu0 %v1535
  %2101 = vmatpush2.msra.mxu0 %v1534
  %2102 = vmatprep.subr.mxu0 %v1522
  %2103 = vmatpush2.msra.mxu0 %v1521
  %2104 = vmatprep.subr.mxu0 %v1509
  %2105 = vmatpush2.msra.mxu0 %v1508
  %2106 = vmatprep.mubr.f32.mxu0 %v1820
  %2107 = vmatmul.mubr.f32.gmra.mxu0 %v1818
  %v2108 = vpop.f32.mrf.mxu0
  %v2109 = vadd.f32 %v2038, %v2108
  %v2110 = vpop.f32.mrf.mxu0
  %v2111 = vadd.f32 %v2040, %v2110
  %2112 = vdwg.mxu0
  %2113 = vmatprep.subr.mxu0 %v250
  %2114 = vmatpush1.msra.mxu0 %v249
  %2115 = vmatprep.subr.mxu0 %v237
  %2116 = vmatpush1.msra.mxu0 %v236
  %2117 = vmatprep.subr.mxu0 %v224
  %2118 = vmatpush1.msra.mxu0 %v223
  %2119 = vmatprep.subr.mxu0 %v211
  %2120 = vmatpush1.msra.mxu0 %v210
  %2121 = vmatprep.subr.mxu0 %v198
  %2122 = vmatpush1.msra.mxu0 %v197
  %2123 = vmatprep.subr.mxu0 %v185
  %2124 = vmatpush1.msra.mxu0 %v184
  %2125 = vmatprep.subr.mxu0 %v172
  %2126 = vmatpush1.msra.mxu0 %v171
  %2127 = vmatprep.subr.mxu0 %v159
  %2128 = vmatpush1.msra.mxu0 %v158
  %2129 = vmatprep.subr.mxu0 %v146
  %2130 = vmatpush1.msra.mxu0 %v145
  %2131 = vmatprep.subr.mxu0 %v133
  %2132 = vmatpush1.msra.mxu0 %v132
  %2133 = vmatprep.subr.mxu0 %v120
  %2134 = vmatpush1.msra.mxu0 %v119
  %2135 = vmatprep.subr.mxu0 %v107
  %2136 = vmatpush1.msra.mxu0 %v106
  %2137 = vmatprep.subr.mxu0 %v94
  %2138 = vmatpush1.msra.mxu0 %v93
  %2139 = vmatprep.subr.mxu0 %v81
  %2140 = vmatpush1.msra.mxu0 %v80
  %2141 = vmatprep.subr.mxu0 %v68
  %2142 = vmatpush1.msra.mxu0 %v67
  %2143 = vmatprep.subr.mxu0 %v55
  %2144 = vmatpush1.msra.mxu0 %v54
  %2145 = vmatprep.subr.mxu0 %v458
  %2146 = vmatpush2.msra.mxu0 %v457
  %2147 = vmatprep.subr.mxu0 %v445
  %2148 = vmatpush2.msra.mxu0 %v444
  %2149 = vmatprep.subr.mxu0 %v432
  %2150 = vmatpush2.msra.mxu0 %v431
  %2151 = vmatprep.subr.mxu0 %v419
  %2152 = vmatpush2.msra.mxu0 %v418
  %2153 = vmatprep.subr.mxu0 %v406
  %2154 = vmatpush2.msra.mxu0 %v405
  %2155 = vmatprep.subr.mxu0 %v393
  %2156 = vmatpush2.msra.mxu0 %v392
  %2157 = vmatprep.subr.mxu0 %v380
  %2158 = vmatpush2.msra.mxu0 %v379
  %2159 = vmatprep.subr.mxu0 %v367
  %2160 = vmatpush2.msra.mxu0 %v366
  %2161 = vmatprep.subr.mxu0 %v354
  %2162 = vmatpush2.msra.mxu0 %v353
  %2163 = vmatprep.subr.mxu0 %v341
  %2164 = vmatpush2.msra.mxu0 %v340
  %2165 = vmatprep.subr.mxu0 %v328
  %2166 = vmatpush2.msra.mxu0 %v327
  %2167 = vmatprep.subr.mxu0 %v315
  %2168 = vmatpush2.msra.mxu0 %v314
  %2169 = vmatprep.subr.mxu0 %v302
  %2170 = vmatpush2.msra.mxu0 %v301
  %2171 = vmatprep.subr.mxu0 %v289
  %2172 = vmatpush2.msra.mxu0 %v288
  %2173 = vmatprep.subr.mxu0 %v276
  %2174 = vmatpush2.msra.mxu0 %v275
  %2175 = vmatprep.subr.mxu0 %v263
  %2176 = vmatpush2.msra.mxu0 %v262
  %2177 = vmatprep.mubr.f32.mxu0 %v1802
  %2178 = vmatmul.mubr.f32.gmra.mxu0 %v1794
  %v2179 = vpop.f32.mrf.mxu0
  %v2180 = vadd.f32 %v1731, %v2179
  %v2181 = vpop.f32.mrf.mxu0
  %v2182 = vadd.f32 %v1735, %v2181
  %2183 = vdwg.mxu0
  %2184 = vmatprep.subr.mxu0 %v666
  %2185 = vmatpush1.msra.mxu0 %v665
  %2186 = vmatprep.subr.mxu0 %v653
  %2187 = vmatpush1.msra.mxu0 %v652
  %2188 = vmatprep.subr.mxu0 %v640
  %2189 = vmatpush1.msra.mxu0 %v639
  %2190 = vmatprep.subr.mxu0 %v627
  %2191 = vmatpush1.msra.mxu0 %v626
  %2192 = vmatprep.subr.mxu0 %v614
  %2193 = vmatpush1.msra.mxu0 %v613
  %2194 = vmatprep.subr.mxu0 %v601
  %2195 = vmatpush1.msra.mxu0 %v600
  %2196 = vmatprep.subr.mxu0 %v588
  %2197 = vmatpush1.msra.mxu0 %v587
  %2198 = vmatprep.subr.mxu0 %v575
  %2199 = vmatpush1.msra.mxu0 %v574
  %2200 = vmatprep.subr.mxu0 %v562
  %2201 = vmatpush1.msra.mxu0 %v561
  %2202 = vmatprep.subr.mxu0 %v549
  %2203 = vmatpush1.msra.mxu0 %v548
  %2204 = vmatprep.subr.mxu0 %v536
  %2205 = vmatpush1.msra.mxu0 %v535
  %2206 = vmatprep.subr.mxu0 %v523
  %2207 = vmatpush1.msra.mxu0 %v522
  %2208 = vmatprep.subr.mxu0 %v510
  %2209 = vmatpush1.msra.mxu0 %v509
  %2210 = vmatprep.subr.mxu0 %v497
  %2211 = vmatpush1.msra.mxu0 %v496
  %2212 = vmatprep.subr.mxu0 %v484
  %2213 = vmatpush1.msra.mxu0 %v483
  %2214 = vmatprep.subr.mxu0 %v471
  %2215 = vmatpush1.msra.mxu0 %v470
  %2216 = vmatprep.subr.mxu0 %v874
  %2217 = vmatpush2.msra.mxu0 %v873
  %2218 = vmatprep.subr.mxu0 %v861
  %2219 = vmatpush2.msra.mxu0 %v860
  %2220 = vmatprep.subr.mxu0 %v848
  %2221 = vmatpush2.msra.mxu0 %v847
  %2222 = vmatprep.subr.mxu0 %v835
  %2223 = vmatpush2.msra.mxu0 %v834
  %2224 = vmatprep.subr.mxu0 %v822
  %2225 = vmatpush2.msra.mxu0 %v821
  %2226 = vmatprep.subr.mxu0 %v809
  %2227 = vmatpush2.msra.mxu0 %v808
  %2228 = vmatprep.subr.mxu0 %v796
  %2229 = vmatpush2.msra.mxu0 %v795
  %2230 = vmatprep.subr.mxu0 %v783
  %2231 = vmatpush2.msra.mxu0 %v782
  %2232 = vmatprep.subr.mxu0 %v770
  %2233 = vmatpush2.msra.mxu0 %v769
  %2234 = vmatprep.subr.mxu0 %v757
  %2235 = vmatpush2.msra.mxu0 %v756
  %2236 = vmatprep.subr.mxu0 %v744
  %2237 = vmatpush2.msra.mxu0 %v743
  %2238 = vmatprep.subr.mxu0 %v731
  %2239 = vmatpush2.msra.mxu0 %v730
  %2240 = vmatprep.subr.mxu0 %v718
  %2241 = vmatpush2.msra.mxu0 %v717
  %2242 = vmatprep.subr.mxu0 %v705
  %2243 = vmatpush2.msra.mxu0 %v704
  %2244 = vmatprep.subr.mxu0 %v692
  %2245 = vmatpush2.msra.mxu0 %v691
  %2246 = vmatprep.subr.mxu0 %v679
  %2247 = vmatpush2.msra.mxu0 %v678
  %2248 = vmatprep.mubr.f32.mxu0 %v1803
  %2249 = vmatmul.mubr.f32.gmra.mxu0 %v1801
  %v2250 = vpop.f32.mrf.mxu0
  %v2251 = vadd.f32 %v2180, %v2250
  %v2252 = vpop.f32.mrf.mxu0
  %v2253 = vadd.f32 %v2182, %v2252
  %2254 = vdwg.mxu0
  %2255 = vmatprep.subr.mxu0 %v1082
  %2256 = vmatpush1.msra.mxu0 %v1081
  %2257 = vmatprep.subr.mxu0 %v1069
  %2258 = vmatpush1.msra.mxu0 %v1068
  %2259 = vmatprep.subr.mxu0 %v1056
  %2260 = vmatpush1.msra.mxu0 %v1055
  %2261 = vmatprep.subr.mxu0 %v1043
  %2262 = vmatpush1.msra.mxu0 %v1042
  %2263 = vmatprep.subr.mxu0 %v1030
  %2264 = vmatpush1.msra.mxu0 %v1029
  %2265 = vmatprep.subr.mxu0 %v1017
  %2266 = vmatpush1.msra.mxu0 %v1016
  %2267 = vmatprep.subr.mxu0 %v1004
  %2268 = vmatpush1.msra.mxu0 %v1003
  %2269 = vmatprep.subr.mxu0 %v991
  %2270 = vmatpush1.msra.mxu0 %v990
  %2271 = vmatprep.subr.mxu0 %v978
  %2272 = vmatpush1.msra.mxu0 %v977
  %2273 = vmatprep.subr.mxu0 %v965
  %2274 = vmatpush1.msra.mxu0 %v964
  %2275 = vmatprep.subr.mxu0 %v952
  %2276 = vmatpush1.msra.mxu0 %v951
  %2277 = vmatprep.subr.mxu0 %v939
  %2278 = vmatpush1.msra.mxu0 %v938
  %2279 = vmatprep.subr.mxu0 %v926
  %2280 = vmatpush1.msra.mxu0 %v925
  %2281 = vmatprep.subr.mxu0 %v913
  %2282 = vmatpush1.msra.mxu0 %v912
  %2283 = vmatprep.subr.mxu0 %v900
  %2284 = vmatpush1.msra.mxu0 %v899
  %2285 = vmatprep.subr.mxu0 %v887
  %2286 = vmatpush1.msra.mxu0 %v886
  %2287 = vmatprep.subr.mxu0 %v1290
  %2288 = vmatpush2.msra.mxu0 %v1289
  %2289 = vmatprep.subr.mxu0 %v1277
  %2290 = vmatpush2.msra.mxu0 %v1276
  %2291 = vmatprep.subr.mxu0 %v1264
  %2292 = vmatpush2.msra.mxu0 %v1263
  %2293 = vmatprep.subr.mxu0 %v1251
  %2294 = vmatpush2.msra.mxu0 %v1250
  %2295 = vmatprep.subr.mxu0 %v1238
  %2296 = vmatpush2.msra.mxu0 %v1237
  %2297 = vmatprep.subr.mxu0 %v1225
  %2298 = vmatpush2.msra.mxu0 %v1224
  %2299 = vmatprep.subr.mxu0 %v1212
  %2300 = vmatpush2.msra.mxu0 %v1211
  %2301 = vmatprep.subr.mxu0 %v1199
  %2302 = vmatpush2.msra.mxu0 %v1198
  %2303 = vmatprep.subr.mxu0 %v1186
  %2304 = vmatpush2.msra.mxu0 %v1185
  %2305 = vmatprep.subr.mxu0 %v1173
  %2306 = vmatpush2.msra.mxu0 %v1172
  %2307 = vmatprep.subr.mxu0 %v1160
  %2308 = vmatpush2.msra.mxu0 %v1159
  %2309 = vmatprep.subr.mxu0 %v1147
  %2310 = vmatpush2.msra.mxu0 %v1146
  %2311 = vmatprep.subr.mxu0 %v1134
  %2312 = vmatpush2.msra.mxu0 %v1133
  %2313 = vmatprep.subr.mxu0 %v1121
  %2314 = vmatpush2.msra.mxu0 %v1120
  %2315 = vmatprep.subr.mxu0 %v1108
  %2316 = vmatpush2.msra.mxu0 %v1107
  %2317 = vmatprep.subr.mxu0 %v1095
  %2318 = vmatpush2.msra.mxu0 %v1094
  %2319 = vmatprep.mubr.f32.mxu0 %v1819
  %2320 = vmatmul.mubr.f32.gmra.mxu0 %v1811
  %v2321 = vpop.f32.mrf.mxu0
  %v2322 = vadd.f32 %v2251, %v2321
  %v2323 = vpop.f32.mrf.mxu0
  %v2324 = vadd.f32 %v2253, %v2323
  %2325 = vdwg.mxu0
  %2326 = vmatprep.subr.mxu0 %v1498
  %2327 = vmatpush1.msra.mxu0 %v1497
  %2328 = vmatprep.subr.mxu0 %v1485
  %2329 = vmatpush1.msra.mxu0 %v1484
  %2330 = vmatprep.subr.mxu0 %v1472
  %2331 = vmatpush1.msra.mxu0 %v1471
  %2332 = vmatprep.subr.mxu0 %v1459
  %2333 = vmatpush1.msra.mxu0 %v1458
  %2334 = vmatprep.subr.mxu0 %v1446
  %2335 = vmatpush1.msra.mxu0 %v1445
  %2336 = vmatprep.subr.mxu0 %v1433
  %2337 = vmatpush1.msra.mxu0 %v1432
  %2338 = vmatprep.subr.mxu0 %v1420
  %2339 = vmatpush1.msra.mxu0 %v1419
  %2340 = vmatprep.subr.mxu0 %v1407
  %2341 = vmatpush1.msra.mxu0 %v1406
  %2342 = vmatprep.subr.mxu0 %v1394
  %2343 = vmatpush1.msra.mxu0 %v1393
  %2344 = vmatprep.subr.mxu0 %v1381
  %2345 = vmatpush1.msra.mxu0 %v1380
  %2346 = vmatprep.subr.mxu0 %v1368
  %2347 = vmatpush1.msra.mxu0 %v1367
  %2348 = vmatprep.subr.mxu0 %v1355
  %2349 = vmatpush1.msra.mxu0 %v1354
  %2350 = vmatprep.subr.mxu0 %v1342
  %2351 = vmatpush1.msra.mxu0 %v1341
  %2352 = vmatprep.subr.mxu0 %v1329
  %2353 = vmatpush1.msra.mxu0 %v1328
  %2354 = vmatprep.subr.mxu0 %v1316
  %2355 = vmatpush1.msra.mxu0 %v1315
  %2356 = vmatprep.subr.mxu0 %v1303
  %2357 = vmatpush1.msra.mxu0 %v1302
  %2358 = vmatprep.subr.mxu0 %v1706
  %2359 = vmatpush2.msra.mxu0 %v1705
  %2360 = vmatprep.subr.mxu0 %v1693
  %2361 = vmatpush2.msra.mxu0 %v1692
  %2362 = vmatprep.subr.mxu0 %v1680
  %2363 = vmatpush2.msra.mxu0 %v1679
  %2364 = vmatprep.subr.mxu0 %v1667
  %2365 = vmatpush2.msra.mxu0 %v1666
  %2366 = vmatprep.subr.mxu0 %v1654
  %2367 = vmatpush2.msra.mxu0 %v1653
  %2368 = vmatprep.subr.mxu0 %v1641
  %2369 = vmatpush2.msra.mxu0 %v1640
  %2370 = vmatprep.subr.mxu0 %v1628
  %2371 = vmatpush2.msra.mxu0 %v1627
  %2372 = vmatprep.subr.mxu0 %v1615
  %2373 = vmatpush2.msra.mxu0 %v1614
  %2374 = vmatprep.subr.mxu0 %v1602
  %2375 = vmatpush2.msra.mxu0 %v1601
  %2376 = vmatprep.subr.mxu0 %v1589
  %2377 = vmatpush2.msra.mxu0 %v1588
  %2378 = vmatprep.subr.mxu0 %v1576
  %2379 = vmatpush2.msra.mxu0 %v1575
  %2380 = vmatprep.subr.mxu0 %v1563
  %2381 = vmatpush2.msra.mxu0 %v1562
  %2382 = vmatprep.subr.mxu0 %v1550
  %2383 = vmatpush2.msra.mxu0 %v1549
  %2384 = vmatprep.subr.mxu0 %v1537
  %2385 = vmatpush2.msra.mxu0 %v1536
  %2386 = vmatprep.subr.mxu0 %v1524
  %2387 = vmatpush2.msra.mxu0 %v1523
  %2388 = vmatprep.subr.mxu0 %v1511
  %2389 = vmatpush2.msra.mxu0 %v1510
  %2390 = vmatprep.mubr.f32.mxu0 %v1820
  %2391 = vmatmul.mubr.f32.gmra.mxu0 %v1818
  %v2392 = vpop.f32.mrf.mxu0
  %v2393 = vadd.f32 %v2322, %v2392
  %v2394 = vpop.f32.mrf.mxu0
  %v2395 = vadd.f32 %v2324, %v2394
  %2396 = vdwg.mxu0
  %2397 = vmatprep.subr.mxu0 %v252
  %2398 = vmatpush1.msra.mxu0 %v251
  %2399 = vmatprep.subr.mxu0 %v239
  %2400 = vmatpush1.msra.mxu0 %v238
  %2401 = vmatprep.subr.mxu0 %v226
  %2402 = vmatpush1.msra.mxu0 %v225
  %2403 = vmatprep.subr.mxu0 %v213
  %2404 = vmatpush1.msra.mxu0 %v212
  %2405 = vmatprep.subr.mxu0 %v200
  %2406 = vmatpush1.msra.mxu0 %v199
  %2407 = vmatprep.subr.mxu0 %v187
  %2408 = vmatpush1.msra.mxu0 %v186
  %2409 = vmatprep.subr.mxu0 %v174
  %2410 = vmatpush1.msra.mxu0 %v173
  %2411 = vmatprep.subr.mxu0 %v161
  %2412 = vmatpush1.msra.mxu0 %v160
  %2413 = vmatprep.subr.mxu0 %v148
  %2414 = vmatpush1.msra.mxu0 %v147
  %2415 = vmatprep.subr.mxu0 %v135
  %2416 = vmatpush1.msra.mxu0 %v134
  %2417 = vmatprep.subr.mxu0 %v122
  %2418 = vmatpush1.msra.mxu0 %v121
  %2419 = vmatprep.subr.mxu0 %v109
  %2420 = vmatpush1.msra.mxu0 %v108
  %2421 = vmatprep.subr.mxu0 %v96
  %2422 = vmatpush1.msra.mxu0 %v95
  %2423 = vmatprep.subr.mxu0 %v83
  %2424 = vmatpush1.msra.mxu0 %v82
  %2425 = vmatprep.subr.mxu0 %v70
  %2426 = vmatpush1.msra.mxu0 %v69
  %2427 = vmatprep.subr.mxu0 %v57
  %2428 = vmatpush1.msra.mxu0 %v56
  %2429 = vmatprep.subr.mxu0 %v460
  %2430 = vmatpush2.msra.mxu0 %v459
  %2431 = vmatprep.subr.mxu0 %v447
  %2432 = vmatpush2.msra.mxu0 %v446
  %2433 = vmatprep.subr.mxu0 %v434
  %2434 = vmatpush2.msra.mxu0 %v433
  %2435 = vmatprep.subr.mxu0 %v421
  %2436 = vmatpush2.msra.mxu0 %v420
  %2437 = vmatprep.subr.mxu0 %v408
  %2438 = vmatpush2.msra.mxu0 %v407
  %2439 = vmatprep.subr.mxu0 %v395
  %2440 = vmatpush2.msra.mxu0 %v394
  %2441 = vmatprep.subr.mxu0 %v382
  %2442 = vmatpush2.msra.mxu0 %v381
  %2443 = vmatprep.subr.mxu0 %v369
  %2444 = vmatpush2.msra.mxu0 %v368
  %2445 = vmatprep.subr.mxu0 %v356
  %2446 = vmatpush2.msra.mxu0 %v355
  %2447 = vmatprep.subr.mxu0 %v343
  %2448 = vmatpush2.msra.mxu0 %v342
  %2449 = vmatprep.subr.mxu0 %v330
  %2450 = vmatpush2.msra.mxu0 %v329
  %2451 = vmatprep.subr.mxu0 %v317
  %2452 = vmatpush2.msra.mxu0 %v316
  %2453 = vmatprep.subr.mxu0 %v304
  %2454 = vmatpush2.msra.mxu0 %v303
  %2455 = vmatprep.subr.mxu0 %v291
  %2456 = vmatpush2.msra.mxu0 %v290
  %2457 = vmatprep.subr.mxu0 %v278
  %2458 = vmatpush2.msra.mxu0 %v277
  %2459 = vmatprep.subr.mxu0 %v265
  %2460 = vmatpush2.msra.mxu0 %v264
  %2461 = vmatprep.mubr.f32.mxu0 %v1802
  %2462 = vmatmul.mubr.f32.gmra.mxu0 %v1794
  %v2463 = vpop.f32.mrf.mxu0
  %v2464 = vadd.f32 %v1739, %v2463
  %v2465 = vpop.f32.mrf.mxu0
  %v2466 = vadd.f32 %v1743, %v2465
  %2467 = vdwg.mxu0
  %2468 = vmatprep.subr.mxu0 %v668
  %2469 = vmatpush1.msra.mxu0 %v667
  %2470 = vmatprep.subr.mxu0 %v655
  %2471 = vmatpush1.msra.mxu0 %v654
  %2472 = vmatprep.subr.mxu0 %v642
  %2473 = vmatpush1.msra.mxu0 %v641
  %2474 = vmatprep.subr.mxu0 %v629
  %2475 = vmatpush1.msra.mxu0 %v628
  %2476 = vmatprep.subr.mxu0 %v616
  %2477 = vmatpush1.msra.mxu0 %v615
  %2478 = vmatprep.subr.mxu0 %v603
  %2479 = vmatpush1.msra.mxu0 %v602
  %2480 = vmatprep.subr.mxu0 %v590
  %2481 = vmatpush1.msra.mxu0 %v589
  %2482 = vmatprep.subr.mxu0 %v577
  %2483 = vmatpush1.msra.mxu0 %v576
  %2484 = vmatprep.subr.mxu0 %v564
  %2485 = vmatpush1.msra.mxu0 %v563
  %2486 = vmatprep.subr.mxu0 %v551
  %2487 = vmatpush1.msra.mxu0 %v550
  %2488 = vmatprep.subr.mxu0 %v538
  %2489 = vmatpush1.msra.mxu0 %v537
  %2490 = vmatprep.subr.mxu0 %v525
  %2491 = vmatpush1.msra.mxu0 %v524
  %2492 = vmatprep.subr.mxu0 %v512
  %2493 = vmatpush1.msra.mxu0 %v511
  %2494 = vmatprep.subr.mxu0 %v499
  %2495 = vmatpush1.msra.mxu0 %v498
  %2496 = vmatprep.subr.mxu0 %v486
  %2497 = vmatpush1.msra.mxu0 %v485
  %2498 = vmatprep.subr.mxu0 %v473
  %2499 = vmatpush1.msra.mxu0 %v472
  %2500 = vmatprep.subr.mxu0 %v876
  %2501 = vmatpush2.msra.mxu0 %v875
  %2502 = vmatprep.subr.mxu0 %v863
  %2503 = vmatpush2.msra.mxu0 %v862
  %2504 = vmatprep.subr.mxu0 %v850
  %2505 = vmatpush2.msra.mxu0 %v849
  %2506 = vmatprep.subr.mxu0 %v837
  %2507 = vmatpush2.msra.mxu0 %v836
  %2508 = vmatprep.subr.mxu0 %v824
  %2509 = vmatpush2.msra.mxu0 %v823
  %2510 = vmatprep.subr.mxu0 %v811
  %2511 = vmatpush2.msra.mxu0 %v810
  %2512 = vmatprep.subr.mxu0 %v798
  %2513 = vmatpush2.msra.mxu0 %v797
  %2514 = vmatprep.subr.mxu0 %v785
  %2515 = vmatpush2.msra.mxu0 %v784
  %2516 = vmatprep.subr.mxu0 %v772
  %2517 = vmatpush2.msra.mxu0 %v771
  %2518 = vmatprep.subr.mxu0 %v759
  %2519 = vmatpush2.msra.mxu0 %v758
  %2520 = vmatprep.subr.mxu0 %v746
  %2521 = vmatpush2.msra.mxu0 %v745
  %2522 = vmatprep.subr.mxu0 %v733
  %2523 = vmatpush2.msra.mxu0 %v732
  %2524 = vmatprep.subr.mxu0 %v720
  %2525 = vmatpush2.msra.mxu0 %v719
  %2526 = vmatprep.subr.mxu0 %v707
  %2527 = vmatpush2.msra.mxu0 %v706
  %2528 = vmatprep.subr.mxu0 %v694
  %2529 = vmatpush2.msra.mxu0 %v693
  %2530 = vmatprep.subr.mxu0 %v681
  %2531 = vmatpush2.msra.mxu0 %v680
  %2532 = vmatprep.mubr.f32.mxu0 %v1803
  %2533 = vmatmul.mubr.f32.gmra.mxu0 %v1801
  %v2534 = vpop.f32.mrf.mxu0
  %v2535 = vadd.f32 %v2464, %v2534
  %v2536 = vpop.f32.mrf.mxu0
  %v2537 = vadd.f32 %v2466, %v2536
  %2538 = vdwg.mxu0
  %2539 = vmatprep.subr.mxu0 %v1084
  %2540 = vmatpush1.msra.mxu0 %v1083
  %2541 = vmatprep.subr.mxu0 %v1071
  %2542 = vmatpush1.msra.mxu0 %v1070
  %2543 = vmatprep.subr.mxu0 %v1058
  %2544 = vmatpush1.msra.mxu0 %v1057
  %2545 = vmatprep.subr.mxu0 %v1045
  %2546 = vmatpush1.msra.mxu0 %v1044
  %2547 = vmatprep.subr.mxu0 %v1032
  %2548 = vmatpush1.msra.mxu0 %v1031
  %2549 = vmatprep.subr.mxu0 %v1019
  %2550 = vmatpush1.msra.mxu0 %v1018
  %2551 = vmatprep.subr.mxu0 %v1006
  %2552 = vmatpush1.msra.mxu0 %v1005
  %2553 = vmatprep.subr.mxu0 %v993
  %2554 = vmatpush1.msra.mxu0 %v992
  %2555 = vmatprep.subr.mxu0 %v980
  %2556 = vmatpush1.msra.mxu0 %v979
  %2557 = vmatprep.subr.mxu0 %v967
  %2558 = vmatpush1.msra.mxu0 %v966
  %2559 = vmatprep.subr.mxu0 %v954
  %2560 = vmatpush1.msra.mxu0 %v953
  %2561 = vmatprep.subr.mxu0 %v941
  %2562 = vmatpush1.msra.mxu0 %v940
  %2563 = vmatprep.subr.mxu0 %v928
  %2564 = vmatpush1.msra.mxu0 %v927
  %2565 = vmatprep.subr.mxu0 %v915
  %2566 = vmatpush1.msra.mxu0 %v914
  %2567 = vmatprep.subr.mxu0 %v902
  %2568 = vmatpush1.msra.mxu0 %v901
  %2569 = vmatprep.subr.mxu0 %v889
  %2570 = vmatpush1.msra.mxu0 %v888
  %2571 = vmatprep.subr.mxu0 %v1292
  %2572 = vmatpush2.msra.mxu0 %v1291
  %2573 = vmatprep.subr.mxu0 %v1279
  %2574 = vmatpush2.msra.mxu0 %v1278
  %2575 = vmatprep.subr.mxu0 %v1266
  %2576 = vmatpush2.msra.mxu0 %v1265
  %2577 = vmatprep.subr.mxu0 %v1253
  %2578 = vmatpush2.msra.mxu0 %v1252
  %2579 = vmatprep.subr.mxu0 %v1240
  %2580 = vmatpush2.msra.mxu0 %v1239
  %2581 = vmatprep.subr.mxu0 %v1227
  %2582 = vmatpush2.msra.mxu0 %v1226
  %2583 = vmatprep.subr.mxu0 %v1214
  %2584 = vmatpush2.msra.mxu0 %v1213
  %2585 = vmatprep.subr.mxu0 %v1201
  %2586 = vmatpush2.msra.mxu0 %v1200
  %2587 = vmatprep.subr.mxu0 %v1188
  %2588 = vmatpush2.msra.mxu0 %v1187
  %2589 = vmatprep.subr.mxu0 %v1175
  %2590 = vmatpush2.msra.mxu0 %v1174
  %2591 = vmatprep.subr.mxu0 %v1162
  %2592 = vmatpush2.msra.mxu0 %v1161
  %2593 = vmatprep.subr.mxu0 %v1149
  %2594 = vmatpush2.msra.mxu0 %v1148
  %2595 = vmatprep.subr.mxu0 %v1136
  %2596 = vmatpush2.msra.mxu0 %v1135
  %2597 = vmatprep.subr.mxu0 %v1123
  %2598 = vmatpush2.msra.mxu0 %v1122
  %2599 = vmatprep.subr.mxu0 %v1110
  %2600 = vmatpush2.msra.mxu0 %v1109
  %2601 = vmatprep.subr.mxu0 %v1097
  %2602 = vmatpush2.msra.mxu0 %v1096
  %2603 = vmatprep.mubr.f32.mxu0 %v1819
  %2604 = vmatmul.mubr.f32.gmra.mxu0 %v1811
  %v2605 = vpop.f32.mrf.mxu0
  %v2606 = vadd.f32 %v2535, %v2605
  %v2607 = vpop.f32.mrf.mxu0
  %v2608 = vadd.f32 %v2537, %v2607
  %2609 = vdwg.mxu0
  %2610 = vmatprep.subr.mxu0 %v1500
  %2611 = vmatpush1.msra.mxu0 %v1499
  %2612 = vmatprep.subr.mxu0 %v1487
  %2613 = vmatpush1.msra.mxu0 %v1486
  %2614 = vmatprep.subr.mxu0 %v1474
  %2615 = vmatpush1.msra.mxu0 %v1473
  %2616 = vmatprep.subr.mxu0 %v1461
  %2617 = vmatpush1.msra.mxu0 %v1460
  %2618 = vmatprep.subr.mxu0 %v1448
  %2619 = vmatpush1.msra.mxu0 %v1447
  %2620 = vmatprep.subr.mxu0 %v1435
  %2621 = vmatpush1.msra.mxu0 %v1434
  %2622 = vmatprep.subr.mxu0 %v1422
  %2623 = vmatpush1.msra.mxu0 %v1421
  %2624 = vmatprep.subr.mxu0 %v1409
  %2625 = vmatpush1.msra.mxu0 %v1408
  %2626 = vmatprep.subr.mxu0 %v1396
  %2627 = vmatpush1.msra.mxu0 %v1395
  %2628 = vmatprep.subr.mxu0 %v1383
  %2629 = vmatpush1.msra.mxu0 %v1382
  %2630 = vmatprep.subr.mxu0 %v1370
  %2631 = vmatpush1.msra.mxu0 %v1369
  %2632 = vmatprep.subr.mxu0 %v1357
  %2633 = vmatpush1.msra.mxu0 %v1356
  %2634 = vmatprep.subr.mxu0 %v1344
  %2635 = vmatpush1.msra.mxu0 %v1343
  %2636 = vmatprep.subr.mxu0 %v1331
  %2637 = vmatpush1.msra.mxu0 %v1330
  %2638 = vmatprep.subr.mxu0 %v1318
  %2639 = vmatpush1.msra.mxu0 %v1317
  %2640 = vmatprep.subr.mxu0 %v1305
  %2641 = vmatpush1.msra.mxu0 %v1304
  %2642 = vmatprep.subr.mxu0 %v1708
  %2643 = vmatpush2.msra.mxu0 %v1707
  %2644 = vmatprep.subr.mxu0 %v1695
  %2645 = vmatpush2.msra.mxu0 %v1694
  %2646 = vmatprep.subr.mxu0 %v1682
  %2647 = vmatpush2.msra.mxu0 %v1681
  %2648 = vmatprep.subr.mxu0 %v1669
  %2649 = vmatpush2.msra.mxu0 %v1668
  %2650 = vmatprep.subr.mxu0 %v1656
  %2651 = vmatpush2.msra.mxu0 %v1655
  %2652 = vmatprep.subr.mxu0 %v1643
  %2653 = vmatpush2.msra.mxu0 %v1642
  %2654 = vmatprep.subr.mxu0 %v1630
  %2655 = vmatpush2.msra.mxu0 %v1629
  %2656 = vmatprep.subr.mxu0 %v1617
  %2657 = vmatpush2.msra.mxu0 %v1616
  %2658 = vmatprep.subr.mxu0 %v1604
  %2659 = vmatpush2.msra.mxu0 %v1603
  %2660 = vmatprep.subr.mxu0 %v1591
  %2661 = vmatpush2.msra.mxu0 %v1590
  %2662 = vmatprep.subr.mxu0 %v1578
  %2663 = vmatpush2.msra.mxu0 %v1577
  %2664 = vmatprep.subr.mxu0 %v1565
  %2665 = vmatpush2.msra.mxu0 %v1564
  %2666 = vmatprep.subr.mxu0 %v1552
  %2667 = vmatpush2.msra.mxu0 %v1551
  %2668 = vmatprep.subr.mxu0 %v1539
  %2669 = vmatpush2.msra.mxu0 %v1538
  %2670 = vmatprep.subr.mxu0 %v1526
  %2671 = vmatpush2.msra.mxu0 %v1525
  %2672 = vmatprep.subr.mxu0 %v1513
  %2673 = vmatpush2.msra.mxu0 %v1512
  %2674 = vmatprep.mubr.f32.mxu0 %v1820
  %2675 = vmatmul.mubr.f32.gmra.mxu0 %v1818
  %v2676 = vpop.f32.mrf.mxu0
  %v2677 = vadd.f32 %v2606, %v2676
  %v2678 = vpop.f32.mrf.mxu0
  %v2679 = vadd.f32 %v2608, %v2678
  %2680 = vdwg.mxu0
  %2681 = vmatprep.subr.mxu0 %v254
  %2682 = vmatpush1.msra.mxu0 %v253
  %2683 = vmatprep.subr.mxu0 %v241
  %2684 = vmatpush1.msra.mxu0 %v240
  %2685 = vmatprep.subr.mxu0 %v228
  %2686 = vmatpush1.msra.mxu0 %v227
  %2687 = vmatprep.subr.mxu0 %v215
  %2688 = vmatpush1.msra.mxu0 %v214
  %2689 = vmatprep.subr.mxu0 %v202
  %2690 = vmatpush1.msra.mxu0 %v201
  %2691 = vmatprep.subr.mxu0 %v189
  %2692 = vmatpush1.msra.mxu0 %v188
  %2693 = vmatprep.subr.mxu0 %v176
  %2694 = vmatpush1.msra.mxu0 %v175
  %2695 = vmatprep.subr.mxu0 %v163
  %2696 = vmatpush1.msra.mxu0 %v162
  %2697 = vmatprep.subr.mxu0 %v150
  %2698 = vmatpush1.msra.mxu0 %v149
  %2699 = vmatprep.subr.mxu0 %v137
  %2700 = vmatpush1.msra.mxu0 %v136
  %2701 = vmatprep.subr.mxu0 %v124
  %2702 = vmatpush1.msra.mxu0 %v123
  %2703 = vmatprep.subr.mxu0 %v111
  %2704 = vmatpush1.msra.mxu0 %v110
  %2705 = vmatprep.subr.mxu0 %v98
  %2706 = vmatpush1.msra.mxu0 %v97
  %2707 = vmatprep.subr.mxu0 %v85
  %2708 = vmatpush1.msra.mxu0 %v84
  %2709 = vmatprep.subr.mxu0 %v72
  %2710 = vmatpush1.msra.mxu0 %v71
  %2711 = vmatprep.subr.mxu0 %v59
  %2712 = vmatpush1.msra.mxu0 %v58
  %2713 = vmatprep.subr.mxu0 %v462
  %2714 = vmatpush2.msra.mxu0 %v461
  %2715 = vmatprep.subr.mxu0 %v449
  %2716 = vmatpush2.msra.mxu0 %v448
  %2717 = vmatprep.subr.mxu0 %v436
  %2718 = vmatpush2.msra.mxu0 %v435
  %2719 = vmatprep.subr.mxu0 %v423
  %2720 = vmatpush2.msra.mxu0 %v422
  %2721 = vmatprep.subr.mxu0 %v410
  %2722 = vmatpush2.msra.mxu0 %v409
  %2723 = vmatprep.subr.mxu0 %v397
  %2724 = vmatpush2.msra.mxu0 %v396
  %2725 = vmatprep.subr.mxu0 %v384
  %2726 = vmatpush2.msra.mxu0 %v383
  %2727 = vmatprep.subr.mxu0 %v371
  %2728 = vmatpush2.msra.mxu0 %v370
  %2729 = vmatprep.subr.mxu0 %v358
  %2730 = vmatpush2.msra.mxu0 %v357
  %2731 = vmatprep.subr.mxu0 %v345
  %2732 = vmatpush2.msra.mxu0 %v344
  %2733 = vmatprep.subr.mxu0 %v332
  %2734 = vmatpush2.msra.mxu0 %v331
  %2735 = vmatprep.subr.mxu0 %v319
  %2736 = vmatpush2.msra.mxu0 %v318
  %2737 = vmatprep.subr.mxu0 %v306
  %2738 = vmatpush2.msra.mxu0 %v305
  %2739 = vmatprep.subr.mxu0 %v293
  %2740 = vmatpush2.msra.mxu0 %v292
  %2741 = vmatprep.subr.mxu0 %v280
  %2742 = vmatpush2.msra.mxu0 %v279
  %2743 = vmatprep.subr.mxu0 %v267
  %2744 = vmatpush2.msra.mxu0 %v266
  %2745 = vmatprep.mubr.f32.mxu0 %v1802
  %2746 = vmatmul.mubr.f32.gmra.mxu0 %v1794
  %v2747 = vpop.f32.mrf.mxu0
  %v2748 = vadd.f32 %v1747, %v2747
  %v2749 = vpop.f32.mrf.mxu0
  %v2750 = vadd.f32 %v1751, %v2749
  %2751 = vdwg.mxu0
  %2752 = vmatprep.subr.mxu0 %v670
  %2753 = vmatpush1.msra.mxu0 %v669
  %2754 = vmatprep.subr.mxu0 %v657
  %2755 = vmatpush1.msra.mxu0 %v656
  %2756 = vmatprep.subr.mxu0 %v644
  %2757 = vmatpush1.msra.mxu0 %v643
  %2758 = vmatprep.subr.mxu0 %v631
  %2759 = vmatpush1.msra.mxu0 %v630
  %2760 = vmatprep.subr.mxu0 %v618
  %2761 = vmatpush1.msra.mxu0 %v617
  %2762 = vmatprep.subr.mxu0 %v605
  %2763 = vmatpush1.msra.mxu0 %v604
  %2764 = vmatprep.subr.mxu0 %v592
  %2765 = vmatpush1.msra.mxu0 %v591
  %2766 = vmatprep.subr.mxu0 %v579
  %2767 = vmatpush1.msra.mxu0 %v578
  %2768 = vmatprep.subr.mxu0 %v566
  %2769 = vmatpush1.msra.mxu0 %v565
  %2770 = vmatprep.subr.mxu0 %v553
  %2771 = vmatpush1.msra.mxu0 %v552
  %2772 = vmatprep.subr.mxu0 %v540
  %2773 = vmatpush1.msra.mxu0 %v539
  %2774 = vmatprep.subr.mxu0 %v527
  %2775 = vmatpush1.msra.mxu0 %v526
  %2776 = vmatprep.subr.mxu0 %v514
  %2777 = vmatpush1.msra.mxu0 %v513
  %2778 = vmatprep.subr.mxu0 %v501
  %2779 = vmatpush1.msra.mxu0 %v500
  %2780 = vmatprep.subr.mxu0 %v488
  %2781 = vmatpush1.msra.mxu0 %v487
  %2782 = vmatprep.subr.mxu0 %v475
  %2783 = vmatpush1.msra.mxu0 %v474
  %2784 = vmatprep.subr.mxu0 %v878
  %2785 = vmatpush2.msra.mxu0 %v877
  %2786 = vmatprep.subr.mxu0 %v865
  %2787 = vmatpush2.msra.mxu0 %v864
  %2788 = vmatprep.subr.mxu0 %v852
  %2789 = vmatpush2.msra.mxu0 %v851
  %2790 = vmatprep.subr.mxu0 %v839
  %2791 = vmatpush2.msra.mxu0 %v838
  %2792 = vmatprep.subr.mxu0 %v826
  %2793 = vmatpush2.msra.mxu0 %v825
  %2794 = vmatprep.subr.mxu0 %v813
  %2795 = vmatpush2.msra.mxu0 %v812
  %2796 = vmatprep.subr.mxu0 %v800
  %2797 = vmatpush2.msra.mxu0 %v799
  %2798 = vmatprep.subr.mxu0 %v787
  %2799 = vmatpush2.msra.mxu0 %v786
  %2800 = vmatprep.subr.mxu0 %v774
  %2801 = vmatpush2.msra.mxu0 %v773
  %2802 = vmatprep.subr.mxu0 %v761
  %2803 = vmatpush2.msra.mxu0 %v760
  %2804 = vmatprep.subr.mxu0 %v748
  %2805 = vmatpush2.msra.mxu0 %v747
  %2806 = vmatprep.subr.mxu0 %v735
  %2807 = vmatpush2.msra.mxu0 %v734
  %2808 = vmatprep.subr.mxu0 %v722
  %2809 = vmatpush2.msra.mxu0 %v721
  %2810 = vmatprep.subr.mxu0 %v709
  %2811 = vmatpush2.msra.mxu0 %v708
  %2812 = vmatprep.subr.mxu0 %v696
  %2813 = vmatpush2.msra.mxu0 %v695
  %2814 = vmatprep.subr.mxu0 %v683
  %2815 = vmatpush2.msra.mxu0 %v682
  %2816 = vmatprep.mubr.f32.mxu0 %v1803
  %2817 = vmatmul.mubr.f32.gmra.mxu0 %v1801
  %v2818 = vpop.f32.mrf.mxu0
  %v2819 = vadd.f32 %v2748, %v2818
  %v2820 = vpop.f32.mrf.mxu0
  %v2821 = vadd.f32 %v2750, %v2820
  %2822 = vdwg.mxu0
  %2823 = vmatprep.subr.mxu0 %v1086
  %2824 = vmatpush1.msra.mxu0 %v1085
  %2825 = vmatprep.subr.mxu0 %v1073
  %2826 = vmatpush1.msra.mxu0 %v1072
  %2827 = vmatprep.subr.mxu0 %v1060
  %2828 = vmatpush1.msra.mxu0 %v1059
  %2829 = vmatprep.subr.mxu0 %v1047
  %2830 = vmatpush1.msra.mxu0 %v1046
  %2831 = vmatprep.subr.mxu0 %v1034
  %2832 = vmatpush1.msra.mxu0 %v1033
  %2833 = vmatprep.subr.mxu0 %v1021
  %2834 = vmatpush1.msra.mxu0 %v1020
  %2835 = vmatprep.subr.mxu0 %v1008
  %2836 = vmatpush1.msra.mxu0 %v1007
  %2837 = vmatprep.subr.mxu0 %v995
  %2838 = vmatpush1.msra.mxu0 %v994
  %2839 = vmatprep.subr.mxu0 %v982
  %2840 = vmatpush1.msra.mxu0 %v981
  %2841 = vmatprep.subr.mxu0 %v969
  %2842 = vmatpush1.msra.mxu0 %v968
  %2843 = vmatprep.subr.mxu0 %v956
  %2844 = vmatpush1.msra.mxu0 %v955
  %2845 = vmatprep.subr.mxu0 %v943
  %2846 = vmatpush1.msra.mxu0 %v942
  %2847 = vmatprep.subr.mxu0 %v930
  %2848 = vmatpush1.msra.mxu0 %v929
  %2849 = vmatprep.subr.mxu0 %v917
  %2850 = vmatpush1.msra.mxu0 %v916
  %2851 = vmatprep.subr.mxu0 %v904
  %2852 = vmatpush1.msra.mxu0 %v903
  %2853 = vmatprep.subr.mxu0 %v891
  %2854 = vmatpush1.msra.mxu0 %v890
  %2855 = vmatprep.subr.mxu0 %v1294
  %2856 = vmatpush2.msra.mxu0 %v1293
  %2857 = vmatprep.subr.mxu0 %v1281
  %2858 = vmatpush2.msra.mxu0 %v1280
  %2859 = vmatprep.subr.mxu0 %v1268
  %2860 = vmatpush2.msra.mxu0 %v1267
  %2861 = vmatprep.subr.mxu0 %v1255
  %2862 = vmatpush2.msra.mxu0 %v1254
  %2863 = vmatprep.subr.mxu0 %v1242
  %2864 = vmatpush2.msra.mxu0 %v1241
  %2865 = vmatprep.subr.mxu0 %v1229
  %2866 = vmatpush2.msra.mxu0 %v1228
  %2867 = vmatprep.subr.mxu0 %v1216
  %2868 = vmatpush2.msra.mxu0 %v1215
  %2869 = vmatprep.subr.mxu0 %v1203
  %2870 = vmatpush2.msra.mxu0 %v1202
  %2871 = vmatprep.subr.mxu0 %v1190
  %2872 = vmatpush2.msra.mxu0 %v1189
  %2873 = vmatprep.subr.mxu0 %v1177
  %2874 = vmatpush2.msra.mxu0 %v1176
  %2875 = vmatprep.subr.mxu0 %v1164
  %2876 = vmatpush2.msra.mxu0 %v1163
  %2877 = vmatprep.subr.mxu0 %v1151
  %2878 = vmatpush2.msra.mxu0 %v1150
  %2879 = vmatprep.subr.mxu0 %v1138
  %2880 = vmatpush2.msra.mxu0 %v1137
  %2881 = vmatprep.subr.mxu0 %v1125
  %2882 = vmatpush2.msra.mxu0 %v1124
  %2883 = vmatprep.subr.mxu0 %v1112
  %2884 = vmatpush2.msra.mxu0 %v1111
  %2885 = vmatprep.subr.mxu0 %v1099
  %2886 = vmatpush2.msra.mxu0 %v1098
  %2887 = vmatprep.mubr.f32.mxu0 %v1819
  %2888 = vmatmul.mubr.f32.gmra.mxu0 %v1811
  %v2889 = vpop.f32.mrf.mxu0
  %v2890 = vadd.f32 %v2819, %v2889
  %v2891 = vpop.f32.mrf.mxu0
  %v2892 = vadd.f32 %v2821, %v2891
  %2893 = vdwg.mxu0
  %2894 = vmatprep.subr.mxu0 %v1502
  %2895 = vmatpush1.msra.mxu0 %v1501
  %2896 = vmatprep.subr.mxu0 %v1489
  %2897 = vmatpush1.msra.mxu0 %v1488
  %2898 = vmatprep.subr.mxu0 %v1476
  %2899 = vmatpush1.msra.mxu0 %v1475
  %2900 = vmatprep.subr.mxu0 %v1463
  %2901 = vmatpush1.msra.mxu0 %v1462
  %2902 = vmatprep.subr.mxu0 %v1450
  %2903 = vmatpush1.msra.mxu0 %v1449
  %2904 = vmatprep.subr.mxu0 %v1437
  %2905 = vmatpush1.msra.mxu0 %v1436
  %2906 = vmatprep.subr.mxu0 %v1424
  %2907 = vmatpush1.msra.mxu0 %v1423
  %2908 = vmatprep.subr.mxu0 %v1411
  %2909 = vmatpush1.msra.mxu0 %v1410
  %2910 = vmatprep.subr.mxu0 %v1398
  %2911 = vmatpush1.msra.mxu0 %v1397
  %2912 = vmatprep.subr.mxu0 %v1385
  %2913 = vmatpush1.msra.mxu0 %v1384
  %2914 = vmatprep.subr.mxu0 %v1372
  %2915 = vmatpush1.msra.mxu0 %v1371
  %2916 = vmatprep.subr.mxu0 %v1359
  %2917 = vmatpush1.msra.mxu0 %v1358
  %2918 = vmatprep.subr.mxu0 %v1346
  %2919 = vmatpush1.msra.mxu0 %v1345
  %2920 = vmatprep.subr.mxu0 %v1333
  %2921 = vmatpush1.msra.mxu0 %v1332
  %2922 = vmatprep.subr.mxu0 %v1320
  %2923 = vmatpush1.msra.mxu0 %v1319
  %2924 = vmatprep.subr.mxu0 %v1307
  %2925 = vmatpush1.msra.mxu0 %v1306
  %2926 = vmatprep.subr.mxu0 %v1710
  %2927 = vmatpush2.msra.mxu0 %v1709
  %2928 = vmatprep.subr.mxu0 %v1697
  %2929 = vmatpush2.msra.mxu0 %v1696
  %2930 = vmatprep.subr.mxu0 %v1684
  %2931 = vmatpush2.msra.mxu0 %v1683
  %2932 = vmatprep.subr.mxu0 %v1671
  %2933 = vmatpush2.msra.mxu0 %v1670
  %2934 = vmatprep.subr.mxu0 %v1658
  %2935 = vmatpush2.msra.mxu0 %v1657
  %2936 = vmatprep.subr.mxu0 %v1645
  %2937 = vmatpush2.msra.mxu0 %v1644
  %2938 = vmatprep.subr.mxu0 %v1632
  %2939 = vmatpush2.msra.mxu0 %v1631
  %2940 = vmatprep.subr.mxu0 %v1619
  %2941 = vmatpush2.msra.mxu0 %v1618
  %2942 = vmatprep.subr.mxu0 %v1606
  %2943 = vmatpush2.msra.mxu0 %v1605
  %2944 = vmatprep.subr.mxu0 %v1593
  %2945 = vmatpush2.msra.mxu0 %v1592
  %2946 = vmatprep.subr.mxu0 %v1580
  %2947 = vmatpush2.msra.mxu0 %v1579
  %2948 = vmatprep.subr.mxu0 %v1567
  %2949 = vmatpush2.msra.mxu0 %v1566
  %2950 = vmatprep.subr.mxu0 %v1554
  %2951 = vmatpush2.msra.mxu0 %v1553
  %2952 = vmatprep.subr.mxu0 %v1541
  %2953 = vmatpush2.msra.mxu0 %v1540
  %2954 = vmatprep.subr.mxu0 %v1528
  %2955 = vmatpush2.msra.mxu0 %v1527
  %2956 = vmatprep.subr.mxu0 %v1515
  %2957 = vmatpush2.msra.mxu0 %v1514
  %2958 = vmatprep.mubr.f32.mxu0 %v1820
  %2959 = vmatmul.mubr.f32.gmra.mxu0 %v1818
  %v2960 = vpop.f32.mrf.mxu0
  %v2961 = vadd.f32 %v2890, %v2960
  %v2962 = vpop.f32.mrf.mxu0
  %v2963 = vadd.f32 %v2892, %v2962
  %2964 = vdwg.mxu0
  %2965 = vmatprep.subr.mxu0 %v256
  %2966 = vmatpush1.msra.mxu0 %v255
  %2967 = vmatprep.subr.mxu0 %v243
  %2968 = vmatpush1.msra.mxu0 %v242
  %2969 = vmatprep.subr.mxu0 %v230
  %2970 = vmatpush1.msra.mxu0 %v229
  %2971 = vmatprep.subr.mxu0 %v217
  %2972 = vmatpush1.msra.mxu0 %v216
  %2973 = vmatprep.subr.mxu0 %v204
  %2974 = vmatpush1.msra.mxu0 %v203
  %2975 = vmatprep.subr.mxu0 %v191
  %2976 = vmatpush1.msra.mxu0 %v190
  %2977 = vmatprep.subr.mxu0 %v178
  %2978 = vmatpush1.msra.mxu0 %v177
  %2979 = vmatprep.subr.mxu0 %v165
  %2980 = vmatpush1.msra.mxu0 %v164
  %2981 = vmatprep.subr.mxu0 %v152
  %2982 = vmatpush1.msra.mxu0 %v151
  %2983 = vmatprep.subr.mxu0 %v139
  %2984 = vmatpush1.msra.mxu0 %v138
  %2985 = vmatprep.subr.mxu0 %v126
  %2986 = vmatpush1.msra.mxu0 %v125
  %2987 = vmatprep.subr.mxu0 %v113
  %2988 = vmatpush1.msra.mxu0 %v112
  %2989 = vmatprep.subr.mxu0 %v100
  %2990 = vmatpush1.msra.mxu0 %v99
  %2991 = vmatprep.subr.mxu0 %v87
  %2992 = vmatpush1.msra.mxu0 %v86
  %2993 = vmatprep.subr.mxu0 %v74
  %2994 = vmatpush1.msra.mxu0 %v73
  %2995 = vmatprep.subr.mxu0 %v61
  %2996 = vmatpush1.msra.mxu0 %v60
  %2997 = vmatprep.subr.mxu0 %v464
  %2998 = vmatpush2.msra.mxu0 %v463
  %2999 = vmatprep.subr.mxu0 %v451
  %3000 = vmatpush2.msra.mxu0 %v450
  %3001 = vmatprep.subr.mxu0 %v438
  %3002 = vmatpush2.msra.mxu0 %v437
  %3003 = vmatprep.subr.mxu0 %v425
  %3004 = vmatpush2.msra.mxu0 %v424
  %3005 = vmatprep.subr.mxu0 %v412
  %3006 = vmatpush2.msra.mxu0 %v411
  %3007 = vmatprep.subr.mxu0 %v399
  %3008 = vmatpush2.msra.mxu0 %v398
  %3009 = vmatprep.subr.mxu0 %v386
  %3010 = vmatpush2.msra.mxu0 %v385
  %3011 = vmatprep.subr.mxu0 %v373
  %3012 = vmatpush2.msra.mxu0 %v372
  %3013 = vmatprep.subr.mxu0 %v360
  %3014 = vmatpush2.msra.mxu0 %v359
  %3015 = vmatprep.subr.mxu0 %v347
  %3016 = vmatpush2.msra.mxu0 %v346
  %3017 = vmatprep.subr.mxu0 %v334
  %3018 = vmatpush2.msra.mxu0 %v333
  %3019 = vmatprep.subr.mxu0 %v321
  %3020 = vmatpush2.msra.mxu0 %v320
  %3021 = vmatprep.subr.mxu0 %v308
  %3022 = vmatpush2.msra.mxu0 %v307
  %3023 = vmatprep.subr.mxu0 %v295
  %3024 = vmatpush2.msra.mxu0 %v294
  %3025 = vmatprep.subr.mxu0 %v282
  %3026 = vmatpush2.msra.mxu0 %v281
  %3027 = vmatprep.subr.mxu0 %v269
  %3028 = vmatpush2.msra.mxu0 %v268
  %3029 = vmatprep.mubr.f32.mxu0 %v1802
  %3030 = vmatmul.mubr.f32.gmra.mxu0 %v1794
  %v3031 = vpop.f32.mrf.mxu0
  %v3032 = vadd.f32 %v1755, %v3031
  %v3033 = vpop.f32.mrf.mxu0
  %v3034 = vadd.f32 %v1759, %v3033
  %3035 = vdwg.mxu0
  %3036 = vmatprep.subr.mxu0 %v672
  %3037 = vmatpush1.msra.mxu0 %v671
  %3038 = vmatprep.subr.mxu0 %v659
  %3039 = vmatpush1.msra.mxu0 %v658
  %3040 = vmatprep.subr.mxu0 %v646
  %3041 = vmatpush1.msra.mxu0 %v645
  %3042 = vmatprep.subr.mxu0 %v633
  %3043 = vmatpush1.msra.mxu0 %v632
  %3044 = vmatprep.subr.mxu0 %v620
  %3045 = vmatpush1.msra.mxu0 %v619
  %3046 = vmatprep.subr.mxu0 %v607
  %3047 = vmatpush1.msra.mxu0 %v606
  %3048 = vmatprep.subr.mxu0 %v594
  %3049 = vmatpush1.msra.mxu0 %v593
  %3050 = vmatprep.subr.mxu0 %v581
  %3051 = vmatpush1.msra.mxu0 %v580
  %3052 = vmatprep.subr.mxu0 %v568
  %3053 = vmatpush1.msra.mxu0 %v567
  %3054 = vmatprep.subr.mxu0 %v555
  %3055 = vmatpush1.msra.mxu0 %v554
  %3056 = vmatprep.subr.mxu0 %v542
  %3057 = vmatpush1.msra.mxu0 %v541
  %3058 = vmatprep.subr.mxu0 %v529
  %3059 = vmatpush1.msra.mxu0 %v528
  %3060 = vmatprep.subr.mxu0 %v516
  %3061 = vmatpush1.msra.mxu0 %v515
  %3062 = vmatprep.subr.mxu0 %v503
  %3063 = vmatpush1.msra.mxu0 %v502
  %3064 = vmatprep.subr.mxu0 %v490
  %3065 = vmatpush1.msra.mxu0 %v489
  %3066 = vmatprep.subr.mxu0 %v477
  %3067 = vmatpush1.msra.mxu0 %v476
  %3068 = vmatprep.subr.mxu0 %v880
  %3069 = vmatpush2.msra.mxu0 %v879
  %3070 = vmatprep.subr.mxu0 %v867
  %3071 = vmatpush2.msra.mxu0 %v866
  %3072 = vmatprep.subr.mxu0 %v854
  %3073 = vmatpush2.msra.mxu0 %v853
  %3074 = vmatprep.subr.mxu0 %v841
  %3075 = vmatpush2.msra.mxu0 %v840
  %3076 = vmatprep.subr.mxu0 %v828
  %3077 = vmatpush2.msra.mxu0 %v827
  %3078 = vmatprep.subr.mxu0 %v815
  %3079 = vmatpush2.msra.mxu0 %v814
  %3080 = vmatprep.subr.mxu0 %v802
  %3081 = vmatpush2.msra.mxu0 %v801
  %3082 = vmatprep.subr.mxu0 %v789
  %3083 = vmatpush2.msra.mxu0 %v788
  %3084 = vmatprep.subr.mxu0 %v776
  %3085 = vmatpush2.msra.mxu0 %v775
  %3086 = vmatprep.subr.mxu0 %v763
  %3087 = vmatpush2.msra.mxu0 %v762
  %3088 = vmatprep.subr.mxu0 %v750
  %3089 = vmatpush2.msra.mxu0 %v749
  %3090 = vmatprep.subr.mxu0 %v737
  %3091 = vmatpush2.msra.mxu0 %v736
  %3092 = vmatprep.subr.mxu0 %v724
  %3093 = vmatpush2.msra.mxu0 %v723
  %3094 = vmatprep.subr.mxu0 %v711
  %3095 = vmatpush2.msra.mxu0 %v710
  %3096 = vmatprep.subr.mxu0 %v698
  %3097 = vmatpush2.msra.mxu0 %v697
  %3098 = vmatprep.subr.mxu0 %v685
  %3099 = vmatpush2.msra.mxu0 %v684
  %3100 = vmatprep.mubr.f32.mxu0 %v1803
  %3101 = vmatmul.mubr.f32.gmra.mxu0 %v1801
  %v3102 = vpop.f32.mrf.mxu0
  %v3103 = vadd.f32 %v3032, %v3102
  %v3104 = vpop.f32.mrf.mxu0
  %v3105 = vadd.f32 %v3034, %v3104
  %3106 = vdwg.mxu0
  %3107 = vmatprep.subr.mxu0 %v1088
  %3108 = vmatpush1.msra.mxu0 %v1087
  %3109 = vmatprep.subr.mxu0 %v1075
  %3110 = vmatpush1.msra.mxu0 %v1074
  %3111 = vmatprep.subr.mxu0 %v1062
  %3112 = vmatpush1.msra.mxu0 %v1061
  %3113 = vmatprep.subr.mxu0 %v1049
  %3114 = vmatpush1.msra.mxu0 %v1048
  %3115 = vmatprep.subr.mxu0 %v1036
  %3116 = vmatpush1.msra.mxu0 %v1035
  %3117 = vmatprep.subr.mxu0 %v1023
  %3118 = vmatpush1.msra.mxu0 %v1022
  %3119 = vmatprep.subr.mxu0 %v1010
  %3120 = vmatpush1.msra.mxu0 %v1009
  %3121 = vmatprep.subr.mxu0 %v997
  %3122 = vmatpush1.msra.mxu0 %v996
  %3123 = vmatprep.subr.mxu0 %v984
  %3124 = vmatpush1.msra.mxu0 %v983
  %3125 = vmatprep.subr.mxu0 %v971
  %3126 = vmatpush1.msra.mxu0 %v970
  %3127 = vmatprep.subr.mxu0 %v958
  %3128 = vmatpush1.msra.mxu0 %v957
  %3129 = vmatprep.subr.mxu0 %v945
  %3130 = vmatpush1.msra.mxu0 %v944
  %3131 = vmatprep.subr.mxu0 %v932
  %3132 = vmatpush1.msra.mxu0 %v931
  %3133 = vmatprep.subr.mxu0 %v919
  %3134 = vmatpush1.msra.mxu0 %v918
  %3135 = vmatprep.subr.mxu0 %v906
  %3136 = vmatpush1.msra.mxu0 %v905
  %3137 = vmatprep.subr.mxu0 %v893
  %3138 = vmatpush1.msra.mxu0 %v892
  %3139 = vmatprep.subr.mxu0 %v1296
  %3140 = vmatpush2.msra.mxu0 %v1295
  %3141 = vmatprep.subr.mxu0 %v1283
  %3142 = vmatpush2.msra.mxu0 %v1282
  %3143 = vmatprep.subr.mxu0 %v1270
  %3144 = vmatpush2.msra.mxu0 %v1269
  %3145 = vmatprep.subr.mxu0 %v1257
  %3146 = vmatpush2.msra.mxu0 %v1256
  %3147 = vmatprep.subr.mxu0 %v1244
  %3148 = vmatpush2.msra.mxu0 %v1243
  %3149 = vmatprep.subr.mxu0 %v1231
  %3150 = vmatpush2.msra.mxu0 %v1230
  %3151 = vmatprep.subr.mxu0 %v1218
  %3152 = vmatpush2.msra.mxu0 %v1217
  %3153 = vmatprep.subr.mxu0 %v1205
  %3154 = vmatpush2.msra.mxu0 %v1204
  %3155 = vmatprep.subr.mxu0 %v1192
  %3156 = vmatpush2.msra.mxu0 %v1191
  %3157 = vmatprep.subr.mxu0 %v1179
  %3158 = vmatpush2.msra.mxu0 %v1178
  %3159 = vmatprep.subr.mxu0 %v1166
  %3160 = vmatpush2.msra.mxu0 %v1165
  %3161 = vmatprep.subr.mxu0 %v1153
  %3162 = vmatpush2.msra.mxu0 %v1152
  %3163 = vmatprep.subr.mxu0 %v1140
  %3164 = vmatpush2.msra.mxu0 %v1139
  %3165 = vmatprep.subr.mxu0 %v1127
  %3166 = vmatpush2.msra.mxu0 %v1126
  %3167 = vmatprep.subr.mxu0 %v1114
  %3168 = vmatpush2.msra.mxu0 %v1113
  %3169 = vmatprep.subr.mxu0 %v1101
  %3170 = vmatpush2.msra.mxu0 %v1100
  %3171 = vmatprep.mubr.f32.mxu0 %v1819
  %3172 = vmatmul.mubr.f32.gmra.mxu0 %v1811
  %v3173 = vpop.f32.mrf.mxu0
  %v3174 = vadd.f32 %v3103, %v3173
  %v3175 = vpop.f32.mrf.mxu0
  %v3176 = vadd.f32 %v3105, %v3175
  %3177 = vdwg.mxu0
  %3178 = vmatprep.subr.mxu0 %v1504
  %3179 = vmatpush1.msra.mxu0 %v1503
  %3180 = vmatprep.subr.mxu0 %v1491
  %3181 = vmatpush1.msra.mxu0 %v1490
  %3182 = vmatprep.subr.mxu0 %v1478
  %3183 = vmatpush1.msra.mxu0 %v1477
  %3184 = vmatprep.subr.mxu0 %v1465
  %3185 = vmatpush1.msra.mxu0 %v1464
  %3186 = vmatprep.subr.mxu0 %v1452
  %3187 = vmatpush1.msra.mxu0 %v1451
  %3188 = vmatprep.subr.mxu0 %v1439
  %3189 = vmatpush1.msra.mxu0 %v1438
  %3190 = vmatprep.subr.mxu0 %v1426
  %3191 = vmatpush1.msra.mxu0 %v1425
  %3192 = vmatprep.subr.mxu0 %v1413
  %3193 = vmatpush1.msra.mxu0 %v1412
  %3194 = vmatprep.subr.mxu0 %v1400
  %3195 = vmatpush1.msra.mxu0 %v1399
  %3196 = vmatprep.subr.mxu0 %v1387
  %3197 = vmatpush1.msra.mxu0 %v1386
  %3198 = vmatprep.subr.mxu0 %v1374
  %3199 = vmatpush1.msra.mxu0 %v1373
  %3200 = vmatprep.subr.mxu0 %v1361
  %3201 = vmatpush1.msra.mxu0 %v1360
  %3202 = vmatprep.subr.mxu0 %v1348
  %3203 = vmatpush1.msra.mxu0 %v1347
  %3204 = vmatprep.subr.mxu0 %v1335
  %3205 = vmatpush1.msra.mxu0 %v1334
  %3206 = vmatprep.subr.mxu0 %v1322
  %3207 = vmatpush1.msra.mxu0 %v1321
  %3208 = vmatprep.subr.mxu0 %v1309
  %3209 = vmatpush1.msra.mxu0 %v1308
  %3210 = vmatprep.subr.mxu0 %v1712
  %3211 = vmatpush2.msra.mxu0 %v1711
  %3212 = vmatprep.subr.mxu0 %v1699
  %3213 = vmatpush2.msra.mxu0 %v1698
  %3214 = vmatprep.subr.mxu0 %v1686
  %3215 = vmatpush2.msra.mxu0 %v1685
  %3216 = vmatprep.subr.mxu0 %v1673
  %3217 = vmatpush2.msra.mxu0 %v1672
  %3218 = vmatprep.subr.mxu0 %v1660
  %3219 = vmatpush2.msra.mxu0 %v1659
  %3220 = vmatprep.subr.mxu0 %v1647
  %3221 = vmatpush2.msra.mxu0 %v1646
  %3222 = vmatprep.subr.mxu0 %v1634
  %3223 = vmatpush2.msra.mxu0 %v1633
  %3224 = vmatprep.subr.mxu0 %v1621
  %3225 = vmatpush2.msra.mxu0 %v1620
  %3226 = vmatprep.subr.mxu0 %v1608
  %3227 = vmatpush2.msra.mxu0 %v1607
  %3228 = vmatprep.subr.mxu0 %v1595
  %3229 = vmatpush2.msra.mxu0 %v1594
  %3230 = vmatprep.subr.mxu0 %v1582
  %3231 = vmatpush2.msra.mxu0 %v1581
  %3232 = vmatprep.subr.mxu0 %v1569
  %3233 = vmatpush2.msra.mxu0 %v1568
  %3234 = vmatprep.subr.mxu0 %v1556
  %3235 = vmatpush2.msra.mxu0 %v1555
  %3236 = vmatprep.subr.mxu0 %v1543
  %3237 = vmatpush2.msra.mxu0 %v1542
  %3238 = vmatprep.subr.mxu0 %v1530
  %3239 = vmatpush2.msra.mxu0 %v1529
  %3240 = vmatprep.subr.mxu0 %v1517
  %3241 = vmatpush2.msra.mxu0 %v1516
  %3242 = vmatprep.mubr.f32.mxu0 %v1820
  %3243 = vmatmul.mubr.f32.gmra.mxu0 %v1818
  %v3244 = vpop.f32.mrf.mxu0
  %v3245 = vadd.f32 %v3174, %v3244
  %v3246 = vpop.f32.mrf.mxu0
  %v3247 = vadd.f32 %v3176, %v3246
  %3248 = vdwg.mxu0
  %3249 = vmatprep.subr.mxu0 %v258
  %3250 = vmatpush1.msra.mxu0 %v257
  %3251 = vmatprep.subr.mxu0 %v245
  %3252 = vmatpush1.msra.mxu0 %v244
  %3253 = vmatprep.subr.mxu0 %v232
  %3254 = vmatpush1.msra.mxu0 %v231
  %3255 = vmatprep.subr.mxu0 %v219
  %3256 = vmatpush1.msra.mxu0 %v218
  %3257 = vmatprep.subr.mxu0 %v206
  %3258 = vmatpush1.msra.mxu0 %v205
  %3259 = vmatprep.subr.mxu0 %v193
  %3260 = vmatpush1.msra.mxu0 %v192
  %3261 = vmatprep.subr.mxu0 %v180
  %3262 = vmatpush1.msra.mxu0 %v179
  %3263 = vmatprep.subr.mxu0 %v167
  %3264 = vmatpush1.msra.mxu0 %v166
  %3265 = vmatprep.subr.mxu0 %v154
  %3266 = vmatpush1.msra.mxu0 %v153
  %3267 = vmatprep.subr.mxu0 %v141
  %3268 = vmatpush1.msra.mxu0 %v140
  %3269 = vmatprep.subr.mxu0 %v128
  %3270 = vmatpush1.msra.mxu0 %v127
  %3271 = vmatprep.subr.mxu0 %v115
  %3272 = vmatpush1.msra.mxu0 %v114
  %3273 = vmatprep.subr.mxu0 %v102
  %3274 = vmatpush1.msra.mxu0 %v101
  %3275 = vmatprep.subr.mxu0 %v89
  %3276 = vmatpush1.msra.mxu0 %v88
  %3277 = vmatprep.subr.mxu0 %v76
  %3278 = vmatpush1.msra.mxu0 %v75
  %3279 = vmatprep.subr.mxu0 %v63
  %3280 = vmatpush1.msra.mxu0 %v62
  %3281 = vmatprep.subr.mxu0 %v466
  %3282 = vmatpush2.msra.mxu0 %v465
  %3283 = vmatprep.subr.mxu0 %v453
  %3284 = vmatpush2.msra.mxu0 %v452
  %3285 = vmatprep.subr.mxu0 %v440
  %3286 = vmatpush2.msra.mxu0 %v439
  %3287 = vmatprep.subr.mxu0 %v427
  %3288 = vmatpush2.msra.mxu0 %v426
  %3289 = vmatprep.subr.mxu0 %v414
  %3290 = vmatpush2.msra.mxu0 %v413
  %3291 = vmatprep.subr.mxu0 %v401
  %3292 = vmatpush2.msra.mxu0 %v400
  %3293 = vmatprep.subr.mxu0 %v388
  %3294 = vmatpush2.msra.mxu0 %v387
  %3295 = vmatprep.subr.mxu0 %v375
  %3296 = vmatpush2.msra.mxu0 %v374
  %3297 = vmatprep.subr.mxu0 %v362
  %3298 = vmatpush2.msra.mxu0 %v361
  %3299 = vmatprep.subr.mxu0 %v349
  %3300 = vmatpush2.msra.mxu0 %v348
  %3301 = vmatprep.subr.mxu0 %v336
  %3302 = vmatpush2.msra.mxu0 %v335
  %3303 = vmatprep.subr.mxu0 %v323
  %3304 = vmatpush2.msra.mxu0 %v322
  %3305 = vmatprep.subr.mxu0 %v310
  %3306 = vmatpush2.msra.mxu0 %v309
  %3307 = vmatprep.subr.mxu0 %v297
  %3308 = vmatpush2.msra.mxu0 %v296
  %3309 = vmatprep.subr.mxu0 %v284
  %3310 = vmatpush2.msra.mxu0 %v283
  %3311 = vmatprep.subr.mxu0 %v271
  %3312 = vmatpush2.msra.mxu0 %v270
  %3313 = vmatprep.mubr.f32.mxu0 %v1802
  %3314 = vmatmul.mubr.f32.gmra.mxu0 %v1794
  %v3315 = vpop.f32.mrf.mxu0
  %v3316 = vadd.f32 %v1763, %v3315
  %v3317 = vpop.f32.mrf.mxu0
  %v3318 = vadd.f32 %v1767, %v3317
  %3319 = vdwg.mxu0
  %3320 = vmatprep.subr.mxu0 %v674
  %3321 = vmatpush1.msra.mxu0 %v673
  %3322 = vmatprep.subr.mxu0 %v661
  %3323 = vmatpush1.msra.mxu0 %v660
  %3324 = vmatprep.subr.mxu0 %v648
  %3325 = vmatpush1.msra.mxu0 %v647
  %3326 = vmatprep.subr.mxu0 %v635
  %3327 = vmatpush1.msra.mxu0 %v634
  %3328 = vmatprep.subr.mxu0 %v622
  %3329 = vmatpush1.msra.mxu0 %v621
  %3330 = vmatprep.subr.mxu0 %v609
  %3331 = vmatpush1.msra.mxu0 %v608
  %3332 = vmatprep.subr.mxu0 %v596
  %3333 = vmatpush1.msra.mxu0 %v595
  %3334 = vmatprep.subr.mxu0 %v583
  %3335 = vmatpush1.msra.mxu0 %v582
  %3336 = vmatprep.subr.mxu0 %v570
  %3337 = vmatpush1.msra.mxu0 %v569
  %3338 = vmatprep.subr.mxu0 %v557
  %3339 = vmatpush1.msra.mxu0 %v556
  %3340 = vmatprep.subr.mxu0 %v544
  %3341 = vmatpush1.msra.mxu0 %v543
  %3342 = vmatprep.subr.mxu0 %v531
  %3343 = vmatpush1.msra.mxu0 %v530
  %3344 = vmatprep.subr.mxu0 %v518
  %3345 = vmatpush1.msra.mxu0 %v517
  %3346 = vmatprep.subr.mxu0 %v505
  %3347 = vmatpush1.msra.mxu0 %v504
  %3348 = vmatprep.subr.mxu0 %v492
  %3349 = vmatpush1.msra.mxu0 %v491
  %3350 = vmatprep.subr.mxu0 %v479
  %3351 = vmatpush1.msra.mxu0 %v478
  %3352 = vmatprep.subr.mxu0 %v882
  %3353 = vmatpush2.msra.mxu0 %v881
  %3354 = vmatprep.subr.mxu0 %v869
  %3355 = vmatpush2.msra.mxu0 %v868
  %3356 = vmatprep.subr.mxu0 %v856
  %3357 = vmatpush2.msra.mxu0 %v855
  %3358 = vmatprep.subr.mxu0 %v843
  %3359 = vmatpush2.msra.mxu0 %v842
  %3360 = vmatprep.subr.mxu0 %v830
  %3361 = vmatpush2.msra.mxu0 %v829
  %3362 = vmatprep.subr.mxu0 %v817
  %3363 = vmatpush2.msra.mxu0 %v816
  %3364 = vmatprep.subr.mxu0 %v804
  %3365 = vmatpush2.msra.mxu0 %v803
  %3366 = vmatprep.subr.mxu0 %v791
  %3367 = vmatpush2.msra.mxu0 %v790
  %3368 = vmatprep.subr.mxu0 %v778
  %3369 = vmatpush2.msra.mxu0 %v777
  %3370 = vmatprep.subr.mxu0 %v765
  %3371 = vmatpush2.msra.mxu0 %v764
  %3372 = vmatprep.subr.mxu0 %v752
  %3373 = vmatpush2.msra.mxu0 %v751
  %3374 = vmatprep.subr.mxu0 %v739
  %3375 = vmatpush2.msra.mxu0 %v738
  %3376 = vmatprep.subr.mxu0 %v726
  %3377 = vmatpush2.msra.mxu0 %v725
  %3378 = vmatprep.subr.mxu0 %v713
  %3379 = vmatpush2.msra.mxu0 %v712
  %3380 = vmatprep.subr.mxu0 %v700
  %3381 = vmatpush2.msra.mxu0 %v699
  %3382 = vmatprep.subr.mxu0 %v687
  %3383 = vmatpush2.msra.mxu0 %v686
  %3384 = vmatprep.mubr.f32.mxu0 %v1803
  %3385 = vmatmul.mubr.f32.gmra.mxu0 %v1801
  %v3386 = vpop.f32.mrf.mxu0
  %v3387 = vadd.f32 %v3316, %v3386
  %v3388 = vpop.f32.mrf.mxu0
  %v3389 = vadd.f32 %v3318, %v3388
  %3390 = vdwg.mxu0
  %3391 = vmatprep.subr.mxu0 %v1090
  %3392 = vmatpush1.msra.mxu0 %v1089
  %3393 = vmatprep.subr.mxu0 %v1077
  %3394 = vmatpush1.msra.mxu0 %v1076
  %3395 = vmatprep.subr.mxu0 %v1064
  %3396 = vmatpush1.msra.mxu0 %v1063
  %3397 = vmatprep.subr.mxu0 %v1051
  %3398 = vmatpush1.msra.mxu0 %v1050
  %3399 = vmatprep.subr.mxu0 %v1038
  %3400 = vmatpush1.msra.mxu0 %v1037
  %3401 = vmatprep.subr.mxu0 %v1025
  %3402 = vmatpush1.msra.mxu0 %v1024
  %3403 = vmatprep.subr.mxu0 %v1012
  %3404 = vmatpush1.msra.mxu0 %v1011
  %3405 = vmatprep.subr.mxu0 %v999
  %3406 = vmatpush1.msra.mxu0 %v998
  %3407 = vmatprep.subr.mxu0 %v986
  %3408 = vmatpush1.msra.mxu0 %v985
  %3409 = vmatprep.subr.mxu0 %v973
  %3410 = vmatpush1.msra.mxu0 %v972
  %3411 = vmatprep.subr.mxu0 %v960
  %3412 = vmatpush1.msra.mxu0 %v959
  %3413 = vmatprep.subr.mxu0 %v947
  %3414 = vmatpush1.msra.mxu0 %v946
  %3415 = vmatprep.subr.mxu0 %v934
  %3416 = vmatpush1.msra.mxu0 %v933
  %3417 = vmatprep.subr.mxu0 %v921
  %3418 = vmatpush1.msra.mxu0 %v920
  %3419 = vmatprep.subr.mxu0 %v908
  %3420 = vmatpush1.msra.mxu0 %v907
  %3421 = vmatprep.subr.mxu0 %v895
  %3422 = vmatpush1.msra.mxu0 %v894
  %3423 = vmatprep.subr.mxu0 %v1298
  %3424 = vmatpush2.msra.mxu0 %v1297
  %3425 = vmatprep.subr.mxu0 %v1285
  %3426 = vmatpush2.msra.mxu0 %v1284
  %3427 = vmatprep.subr.mxu0 %v1272
  %3428 = vmatpush2.msra.mxu0 %v1271
  %3429 = vmatprep.subr.mxu0 %v1259
  %3430 = vmatpush2.msra.mxu0 %v1258
  %3431 = vmatprep.subr.mxu0 %v1246
  %3432 = vmatpush2.msra.mxu0 %v1245
  %3433 = vmatprep.subr.mxu0 %v1233
  %3434 = vmatpush2.msra.mxu0 %v1232
  %3435 = vmatprep.subr.mxu0 %v1220
  %3436 = vmatpush2.msra.mxu0 %v1219
  %3437 = vmatprep.subr.mxu0 %v1207
  %3438 = vmatpush2.msra.mxu0 %v1206
  %3439 = vmatprep.subr.mxu0 %v1194
  %3440 = vmatpush2.msra.mxu0 %v1193
  %3441 = vmatprep.subr.mxu0 %v1181
  %3442 = vmatpush2.msra.mxu0 %v1180
  %3443 = vmatprep.subr.mxu0 %v1168
  %3444 = vmatpush2.msra.mxu0 %v1167
  %3445 = vmatprep.subr.mxu0 %v1155
  %3446 = vmatpush2.msra.mxu0 %v1154
  %3447 = vmatprep.subr.mxu0 %v1142
  %3448 = vmatpush2.msra.mxu0 %v1141
  %3449 = vmatprep.subr.mxu0 %v1129
  %3450 = vmatpush2.msra.mxu0 %v1128
  %3451 = vmatprep.subr.mxu0 %v1116
  %3452 = vmatpush2.msra.mxu0 %v1115
  %3453 = vmatprep.subr.mxu0 %v1103
  %3454 = vmatpush2.msra.mxu0 %v1102
  %3455 = vmatprep.mubr.f32.mxu0 %v1819
  %3456 = vmatmul.mubr.f32.gmra.mxu0 %v1811
  %v3457 = vpop.f32.mrf.mxu0
  %v3458 = vadd.f32 %v3387, %v3457
  %v3459 = vpop.f32.mrf.mxu0
  %v3460 = vadd.f32 %v3389, %v3459
  %3461 = vdwg.mxu0
  %3462 = vmatprep.subr.mxu0 %v1506
  %3463 = vmatpush1.msra.mxu0 %v1505
  %3464 = vmatprep.subr.mxu0 %v1493
  %3465 = vmatpush1.msra.mxu0 %v1492
  %3466 = vmatprep.subr.mxu0 %v1480
  %3467 = vmatpush1.msra.mxu0 %v1479
  %3468 = vmatprep.subr.mxu0 %v1467
  %3469 = vmatpush1.msra.mxu0 %v1466
  %3470 = vmatprep.subr.mxu0 %v1454
  %3471 = vmatpush1.msra.mxu0 %v1453
  %3472 = vmatprep.subr.mxu0 %v1441
  %3473 = vmatpush1.msra.mxu0 %v1440
  %3474 = vmatprep.subr.mxu0 %v1428
  %3475 = vmatpush1.msra.mxu0 %v1427
  %3476 = vmatprep.subr.mxu0 %v1415
  %3477 = vmatpush1.msra.mxu0 %v1414
  %3478 = vmatprep.subr.mxu0 %v1402
  %3479 = vmatpush1.msra.mxu0 %v1401
  %3480 = vmatprep.subr.mxu0 %v1389
  %3481 = vmatpush1.msra.mxu0 %v1388
  %3482 = vmatprep.subr.mxu0 %v1376
  %3483 = vmatpush1.msra.mxu0 %v1375
  %3484 = vmatprep.subr.mxu0 %v1363
  %3485 = vmatpush1.msra.mxu0 %v1362
  %3486 = vmatprep.subr.mxu0 %v1350
  %3487 = vmatpush1.msra.mxu0 %v1349
  %3488 = vmatprep.subr.mxu0 %v1337
  %3489 = vmatpush1.msra.mxu0 %v1336
  %3490 = vmatprep.subr.mxu0 %v1324
  %3491 = vmatpush1.msra.mxu0 %v1323
  %3492 = vmatprep.subr.mxu0 %v1311
  %3493 = vmatpush1.msra.mxu0 %v1310
  %3494 = vmatprep.subr.mxu0 %v1714
  %3495 = vmatpush2.msra.mxu0 %v1713
  %3496 = vmatprep.subr.mxu0 %v1701
  %3497 = vmatpush2.msra.mxu0 %v1700
  %3498 = vmatprep.subr.mxu0 %v1688
  %3499 = vmatpush2.msra.mxu0 %v1687
  %3500 = vmatprep.subr.mxu0 %v1675
  %3501 = vmatpush2.msra.mxu0 %v1674
  %3502 = vmatprep.subr.mxu0 %v1662
  %3503 = vmatpush2.msra.mxu0 %v1661
  %3504 = vmatprep.subr.mxu0 %v1649
  %3505 = vmatpush2.msra.mxu0 %v1648
  %3506 = vmatprep.subr.mxu0 %v1636
  %3507 = vmatpush2.msra.mxu0 %v1635
  %3508 = vmatprep.subr.mxu0 %v1623
  %3509 = vmatpush2.msra.mxu0 %v1622
  %3510 = vmatprep.subr.mxu0 %v1610
  %3511 = vmatpush2.msra.mxu0 %v1609
  %3512 = vmatprep.subr.mxu0 %v1597
  %3513 = vmatpush2.msra.mxu0 %v1596
  %3514 = vmatprep.subr.mxu0 %v1584
  %3515 = vmatpush2.msra.mxu0 %v1583
  %3516 = vmatprep.subr.mxu0 %v1571
  %3517 = vmatpush2.msra.mxu0 %v1570
  %3518 = vmatprep.subr.mxu0 %v1558
  %3519 = vmatpush2.msra.mxu0 %v1557
  %3520 = vmatprep.subr.mxu0 %v1545
  %3521 = vmatpush2.msra.mxu0 %v1544
  %3522 = vmatprep.subr.mxu0 %v1532
  %3523 = vmatpush2.msra.mxu0 %v1531
  %3524 = vmatprep.subr.mxu0 %v1519
  %3525 = vmatpush2.msra.mxu0 %v1518
  %3526 = vmatprep.mubr.f32.mxu0 %v1820
  %3527 = vmatmul.mubr.f32.gmra.mxu0 %v1818
  %v3528 = vpop.f32.mrf.mxu0
  %v3529 = vadd.f32 %v3458, %v3528
  %v3530 = vpop.f32.mrf.mxu0
  %v3531 = vadd.f32 %v3460, %v3530
  %3532 = vdwg.mxu0
  %3533 = vmatprep.subr.mxu0 0.0
  %3534 = vmatpush1.msra.mxu0 %v259
  %3535 = vmatprep.subr.mxu0 0.0
  %3536 = vmatpush1.msra.mxu0 %v246
  %3537 = vmatprep.subr.mxu0 0.0
  %3538 = vmatpush1.msra.mxu0 %v233
  %3539 = vmatprep.subr.mxu0 0.0
  %3540 = vmatpush1.msra.mxu0 %v220
  %3541 = vmatprep.subr.mxu0 0.0
  %3542 = vmatpush1.msra.mxu0 %v207
  %3543 = vmatprep.subr.mxu0 0.0
  %3544 = vmatpush1.msra.mxu0 %v194
  %3545 = vmatprep.subr.mxu0 0.0
  %3546 = vmatpush1.msra.mxu0 %v181
  %3547 = vmatprep.subr.mxu0 0.0
  %3548 = vmatpush1.msra.mxu0 %v168
  %3549 = vmatprep.subr.mxu0 0.0
  %3550 = vmatpush1.msra.mxu0 %v155
  %3551 = vmatprep.subr.mxu0 0.0
  %3552 = vmatpush1.msra.mxu0 %v142
  %3553 = vmatprep.subr.mxu0 0.0
  %3554 = vmatpush1.msra.mxu0 %v129
  %3555 = vmatprep.subr.mxu0 0.0
  %3556 = vmatpush1.msra.mxu0 %v116
  %3557 = vmatprep.subr.mxu0 0.0
  %3558 = vmatpush1.msra.mxu0 %v103
  %3559 = vmatprep.subr.mxu0 0.0
  %3560 = vmatpush1.msra.mxu0 %v90
  %3561 = vmatprep.subr.mxu0 0.0
  %3562 = vmatpush1.msra.mxu0 %v77
  %3563 = vmatprep.subr.mxu0 0.0
  %3564 = vmatpush1.msra.mxu0 %v64
  %3565 = vmatprep.subr.mxu0 0.0
  %3566 = vmatpush2.msra.mxu0 %v467
  %3567 = vmatprep.subr.mxu0 0.0
  %3568 = vmatpush2.msra.mxu0 %v454
  %3569 = vmatprep.subr.mxu0 0.0
  %3570 = vmatpush2.msra.mxu0 %v441
  %3571 = vmatprep.subr.mxu0 0.0
  %3572 = vmatpush2.msra.mxu0 %v428
  %3573 = vmatprep.subr.mxu0 0.0
  %3574 = vmatpush2.msra.mxu0 %v415
  %3575 = vmatprep.subr.mxu0 0.0
  %3576 = vmatpush2.msra.mxu0 %v402
  %3577 = vmatprep.subr.mxu0 0.0
  %3578 = vmatpush2.msra.mxu0 %v389
  %3579 = vmatprep.subr.mxu0 0.0
  %3580 = vmatpush2.msra.mxu0 %v376
  %3581 = vmatprep.subr.mxu0 0.0
  %3582 = vmatpush2.msra.mxu0 %v363
  %3583 = vmatprep.subr.mxu0 0.0
  %3584 = vmatpush2.msra.mxu0 %v350
  %3585 = vmatprep.subr.mxu0 0.0
  %3586 = vmatpush2.msra.mxu0 %v337
  %3587 = vmatprep.subr.mxu0 0.0
  %3588 = vmatpush2.msra.mxu0 %v324
  %3589 = vmatprep.subr.mxu0 0.0
  %3590 = vmatpush2.msra.mxu0 %v311
  %3591 = vmatprep.subr.mxu0 0.0
  %3592 = vmatpush2.msra.mxu0 %v298
  %3593 = vmatprep.subr.mxu0 0.0
  %3594 = vmatpush2.msra.mxu0 %v285
  %3595 = vmatprep.subr.mxu0 0.0
  %3596 = vmatpush2.msra.mxu0 %v272
  %3597 = vmatprep.mubr.f32.mxu0 %v1802
  %3598 = vmatmul.mubr.f32.gmra.mxu0 %v1794
  %v3599 = vpop.f32.mrf.mxu0
  %v3600 = vadd.f32 %v1771, %v3599
  %v3601 = vpop.f32.mrf.mxu0
  %3602 = vdwg.mxu0
  %3603 = vmatprep.subr.mxu0 0.0
  %3604 = vmatpush1.msra.mxu0 %v675
  %3605 = vmatprep.subr.mxu0 0.0
  %3606 = vmatpush1.msra.mxu0 %v662
  %3607 = vmatprep.subr.mxu0 0.0
  %3608 = vmatpush1.msra.mxu0 %v649
  %3609 = vmatprep.subr.mxu0 0.0
  %3610 = vmatpush1.msra.mxu0 %v636
  %3611 = vmatprep.subr.mxu0 0.0
  %3612 = vmatpush1.msra.mxu0 %v623
  %3613 = vmatprep.subr.mxu0 0.0
  %3614 = vmatpush1.msra.mxu0 %v610
  %3615 = vmatprep.subr.mxu0 0.0
  %3616 = vmatpush1.msra.mxu0 %v597
  %3617 = vmatprep.subr.mxu0 0.0
  %3618 = vmatpush1.msra.mxu0 %v584
  %3619 = vmatprep.subr.mxu0 0.0
  %3620 = vmatpush1.msra.mxu0 %v571
  %3621 = vmatprep.subr.mxu0 0.0
  %3622 = vmatpush1.msra.mxu0 %v558
  %3623 = vmatprep.subr.mxu0 0.0
  %3624 = vmatpush1.msra.mxu0 %v545
  %3625 = vmatprep.subr.mxu0 0.0
  %3626 = vmatpush1.msra.mxu0 %v532
  %3627 = vmatprep.subr.mxu0 0.0
  %3628 = vmatpush1.msra.mxu0 %v519
  %3629 = vmatprep.subr.mxu0 0.0
  %3630 = vmatpush1.msra.mxu0 %v506
  %3631 = vmatprep.subr.mxu0 0.0
  %3632 = vmatpush1.msra.mxu0 %v493
  %3633 = vmatprep.subr.mxu0 0.0
  %3634 = vmatpush1.msra.mxu0 %v480
  %3635 = vmatprep.subr.mxu0 0.0
  %3636 = vmatpush2.msra.mxu0 %v883
  %3637 = vmatprep.subr.mxu0 0.0
  %3638 = vmatpush2.msra.mxu0 %v870
  %3639 = vmatprep.subr.mxu0 0.0
  %3640 = vmatpush2.msra.mxu0 %v857
  %3641 = vmatprep.subr.mxu0 0.0
  %3642 = vmatpush2.msra.mxu0 %v844
  %3643 = vmatprep.subr.mxu0 0.0
  %3644 = vmatpush2.msra.mxu0 %v831
  %3645 = vmatprep.subr.mxu0 0.0
  %3646 = vmatpush2.msra.mxu0 %v818
  %3647 = vmatprep.subr.mxu0 0.0
  %3648 = vmatpush2.msra.mxu0 %v805
  %3649 = vmatprep.subr.mxu0 0.0
  %3650 = vmatpush2.msra.mxu0 %v792
  %3651 = vmatprep.subr.mxu0 0.0
  %3652 = vmatpush2.msra.mxu0 %v779
  %3653 = vmatprep.subr.mxu0 0.0
  %3654 = vmatpush2.msra.mxu0 %v766
  %3655 = vmatprep.subr.mxu0 0.0
  %3656 = vmatpush2.msra.mxu0 %v753
  %3657 = vmatprep.subr.mxu0 0.0
  %3658 = vmatpush2.msra.mxu0 %v740
  %3659 = vmatprep.subr.mxu0 0.0
  %3660 = vmatpush2.msra.mxu0 %v727
  %3661 = vmatprep.subr.mxu0 0.0
  %3662 = vmatpush2.msra.mxu0 %v714
  %3663 = vmatprep.subr.mxu0 0.0
  %3664 = vmatpush2.msra.mxu0 %v701
  %3665 = vmatprep.subr.mxu0 0.0
  %3666 = vmatpush2.msra.mxu0 %v688
  %3667 = vmatprep.mubr.f32.mxu0 %v1803
  %3668 = vmatmul.mubr.f32.gmra.mxu0 %v1801
  %v3669 = vpop.f32.mrf.mxu0
  %v3670 = vadd.f32 %v3600, %v3669
  %v3671 = vpop.f32.mrf.mxu0
  %3672 = vdwg.mxu0
  %3673 = vmatprep.subr.mxu0 0.0
  %3674 = vmatpush1.msra.mxu0 %v1091
  %3675 = vmatprep.subr.mxu0 0.0
  %3676 = vmatpush1.msra.mxu0 %v1078
  %3677 = vmatprep.subr.mxu0 0.0
  %3678 = vmatpush1.msra.mxu0 %v1065
  %3679 = vmatprep.subr.mxu0 0.0
  %3680 = vmatpush1.msra.mxu0 %v1052
  %3681 = vmatprep.subr.mxu0 0.0
  %3682 = vmatpush1.msra.mxu0 %v1039
  %3683 = vmatprep.subr.mxu0 0.0
  %3684 = vmatpush1.msra.mxu0 %v1026
  %3685 = vmatprep.subr.mxu0 0.0
  %3686 = vmatpush1.msra.mxu0 %v1013
  %3687 = vmatprep.subr.mxu0 0.0
  %3688 = vmatpush1.msra.mxu0 %v1000
  %3689 = vmatprep.subr.mxu0 0.0
  %3690 = vmatpush1.msra.mxu0 %v987
  %3691 = vmatprep.subr.mxu0 0.0
  %3692 = vmatpush1.msra.mxu0 %v974
  %3693 = vmatprep.subr.mxu0 0.0
  %3694 = vmatpush1.msra.mxu0 %v961
  %3695 = vmatprep.subr.mxu0 0.0
  %3696 = vmatpush1.msra.mxu0 %v948
  %3697 = vmatprep.subr.mxu0 0.0
  %3698 = vmatpush1.msra.mxu0 %v935
  %3699 = vmatprep.subr.mxu0 0.0
  %3700 = vmatpush1.msra.mxu0 %v922
  %3701 = vmatprep.subr.mxu0 0.0
  %3702 = vmatpush1.msra.mxu0 %v909
  %3703 = vmatprep.subr.mxu0 0.0
  %3704 = vmatpush1.msra.mxu0 %v896
  %3705 = vmatprep.subr.mxu0 0.0
  %3706 = vmatpush2.msra.mxu0 %v1299
  %3707 = vmatprep.subr.mxu0 0.0
  %3708 = vmatpush2.msra.mxu0 %v1286
  %3709 = vmatprep.subr.mxu0 0.0
  %3710 = vmatpush2.msra.mxu0 %v1273
  %3711 = vmatprep.subr.mxu0 0.0
  %3712 = vmatpush2.msra.mxu0 %v1260
  %3713 = vmatprep.subr.mxu0 0.0
  %3714 = vmatpush2.msra.mxu0 %v1247
  %3715 = vmatprep.subr.mxu0 0.0
  %3716 = vmatpush2.msra.mxu0 %v1234
  %3717 = vmatprep.subr.mxu0 0.0
  %3718 = vmatpush2.msra.mxu0 %v1221
  %3719 = vmatprep.subr.mxu0 0.0
  %3720 = vmatpush2.msra.mxu0 %v1208
  %3721 = vmatprep.subr.mxu0 0.0
  %3722 = vmatpush2.msra.mxu0 %v1195
  %3723 = vmatprep.subr.mxu0 0.0
  %3724 = vmatpush2.msra.mxu0 %v1182
  %3725 = vmatprep.subr.mxu0 0.0
  %3726 = vmatpush2.msra.mxu0 %v1169
  %3727 = vmatprep.subr.mxu0 0.0
  %3728 = vmatpush2.msra.mxu0 %v1156
  %3729 = vmatprep.subr.mxu0 0.0
  %3730 = vmatpush2.msra.mxu0 %v1143
  %3731 = vmatprep.subr.mxu0 0.0
  %3732 = vmatpush2.msra.mxu0 %v1130
  %3733 = vmatprep.subr.mxu0 0.0
  %3734 = vmatpush2.msra.mxu0 %v1117
  %3735 = vmatprep.subr.mxu0 0.0
  %3736 = vmatpush2.msra.mxu0 %v1104
  %3737 = vmatprep.mubr.f32.mxu0 %v1819
  %3738 = vmatmul.mubr.f32.gmra.mxu0 %v1811
  %v3739 = vpop.f32.mrf.mxu0
  %v3740 = vadd.f32 %v3670, %v3739
  %v3741 = vpop.f32.mrf.mxu0
  %3742 = vdwg.mxu0
  %3743 = vmatprep.subr.mxu0 0.0
  %3744 = vmatpush1.msra.mxu0 %v1507
  %3745 = vmatprep.subr.mxu0 0.0
  %3746 = vmatpush1.msra.mxu0 %v1494
  %3747 = vmatprep.subr.mxu0 0.0
  %3748 = vmatpush1.msra.mxu0 %v1481
  %3749 = vmatprep.subr.mxu0 0.0
  %3750 = vmatpush1.msra.mxu0 %v1468
  %3751 = vmatprep.subr.mxu0 0.0
  %3752 = vmatpush1.msra.mxu0 %v1455
  %3753 = vmatprep.subr.mxu0 0.0
  %3754 = vmatpush1.msra.mxu0 %v1442
  %3755 = vmatprep.subr.mxu0 0.0
  %3756 = vmatpush1.msra.mxu0 %v1429
  %3757 = vmatprep.subr.mxu0 0.0
  %3758 = vmatpush1.msra.mxu0 %v1416
  %3759 = vmatprep.subr.mxu0 0.0
  %3760 = vmatpush1.msra.mxu0 %v1403
  %3761 = vmatprep.subr.mxu0 0.0
  %3762 = vmatpush1.msra.mxu0 %v1390
  %3763 = vmatprep.subr.mxu0 0.0
  %3764 = vmatpush1.msra.mxu0 %v1377
  %3765 = vmatprep.subr.mxu0 0.0
  %3766 = vmatpush1.msra.mxu0 %v1364
  %3767 = vmatprep.subr.mxu0 0.0
  %3768 = vmatpush1.msra.mxu0 %v1351
  %3769 = vmatprep.subr.mxu0 0.0
  %3770 = vmatpush1.msra.mxu0 %v1338
  %3771 = vmatprep.subr.mxu0 0.0
  %3772 = vmatpush1.msra.mxu0 %v1325
  %3773 = vmatprep.subr.mxu0 0.0
  %3774 = vmatpush1.msra.mxu0 %v1312
  %3775 = vmatprep.subr.mxu0 0.0
  %3776 = vmatpush2.msra.mxu0 %v1715
  %3777 = vmatprep.subr.mxu0 0.0
  %3778 = vmatpush2.msra.mxu0 %v1702
  %3779 = vmatprep.subr.mxu0 0.0
  %3780 = vmatpush2.msra.mxu0 %v1689
  %3781 = vmatprep.subr.mxu0 0.0
  %3782 = vmatpush2.msra.mxu0 %v1676
  %3783 = vmatprep.subr.mxu0 0.0
  %3784 = vmatpush2.msra.mxu0 %v1663
  %3785 = vmatprep.subr.mxu0 0.0
  %3786 = vmatpush2.msra.mxu0 %v1650
  %3787 = vmatprep.subr.mxu0 0.0
  %3788 = vmatpush2.msra.mxu0 %v1637
  %3789 = vmatprep.subr.mxu0 0.0
  %3790 = vmatpush2.msra.mxu0 %v1624
  %3791 = vmatprep.subr.mxu0 0.0
  %3792 = vmatpush2.msra.mxu0 %v1611
  %3793 = vmatprep.subr.mxu0 0.0
  %3794 = vmatpush2.msra.mxu0 %v1598
  %3795 = vmatprep.subr.mxu0 0.0
  %3796 = vmatpush2.msra.mxu0 %v1585
  %3797 = vmatprep.subr.mxu0 0.0
  %3798 = vmatpush2.msra.mxu0 %v1572
  %3799 = vmatprep.subr.mxu0 0.0
  %3800 = vmatpush2.msra.mxu0 %v1559
  %3801 = vmatprep.subr.mxu0 0.0
  %3802 = vmatpush2.msra.mxu0 %v1546
  %3803 = vmatprep.subr.mxu0 0.0
  %3804 = vmatpush2.msra.mxu0 %v1533
  %3805 = vmatprep.subr.mxu0 0.0
  %3806 = vmatpush2.msra.mxu0 %v1520
  %3807 = vmatprep.mubr.f32.mxu0 %v1820
  %3808 = vmatmul.mubr.f32.gmra.mxu0 %v1818
  %v3809 = vpop.f32.mrf.mxu0
  %v3810 = vadd.f32 %v3740, %v3809
  %v3811 = vpop.f32.mrf.mxu0
  %3812 = vdwg.mxu0
  %v3813 = vld [vmem:[%s3] sm:$0xff]
  %v3814 = vld [vmem:[%s3 + $0x8] sm:$0xff]
  %v3815 = vld [vmem:[%s3 + $0x10] sm:$0xff]
  %v3816 = vld [vmem:[%s3 + $0x18] sm:$0xff]
  %v3817 = vld [vmem:[%s3 + $0x20] sm:$0xff]
  %v3818 = vld [vmem:[%s3 + $0x28] sm:$0xff]
  %v3819 = vld [vmem:[%s3 + $0x30] sm:$0xff]
  %v3820 = vld [vmem:[%s3 + $0x38] sm:$0xff]
  %v3821 = vld [vmem:[%s3 + $0x40] sm:$0xff]
  %v3822 = vld [vmem:[%s3 + $0x48] sm:$0xff]
  %v3823 = vld [vmem:[%s3 + $0x50] sm:$0xff]
  %v3824 = vld [vmem:[%s3 + $0x58] sm:$0xff]
  %v3825 = vld [vmem:[%s3 + $0x60] sm:$0xff]
  %v3826 = vld [vmem:[%s3 + $0x68] sm:$0xff]
  %v3827 = vld [vmem:[%s3 + $0x70] sm:$0xff]
  %v3828 = vld [vmem:[%s3 + $0x78] sm:$0xff]
  %v3829 = vld [vmem:[%s3 + $0x80] sm:$0xff]
  %v3830 = vld [vmem:[%s3 + $0x88] sm:$0xff]
  %v3831 = vld [vmem:[%s3 + $0x90] sm:$0xff]
  %v3832 = vld [vmem:[%s3 + $0x98] sm:$0xff]
  %v3833 = vld [vmem:[%s3 + $0xa0] sm:$0xff]
  %v3834 = vld [vmem:[%s3 + $0xa8] sm:$0xff]
  %v3835 = vld [vmem:[%s3 + $0xb0] sm:$0xff]
  %v3836 = vld [vmem:[%s3 + $0xb8] sm:$0xff]
  %v3837 = vld [vmem:[%s3 + $0xc0] sm:$0xff]
  %v3838 = vld [vmem:[%s3 + $0xc8] sm:$0xff]
  %v3839 = vld [vmem:[%s3 + $0xd0] sm:$0xff]
  %v3840 = vld [vmem:[%s3 + $0xd8] sm:$0xff]
  %v3841 = vld [vmem:[%s3 + $0xe0] sm:$0xff]
  %v3842 = vld [vmem:[%s3 + $0xe8] sm:$0xff]
  %v3843 = vld [vmem:[%s3 + $0xf0] sm:$0xff]
  %v3844 = vld [vmem:[%s3 + $0xf8] sm:$0xff]
  %v3845 = vld [vmem:[%s3 + $0x100] sm:$0xff]
  %v3846 = vld [vmem:[%s3 + $0x108] sm:$0xff]
  %v3847 = vld [vmem:[%s3 + $0x110] sm:$0xff]
  %v3848 = vld [vmem:[%s3 + $0x118] sm:$0xff]
  %v3849 = vld [vmem:[%s3 + $0x120] sm:$0xff]
  %v3850 = vld [vmem:[%s3 + $0x128] sm:$0xff]
  %v3851 = vld [vmem:[%s3 + $0x130] sm:$0xff]
  %v3852 = vld [vmem:[%s3 + $0x138] sm:$0xff]
  %v3853 = vld [vmem:[%s3 + $0x140] sm:$0xff]
  %v3854 = vld [vmem:[%s3 + $0x148] sm:$0xff]
  %v3855 = vld [vmem:[%s3 + $0x150] sm:$0xff]
  %v3856 = vld [vmem:[%s3 + $0x158] sm:$0xff]
  %v3857 = vld [vmem:[%s3 + $0x160] sm:$0xff]
  %v3858 = vld [vmem:[%s3 + $0x168] sm:$0xff]
  %v3859 = vld [vmem:[%s3 + $0x170] sm:$0xff]
  %v3860 = vld [vmem:[%s3 + $0x178] sm:$0xff]
  %v3861 = vld [vmem:[%s3 + $0x180] sm:$0xff]
  %v3862 = vld [vmem:[%s3 + $0x188] sm:$0xff]
  %v3863 = vld [vmem:[%s3 + $0x190] sm:$0xff]
  %v3864 = vld [vmem:[%s3 + $0x198] sm:$0xff]
  %v3865 = vld [vmem:[%s3 + $0x1a0] sm:$0xff]
  %v3866 = vld [vmem:[%s3 + $0x1a8] sm:$0xff]
  %v3867 = vld [vmem:[%s3 + $0x1b0] sm:$0xff]
  %v3868 = vld [vmem:[%s3 + $0x1b8] sm:$0xff]
  %v3869 = vld [vmem:[%s3 + $0x1c0] sm:$0xff]
  %v3870 = vld [vmem:[%s3 + $0x1c8] sm:$0xff]
  %v3871 = vld [vmem:[%s3 + $0x1d0] sm:$0xff]
  %v3872 = vld [vmem:[%s3 + $0x1d8] sm:$0xff]
  %v3873 = vld [vmem:[%s3 + $0x1e0] sm:$0xff]
  %v3874 = vld [vmem:[%s3 + $0x1e8] sm:$0xff]
  %v3875 = vld [vmem:[%s3 + $0x1f0] sm:$0xff]
  %v3876 = vld [vmem:[%s3 + $0x1f8] sm:$0xff]
  %v3877 = vld [vmem:[%s3 + $0x200] sm:$0xff]
  %v3878 = vld [vmem:[%s3 + $0x208] sm:$0xff]
  %v3879 = vld [vmem:[%s3 + $0x210] sm:$0xff]
  %v3880 = vld [vmem:[%s3 + $0x218] sm:$0xff]
  %v3881 = vld [vmem:[%s3 + $0x220] sm:$0xff]
  %v3882 = vld [vmem:[%s3 + $0x228] sm:$0xff]
  %v3883 = vld [vmem:[%s3 + $0x230] sm:$0xff]
  %v3884 = vld [vmem:[%s3 + $0x238] sm:$0xff]
  %v3885 = vld [vmem:[%s3 + $0x240] sm:$0xff]
  %v3886 = vld [vmem:[%s3 + $0x248] sm:$0xff]
  %v3887 = vld [vmem:[%s3 + $0x250] sm:$0xff]
  %v3888 = vld [vmem:[%s3 + $0x258] sm:$0xff]
  %v3889 = vld [vmem:[%s3 + $0x260] sm:$0xff]
  %v3890 = vld [vmem:[%s3 + $0x268] sm:$0xff]
  %v3891 = vld [vmem:[%s3 + $0x270] sm:$0xff]
  %v3892 = vld [vmem:[%s3 + $0x278] sm:$0xff]
  %v3893 = vld [vmem:[%s3 + $0x280] sm:$0xff]
  %v3894 = vld [vmem:[%s3 + $0x288] sm:$0xff]
  %v3895 = vld [vmem:[%s3 + $0x290] sm:$0xff]
  %v3896 = vld [vmem:[%s3 + $0x298] sm:$0xff]
  %v3897 = vld [vmem:[%s3 + $0x2a0] sm:$0xff]
  %v3898 = vld [vmem:[%s3 + $0x2a8] sm:$0xff]
  %v3899 = vld [vmem:[%s3 + $0x2b0] sm:$0xff]
  %v3900 = vld [vmem:[%s3 + $0x2b8] sm:$0xff]
  %v3901 = vld [vmem:[%s3 + $0x2c0] sm:$0xff]
  %v3902 = vld [vmem:[%s3 + $0x2c8] sm:$0xff]
  %v3903 = vld [vmem:[%s3 + $0x2d0] sm:$0xff]
  %v3904 = vld [vmem:[%s3 + $0x2d8] sm:$0xff]
  %v3905 = vld [vmem:[%s3 + $0x2e0] sm:$0xff]
  %v3906 = vld [vmem:[%s3 + $0x2e8] sm:$0xff]
  %v3907 = vld [vmem:[%s3 + $0x2f0] sm:$0xff]
  %v3908 = vld [vmem:[%s3 + $0x2f8] sm:$0xff]
  %v3909 = vld [vmem:[%s3 + $0x300] sm:$0xff]
  %v3910 = vld [vmem:[%s3 + $0x308] sm:$0xff]
  %v3911 = vld [vmem:[%s3 + $0x310] sm:$0xff]
  %v3912 = vld [vmem:[%s3 + $0x318] sm:$0xff]
  %v3913 = vld [vmem:[%s3 + $0x320] sm:$0xff]
  %v3914 = vld [vmem:[%s3 + $0x328] sm:$0xff]
  %v3915 = vld [vmem:[%s3 + $0x330] sm:$0xff]
  %v3916 = vld [vmem:[%s3 + $0x338] sm:$0xff]
  %v3917 = vld [vmem:[%s3 + $0x340] sm:$0xff]
  %v3918 = vld [vmem:[%s3 + $0x348] sm:$0xff]
  %v3919 = vld [vmem:[%s3 + $0x350] sm:$0xff]
  %v3920 = vld [vmem:[%s3 + $0x358] sm:$0xff]
  %v3921 = vld [vmem:[%s3 + $0x360] sm:$0xff]
  %v3922 = vld [vmem:[%s3 + $0x368] sm:$0xff]
  %v3923 = vld [vmem:[%s3 + $0x370] sm:$0xff]
  %v3924 = vld [vmem:[%s3 + $0x378] sm:$0xff]
  %v3925 = vld [vmem:[%s3 + $0x380] sm:$0xff]
  %v3926 = vld [vmem:[%s3 + $0x388] sm:$0xff]
  %v3927 = vld [vmem:[%s3 + $0x390] sm:$0xff]
  %v3928 = vld [vmem:[%s3 + $0x398] sm:$0xff]
  %v3929 = vld [vmem:[%s3 + $0x3a0] sm:$0xff]
  %v3930 = vld [vmem:[%s3 + $0x3a8] sm:$0xff]
  %v3931 = vld [vmem:[%s3 + $0x3b0] sm:$0xff]
  %v3932 = vld [vmem:[%s3 + $0x3b8] sm:$0xff]
  %v3933 = vld [vmem:[%s3 + $0x3c0] sm:$0xff]
  %v3934 = vld [vmem:[%s3 + $0x3c8] sm:$0xff]
  %v3935 = vld [vmem:[%s3 + $0x3d0] sm:$0xff]
  %v3936 = vld [vmem:[%s3 + $0x3d8] sm:$0xff]
  %v3937 = vld [vmem:[%s3 + $0x3e0] sm:$0xff]
  %v3938 = vld [vmem:[%s3 + $0x3e8] sm:$0xff]
  %v3939 = vld [vmem:[%s3 + $0x3f0] sm:$0xff]
  %v3940 = vld [vmem:[%s3 + $0x3f8] sm:$0xff]
  %v3941 = vld [vmem:[%s3 + $0x400] sm:$0xff]
  %v3942 = vld [vmem:[%s3 + $0x408] sm:$0xff]
  %v3943 = vld [vmem:[%s3 + $0x410] sm:$0xff]
  %v3944 = vld [vmem:[%s3 + $0x418] sm:$0xff]
  %v3945 = vld [vmem:[%s3 + $0x420] sm:$0xff]
  %v3946 = vld [vmem:[%s3 + $0x428] sm:$0xff]
  %v3947 = vld [vmem:[%s3 + $0x430] sm:$0xff]
  %v3948 = vld [vmem:[%s3 + $0x438] sm:$0xff]
  %v3949 = vld [vmem:[%s3 + $0x440] sm:$0xff]
  %v3950 = vld [vmem:[%s3 + $0x448] sm:$0xff]
  %v3951 = vld [vmem:[%s3 + $0x450] sm:$0xff]
  %v3952 = vld [vmem:[%s3 + $0x458] sm:$0xff]
  %v3953 = vld [vmem:[%s3 + $0x460] sm:$0xff]
  %v3954 = vld [vmem:[%s3 + $0x468] sm:$0xff]
  %v3955 = vld [vmem:[%s3 + $0x470] sm:$0xff]
  %v3956 = vld [vmem:[%s3 + $0x478] sm:$0xff]
  %v3957 = vld [vmem:[%s3 + $0x480] sm:$0xff]
  %v3958 = vld [vmem:[%s3 + $0x488] sm:$0xff]
  %v3959 = vld [vmem:[%s3 + $0x490] sm:$0xff]
  %v3960 = vld [vmem:[%s3 + $0x498] sm:$0xff]
  %v3961 = vld [vmem:[%s3 + $0x4a0] sm:$0xff]
  %v3962 = vld [vmem:[%s3 + $0x4a8] sm:$0xff]
  %v3963 = vld [vmem:[%s3 + $0x4b0] sm:$0xff]
  %v3964 = vld [vmem:[%s3 + $0x4b8] sm:$0xff]
  %v3965 = vld [vmem:[%s3 + $0x4c0] sm:$0xff]
  %v3966 = vld [vmem:[%s3 + $0x4c8] sm:$0xff]
  %v3967 = vld [vmem:[%s3 + $0x4d0] sm:$0xff]
  %v3968 = vld [vmem:[%s3 + $0x4d8] sm:$0xff]
  %v3969 = vld [vmem:[%s3 + $0x4e0] sm:$0xff]
  %v3970 = vld [vmem:[%s3 + $0x4e8] sm:$0xff]
  %v3971 = vld [vmem:[%s3 + $0x4f0] sm:$0xff]
  %v3972 = vld [vmem:[%s3 + $0x4f8] sm:$0xff]
  %v3973 = vld [vmem:[%s3 + $0x500] sm:$0xff]
  %v3974 = vld [vmem:[%s3 + $0x508] sm:$0xff]
  %v3975 = vld [vmem:[%s3 + $0x510] sm:$0xff]
  %v3976 = vld [vmem:[%s3 + $0x518] sm:$0xff]
  %v3977 = vld [vmem:[%s3 + $0x520] sm:$0xff]
  %v3978 = vld [vmem:[%s3 + $0x528] sm:$0xff]
  %v3979 = vld [vmem:[%s3 + $0x530] sm:$0xff]
  %v3980 = vld [vmem:[%s3 + $0x538] sm:$0xff]
  %v3981 = vld [vmem:[%s3 + $0x540] sm:$0xff]
  %v3982 = vld [vmem:[%s3 + $0x548] sm:$0xff]
  %v3983 = vld [vmem:[%s3 + $0x550] sm:$0xff]
  %v3984 = vld [vmem:[%s3 + $0x558] sm:$0xff]
  %v3985 = vld [vmem:[%s3 + $0x560] sm:$0xff]
  %v3986 = vld [vmem:[%s3 + $0x568] sm:$0xff]
  %v3987 = vld [vmem:[%s3 + $0x570] sm:$0xff]
  %v3988 = vld [vmem:[%s3 + $0x578] sm:$0xff]
  %v3989 = vld [vmem:[%s3 + $0x580] sm:$0xff]
  %v3990 = vld [vmem:[%s3 + $0x588] sm:$0xff]
  %v3991 = vld [vmem:[%s3 + $0x590] sm:$0xff]
  %v3992 = vld [vmem:[%s3 + $0x598] sm:$0xff]
  %v3993 = vld [vmem:[%s3 + $0x5a0] sm:$0xff]
  %v3994 = vld [vmem:[%s3 + $0x5a8] sm:$0xff]
  %v3995 = vld [vmem:[%s3 + $0x5b0] sm:$0xff]
  %v3996 = vld [vmem:[%s3 + $0x5b8] sm:$0xff]
  %v3997 = vld [vmem:[%s3 + $0x5c0] sm:$0xff]
  %v3998 = vld [vmem:[%s3 + $0x5c8] sm:$0xff]
  %v3999 = vld [vmem:[%s3 + $0x5d0] sm:$0xff]
  %v4000 = vld [vmem:[%s3 + $0x5d8] sm:$0xff]
  %v4001 = vld [vmem:[%s3 + $0x5e0] sm:$0xff]
  %v4002 = vld [vmem:[%s3 + $0x5e8] sm:$0xff]
  %v4003 = vld [vmem:[%s3 + $0x5f0] sm:$0xff]
  %v4004 = vld [vmem:[%s3 + $0x5f8] sm:$0xff]
  %v4005 = vld [vmem:[%s3 + $0x600] sm:$0xff]
  %v4006 = vld [vmem:[%s3 + $0x608] sm:$0xff]
  %v4007 = vld [vmem:[%s3 + $0x610] sm:$0xff]
  %v4008 = vld [vmem:[%s3 + $0x618] sm:$0xff]
  %vm4009 = vcmask 261120
  %v4011 = vsel %vm4009, %v3810, 0
  %4013 = vmatprep.subr.mxu0 0.0
  %4014 = vmatpush1.msra.mxu0 %v3828
  %4015 = vmatprep.subr.mxu0 0.0
  %4016 = vmatpush1.msra.mxu0 %v3827
  %4017 = vmatprep.subr.mxu0 0.0
  %4018 = vmatpush1.msra.mxu0 %v3826
  %4019 = vmatprep.subr.mxu0 0.0
  %4020 = vmatpush1.msra.mxu0 %v3825
  %4021 = vmatprep.subr.mxu0 0.0
  %4022 = vmatpush1.msra.mxu0 %v3824
  %4023 = vmatprep.subr.mxu0 0.0
  %4024 = vmatpush1.msra.mxu0 %v3823
  %4025 = vmatprep.subr.mxu0 0.0
  %4026 = vmatpush1.msra.mxu0 %v3822
  %4027 = vmatprep.subr.mxu0 0.0
  %4028 = vmatpush1.msra.mxu0 %v3821
  %4029 = vmatprep.subr.mxu0 0.0
  %4030 = vmatpush1.msra.mxu0 %v3820
  %4031 = vmatprep.subr.mxu0 0.0
  %4032 = vmatpush1.msra.mxu0 %v3819
  %4033 = vmatprep.subr.mxu0 0.0
  %4034 = vmatpush1.msra.mxu0 %v3818
  %4035 = vmatprep.subr.mxu0 0.0
  %4036 = vmatpush1.msra.mxu0 %v3817
  %4037 = vmatprep.subr.mxu0 0.0
  %4038 = vmatpush1.msra.mxu0 %v3816
  %4039 = vmatprep.subr.mxu0 0.0
  %4040 = vmatpush1.msra.mxu0 %v3815
  %4041 = vmatprep.subr.mxu0 0.0
  %4042 = vmatpush1.msra.mxu0 %v3814
  %4043 = vmatprep.subr.mxu0 0.0
  %4044 = vmatpush1.msra.mxu0 %v3813
  %4045 = vmatprep.subr.mxu0 0.0
  %4046 = vmatpush2.msra.mxu0 %v3844
  %4047 = vmatprep.subr.mxu0 0.0
  %4048 = vmatpush2.msra.mxu0 %v3843
  %4049 = vmatprep.subr.mxu0 0.0
  %4050 = vmatpush2.msra.mxu0 %v3842
  %4051 = vmatprep.subr.mxu0 0.0
  %4052 = vmatpush2.msra.mxu0 %v3841
  %4053 = vmatprep.subr.mxu0 0.0
  %4054 = vmatpush2.msra.mxu0 %v3840
  %4055 = vmatprep.subr.mxu0 0.0
  %4056 = vmatpush2.msra.mxu0 %v3839
  %4057 = vmatprep.subr.mxu0 0.0
  %4058 = vmatpush2.msra.mxu0 %v3838
  %4059 = vmatprep.subr.mxu0 0.0
  %4060 = vmatpush2.msra.mxu0 %v3837
  %4061 = vmatprep.subr.mxu0 0.0
  %4062 = vmatpush2.msra.mxu0 %v3836
  %4063 = vmatprep.subr.mxu0 0.0
  %4064 = vmatpush2.msra.mxu0 %v3835
  %4065 = vmatprep.subr.mxu0 0.0
  %4066 = vmatpush2.msra.mxu0 %v3834
  %4067 = vmatprep.subr.mxu0 0.0
  %4068 = vmatpush2.msra.mxu0 %v3833
  %4069 = vmatprep.subr.mxu0 0.0
  %4070 = vmatpush2.msra.mxu0 %v3832
  %4071 = vmatprep.subr.mxu0 0.0
  %4072 = vmatpush2.msra.mxu0 %v3831
  %4073 = vmatprep.subr.mxu0 0.0
  %4074 = vmatpush2.msra.mxu0 %v3830
  %4075 = vmatprep.subr.mxu0 0.0
  %4076 = vmatpush2.msra.mxu0 %v3829
  %4077 = vmatprep.mubr.f32.mxu0 %v2111
  %4078 = vmatmul.mubr.f32.gmra.mxu0 %v2109
  %v4079 = vpop.f32.mrf.mxu0
  %v4080 = vadd.f32 0.0, %v4079
  %v4081 = vpop.f32.mrf.mxu0
  %4082 = vdwg.mxu0
  %4083 = vmatprep.subr.mxu0 0.0
  %4084 = vmatpush1.msra.mxu0 %v3860
  %4085 = vmatprep.subr.mxu0 0.0
  %4086 = vmatpush1.msra.mxu0 %v3859
  %4087 = vmatprep.subr.mxu0 0.0
  %4088 = vmatpush1.msra.mxu0 %v3858
  %4089 = vmatprep.subr.mxu0 0.0
  %4090 = vmatpush1.msra.mxu0 %v3857
  %4091 = vmatprep.subr.mxu0 0.0
  %4092 = vmatpush1.msra.mxu0 %v3856
  %4093 = vmatprep.subr.mxu0 0.0
  %4094 = vmatpush1.msra.mxu0 %v3855
  %4095 = vmatprep.subr.mxu0 0.0
  %4096 = vmatpush1.msra.mxu0 %v3854
  %4097 = vmatprep.subr.mxu0 0.0
  %4098 = vmatpush1.msra.mxu0 %v3853
  %4099 = vmatprep.subr.mxu0 0.0
  %4100 = vmatpush1.msra.mxu0 %v3852
  %4101 = vmatprep.subr.mxu0 0.0
  %4102 = vmatpush1.msra.mxu0 %v3851
  %4103 = vmatprep.subr.mxu0 0.0
  %4104 = vmatpush1.msra.mxu0 %v3850
  %4105 = vmatprep.subr.mxu0 0.0
  %4106 = vmatpush1.msra.mxu0 %v3849
  %4107 = vmatprep.subr.mxu0 0.0
  %4108 = vmatpush1.msra.mxu0 %v3848
  %4109 = vmatprep.subr.mxu0 0.0
  %4110 = vmatpush1.msra.mxu0 %v3847
  %4111 = vmatprep.subr.mxu0 0.0
  %4112 = vmatpush1.msra.mxu0 %v3846
  %4113 = vmatprep.subr.mxu0 0.0
  %4114 = vmatpush1.msra.mxu0 %v3845
  %4115 = vmatprep.subr.mxu0 0.0
  %4116 = vmatpush2.msra.mxu0 %v3876
  %4117 = vmatprep.subr.mxu0 0.0
  %4118 = vmatpush2.msra.mxu0 %v3875
  %4119 = vmatprep.subr.mxu0 0.0
  %4120 = vmatpush2.msra.mxu0 %v3874
  %4121 = vmatprep.subr.mxu0 0.0
  %4122 = vmatpush2.msra.mxu0 %v3873
  %4123 = vmatprep.subr.mxu0 0.0
  %4124 = vmatpush2.msra.mxu0 %v3872
  %4125 = vmatprep.subr.mxu0 0.0
  %4126 = vmatpush2.msra.mxu0 %v3871
  %4127 = vmatprep.subr.mxu0 0.0
  %4128 = vmatpush2.msra.mxu0 %v3870
  %4129 = vmatprep.subr.mxu0 0.0
  %4130 = vmatpush2.msra.mxu0 %v3869
  %4131 = vmatprep.subr.mxu0 0.0
  %4132 = vmatpush2.msra.mxu0 %v3868
  %4133 = vmatprep.subr.mxu0 0.0
  %4134 = vmatpush2.msra.mxu0 %v3867
  %4135 = vmatprep.subr.mxu0 0.0
  %4136 = vmatpush2.msra.mxu0 %v3866
  %4137 = vmatprep.subr.mxu0 0.0
  %4138 = vmatpush2.msra.mxu0 %v3865
  %4139 = vmatprep.subr.mxu0 0.0
  %4140 = vmatpush2.msra.mxu0 %v3864
  %4141 = vmatprep.subr.mxu0 0.0
  %4142 = vmatpush2.msra.mxu0 %v3863
  %4143 = vmatprep.subr.mxu0 0.0
  %4144 = vmatpush2.msra.mxu0 %v3862
  %4145 = vmatprep.subr.mxu0 0.0
  %4146 = vmatpush2.msra.mxu0 %v3861
  %4147 = vmatprep.mubr.f32.mxu0 %v2395
  %4148 = vmatmul.mubr.f32.gmra.mxu0 %v2393
  %v4149 = vpop.f32.mrf.mxu0
  %v4150 = vadd.f32 %v4080, %v4149
  %v4151 = vpop.f32.mrf.mxu0
  %4152 = vdwg.mxu0
  %4153 = vmatprep.subr.mxu0 0.0
  %4154 = vmatpush1.msra.mxu0 %v3892
  %4155 = vmatprep.subr.mxu0 0.0
  %4156 = vmatpush1.msra.mxu0 %v3891
  %4157 = vmatprep.subr.mxu0 0.0
  %4158 = vmatpush1.msra.mxu0 %v3890
  %4159 = vmatprep.subr.mxu0 0.0
  %4160 = vmatpush1.msra.mxu0 %v3889
  %4161 = vmatprep.subr.mxu0 0.0
  %4162 = vmatpush1.msra.mxu0 %v3888
  %4163 = vmatprep.subr.mxu0 0.0
  %4164 = vmatpush1.msra.mxu0 %v3887
  %4165 = vmatprep.subr.mxu0 0.0
  %4166 = vmatpush1.msra.mxu0 %v3886
  %4167 = vmatprep.subr.mxu0 0.0
  %4168 = vmatpush1.msra.mxu0 %v3885
  %4169 = vmatprep.subr.mxu0 0.0
  %4170 = vmatpush1.msra.mxu0 %v3884
  %4171 = vmatprep.subr.mxu0 0.0
  %4172 = vmatpush1.msra.mxu0 %v3883
  %4173 = vmatprep.subr.mxu0 0.0
  %4174 = vmatpush1.msra.mxu0 %v3882
  %4175 = vmatprep.subr.mxu0 0.0
  %4176 = vmatpush1.msra.mxu0 %v3881
  %4177 = vmatprep.subr.mxu0 0.0
  %4178 = vmatpush1.msra.mxu0 %v3880
  %4179 = vmatprep.subr.mxu0 0.0
  %4180 = vmatpush1.msra.mxu0 %v3879
  %4181 = vmatprep.subr.mxu0 0.0
  %4182 = vmatpush1.msra.mxu0 %v3878
  %4183 = vmatprep.subr.mxu0 0.0
  %4184 = vmatpush1.msra.mxu0 %v3877
  %4185 = vmatprep.subr.mxu0 0.0
  %4186 = vmatpush2.msra.mxu0 %v3908
  %4187 = vmatprep.subr.mxu0 0.0
  %4188 = vmatpush2.msra.mxu0 %v3907
  %4189 = vmatprep.subr.mxu0 0.0
  %4190 = vmatpush2.msra.mxu0 %v3906
  %4191 = vmatprep.subr.mxu0 0.0
  %4192 = vmatpush2.msra.mxu0 %v3905
  %4193 = vmatprep.subr.mxu0 0.0
  %4194 = vmatpush2.msra.mxu0 %v3904
  %4195 = vmatprep.subr.mxu0 0.0
  %4196 = vmatpush2.msra.mxu0 %v3903
  %4197 = vmatprep.subr.mxu0 0.0
  %4198 = vmatpush2.msra.mxu0 %v3902
  %4199 = vmatprep.subr.mxu0 0.0
  %4200 = vmatpush2.msra.mxu0 %v3901
  %4201 = vmatprep.subr.mxu0 0.0
  %4202 = vmatpush2.msra.mxu0 %v3900
  %4203 = vmatprep.subr.mxu0 0.0
  %4204 = vmatpush2.msra.mxu0 %v3899
  %4205 = vmatprep.subr.mxu0 0.0
  %4206 = vmatpush2.msra.mxu0 %v3898
  %4207 = vmatprep.subr.mxu0 0.0
  %4208 = vmatpush2.msra.mxu0 %v3897
  %4209 = vmatprep.subr.mxu0 0.0
  %4210 = vmatpush2.msra.mxu0 %v3896
  %4211 = vmatprep.subr.mxu0 0.0
  %4212 = vmatpush2.msra.mxu0 %v3895
  %4213 = vmatprep.subr.mxu0 0.0
  %4214 = vmatpush2.msra.mxu0 %v3894
  %4215 = vmatprep.subr.mxu0 0.0
  %4216 = vmatpush2.msra.mxu0 %v3893
  %4217 = vmatprep.mubr.f32.mxu0 %v2679
  %4218 = vmatmul.mubr.f32.gmra.mxu0 %v2677
  %v4219 = vpop.f32.mrf.mxu0
  %v4220 = vadd.f32 %v4150, %v4219
  %v4221 = vpop.f32.mrf.mxu0
  %4222 = vdwg.mxu0
  %4223 = vmatprep.subr.mxu0 0.0
  %4224 = vmatpush1.msra.mxu0 %v3924
  %4225 = vmatprep.subr.mxu0 0.0
  %4226 = vmatpush1.msra.mxu0 %v3923
  %4227 = vmatprep.subr.mxu0 0.0
  %4228 = vmatpush1.msra.mxu0 %v3922
  %4229 = vmatprep.subr.mxu0 0.0
  %4230 = vmatpush1.msra.mxu0 %v3921
  %4231 = vmatprep.subr.mxu0 0.0
  %4232 = vmatpush1.msra.mxu0 %v3920
  %4233 = vmatprep.subr.mxu0 0.0
  %4234 = vmatpush1.msra.mxu0 %v3919
  %4235 = vmatprep.subr.mxu0 0.0
  %4236 = vmatpush1.msra.mxu0 %v3918
  %4237 = vmatprep.subr.mxu0 0.0
  %4238 = vmatpush1.msra.mxu0 %v3917
  %4239 = vmatprep.subr.mxu0 0.0
  %4240 = vmatpush1.msra.mxu0 %v3916
  %4241 = vmatprep.subr.mxu0 0.0
  %4242 = vmatpush1.msra.mxu0 %v3915
  %4243 = vmatprep.subr.mxu0 0.0
  %4244 = vmatpush1.msra.mxu0 %v3914
  %4245 = vmatprep.subr.mxu0 0.0
  %4246 = vmatpush1.msra.mxu0 %v3913
  %4247 = vmatprep.subr.mxu0 0.0
  %4248 = vmatpush1.msra.mxu0 %v3912
  %4249 = vmatprep.subr.mxu0 0.0
  %4250 = vmatpush1.msra.mxu0 %v3911
  %4251 = vmatprep.subr.mxu0 0.0
  %4252 = vmatpush1.msra.mxu0 %v3910
  %4253 = vmatprep.subr.mxu0 0.0
  %4254 = vmatpush1.msra.mxu0 %v3909
  %4255 = vmatprep.subr.mxu0 0.0
  %4256 = vmatpush2.msra.mxu0 %v3940
  %4257 = vmatprep.subr.mxu0 0.0
  %4258 = vmatpush2.msra.mxu0 %v3939
  %4259 = vmatprep.subr.mxu0 0.0
  %4260 = vmatpush2.msra.mxu0 %v3938
  %4261 = vmatprep.subr.mxu0 0.0
  %4262 = vmatpush2.msra.mxu0 %v3937
  %4263 = vmatprep.subr.mxu0 0.0
  %4264 = vmatpush2.msra.mxu0 %v3936
  %4265 = vmatprep.subr.mxu0 0.0
  %4266 = vmatpush2.msra.mxu0 %v3935
  %4267 = vmatprep.subr.mxu0 0.0
  %4268 = vmatpush2.msra.mxu0 %v3934
  %4269 = vmatprep.subr.mxu0 0.0
  %4270 = vmatpush2.msra.mxu0 %v3933
  %4271 = vmatprep.subr.mxu0 0.0
  %4272 = vmatpush2.msra.mxu0 %v3932
  %4273 = vmatprep.subr.mxu0 0.0
  %4274 = vmatpush2.msra.mxu0 %v3931
  %4275 = vmatprep.subr.mxu0 0.0
  %4276 = vmatpush2.msra.mxu0 %v3930
  %4277 = vmatprep.subr.mxu0 0.0
  %4278 = vmatpush2.msra.mxu0 %v3929
  %4279 = vmatprep.subr.mxu0 0.0
  %4280 = vmatpush2.msra.mxu0 %v3928
  %4281 = vmatprep.subr.mxu0 0.0
  %4282 = vmatpush2.msra.mxu0 %v3927
  %4283 = vmatprep.subr.mxu0 0.0
  %4284 = vmatpush2.msra.mxu0 %v3926
  %4285 = vmatprep.subr.mxu0 0.0
  %4286 = vmatpush2.msra.mxu0 %v3925
  %4287 = vmatprep.mubr.f32.mxu0 %v2963
  %4288 = vmatmul.mubr.f32.gmra.mxu0 %v2961
  %v4289 = vpop.f32.mrf.mxu0
  %v4290 = vadd.f32 %v4220, %v4289
  %v4291 = vpop.f32.mrf.mxu0
  %4292 = vdwg.mxu0
  %4293 = vmatprep.subr.mxu0 0.0
  %4294 = vmatpush1.msra.mxu0 %v3956
  %4295 = vmatprep.subr.mxu0 0.0
  %4296 = vmatpush1.msra.mxu0 %v3955
  %4297 = vmatprep.subr.mxu0 0.0
  %4298 = vmatpush1.msra.mxu0 %v3954
  %4299 = vmatprep.subr.mxu0 0.0
  %4300 = vmatpush1.msra.mxu0 %v3953
  %4301 = vmatprep.subr.mxu0 0.0
  %4302 = vmatpush1.msra.mxu0 %v3952
  %4303 = vmatprep.subr.mxu0 0.0
  %4304 = vmatpush1.msra.mxu0 %v3951
  %4305 = vmatprep.subr.mxu0 0.0
  %4306 = vmatpush1.msra.mxu0 %v3950
  %4307 = vmatprep.subr.mxu0 0.0
  %4308 = vmatpush1.msra.mxu0 %v3949
  %4309 = vmatprep.subr.mxu0 0.0
  %4310 = vmatpush1.msra.mxu0 %v3948
  %4311 = vmatprep.subr.mxu0 0.0
  %4312 = vmatpush1.msra.mxu0 %v3947
  %4313 = vmatprep.subr.mxu0 0.0
  %4314 = vmatpush1.msra.mxu0 %v3946
  %4315 = vmatprep.subr.mxu0 0.0
  %4316 = vmatpush1.msra.mxu0 %v3945
  %4317 = vmatprep.subr.mxu0 0.0
  %4318 = vmatpush1.msra.mxu0 %v3944
  %4319 = vmatprep.subr.mxu0 0.0
  %4320 = vmatpush1.msra.mxu0 %v3943
  %4321 = vmatprep.subr.mxu0 0.0
  %4322 = vmatpush1.msra.mxu0 %v3942
  %4323 = vmatprep.subr.mxu0 0.0
  %4324 = vmatpush1.msra.mxu0 %v3941
  %4325 = vmatprep.subr.mxu0 0.0
  %4326 = vmatpush2.msra.mxu0 %v3972
  %4327 = vmatprep.subr.mxu0 0.0
  %4328 = vmatpush2.msra.mxu0 %v3971
  %4329 = vmatprep.subr.mxu0 0.0
  %4330 = vmatpush2.msra.mxu0 %v3970
  %4331 = vmatprep.subr.mxu0 0.0
  %4332 = vmatpush2.msra.mxu0 %v3969
  %4333 = vmatprep.subr.mxu0 0.0
  %4334 = vmatpush2.msra.mxu0 %v3968
  %4335 = vmatprep.subr.mxu0 0.0
  %4336 = vmatpush2.msra.mxu0 %v3967
  %4337 = vmatprep.subr.mxu0 0.0
  %4338 = vmatpush2.msra.mxu0 %v3966
  %4339 = vmatprep.subr.mxu0 0.0
  %4340 = vmatpush2.msra.mxu0 %v3965
  %4341 = vmatprep.subr.mxu0 0.0
  %4342 = vmatpush2.msra.mxu0 %v3964
  %4343 = vmatprep.subr.mxu0 0.0
  %4344 = vmatpush2.msra.mxu0 %v3963
  %4345 = vmatprep.subr.mxu0 0.0
  %4346 = vmatpush2.msra.mxu0 %v3962
  %4347 = vmatprep.subr.mxu0 0.0
  %4348 = vmatpush2.msra.mxu0 %v3961
  %4349 = vmatprep.subr.mxu0 0.0
  %4350 = vmatpush2.msra.mxu0 %v3960
  %4351 = vmatprep.subr.mxu0 0.0
  %4352 = vmatpush2.msra.mxu0 %v3959
  %4353 = vmatprep.subr.mxu0 0.0
  %4354 = vmatpush2.msra.mxu0 %v3958
  %4355 = vmatprep.subr.mxu0 0.0
  %4356 = vmatpush2.msra.mxu0 %v3957
  %4357 = vmatprep.mubr.f32.mxu0 %v3247
  %4358 = vmatmul.mubr.f32.gmra.mxu0 %v3245
  %v4359 = vpop.f32.mrf.mxu0
  %v4360 = vadd.f32 %v4290, %v4359
  %v4361 = vpop.f32.mrf.mxu0
  %4362 = vdwg.mxu0
  %4363 = vmatprep.subr.mxu0 0.0
  %4364 = vmatpush1.msra.mxu0 %v3988
  %4365 = vmatprep.subr.mxu0 0.0
  %4366 = vmatpush1.msra.mxu0 %v3987
  %4367 = vmatprep.subr.mxu0 0.0
  %4368 = vmatpush1.msra.mxu0 %v3986
  %4369 = vmatprep.subr.mxu0 0.0
  %4370 = vmatpush1.msra.mxu0 %v3985
  %4371 = vmatprep.subr.mxu0 0.0
  %4372 = vmatpush1.msra.mxu0 %v3984
  %4373 = vmatprep.subr.mxu0 0.0
  %4374 = vmatpush1.msra.mxu0 %v3983
  %4375 = vmatprep.subr.mxu0 0.0
  %4376 = vmatpush1.msra.mxu0 %v3982
  %4377 = vmatprep.subr.mxu0 0.0
  %4378 = vmatpush1.msra.mxu0 %v3981
  %4379 = vmatprep.subr.mxu0 0.0
  %4380 = vmatpush1.msra.mxu0 %v3980
  %4381 = vmatprep.subr.mxu0 0.0
  %4382 = vmatpush1.msra.mxu0 %v3979
  %4383 = vmatprep.subr.mxu0 0.0
  %4384 = vmatpush1.msra.mxu0 %v3978
  %4385 = vmatprep.subr.mxu0 0.0
  %4386 = vmatpush1.msra.mxu0 %v3977
  %4387 = vmatprep.subr.mxu0 0.0
  %4388 = vmatpush1.msra.mxu0 %v3976
  %4389 = vmatprep.subr.mxu0 0.0
  %4390 = vmatpush1.msra.mxu0 %v3975
  %4391 = vmatprep.subr.mxu0 0.0
  %4392 = vmatpush1.msra.mxu0 %v3974
  %4393 = vmatprep.subr.mxu0 0.0
  %4394 = vmatpush1.msra.mxu0 %v3973
  %4395 = vmatprep.subr.mxu0 0.0
  %4396 = vmatpush2.msra.mxu0 %v4004
  %4397 = vmatprep.subr.mxu0 0.0
  %4398 = vmatpush2.msra.mxu0 %v4003
  %4399 = vmatprep.subr.mxu0 0.0
  %4400 = vmatpush2.msra.mxu0 %v4002
  %4401 = vmatprep.subr.mxu0 0.0
  %4402 = vmatpush2.msra.mxu0 %v4001
  %4403 = vmatprep.subr.mxu0 0.0
  %4404 = vmatpush2.msra.mxu0 %v4000
  %4405 = vmatprep.subr.mxu0 0.0
  %4406 = vmatpush2.msra.mxu0 %v3999
  %4407 = vmatprep.subr.mxu0 0.0
  %4408 = vmatpush2.msra.mxu0 %v3998
  %4409 = vmatprep.subr.mxu0 0.0
  %4410 = vmatpush2.msra.mxu0 %v3997
  %4411 = vmatprep.subr.mxu0 0.0
  %4412 = vmatpush2.msra.mxu0 %v3996
  %4413 = vmatprep.subr.mxu0 0.0
  %4414 = vmatpush2.msra.mxu0 %v3995
  %4415 = vmatprep.subr.mxu0 0.0
  %4416 = vmatpush2.msra.mxu0 %v3994
  %4417 = vmatprep.subr.mxu0 0.0
  %4418 = vmatpush2.msra.mxu0 %v3993
  %4419 = vmatprep.subr.mxu0 0.0
  %4420 = vmatpush2.msra.mxu0 %v3992
  %4421 = vmatprep.subr.mxu0 0.0
  %4422 = vmatpush2.msra.mxu0 %v3991
  %4423 = vmatprep.subr.mxu0 0.0
  %4424 = vmatpush2.msra.mxu0 %v3990
  %4425 = vmatprep.subr.mxu0 0.0
  %4426 = vmatpush2.msra.mxu0 %v3989
  %4427 = vmatprep.mubr.f32.mxu0 %v3531
  %4428 = vmatmul.mubr.f32.gmra.mxu0 %v3529
  %v4429 = vpop.f32.mrf.mxu0
  %v4430 = vadd.f32 %v4360, %v4429
  %v4431 = vpop.f32.mrf.mxu0
  %4432 = vdwg.mxu0
  %4433 = vmatprep.subr.mxu0 0.0
  %4434 = vmatpush1.msra.mxu0 0.0
  %4435 = vmatprep.subr.mxu0 0.0
  %4436 = vmatpush1.msra.mxu0 0.0
  %4437 = vmatprep.subr.mxu0 0.0
  %4438 = vmatpush1.msra.mxu0 0.0
  %4439 = vmatprep.subr.mxu0 0.0
  %4440 = vmatpush1.msra.mxu0 0.0
  %4441 = vmatprep.subr.mxu0 0.0
  %4442 = vmatpush1.msra.mxu0 0.0
  %4443 = vmatprep.subr.mxu0 0.0
  %4444 = vmatpush1.msra.mxu0 0.0
  %4445 = vmatprep.subr.mxu0 0.0
  %4446 = vmatpush1.msra.mxu0 0.0
  %4447 = vmatprep.subr.mxu0 0.0
  %4448 = vmatpush1.msra.mxu0 0.0
  %4449 = vmatprep.subr.mxu0 0.0
  %4450 = vmatpush1.msra.mxu0 0.0
  %4451 = vmatprep.subr.mxu0 0.0
  %4452 = vmatpush1.msra.mxu0 0.0
  %4453 = vmatprep.subr.mxu0 0.0
  %4454 = vmatpush1.msra.mxu0 0.0
  %4455 = vmatprep.subr.mxu0 0.0
  %4456 = vmatpush1.msra.mxu0 0.0
  %4457 = vmatprep.subr.mxu0 0.0
  %4458 = vmatpush1.msra.mxu0 %v4008
  %4459 = vmatprep.subr.mxu0 0.0
  %4460 = vmatpush1.msra.mxu0 %v4007
  %4461 = vmatprep.subr.mxu0 0.0
  %4462 = vmatpush1.msra.mxu0 %v4006
  %4463 = vmatprep.subr.mxu0 0.0
  %4464 = vmatpush1.msra.mxu0 %v4005
  %4465 = vmatprep.subr.mxu0 0.0
  %4466 = vmatpush2.msra.mxu0 0.0
  %4467 = vmatprep.subr.mxu0 0.0
  %4468 = vmatpush2.msra.mxu0 0.0
  %4469 = vmatprep.subr.mxu0 0.0
  %4470 = vmatpush2.msra.mxu0 0.0
  %4471 = vmatprep.subr.mxu0 0.0
  %4472 = vmatpush2.msra.mxu0 0.0
  %4473 = vmatprep.subr.mxu0 0.0
  %4474 = vmatpush2.msra.mxu0 0.0
  %4475 = vmatprep.subr.mxu0 0.0
  %4476 = vmatpush2.msra.mxu0 0.0
  %4477 = vmatprep.subr.mxu0 0.0
  %4478 = vmatpush2.msra.mxu0 0.0
  %4479 = vmatprep.subr.mxu0 0.0
  %4480 = vmatpush2.msra.mxu0 0.0
  %4481 = vmatprep.subr.mxu0 0.0
  %4482 = vmatpush2.msra.mxu0 0.0
  %4483 = vmatprep.subr.mxu0 0.0
  %4484 = vmatpush2.msra.mxu0 0.0
  %4485 = vmatprep.subr.mxu0 0.0
  %4486 = vmatpush2.msra.mxu0 0.0
  %4487 = vmatprep.subr.mxu0 0.0
  %4488 = vmatpush2.msra.mxu0 0.0
  %4489 = vmatprep.subr.mxu0 0.0
  %4490 = vmatpush2.msra.mxu0 0.0
  %4491 = vmatprep.subr.mxu0 0.0
  %4492 = vmatpush2.msra.mxu0 0.0
  %4493 = vmatprep.subr.mxu0 0.0
  %4494 = vmatpush2.msra.mxu0 0.0
  %4495 = vmatprep.subr.mxu0 0.0
  %4496 = vmatpush2.msra.mxu0 0.0
  %4497 = vmatprep.mubr.f32.mxu0 0.0
  %4498 = vmatmul.mubr.f32.gmra.mxu0 %v4011
  %v4499 = vpop.f32.mrf.mxu0
  %v4500 = vadd.f32 %v4430, %v4499
  %v4501 = vpop.f32.mrf.mxu0
  %4502 = vdwg.mxu0
  %v4503 = vmul.f32 %v2109, %v2109
  %v4504 = vmul.f32 %v2111, %v2111
  %v4505 = vmul.f32 %v2393, %v2393
  %v4506 = vmul.f32 %v2395, %v2395
  %v4507 = vmul.f32 %v2677, %v2677
  %v4508 = vmul.f32 %v2679, %v2679
  %v4509 = vmul.f32 %v2961, %v2961
  %v4510 = vmul.f32 %v2963, %v2963
  %v4511 = vmul.f32 %v3245, %v3245
  %v4512 = vmul.f32 %v3247, %v3247
  %v4513 = vmul.f32 %v3529, %v3529
  %v4514 = vmul.f32 %v3531, %v3531
  %v4515 = vmul.f32 %v3810, %v3810
  %v4517 = vsel %vm4009, %v4515, 0
  %4519 = vmatprep.subr.mxu0 0.0
  %4520 = vmatpush1.msra.mxu0 %v3828
  %4521 = vmatprep.subr.mxu0 0.0
  %4522 = vmatpush1.msra.mxu0 %v3827
  %4523 = vmatprep.subr.mxu0 0.0
  %4524 = vmatpush1.msra.mxu0 %v3826
  %4525 = vmatprep.subr.mxu0 0.0
  %4526 = vmatpush1.msra.mxu0 %v3825
  %4527 = vmatprep.subr.mxu0 0.0
  %4528 = vmatpush1.msra.mxu0 %v3824
  %4529 = vmatprep.subr.mxu0 0.0
  %4530 = vmatpush1.msra.mxu0 %v3823
  %4531 = vmatprep.subr.mxu0 0.0
  %4532 = vmatpush1.msra.mxu0 %v3822
  %4533 = vmatprep.subr.mxu0 0.0
  %4534 = vmatpush1.msra.mxu0 %v3821
  %4535 = vmatprep.subr.mxu0 0.0
  %4536 = vmatpush1.msra.mxu0 %v3820
  %4537 = vmatprep.subr.mxu0 0.0
  %4538 = vmatpush1.msra.mxu0 %v3819
  %4539 = vmatprep.subr.mxu0 0.0
  %4540 = vmatpush1.msra.mxu0 %v3818
  %4541 = vmatprep.subr.mxu0 0.0
  %4542 = vmatpush1.msra.mxu0 %v3817
  %4543 = vmatprep.subr.mxu0 0.0
  %4544 = vmatpush1.msra.mxu0 %v3816
  %4545 = vmatprep.subr.mxu0 0.0
  %4546 = vmatpush1.msra.mxu0 %v3815
  %4547 = vmatprep.subr.mxu0 0.0
  %4548 = vmatpush1.msra.mxu0 %v3814
  %4549 = vmatprep.subr.mxu0 0.0
  %4550 = vmatpush1.msra.mxu0 %v3813
  %4551 = vmatprep.subr.mxu0 0.0
  %4552 = vmatpush2.msra.mxu0 %v3844
  %4553 = vmatprep.subr.mxu0 0.0
  %4554 = vmatpush2.msra.mxu0 %v3843
  %4555 = vmatprep.subr.mxu0 0.0
  %4556 = vmatpush2.msra.mxu0 %v3842
  %4557 = vmatprep.subr.mxu0 0.0
  %4558 = vmatpush2.msra.mxu0 %v3841
  %4559 = vmatprep.subr.mxu0 0.0
  %4560 = vmatpush2.msra.mxu0 %v3840
  %4561 = vmatprep.subr.mxu0 0.0
  %4562 = vmatpush2.msra.mxu0 %v3839
  %4563 = vmatprep.subr.mxu0 0.0
  %4564 = vmatpush2.msra.mxu0 %v3838
  %4565 = vmatprep.subr.mxu0 0.0
  %4566 = vmatpush2.msra.mxu0 %v3837
  %4567 = vmatprep.subr.mxu0 0.0
  %4568 = vmatpush2.msra.mxu0 %v3836
  %4569 = vmatprep.subr.mxu0 0.0
  %4570 = vmatpush2.msra.mxu0 %v3835
  %4571 = vmatprep.subr.mxu0 0.0
  %4572 = vmatpush2.msra.mxu0 %v3834
  %4573 = vmatprep.subr.mxu0 0.0
  %4574 = vmatpush2.msra.mxu0 %v3833
  %4575 = vmatprep.subr.mxu0 0.0
  %4576 = vmatpush2.msra.mxu0 %v3832
  %4577 = vmatprep.subr.mxu0 0.0
  %4578 = vmatpush2.msra.mxu0 %v3831
  %4579 = vmatprep.subr.mxu0 0.0
  %4580 = vmatpush2.msra.mxu0 %v3830
  %4581 = vmatprep.subr.mxu0 0.0
  %4582 = vmatpush2.msra.mxu0 %v3829
  %4583 = vmatprep.mubr.f32.mxu0 %v4504
  %4584 = vmatmul.mubr.f32.gmra.mxu0 %v4503
  %v4585 = vpop.f32.mrf.mxu0
  %v4586 = vadd.f32 0.0, %v4585
  %v4587 = vpop.f32.mrf.mxu0
  %4588 = vdwg.mxu0
  %4589 = vmatprep.subr.mxu0 0.0
  %4590 = vmatpush1.msra.mxu0 %v3860
  %4591 = vmatprep.subr.mxu0 0.0
  %4592 = vmatpush1.msra.mxu0 %v3859
  %4593 = vmatprep.subr.mxu0 0.0
  %4594 = vmatpush1.msra.mxu0 %v3858
  %4595 = vmatprep.subr.mxu0 0.0
  %4596 = vmatpush1.msra.mxu0 %v3857
  %4597 = vmatprep.subr.mxu0 0.0
  %4598 = vmatpush1.msra.mxu0 %v3856
  %4599 = vmatprep.subr.mxu0 0.0
  %4600 = vmatpush1.msra.mxu0 %v3855
  %4601 = vmatprep.subr.mxu0 0.0
  %4602 = vmatpush1.msra.mxu0 %v3854
  %4603 = vmatprep.subr.mxu0 0.0
  %4604 = vmatpush1.msra.mxu0 %v3853
  %4605 = vmatprep.subr.mxu0 0.0
  %4606 = vmatpush1.msra.mxu0 %v3852
  %4607 = vmatprep.subr.mxu0 0.0
  %4608 = vmatpush1.msra.mxu0 %v3851
  %4609 = vmatprep.subr.mxu0 0.0
  %4610 = vmatpush1.msra.mxu0 %v3850
  %4611 = vmatprep.subr.mxu0 0.0
  %4612 = vmatpush1.msra.mxu0 %v3849
  %4613 = vmatprep.subr.mxu0 0.0
  %4614 = vmatpush1.msra.mxu0 %v3848
  %4615 = vmatprep.subr.mxu0 0.0
  %4616 = vmatpush1.msra.mxu0 %v3847
  %4617 = vmatprep.subr.mxu0 0.0
  %4618 = vmatpush1.msra.mxu0 %v3846
  %4619 = vmatprep.subr.mxu0 0.0
  %4620 = vmatpush1.msra.mxu0 %v3845
  %4621 = vmatprep.subr.mxu0 0.0
  %4622 = vmatpush2.msra.mxu0 %v3876
  %4623 = vmatprep.subr.mxu0 0.0
  %4624 = vmatpush2.msra.mxu0 %v3875
  %4625 = vmatprep.subr.mxu0 0.0
  %4626 = vmatpush2.msra.mxu0 %v3874
  %4627 = vmatprep.subr.mxu0 0.0
  %4628 = vmatpush2.msra.mxu0 %v3873
  %4629 = vmatprep.subr.mxu0 0.0
  %4630 = vmatpush2.msra.mxu0 %v3872
  %4631 = vmatprep.subr.mxu0 0.0
  %4632 = vmatpush2.msra.mxu0 %v3871
  %4633 = vmatprep.subr.mxu0 0.0
  %4634 = vmatpush2.msra.mxu0 %v3870
  %4635 = vmatprep.subr.mxu0 0.0
  %4636 = vmatpush2.msra.mxu0 %v3869
  %4637 = vmatprep.subr.mxu0 0.0
  %4638 = vmatpush2.msra.mxu0 %v3868
  %4639 = vmatprep.subr.mxu0 0.0
  %4640 = vmatpush2.msra.mxu0 %v3867
  %4641 = vmatprep.subr.mxu0 0.0
  %4642 = vmatpush2.msra.mxu0 %v3866
  %4643 = vmatprep.subr.mxu0 0.0
  %4644 = vmatpush2.msra.mxu0 %v3865
  %4645 = vmatprep.subr.mxu0 0.0
  %4646 = vmatpush2.msra.mxu0 %v3864
  %4647 = vmatprep.subr.mxu0 0.0
  %4648 = vmatpush2.msra.mxu0 %v3863
  %4649 = vmatprep.subr.mxu0 0.0
  %4650 = vmatpush2.msra.mxu0 %v3862
  %4651 = vmatprep.subr.mxu0 0.0
  %4652 = vmatpush2.msra.mxu0 %v3861
  %4653 = vmatprep.mubr.f32.mxu0 %v4506
  %4654 = vmatmul.mubr.f32.gmra.mxu0 %v4505
  %v4655 = vpop.f32.mrf.mxu0
  %v4656 = vadd.f32 %v4586, %v4655
  %v4657 = vpop.f32.mrf.mxu0
  %4658 = vdwg.mxu0
  %4659 = vmatprep.subr.mxu0 0.0
  %4660 = vmatpush1.msra.mxu0 %v3892
  %4661 = vmatprep.subr.mxu0 0.0
  %4662 = vmatpush1.msra.mxu0 %v3891
  %4663 = vmatprep.subr.mxu0 0.0
  %4664 = vmatpush1.msra.mxu0 %v3890
  %4665 = vmatprep.subr.mxu0 0.0
  %4666 = vmatpush1.msra.mxu0 %v3889
  %4667 = vmatprep.subr.mxu0 0.0
  %4668 = vmatpush1.msra.mxu0 %v3888
  %4669 = vmatprep.subr.mxu0 0.0
  %4670 = vmatpush1.msra.mxu0 %v3887
  %4671 = vmatprep.subr.mxu0 0.0
  %4672 = vmatpush1.msra.mxu0 %v3886
  %4673 = vmatprep.subr.mxu0 0.0
  %4674 = vmatpush1.msra.mxu0 %v3885
  %4675 = vmatprep.subr.mxu0 0.0
  %4676 = vmatpush1.msra.mxu0 %v3884
  %4677 = vmatprep.subr.mxu0 0.0
  %4678 = vmatpush1.msra.mxu0 %v3883
  %4679 = vmatprep.subr.mxu0 0.0
  %4680 = vmatpush1.msra.mxu0 %v3882
  %4681 = vmatprep.subr.mxu0 0.0
  %4682 = vmatpush1.msra.mxu0 %v3881
  %4683 = vmatprep.subr.mxu0 0.0
  %4684 = vmatpush1.msra.mxu0 %v3880
  %4685 = vmatprep.subr.mxu0 0.0
  %4686 = vmatpush1.msra.mxu0 %v3879
  %4687 = vmatprep.subr.mxu0 0.0
  %4688 = vmatpush1.msra.mxu0 %v3878
  %4689 = vmatprep.subr.mxu0 0.0
  %4690 = vmatpush1.msra.mxu0 %v3877
  %4691 = vmatprep.subr.mxu0 0.0
  %4692 = vmatpush2.msra.mxu0 %v3908
  %4693 = vmatprep.subr.mxu0 0.0
  %4694 = vmatpush2.msra.mxu0 %v3907
  %4695 = vmatprep.subr.mxu0 0.0
  %4696 = vmatpush2.msra.mxu0 %v3906
  %4697 = vmatprep.subr.mxu0 0.0
  %4698 = vmatpush2.msra.mxu0 %v3905
  %4699 = vmatprep.subr.mxu0 0.0
  %4700 = vmatpush2.msra.mxu0 %v3904
  %4701 = vmatprep.subr.mxu0 0.0
  %4702 = vmatpush2.msra.mxu0 %v3903
  %4703 = vmatprep.subr.mxu0 0.0
  %4704 = vmatpush2.msra.mxu0 %v3902
  %4705 = vmatprep.subr.mxu0 0.0
  %4706 = vmatpush2.msra.mxu0 %v3901
  %4707 = vmatprep.subr.mxu0 0.0
  %4708 = vmatpush2.msra.mxu0 %v3900
  %4709 = vmatprep.subr.mxu0 0.0
  %4710 = vmatpush2.msra.mxu0 %v3899
  %4711 = vmatprep.subr.mxu0 0.0
  %4712 = vmatpush2.msra.mxu0 %v3898
  %4713 = vmatprep.subr.mxu0 0.0
  %4714 = vmatpush2.msra.mxu0 %v3897
  %4715 = vmatprep.subr.mxu0 0.0
  %4716 = vmatpush2.msra.mxu0 %v3896
  %4717 = vmatprep.subr.mxu0 0.0
  %4718 = vmatpush2.msra.mxu0 %v3895
  %4719 = vmatprep.subr.mxu0 0.0
  %4720 = vmatpush2.msra.mxu0 %v3894
  %4721 = vmatprep.subr.mxu0 0.0
  %4722 = vmatpush2.msra.mxu0 %v3893
  %4723 = vmatprep.mubr.f32.mxu0 %v4508
  %4724 = vmatmul.mubr.f32.gmra.mxu0 %v4507
  %v4725 = vpop.f32.mrf.mxu0
  %v4726 = vadd.f32 %v4656, %v4725
  %v4727 = vpop.f32.mrf.mxu0
  %4728 = vdwg.mxu0
  %4729 = vmatprep.subr.mxu0 0.0
  %4730 = vmatpush1.msra.mxu0 %v3924
  %4731 = vmatprep.subr.mxu0 0.0
  %4732 = vmatpush1.msra.mxu0 %v3923
  %4733 = vmatprep.subr.mxu0 0.0
  %4734 = vmatpush1.msra.mxu0 %v3922
  %4735 = vmatprep.subr.mxu0 0.0
  %4736 = vmatpush1.msra.mxu0 %v3921
  %4737 = vmatprep.subr.mxu0 0.0
  %4738 = vmatpush1.msra.mxu0 %v3920
  %4739 = vmatprep.subr.mxu0 0.0
  %4740 = vmatpush1.msra.mxu0 %v3919
  %4741 = vmatprep.subr.mxu0 0.0
  %4742 = vmatpush1.msra.mxu0 %v3918
  %4743 = vmatprep.subr.mxu0 0.0
  %4744 = vmatpush1.msra.mxu0 %v3917
  %4745 = vmatprep.subr.mxu0 0.0
  %4746 = vmatpush1.msra.mxu0 %v3916
  %4747 = vmatprep.subr.mxu0 0.0
  %4748 = vmatpush1.msra.mxu0 %v3915
  %4749 = vmatprep.subr.mxu0 0.0
  %4750 = vmatpush1.msra.mxu0 %v3914
  %4751 = vmatprep.subr.mxu0 0.0
  %4752 = vmatpush1.msra.mxu0 %v3913
  %4753 = vmatprep.subr.mxu0 0.0
  %4754 = vmatpush1.msra.mxu0 %v3912
  %4755 = vmatprep.subr.mxu0 0.0
  %4756 = vmatpush1.msra.mxu0 %v3911
  %4757 = vmatprep.subr.mxu0 0.0
  %4758 = vmatpush1.msra.mxu0 %v3910
  %4759 = vmatprep.subr.mxu0 0.0
  %4760 = vmatpush1.msra.mxu0 %v3909
  %4761 = vmatprep.subr.mxu0 0.0
  %4762 = vmatpush2.msra.mxu0 %v3940
  %4763 = vmatprep.subr.mxu0 0.0
  %4764 = vmatpush2.msra.mxu0 %v3939
  %4765 = vmatprep.subr.mxu0 0.0
  %4766 = vmatpush2.msra.mxu0 %v3938
  %4767 = vmatprep.subr.mxu0 0.0
  %4768 = vmatpush2.msra.mxu0 %v3937
  %4769 = vmatprep.subr.mxu0 0.0
  %4770 = vmatpush2.msra.mxu0 %v3936
  %4771 = vmatprep.subr.mxu0 0.0
  %4772 = vmatpush2.msra.mxu0 %v3935
  %4773 = vmatprep.subr.mxu0 0.0
  %4774 = vmatpush2.msra.mxu0 %v3934
  %4775 = vmatprep.subr.mxu0 0.0
  %4776 = vmatpush2.msra.mxu0 %v3933
  %4777 = vmatprep.subr.mxu0 0.0
  %4778 = vmatpush2.msra.mxu0 %v3932
  %4779 = vmatprep.subr.mxu0 0.0
  %4780 = vmatpush2.msra.mxu0 %v3931
  %4781 = vmatprep.subr.mxu0 0.0
  %4782 = vmatpush2.msra.mxu0 %v3930
  %4783 = vmatprep.subr.mxu0 0.0
  %4784 = vmatpush2.msra.mxu0 %v3929
  %4785 = vmatprep.subr.mxu0 0.0
  %4786 = vmatpush2.msra.mxu0 %v3928
  %4787 = vmatprep.subr.mxu0 0.0
  %4788 = vmatpush2.msra.mxu0 %v3927
  %4789 = vmatprep.subr.mxu0 0.0
  %4790 = vmatpush2.msra.mxu0 %v3926
  %4791 = vmatprep.subr.mxu0 0.0
  %4792 = vmatpush2.msra.mxu0 %v3925
  %4793 = vmatprep.mubr.f32.mxu0 %v4510
  %4794 = vmatmul.mubr.f32.gmra.mxu0 %v4509
  %v4795 = vpop.f32.mrf.mxu0
  %v4796 = vadd.f32 %v4726, %v4795
  %v4797 = vpop.f32.mrf.mxu0
  %4798 = vdwg.mxu0
  %4799 = vmatprep.subr.mxu0 0.0
  %4800 = vmatpush1.msra.mxu0 %v3956
  %4801 = vmatprep.subr.mxu0 0.0
  %4802 = vmatpush1.msra.mxu0 %v3955
  %4803 = vmatprep.subr.mxu0 0.0
  %4804 = vmatpush1.msra.mxu0 %v3954
  %4805 = vmatprep.subr.mxu0 0.0
  %4806 = vmatpush1.msra.mxu0 %v3953
  %4807 = vmatprep.subr.mxu0 0.0
  %4808 = vmatpush1.msra.mxu0 %v3952
  %4809 = vmatprep.subr.mxu0 0.0
  %4810 = vmatpush1.msra.mxu0 %v3951
  %4811 = vmatprep.subr.mxu0 0.0
  %4812 = vmatpush1.msra.mxu0 %v3950
  %4813 = vmatprep.subr.mxu0 0.0
  %4814 = vmatpush1.msra.mxu0 %v3949
  %4815 = vmatprep.subr.mxu0 0.0
  %4816 = vmatpush1.msra.mxu0 %v3948
  %4817 = vmatprep.subr.mxu0 0.0
  %4818 = vmatpush1.msra.mxu0 %v3947
  %4819 = vmatprep.subr.mxu0 0.0
  %4820 = vmatpush1.msra.mxu0 %v3946
  %4821 = vmatprep.subr.mxu0 0.0
  %4822 = vmatpush1.msra.mxu0 %v3945
  %4823 = vmatprep.subr.mxu0 0.0
  %4824 = vmatpush1.msra.mxu0 %v3944
  %4825 = vmatprep.subr.mxu0 0.0
  %4826 = vmatpush1.msra.mxu0 %v3943
  %4827 = vmatprep.subr.mxu0 0.0
  %4828 = vmatpush1.msra.mxu0 %v3942
  %4829 = vmatprep.subr.mxu0 0.0
  %4830 = vmatpush1.msra.mxu0 %v3941
  %4831 = vmatprep.subr.mxu0 0.0
  %4832 = vmatpush2.msra.mxu0 %v3972
  %4833 = vmatprep.subr.mxu0 0.0
  %4834 = vmatpush2.msra.mxu0 %v3971
  %4835 = vmatprep.subr.mxu0 0.0
  %4836 = vmatpush2.msra.mxu0 %v3970
  %4837 = vmatprep.subr.mxu0 0.0
  %4838 = vmatpush2.msra.mxu0 %v3969
  %4839 = vmatprep.subr.mxu0 0.0
  %4840 = vmatpush2.msra.mxu0 %v3968
  %4841 = vmatprep.subr.mxu0 0.0
  %4842 = vmatpush2.msra.mxu0 %v3967
  %4843 = vmatprep.subr.mxu0 0.0
  %4844 = vmatpush2.msra.mxu0 %v3966
  %4845 = vmatprep.subr.mxu0 0.0
  %4846 = vmatpush2.msra.mxu0 %v3965
  %4847 = vmatprep.subr.mxu0 0.0
  %4848 = vmatpush2.msra.mxu0 %v3964
  %4849 = vmatprep.subr.mxu0 0.0
  %4850 = vmatpush2.msra.mxu0 %v3963
  %4851 = vmatprep.subr.mxu0 0.0
  %4852 = vmatpush2.msra.mxu0 %v3962
  %4853 = vmatprep.subr.mxu0 0.0
  %4854 = vmatpush2.msra.mxu0 %v3961
  %4855 = vmatprep.subr.mxu0 0.0
  %4856 = vmatpush2.msra.mxu0 %v3960
  %4857 = vmatprep.subr.mxu0 0.0
  %4858 = vmatpush2.msra.mxu0 %v3959
  %4859 = vmatprep.subr.mxu0 0.0
  %4860 = vmatpush2.msra.mxu0 %v3958
  %4861 = vmatprep.subr.mxu0 0.0
  %4862 = vmatpush2.msra.mxu0 %v3957
  %4863 = vmatprep.mubr.f32.mxu0 %v4512
  %4864 = vmatmul.mubr.f32.gmra.mxu0 %v4511
  %v4865 = vpop.f32.mrf.mxu0
  %v4866 = vadd.f32 %v4796, %v4865
  %v4867 = vpop.f32.mrf.mxu0
  %4868 = vdwg.mxu0
  %4869 = vmatprep.subr.mxu0 0.0
  %4870 = vmatpush1.msra.mxu0 %v3988
  %4871 = vmatprep.subr.mxu0 0.0
  %4872 = vmatpush1.msra.mxu0 %v3987
  %4873 = vmatprep.subr.mxu0 0.0
  %4874 = vmatpush1.msra.mxu0 %v3986
  %4875 = vmatprep.subr.mxu0 0.0
  %4876 = vmatpush1.msra.mxu0 %v3985
  %4877 = vmatprep.subr.mxu0 0.0
  %4878 = vmatpush1.msra.mxu0 %v3984
  %4879 = vmatprep.subr.mxu0 0.0
  %4880 = vmatpush1.msra.mxu0 %v3983
  %4881 = vmatprep.subr.mxu0 0.0
  %4882 = vmatpush1.msra.mxu0 %v3982
  %4883 = vmatprep.subr.mxu0 0.0
  %4884 = vmatpush1.msra.mxu0 %v3981
  %4885 = vmatprep.subr.mxu0 0.0
  %4886 = vmatpush1.msra.mxu0 %v3980
  %4887 = vmatprep.subr.mxu0 0.0
  %4888 = vmatpush1.msra.mxu0 %v3979
  %4889 = vmatprep.subr.mxu0 0.0
  %4890 = vmatpush1.msra.mxu0 %v3978
  %4891 = vmatprep.subr.mxu0 0.0
  %4892 = vmatpush1.msra.mxu0 %v3977
  %4893 = vmatprep.subr.mxu0 0.0
  %4894 = vmatpush1.msra.mxu0 %v3976
  %4895 = vmatprep.subr.mxu0 0.0
  %4896 = vmatpush1.msra.mxu0 %v3975
  %4897 = vmatprep.subr.mxu0 0.0
  %4898 = vmatpush1.msra.mxu0 %v3974
  %4899 = vmatprep.subr.mxu0 0.0
  %4900 = vmatpush1.msra.mxu0 %v3973
  %4901 = vmatprep.subr.mxu0 0.0
  %4902 = vmatpush2.msra.mxu0 %v4004
  %4903 = vmatprep.subr.mxu0 0.0
  %4904 = vmatpush2.msra.mxu0 %v4003
  %4905 = vmatprep.subr.mxu0 0.0
  %4906 = vmatpush2.msra.mxu0 %v4002
  %4907 = vmatprep.subr.mxu0 0.0
  %4908 = vmatpush2.msra.mxu0 %v4001
  %4909 = vmatprep.subr.mxu0 0.0
  %4910 = vmatpush2.msra.mxu0 %v4000
  %4911 = vmatprep.subr.mxu0 0.0
  %4912 = vmatpush2.msra.mxu0 %v3999
  %4913 = vmatprep.subr.mxu0 0.0
  %4914 = vmatpush2.msra.mxu0 %v3998
  %4915 = vmatprep.subr.mxu0 0.0
  %4916 = vmatpush2.msra.mxu0 %v3997
  %4917 = vmatprep.subr.mxu0 0.0
  %4918 = vmatpush2.msra.mxu0 %v3996
  %4919 = vmatprep.subr.mxu0 0.0
  %4920 = vmatpush2.msra.mxu0 %v3995
  %4921 = vmatprep.subr.mxu0 0.0
  %4922 = vmatpush2.msra.mxu0 %v3994
  %4923 = vmatprep.subr.mxu0 0.0
  %4924 = vmatpush2.msra.mxu0 %v3993
  %4925 = vmatprep.subr.mxu0 0.0
  %4926 = vmatpush2.msra.mxu0 %v3992
  %4927 = vmatprep.subr.mxu0 0.0
  %4928 = vmatpush2.msra.mxu0 %v3991
  %4929 = vmatprep.subr.mxu0 0.0
  %4930 = vmatpush2.msra.mxu0 %v3990
  %4931 = vmatprep.subr.mxu0 0.0
  %4932 = vmatpush2.msra.mxu0 %v3989
  %4933 = vmatprep.mubr.f32.mxu0 %v4514
  %4934 = vmatmul.mubr.f32.gmra.mxu0 %v4513
  %v4935 = vpop.f32.mrf.mxu0
  %v4936 = vadd.f32 %v4866, %v4935
  %v4937 = vpop.f32.mrf.mxu0
  %4938 = vdwg.mxu0
  %4939 = vmatprep.subr.mxu0 0.0
  %4940 = vmatpush1.msra.mxu0 0.0
  %4941 = vmatprep.subr.mxu0 0.0
  %4942 = vmatpush1.msra.mxu0 0.0
  %4943 = vmatprep.subr.mxu0 0.0
  %4944 = vmatpush1.msra.mxu0 0.0
  %4945 = vmatprep.subr.mxu0 0.0
  %4946 = vmatpush1.msra.mxu0 0.0
  %4947 = vmatprep.subr.mxu0 0.0
  %4948 = vmatpush1.msra.mxu0 0.0
  %4949 = vmatprep.subr.mxu0 0.0
  %4950 = vmatpush1.msra.mxu0 0.0
  %4951 = vmatprep.subr.mxu0 0.0
  %4952 = vmatpush1.msra.mxu0 0.0
  %4953 = vmatprep.subr.mxu0 0.0
  %4954 = vmatpush1.msra.mxu0 0.0
  %4955 = vmatprep.subr.mxu0 0.0
  %4956 = vmatpush1.msra.mxu0 0.0
  %4957 = vmatprep.subr.mxu0 0.0
  %4958 = vmatpush1.msra.mxu0 0.0
  %4959 = vmatprep.subr.mxu0 0.0
  %4960 = vmatpush1.msra.mxu0 0.0
  %4961 = vmatprep.subr.mxu0 0.0
  %4962 = vmatpush1.msra.mxu0 0.0
  %4963 = vmatprep.subr.mxu0 0.0
  %4964 = vmatpush1.msra.mxu0 %v4008
  %4965 = vmatprep.subr.mxu0 0.0
  %4966 = vmatpush1.msra.mxu0 %v4007
  %4967 = vmatprep.subr.mxu0 0.0
  %4968 = vmatpush1.msra.mxu0 %v4006
  %4969 = vmatprep.subr.mxu0 0.0
  %4970 = vmatpush1.msra.mxu0 %v4005
  %4971 = vmatprep.subr.mxu0 0.0
  %4972 = vmatpush2.msra.mxu0 0.0
  %4973 = vmatprep.subr.mxu0 0.0
  %4974 = vmatpush2.msra.mxu0 0.0
  %4975 = vmatprep.subr.mxu0 0.0
  %4976 = vmatpush2.msra.mxu0 0.0
  %4977 = vmatprep.subr.mxu0 0.0
  %4978 = vmatpush2.msra.mxu0 0.0
  %4979 = vmatprep.subr.mxu0 0.0
  %4980 = vmatpush2.msra.mxu0 0.0
  %4981 = vmatprep.subr.mxu0 0.0
  %4982 = vmatpush2.msra.mxu0 0.0
  %4983 = vmatprep.subr.mxu0 0.0
  %4984 = vmatpush2.msra.mxu0 0.0
  %4985 = vmatprep.subr.mxu0 0.0
  %4986 = vmatpush2.msra.mxu0 0.0
  %4987 = vmatprep.subr.mxu0 0.0
  %4988 = vmatpush2.msra.mxu0 0.0
  %4989 = vmatprep.subr.mxu0 0.0
  %4990 = vmatpush2.msra.mxu0 0.0
  %4991 = vmatprep.subr.mxu0 0.0
  %4992 = vmatpush2.msra.mxu0 0.0
  %4993 = vmatprep.subr.mxu0 0.0
  %4994 = vmatpush2.msra.mxu0 0.0
  %4995 = vmatprep.subr.mxu0 0.0
  %4996 = vmatpush2.msra.mxu0 0.0
  %4997 = vmatprep.subr.mxu0 0.0
  %4998 = vmatpush2.msra.mxu0 0.0
  %4999 = vmatprep.subr.mxu0 0.0
  %5000 = vmatpush2.msra.mxu0 0.0
  %5001 = vmatprep.subr.mxu0 0.0
  %5002 = vmatpush2.msra.mxu0 0.0
  %5003 = vmatprep.mubr.f32.mxu0 0.0
  %5004 = vmatmul.mubr.f32.gmra.mxu0 %v4517
  %v5005 = vpop.f32.mrf.mxu0
  %v5006 = vadd.f32 %v4936, %v5005
  %v5007 = vpop.f32.mrf.mxu0
  %5008 = vdwg.mxu0
  %v5009 = vmul.f32 %v4500, %v4500
  %v5010 = vsub.f32 %v5006, %v5009
  %v5011 = vld [vmem:[%s5] sm:$0x1]
  %v5012 = vadd.f32 %v5010, 1e-05
  %v5013 = vrsqrt.pop %v5012
  %v5015 = vlaneseq
  %v5016 = vshrl.u32 %v5015, 7
  %v5017 = vsub.s32 0, %v5016
  %v5018 = vrot.slane %v5011, %v5017
  %v5020 = vmul.f32 %v5018, %v5013
  %v5021 = vld [vmem:[%s6] sm:$0x1]
  %v5022 = vmul.f32 %v4500, %v5020
  %v5024 = vlaneseq
  %v5025 = vshrl.u32 %v5024, 7
  %v5026 = vsub.s32 0, %v5025
  %v5027 = vrot.slane %v5021, %v5026
  %v5029 = vsub.f32 %v5027, %v5022
  %v5030 = vld [vmem:[%s4] sm:$0xff]
  %v5031 = vld [vmem:[%s4 + $0x8] sm:$0xff]
  %v5032 = vld [vmem:[%s4 + $0x10] sm:$0xff]
  %v5033 = vld [vmem:[%s4 + $0x18] sm:$0xff]
  %v5034 = vld [vmem:[%s4 + $0x20] sm:$0xff]
  %v5035 = vld [vmem:[%s4 + $0x28] sm:$0xff]
  %v5036 = vld [vmem:[%s4 + $0x30] sm:$0xff]
  %v5037 = vld [vmem:[%s4 + $0x38] sm:$0xff]
  %v5038 = vld [vmem:[%s4 + $0x40] sm:$0xff]
  %v5039 = vld [vmem:[%s4 + $0x48] sm:$0xff]
  %v5040 = vld [vmem:[%s4 + $0x50] sm:$0xff]
  %v5041 = vld [vmem:[%s4 + $0x58] sm:$0xff]
  %v5042 = vld [vmem:[%s4 + $0x60] sm:$0xff]
  %vm5043 = vcmask 64512
  %v5045 = vsel %vm5043, %v5020, 0
  %5047 = vmatprep.subr.mxu0 0.0
  %5048 = vmatpush1.msra.mxu0 0.0
  %5049 = vmatprep.subr.mxu0 0.0
  %5050 = vmatpush1.msra.mxu0 0.0
  %5051 = vmatprep.subr.mxu0 0.0
  %5052 = vmatpush1.msra.mxu0 0.0
  %5053 = vmatprep.subr.mxu0 0.0
  %5054 = vmatpush1.msra.mxu0 0.0
  %5055 = vmatprep.subr.mxu0 0.0
  %5056 = vmatpush1.msra.mxu0 0.0
  %5057 = vmatprep.subr.mxu0 0.0
  %5058 = vmatpush1.msra.mxu0 0.0
  %5059 = vmatprep.subr.mxu0 0.0
  %5060 = vmatpush1.msra.mxu0 0.0
  %5061 = vmatprep.subr.mxu0 0.0
  %5062 = vmatpush1.msra.mxu0 0.0
  %5063 = vmatprep.subr.mxu0 0.0
  %5064 = vmatpush1.msra.mxu0 0.0
  %5065 = vmatprep.subr.mxu0 0.0
  %5066 = vmatpush1.msra.mxu0 0.0
  %5067 = vmatprep.subr.mxu0 0.0
  %5068 = vmatpush1.msra.mxu0 0.0
  %5069 = vmatprep.subr.mxu0 0.0
  %5070 = vmatpush1.msra.mxu0 0.0
  %5071 = vmatprep.subr.mxu0 0.0
  %5072 = vmatpush1.msra.mxu0 0.0
  %5073 = vmatprep.subr.mxu0 0.0
  %5074 = vmatpush1.msra.mxu0 0.0
  %5075 = vmatprep.subr.mxu0 0.0
  %5076 = vmatpush1.msra.mxu0 0.0
  %5077 = vmatprep.subr.mxu0 %v5031
  %5078 = vmatpush1.msra.mxu0 %v5030
  %5079 = vmatprep.subr.mxu0 0.0
  %5080 = vmatpush2.msra.mxu0 0.0
  %5081 = vmatprep.subr.mxu0 0.0
  %5082 = vmatpush2.msra.mxu0 0.0
  %5083 = vmatprep.subr.mxu0 0.0
  %5084 = vmatpush2.msra.mxu0 0.0
  %5085 = vmatprep.subr.mxu0 0.0
  %5086 = vmatpush2.msra.mxu0 0.0
  %5087 = vmatprep.subr.mxu0 0.0
  %5088 = vmatpush2.msra.mxu0 0.0
  %5089 = vmatprep.subr.mxu0 0.0
  %5090 = vmatpush2.msra.mxu0 0.0
  %5091 = vmatprep.subr.mxu0 0.0
  %5092 = vmatpush2.msra.mxu0 0.0
  %5093 = vmatprep.subr.mxu0 0.0
  %5094 = vmatpush2.msra.mxu0 0.0
  %5095 = vmatprep.subr.mxu0 0.0
  %5096 = vmatpush2.msra.mxu0 0.0
  %5097 = vmatprep.subr.mxu0 0.0
  %5098 = vmatpush2.msra.mxu0 0.0
  %5099 = vmatprep.subr.mxu0 0.0
  %5100 = vmatpush2.msra.mxu0 0.0
  %5101 = vmatprep.subr.mxu0 0.0
  %5102 = vmatpush2.msra.mxu0 0.0
  %5103 = vmatprep.subr.mxu0 0.0
  %5104 = vmatpush2.msra.mxu0 0.0
  %5105 = vmatprep.subr.mxu0 0.0
  %5106 = vmatpush2.msra.mxu0 0.0
  %5107 = vmatprep.subr.mxu0 0.0
  %5108 = vmatpush2.msra.mxu0 0.0
  %5109 = vmatprep.subr.mxu0 0.0
  %5110 = vmatpush2.msra.mxu0 0.0
  %5111 = vmatprep.mubr.f32.mxu0 0.0
  %5112 = vmatmul.mubr.f32.gmra.mxu0 %v5045
  %v5113 = vpop.f32.mrf.mxu0
  %v5114 = vadd.f32 0.0, %v5113
  %v5115 = vpop.f32.mrf.mxu0
  %v5116 = vadd.f32 0.0, %v5115
  %5117 = vdwg.mxu0
  %5118 = vmatprep.subr.mxu0 0.0
  %5119 = vmatpush1.msra.mxu0 0.0
  %5120 = vmatprep.subr.mxu0 0.0
  %5121 = vmatpush1.msra.mxu0 0.0
  %5122 = vmatprep.subr.mxu0 0.0
  %5123 = vmatpush1.msra.mxu0 0.0
  %5124 = vmatprep.subr.mxu0 0.0
  %5125 = vmatpush1.msra.mxu0 0.0
  %5126 = vmatprep.subr.mxu0 0.0
  %5127 = vmatpush1.msra.mxu0 0.0
  %5128 = vmatprep.subr.mxu0 0.0
  %5129 = vmatpush1.msra.mxu0 0.0
  %5130 = vmatprep.subr.mxu0 0.0
  %5131 = vmatpush1.msra.mxu0 0.0
  %5132 = vmatprep.subr.mxu0 0.0
  %5133 = vmatpush1.msra.mxu0 0.0
  %5134 = vmatprep.subr.mxu0 0.0
  %5135 = vmatpush1.msra.mxu0 0.0
  %5136 = vmatprep.subr.mxu0 0.0
  %5137 = vmatpush1.msra.mxu0 0.0
  %5138 = vmatprep.subr.mxu0 0.0
  %5139 = vmatpush1.msra.mxu0 0.0
  %5140 = vmatprep.subr.mxu0 0.0
  %5141 = vmatpush1.msra.mxu0 0.0
  %5142 = vmatprep.subr.mxu0 0.0
  %5143 = vmatpush1.msra.mxu0 0.0
  %5144 = vmatprep.subr.mxu0 0.0
  %5145 = vmatpush1.msra.mxu0 0.0
  %5146 = vmatprep.subr.mxu0 0.0
  %5147 = vmatpush1.msra.mxu0 0.0
  %5148 = vmatprep.subr.mxu0 %v5033
  %5149 = vmatpush1.msra.mxu0 %v5032
  %5150 = vmatprep.subr.mxu0 0.0
  %5151 = vmatpush2.msra.mxu0 0.0
  %5152 = vmatprep.subr.mxu0 0.0
  %5153 = vmatpush2.msra.mxu0 0.0
  %5154 = vmatprep.subr.mxu0 0.0
  %5155 = vmatpush2.msra.mxu0 0.0
  %5156 = vmatprep.subr.mxu0 0.0
  %5157 = vmatpush2.msra.mxu0 0.0
  %5158 = vmatprep.subr.mxu0 0.0
  %5159 = vmatpush2.msra.mxu0 0.0
  %5160 = vmatprep.subr.mxu0 0.0
  %5161 = vmatpush2.msra.mxu0 0.0
  %5162 = vmatprep.subr.mxu0 0.0
  %5163 = vmatpush2.msra.mxu0 0.0
  %5164 = vmatprep.subr.mxu0 0.0
  %5165 = vmatpush2.msra.mxu0 0.0
  %5166 = vmatprep.subr.mxu0 0.0
  %5167 = vmatpush2.msra.mxu0 0.0
  %5168 = vmatprep.subr.mxu0 0.0
  %5169 = vmatpush2.msra.mxu0 0.0
  %5170 = vmatprep.subr.mxu0 0.0
  %5171 = vmatpush2.msra.mxu0 0.0
  %5172 = vmatprep.subr.mxu0 0.0
  %5173 = vmatpush2.msra.mxu0 0.0
  %5174 = vmatprep.subr.mxu0 0.0
  %5175 = vmatpush2.msra.mxu0 0.0
  %5176 = vmatprep.subr.mxu0 0.0
  %5177 = vmatpush2.msra.mxu0 0.0
  %5178 = vmatprep.subr.mxu0 0.0
  %5179 = vmatpush2.msra.mxu0 0.0
  %5180 = vmatprep.subr.mxu0 0.0
  %5181 = vmatpush2.msra.mxu0 0.0
  %5182 = vmatprep.mubr.f32.mxu0 0.0
  %5183 = vmatmul.mubr.f32.gmra.mxu0 %v5045
  %v5184 = vpop.f32.mrf.mxu0
  %v5185 = vadd.f32 0.0, %v5184
  %v5186 = vpop.f32.mrf.mxu0
  %v5187 = vadd.f32 0.0, %v5186
  %5188 = vdwg.mxu0
  %5189 = vmatprep.subr.mxu0 0.0
  %5190 = vmatpush1.msra.mxu0 0.0
  %5191 = vmatprep.subr.mxu0 0.0
  %5192 = vmatpush1.msra.mxu0 0.0
  %5193 = vmatprep.subr.mxu0 0.0
  %5194 = vmatpush1.msra.mxu0 0.0
  %5195 = vmatprep.subr.mxu0 0.0
  %5196 = vmatpush1.msra.mxu0 0.0
  %5197 = vmatprep.subr.mxu0 0.0
  %5198 = vmatpush1.msra.mxu0 0.0
  %5199 = vmatprep.subr.mxu0 0.0
  %5200 = vmatpush1.msra.mxu0 0.0
  %5201 = vmatprep.subr.mxu0 0.0
  %5202 = vmatpush1.msra.mxu0 0.0
  %5203 = vmatprep.subr.mxu0 0.0
  %5204 = vmatpush1.msra.mxu0 0.0
  %5205 = vmatprep.subr.mxu0 0.0
  %5206 = vmatpush1.msra.mxu0 0.0
  %5207 = vmatprep.subr.mxu0 0.0
  %5208 = vmatpush1.msra.mxu0 0.0
  %5209 = vmatprep.subr.mxu0 0.0
  %5210 = vmatpush1.msra.mxu0 0.0
  %5211 = vmatprep.subr.mxu0 0.0
  %5212 = vmatpush1.msra.mxu0 0.0
  %5213 = vmatprep.subr.mxu0 0.0
  %5214 = vmatpush1.msra.mxu0 0.0
  %5215 = vmatprep.subr.mxu0 0.0
  %5216 = vmatpush1.msra.mxu0 0.0
  %5217 = vmatprep.subr.mxu0 0.0
  %5218 = vmatpush1.msra.mxu0 0.0
  %5219 = vmatprep.subr.mxu0 %v5035
  %5220 = vmatpush1.msra.mxu0 %v5034
  %5221 = vmatprep.subr.mxu0 0.0
  %5222 = vmatpush2.msra.mxu0 0.0
  %5223 = vmatprep.subr.mxu0 0.0
  %5224 = vmatpush2.msra.mxu0 0.0
  %5225 = vmatprep.subr.mxu0 0.0
  %5226 = vmatpush2.msra.mxu0 0.0
  %5227 = vmatprep.subr.mxu0 0.0
  %5228 = vmatpush2.msra.mxu0 0.0
  %5229 = vmatprep.subr.mxu0 0.0
  %5230 = vmatpush2.msra.mxu0 0.0
  %5231 = vmatprep.subr.mxu0 0.0
  %5232 = vmatpush2.msra.mxu0 0.0
  %5233 = vmatprep.subr.mxu0 0.0
  %5234 = vmatpush2.msra.mxu0 0.0
  %5235 = vmatprep.subr.mxu0 0.0
  %5236 = vmatpush2.msra.mxu0 0.0
  %5237 = vmatprep.subr.mxu0 0.0
  %5238 = vmatpush2.msra.mxu0 0.0
  %5239 = vmatprep.subr.mxu0 0.0
  %5240 = vmatpush2.msra.mxu0 0.0
  %5241 = vmatprep.subr.mxu0 0.0
  %5242 = vmatpush2.msra.mxu0 0.0
  %5243 = vmatprep.subr.mxu0 0.0
  %5244 = vmatpush2.msra.mxu0 0.0
  %5245 = vmatprep.subr.mxu0 0.0
  %5246 = vmatpush2.msra.mxu0 0.0
  %5247 = vmatprep.subr.mxu0 0.0
  %5248 = vmatpush2.msra.mxu0 0.0
  %5249 = vmatprep.subr.mxu0 0.0
  %5250 = vmatpush2.msra.mxu0 0.0
  %5251 = vmatprep.subr.mxu0 0.0
  %5252 = vmatpush2.msra.mxu0 0.0
  %5253 = vmatprep.mubr.f32.mxu0 0.0
  %5254 = vmatmul.mubr.f32.gmra.mxu0 %v5045
  %v5255 = vpop.f32.mrf.mxu0
  %v5256 = vadd.f32 0.0, %v5255
  %v5257 = vpop.f32.mrf.mxu0
  %v5258 = vadd.f32 0.0, %v5257
  %5259 = vdwg.mxu0
  %5260 = vmatprep.subr.mxu0 0.0
  %5261 = vmatpush1.msra.mxu0 0.0
  %5262 = vmatprep.subr.mxu0 0.0
  %5263 = vmatpush1.msra.mxu0 0.0
  %5264 = vmatprep.subr.mxu0 0.0
  %5265 = vmatpush1.msra.mxu0 0.0
  %5266 = vmatprep.subr.mxu0 0.0
  %5267 = vmatpush1.msra.mxu0 0.0
  %5268 = vmatprep.subr.mxu0 0.0
  %5269 = vmatpush1.msra.mxu0 0.0
  %5270 = vmatprep.subr.mxu0 0.0
  %5271 = vmatpush1.msra.mxu0 0.0
  %5272 = vmatprep.subr.mxu0 0.0
  %5273 = vmatpush1.msra.mxu0 0.0
  %5274 = vmatprep.subr.mxu0 0.0
  %5275 = vmatpush1.msra.mxu0 0.0
  %5276 = vmatprep.subr.mxu0 0.0
  %5277 = vmatpush1.msra.mxu0 0.0
  %5278 = vmatprep.subr.mxu0 0.0
  %5279 = vmatpush1.msra.mxu0 0.0
  %5280 = vmatprep.subr.mxu0 0.0
  %5281 = vmatpush1.msra.mxu0 0.0
  %5282 = vmatprep.subr.mxu0 0.0
  %5283 = vmatpush1.msra.mxu0 0.0
  %5284 = vmatprep.subr.mxu0 0.0
  %5285 = vmatpush1.msra.mxu0 0.0
  %5286 = vmatprep.subr.mxu0 0.0
  %5287 = vmatpush1.msra.mxu0 0.0
  %5288 = vmatprep.subr.mxu0 0.0
  %5289 = vmatpush1.msra.mxu0 0.0
  %5290 = vmatprep.subr.mxu0 %v5037
  %5291 = vmatpush1.msra.mxu0 %v5036
  %5292 = vmatprep.subr.mxu0 0.0
  %5293 = vmatpush2.msra.mxu0 0.0
  %5294 = vmatprep.subr.mxu0 0.0
  %5295 = vmatpush2.msra.mxu0 0.0
  %5296 = vmatprep.subr.mxu0 0.0
  %5297 = vmatpush2.msra.mxu0 0.0
  %5298 = vmatprep.subr.mxu0 0.0
  %5299 = vmatpush2.msra.mxu0 0.0
  %5300 = vmatprep.subr.mxu0 0.0
  %5301 = vmatpush2.msra.mxu0 0.0
  %5302 = vmatprep.subr.mxu0 0.0
  %5303 = vmatpush2.msra.mxu0 0.0
  %5304 = vmatprep.subr.mxu0 0.0
  %5305 = vmatpush2.msra.mxu0 0.0
  %5306 = vmatprep.subr.mxu0 0.0
  %5307 = vmatpush2.msra.mxu0 0.0
  %5308 = vmatprep.subr.mxu0 0.0
  %5309 = vmatpush2.msra.mxu0 0.0
  %5310 = vmatprep.subr.mxu0 0.0
  %5311 = vmatpush2.msra.mxu0 0.0
  %5312 = vmatprep.subr.mxu0 0.0
  %5313 = vmatpush2.msra.mxu0 0.0
  %5314 = vmatprep.subr.mxu0 0.0
  %5315 = vmatpush2.msra.mxu0 0.0
  %5316 = vmatprep.subr.mxu0 0.0
  %5317 = vmatpush2.msra.mxu0 0.0
  %5318 = vmatprep.subr.mxu0 0.0
  %5319 = vmatpush2.msra.mxu0 0.0
  %5320 = vmatprep.subr.mxu0 0.0
  %5321 = vmatpush2.msra.mxu0 0.0
  %5322 = vmatprep.subr.mxu0 0.0
  %5323 = vmatpush2.msra.mxu0 0.0
  %5324 = vmatprep.mubr.f32.mxu0 0.0
  %5325 = vmatmul.mubr.f32.gmra.mxu0 %v5045
  %v5326 = vpop.f32.mrf.mxu0
  %v5327 = vadd.f32 0.0, %v5326
  %v5328 = vpop.f32.mrf.mxu0
  %v5329 = vadd.f32 0.0, %v5328
  %5330 = vdwg.mxu0
  %5331 = vmatprep.subr.mxu0 0.0
  %5332 = vmatpush1.msra.mxu0 0.0
  %5333 = vmatprep.subr.mxu0 0.0
  %5334 = vmatpush1.msra.mxu0 0.0
  %5335 = vmatprep.subr.mxu0 0.0
  %5336 = vmatpush1.msra.mxu0 0.0
  %5337 = vmatprep.subr.mxu0 0.0
  %5338 = vmatpush1.msra.mxu0 0.0
  %5339 = vmatprep.subr.mxu0 0.0
  %5340 = vmatpush1.msra.mxu0 0.0
  %5341 = vmatprep.subr.mxu0 0.0
  %5342 = vmatpush1.msra.mxu0 0.0
  %5343 = vmatprep.subr.mxu0 0.0
  %5344 = vmatpush1.msra.mxu0 0.0
  %5345 = vmatprep.subr.mxu0 0.0
  %5346 = vmatpush1.msra.mxu0 0.0
  %5347 = vmatprep.subr.mxu0 0.0
  %5348 = vmatpush1.msra.mxu0 0.0
  %5349 = vmatprep.subr.mxu0 0.0
  %5350 = vmatpush1.msra.mxu0 0.0
  %5351 = vmatprep.subr.mxu0 0.0
  %5352 = vmatpush1.msra.mxu0 0.0
  %5353 = vmatprep.subr.mxu0 0.0
  %5354 = vmatpush1.msra.mxu0 0.0
  %5355 = vmatprep.subr.mxu0 0.0
  %5356 = vmatpush1.msra.mxu0 0.0
  %5357 = vmatprep.subr.mxu0 0.0
  %5358 = vmatpush1.msra.mxu0 0.0
  %5359 = vmatprep.subr.mxu0 0.0
  %5360 = vmatpush1.msra.mxu0 0.0
  %5361 = vmatprep.subr.mxu0 %v5039
  %5362 = vmatpush1.msra.mxu0 %v5038
  %5363 = vmatprep.subr.mxu0 0.0
  %5364 = vmatpush2.msra.mxu0 0.0
  %5365 = vmatprep.subr.mxu0 0.0
  %5366 = vmatpush2.msra.mxu0 0.0
  %5367 = vmatprep.subr.mxu0 0.0
  %5368 = vmatpush2.msra.mxu0 0.0
  %5369 = vmatprep.subr.mxu0 0.0
  %5370 = vmatpush2.msra.mxu0 0.0
  %5371 = vmatprep.subr.mxu0 0.0
  %5372 = vmatpush2.msra.mxu0 0.0
  %5373 = vmatprep.subr.mxu0 0.0
  %5374 = vmatpush2.msra.mxu0 0.0
  %5375 = vmatprep.subr.mxu0 0.0
  %5376 = vmatpush2.msra.mxu0 0.0
  %5377 = vmatprep.subr.mxu0 0.0
  %5378 = vmatpush2.msra.mxu0 0.0
  %5379 = vmatprep.subr.mxu0 0.0
  %5380 = vmatpush2.msra.mxu0 0.0
  %5381 = vmatprep.subr.mxu0 0.0
  %5382 = vmatpush2.msra.mxu0 0.0
  %5383 = vmatprep.subr.mxu0 0.0
  %5384 = vmatpush2.msra.mxu0 0.0
  %5385 = vmatprep.subr.mxu0 0.0
  %5386 = vmatpush2.msra.mxu0 0.0
  %5387 = vmatprep.subr.mxu0 0.0
  %5388 = vmatpush2.msra.mxu0 0.0
  %5389 = vmatprep.subr.mxu0 0.0
  %5390 = vmatpush2.msra.mxu0 0.0
  %5391 = vmatprep.subr.mxu0 0.0
  %5392 = vmatpush2.msra.mxu0 0.0
  %5393 = vmatprep.subr.mxu0 0.0
  %5394 = vmatpush2.msra.mxu0 0.0
  %5395 = vmatprep.mubr.f32.mxu0 0.0
  %5396 = vmatmul.mubr.f32.gmra.mxu0 %v5045
  %v5397 = vpop.f32.mrf.mxu0
  %v5398 = vadd.f32 0.0, %v5397
  %v5399 = vpop.f32.mrf.mxu0
  %v5400 = vadd.f32 0.0, %v5399
  %5401 = vdwg.mxu0
  %5402 = vmatprep.subr.mxu0 0.0
  %5403 = vmatpush1.msra.mxu0 0.0
  %5404 = vmatprep.subr.mxu0 0.0
  %5405 = vmatpush1.msra.mxu0 0.0
  %5406 = vmatprep.subr.mxu0 0.0
  %5407 = vmatpush1.msra.mxu0 0.0
  %5408 = vmatprep.subr.mxu0 0.0
  %5409 = vmatpush1.msra.mxu0 0.0
  %5410 = vmatprep.subr.mxu0 0.0
  %5411 = vmatpush1.msra.mxu0 0.0
  %5412 = vmatprep.subr.mxu0 0.0
  %5413 = vmatpush1.msra.mxu0 0.0
  %5414 = vmatprep.subr.mxu0 0.0
  %5415 = vmatpush1.msra.mxu0 0.0
  %5416 = vmatprep.subr.mxu0 0.0
  %5417 = vmatpush1.msra.mxu0 0.0
  %5418 = vmatprep.subr.mxu0 0.0
  %5419 = vmatpush1.msra.mxu0 0.0
  %5420 = vmatprep.subr.mxu0 0.0
  %5421 = vmatpush1.msra.mxu0 0.0
  %5422 = vmatprep.subr.mxu0 0.0
  %5423 = vmatpush1.msra.mxu0 0.0
  %5424 = vmatprep.subr.mxu0 0.0
  %5425 = vmatpush1.msra.mxu0 0.0
  %5426 = vmatprep.subr.mxu0 0.0
  %5427 = vmatpush1.msra.mxu0 0.0
  %5428 = vmatprep.subr.mxu0 0.0
  %5429 = vmatpush1.msra.mxu0 0.0
  %5430 = vmatprep.subr.mxu0 0.0
  %5431 = vmatpush1.msra.mxu0 0.0
  %5432 = vmatprep.subr.mxu0 %v5041
  %5433 = vmatpush1.msra.mxu0 %v5040
  %5434 = vmatprep.subr.mxu0 0.0
  %5435 = vmatpush2.msra.mxu0 0.0
  %5436 = vmatprep.subr.mxu0 0.0
  %5437 = vmatpush2.msra.mxu0 0.0
  %5438 = vmatprep.subr.mxu0 0.0
  %5439 = vmatpush2.msra.mxu0 0.0
  %5440 = vmatprep.subr.mxu0 0.0
  %5441 = vmatpush2.msra.mxu0 0.0
  %5442 = vmatprep.subr.mxu0 0.0
  %5443 = vmatpush2.msra.mxu0 0.0
  %5444 = vmatprep.subr.mxu0 0.0
  %5445 = vmatpush2.msra.mxu0 0.0
  %5446 = vmatprep.subr.mxu0 0.0
  %5447 = vmatpush2.msra.mxu0 0.0
  %5448 = vmatprep.subr.mxu0 0.0
  %5449 = vmatpush2.msra.mxu0 0.0
  %5450 = vmatprep.subr.mxu0 0.0
  %5451 = vmatpush2.msra.mxu0 0.0
  %5452 = vmatprep.subr.mxu0 0.0
  %5453 = vmatpush2.msra.mxu0 0.0
  %5454 = vmatprep.subr.mxu0 0.0
  %5455 = vmatpush2.msra.mxu0 0.0
  %5456 = vmatprep.subr.mxu0 0.0
  %5457 = vmatpush2.msra.mxu0 0.0
  %5458 = vmatprep.subr.mxu0 0.0
  %5459 = vmatpush2.msra.mxu0 0.0
  %5460 = vmatprep.subr.mxu0 0.0
  %5461 = vmatpush2.msra.mxu0 0.0
  %5462 = vmatprep.subr.mxu0 0.0
  %5463 = vmatpush2.msra.mxu0 0.0
  %5464 = vmatprep.subr.mxu0 0.0
  %5465 = vmatpush2.msra.mxu0 0.0
  %5466 = vmatprep.mubr.f32.mxu0 0.0
  %5467 = vmatmul.mubr.f32.gmra.mxu0 %v5045
  %v5468 = vpop.f32.mrf.mxu0
  %v5469 = vadd.f32 0.0, %v5468
  %v5470 = vpop.f32.mrf.mxu0
  %v5471 = vadd.f32 0.0, %v5470
  %5472 = vdwg.mxu0
  %5473 = vmatprep.subr.mxu0 0.0
  %5474 = vmatpush1.msra.mxu0 0.0
  %5475 = vmatprep.subr.mxu0 0.0
  %5476 = vmatpush1.msra.mxu0 0.0
  %5477 = vmatprep.subr.mxu0 0.0
  %5478 = vmatpush1.msra.mxu0 0.0
  %5479 = vmatprep.subr.mxu0 0.0
  %5480 = vmatpush1.msra.mxu0 0.0
  %5481 = vmatprep.subr.mxu0 0.0
  %5482 = vmatpush1.msra.mxu0 0.0
  %5483 = vmatprep.subr.mxu0 0.0
  %5484 = vmatpush1.msra.mxu0 0.0
  %5485 = vmatprep.subr.mxu0 0.0
  %5486 = vmatpush1.msra.mxu0 0.0
  %5487 = vmatprep.subr.mxu0 0.0
  %5488 = vmatpush1.msra.mxu0 0.0
  %5489 = vmatprep.subr.mxu0 0.0
  %5490 = vmatpush1.msra.mxu0 0.0
  %5491 = vmatprep.subr.mxu0 0.0
  %5492 = vmatpush1.msra.mxu0 0.0
  %5493 = vmatprep.subr.mxu0 0.0
  %5494 = vmatpush1.msra.mxu0 0.0
  %5495 = vmatprep.subr.mxu0 0.0
  %5496 = vmatpush1.msra.mxu0 0.0
  %5497 = vmatprep.subr.mxu0 0.0
  %5498 = vmatpush1.msra.mxu0 0.0
  %5499 = vmatprep.subr.mxu0 0.0
  %5500 = vmatpush1.msra.mxu0 0.0
  %5501 = vmatprep.subr.mxu0 0.0
  %5502 = vmatpush1.msra.mxu0 0.0
  %5503 = vmatprep.subr.mxu0 0.0
  %5504 = vmatpush1.msra.mxu0 %v5042
  %5505 = vmatprep.subr.mxu0 0.0
  %5506 = vmatpush2.msra.mxu0 0.0
  %5507 = vmatprep.subr.mxu0 0.0
  %5508 = vmatpush2.msra.mxu0 0.0
  %5509 = vmatprep.subr.mxu0 0.0
  %5510 = vmatpush2.msra.mxu0 0.0
  %5511 = vmatprep.subr.mxu0 0.0
  %5512 = vmatpush2.msra.mxu0 0.0
  %5513 = vmatprep.subr.mxu0 0.0
  %5514 = vmatpush2.msra.mxu0 0.0
  %5515 = vmatprep.subr.mxu0 0.0
  %5516 = vmatpush2.msra.mxu0 0.0
  %5517 = vmatprep.subr.mxu0 0.0
  %5518 = vmatpush2.msra.mxu0 0.0
  %5519 = vmatprep.subr.mxu0 0.0
  %5520 = vmatpush2.msra.mxu0 0.0
  %5521 = vmatprep.subr.mxu0 0.0
  %5522 = vmatpush2.msra.mxu0 0.0
  %5523 = vmatprep.subr.mxu0 0.0
  %5524 = vmatpush2.msra.mxu0 0.0
  %5525 = vmatprep.subr.mxu0 0.0
  %5526 = vmatpush2.msra.mxu0 0.0
  %5527 = vmatprep.subr.mxu0 0.0
  %5528 = vmatpush2.msra.mxu0 0.0
  %5529 = vmatprep.subr.mxu0 0.0
  %5530 = vmatpush2.msra.mxu0 0.0
  %5531 = vmatprep.subr.mxu0 0.0
  %5532 = vmatpush2.msra.mxu0 0.0
  %5533 = vmatprep.subr.mxu0 0.0
  %5534 = vmatpush2.msra.mxu0 0.0
  %5535 = vmatprep.subr.mxu0 0.0
  %5536 = vmatpush2.msra.mxu0 0.0
  %5537 = vmatprep.mubr.f32.mxu0 0.0
  %5538 = vmatmul.mubr.f32.gmra.mxu0 %v5045
  %v5539 = vpop.f32.mrf.mxu0
  %v5540 = vadd.f32 0.0, %v5539
  %v5541 = vpop.f32.mrf.mxu0
  %5542 = vdwg.mxu0
  %v5543 = vmul.f32 %v2109, %v5114
  %v5544 = vmul.f32 %v2111, %v5116
  %v5545 = vmul.f32 %v2393, %v5185
  %v5546 = vmul.f32 %v2395, %v5187
  %v5547 = vmul.f32 %v2677, %v5256
  %v5548 = vmul.f32 %v2679, %v5258
  %v5549 = vmul.f32 %v2961, %v5327
  %v5550 = vmul.f32 %v2963, %v5329
  %v5551 = vmul.f32 %v3245, %v5398
  %v5552 = vmul.f32 %v3247, %v5400
  %v5553 = vmul.f32 %v3529, %v5469
  %v5554 = vmul.f32 %v3531, %v5471
  %v5555 = vmul.f32 %v3810, %v5540
  %v5557 = vsel %vm5043, %v5029, 0
  %5559 = vmatprep.subr.mxu0 0.0
  %5560 = vmatpush1.msra.mxu0 0.0
  %5561 = vmatprep.subr.mxu0 0.0
  %5562 = vmatpush1.msra.mxu0 0.0
  %5563 = vmatprep.subr.mxu0 0.0
  %5564 = vmatpush1.msra.mxu0 0.0
  %5565 = vmatprep.subr.mxu0 0.0
  %5566 = vmatpush1.msra.mxu0 0.0
  %5567 = vmatprep.subr.mxu0 0.0
  %5568 = vmatpush1.msra.mxu0 0.0
  %5569 = vmatprep.subr.mxu0 0.0
  %5570 = vmatpush1.msra.mxu0 0.0
  %5571 = vmatprep.subr.mxu0 0.0
  %5572 = vmatpush1.msra.mxu0 0.0
  %5573 = vmatprep.subr.mxu0 0.0
  %5574 = vmatpush1.msra.mxu0 0.0
  %5575 = vmatprep.subr.mxu0 0.0
  %5576 = vmatpush1.msra.mxu0 0.0
  %5577 = vmatprep.subr.mxu0 0.0
  %5578 = vmatpush1.msra.mxu0 0.0
  %5579 = vmatprep.subr.mxu0 0.0
  %5580 = vmatpush1.msra.mxu0 0.0
  %5581 = vmatprep.subr.mxu0 0.0
  %5582 = vmatpush1.msra.mxu0 0.0
  %5583 = vmatprep.subr.mxu0 0.0
  %5584 = vmatpush1.msra.mxu0 0.0
  %5585 = vmatprep.subr.mxu0 0.0
  %5586 = vmatpush1.msra.mxu0 0.0
  %5587 = vmatprep.subr.mxu0 0.0
  %5588 = vmatpush1.msra.mxu0 0.0
  %5589 = vmatprep.subr.mxu0 %v5031
  %5590 = vmatpush1.msra.mxu0 %v5030
  %5591 = vmatprep.subr.mxu0 0.0
  %5592 = vmatpush2.msra.mxu0 0.0
  %5593 = vmatprep.subr.mxu0 0.0
  %5594 = vmatpush2.msra.mxu0 0.0
  %5595 = vmatprep.subr.mxu0 0.0
  %5596 = vmatpush2.msra.mxu0 0.0
  %5597 = vmatprep.subr.mxu0 0.0
  %5598 = vmatpush2.msra.mxu0 0.0
  %5599 = vmatprep.subr.mxu0 0.0
  %5600 = vmatpush2.msra.mxu0 0.0
  %5601 = vmatprep.subr.mxu0 0.0
  %5602 = vmatpush2.msra.mxu0 0.0
  %5603 = vmatprep.subr.mxu0 0.0
  %5604 = vmatpush2.msra.mxu0 0.0
  %5605 = vmatprep.subr.mxu0 0.0
  %5606 = vmatpush2.msra.mxu0 0.0
  %5607 = vmatprep.subr.mxu0 0.0
  %5608 = vmatpush2.msra.mxu0 0.0
  %5609 = vmatprep.subr.mxu0 0.0
  %5610 = vmatpush2.msra.mxu0 0.0
  %5611 = vmatprep.subr.mxu0 0.0
  %5612 = vmatpush2.msra.mxu0 0.0
  %5613 = vmatprep.subr.mxu0 0.0
  %5614 = vmatpush2.msra.mxu0 0.0
  %5615 = vmatprep.subr.mxu0 0.0
  %5616 = vmatpush2.msra.mxu0 0.0
  %5617 = vmatprep.subr.mxu0 0.0
  %5618 = vmatpush2.msra.mxu0 0.0
  %5619 = vmatprep.subr.mxu0 0.0
  %5620 = vmatpush2.msra.mxu0 0.0
  %5621 = vmatprep.subr.mxu0 0.0
  %5622 = vmatpush2.msra.mxu0 0.0
  %5623 = vmatprep.mubr.f32.mxu0 0.0
  %5624 = vmatmul.mubr.f32.gmra.mxu0 %v5557
  %v5625 = vpop.f32.mrf.mxu0
  %v5626 = vadd.f32 0.0, %v5625
  %v5627 = vpop.f32.mrf.mxu0
  %v5628 = vadd.f32 0.0, %v5627
  %5629 = vdwg.mxu0
  %5630 = vmatprep.subr.mxu0 0.0
  %5631 = vmatpush1.msra.mxu0 0.0
  %5632 = vmatprep.subr.mxu0 0.0
  %5633 = vmatpush1.msra.mxu0 0.0
  %5634 = vmatprep.subr.mxu0 0.0
  %5635 = vmatpush1.msra.mxu0 0.0
  %5636 = vmatprep.subr.mxu0 0.0
  %5637 = vmatpush1.msra.mxu0 0.0
  %5638 = vmatprep.subr.mxu0 0.0
  %5639 = vmatpush1.msra.mxu0 0.0
  %5640 = vmatprep.subr.mxu0 0.0
  %5641 = vmatpush1.msra.mxu0 0.0
  %5642 = vmatprep.subr.mxu0 0.0
  %5643 = vmatpush1.msra.mxu0 0.0
  %5644 = vmatprep.subr.mxu0 0.0
  %5645 = vmatpush1.msra.mxu0 0.0
  %5646 = vmatprep.subr.mxu0 0.0
  %5647 = vmatpush1.msra.mxu0 0.0
  %5648 = vmatprep.subr.mxu0 0.0
  %5649 = vmatpush1.msra.mxu0 0.0
  %5650 = vmatprep.subr.mxu0 0.0
  %5651 = vmatpush1.msra.mxu0 0.0
  %5652 = vmatprep.subr.mxu0 0.0
  %5653 = vmatpush1.msra.mxu0 0.0
  %5654 = vmatprep.subr.mxu0 0.0
  %5655 = vmatpush1.msra.mxu0 0.0
  %5656 = vmatprep.subr.mxu0 0.0
  %5657 = vmatpush1.msra.mxu0 0.0
  %5658 = vmatprep.subr.mxu0 0.0
  %5659 = vmatpush1.msra.mxu0 0.0
  %5660 = vmatprep.subr.mxu0 %v5033
  %5661 = vmatpush1.msra.mxu0 %v5032
  %5662 = vmatprep.subr.mxu0 0.0
  %5663 = vmatpush2.msra.mxu0 0.0
  %5664 = vmatprep.subr.mxu0 0.0
  %5665 = vmatpush2.msra.mxu0 0.0
  %5666 = vmatprep.subr.mxu0 0.0
  %5667 = vmatpush2.msra.mxu0 0.0
  %5668 = vmatprep.subr.mxu0 0.0
  %5669 = vmatpush2.msra.mxu0 0.0
  %5670 = vmatprep.subr.mxu0 0.0
  %5671 = vmatpush2.msra.mxu0 0.0
  %5672 = vmatprep.subr.mxu0 0.0
  %5673 = vmatpush2.msra.mxu0 0.0
  %5674 = vmatprep.subr.mxu0 0.0
  %5675 = vmatpush2.msra.mxu0 0.0
  %5676 = vmatprep.subr.mxu0 0.0
  %5677 = vmatpush2.msra.mxu0 0.0
  %5678 = vmatprep.subr.mxu0 0.0
  %5679 = vmatpush2.msra.mxu0 0.0
  %5680 = vmatprep.subr.mxu0 0.0
  %5681 = vmatpush2.msra.mxu0 0.0
  %5682 = vmatprep.subr.mxu0 0.0
  %5683 = vmatpush2.msra.mxu0 0.0
  %5684 = vmatprep.subr.mxu0 0.0
  %5685 = vmatpush2.msra.mxu0 0.0
  %5686 = vmatprep.subr.mxu0 0.0
  %5687 = vmatpush2.msra.mxu0 0.0
  %5688 = vmatprep.subr.mxu0 0.0
  %5689 = vmatpush2.msra.mxu0 0.0
  %5690 = vmatprep.subr.mxu0 0.0
  %5691 = vmatpush2.msra.mxu0 0.0
  %5692 = vmatprep.subr.mxu0 0.0
  %5693 = vmatpush2.msra.mxu0 0.0
  %5694 = vmatprep.mubr.f32.mxu0 0.0
  %5695 = vmatmul.mubr.f32.gmra.mxu0 %v5557
  %v5696 = vpop.f32.mrf.mxu0
  %v5697 = vadd.f32 0.0, %v5696
  %v5698 = vpop.f32.mrf.mxu0
  %v5699 = vadd.f32 0.0, %v5698
  %5700 = vdwg.mxu0
  %5701 = vmatprep.subr.mxu0 0.0
  %5702 = vmatpush1.msra.mxu0 0.0
  %5703 = vmatprep.subr.mxu0 0.0
  %5704 = vmatpush1.msra.mxu0 0.0
  %5705 = vmatprep.subr.mxu0 0.0
  %5706 = vmatpush1.msra.mxu0 0.0
  %5707 = vmatprep.subr.mxu0 0.0
  %5708 = vmatpush1.msra.mxu0 0.0
  %5709 = vmatprep.subr.mxu0 0.0
  %5710 = vmatpush1.msra.mxu0 0.0
  %5711 = vmatprep.subr.mxu0 0.0
  %5712 = vmatpush1.msra.mxu0 0.0
  %5713 = vmatprep.subr.mxu0 0.0
  %5714 = vmatpush1.msra.mxu0 0.0
  %5715 = vmatprep.subr.mxu0 0.0
  %5716 = vmatpush1.msra.mxu0 0.0
  %5717 = vmatprep.subr.mxu0 0.0
  %5718 = vmatpush1.msra.mxu0 0.0
  %5719 = vmatprep.subr.mxu0 0.0
  %5720 = vmatpush1.msra.mxu0 0.0
  %5721 = vmatprep.subr.mxu0 0.0
  %5722 = vmatpush1.msra.mxu0 0.0
  %5723 = vmatprep.subr.mxu0 0.0
  %5724 = vmatpush1.msra.mxu0 0.0
  %5725 = vmatprep.subr.mxu0 0.0
  %5726 = vmatpush1.msra.mxu0 0.0
  %5727 = vmatprep.subr.mxu0 0.0
  %5728 = vmatpush1.msra.mxu0 0.0
  %5729 = vmatprep.subr.mxu0 0.0
  %5730 = vmatpush1.msra.mxu0 0.0
  %5731 = vmatprep.subr.mxu0 %v5035
  %5732 = vmatpush1.msra.mxu0 %v5034
  %5733 = vmatprep.subr.mxu0 0.0
  %5734 = vmatpush2.msra.mxu0 0.0
  %5735 = vmatprep.subr.mxu0 0.0
  %5736 = vmatpush2.msra.mxu0 0.0
  %5737 = vmatprep.subr.mxu0 0.0
  %5738 = vmatpush2.msra.mxu0 0.0
  %5739 = vmatprep.subr.mxu0 0.0
  %5740 = vmatpush2.msra.mxu0 0.0
  %5741 = vmatprep.subr.mxu0 0.0
  %5742 = vmatpush2.msra.mxu0 0.0
  %5743 = vmatprep.subr.mxu0 0.0
  %5744 = vmatpush2.msra.mxu0 0.0
  %5745 = vmatprep.subr.mxu0 0.0
  %5746 = vmatpush2.msra.mxu0 0.0
  %5747 = vmatprep.subr.mxu0 0.0
  %5748 = vmatpush2.msra.mxu0 0.0
  %5749 = vmatprep.subr.mxu0 0.0
  %5750 = vmatpush2.msra.mxu0 0.0
  %5751 = vmatprep.subr.mxu0 0.0
  %5752 = vmatpush2.msra.mxu0 0.0
  %5753 = vmatprep.subr.mxu0 0.0
  %5754 = vmatpush2.msra.mxu0 0.0
  %5755 = vmatprep.subr.mxu0 0.0
  %5756 = vmatpush2.msra.mxu0 0.0
  %5757 = vmatprep.subr.mxu0 0.0
  %5758 = vmatpush2.msra.mxu0 0.0
  %5759 = vmatprep.subr.mxu0 0.0
  %5760 = vmatpush2.msra.mxu0 0.0
  %5761 = vmatprep.subr.mxu0 0.0
  %5762 = vmatpush2.msra.mxu0 0.0
  %5763 = vmatprep.subr.mxu0 0.0
  %5764 = vmatpush2.msra.mxu0 0.0
  %5765 = vmatprep.mubr.f32.mxu0 0.0
  %5766 = vmatmul.mubr.f32.gmra.mxu0 %v5557
  %v5767 = vpop.f32.mrf.mxu0
  %v5768 = vadd.f32 0.0, %v5767
  %v5769 = vpop.f32.mrf.mxu0
  %v5770 = vadd.f32 0.0, %v5769
  %5771 = vdwg.mxu0
  %5772 = vmatprep.subr.mxu0 0.0
  %5773 = vmatpush1.msra.mxu0 0.0
  %5774 = vmatprep.subr.mxu0 0.0
  %5775 = vmatpush1.msra.mxu0 0.0
  %5776 = vmatprep.subr.mxu0 0.0
  %5777 = vmatpush1.msra.mxu0 0.0
  %5778 = vmatprep.subr.mxu0 0.0
  %5779 = vmatpush1.msra.mxu0 0.0
  %5780 = vmatprep.subr.mxu0 0.0
  %5781 = vmatpush1.msra.mxu0 0.0
  %5782 = vmatprep.subr.mxu0 0.0
  %5783 = vmatpush1.msra.mxu0 0.0
  %5784 = vmatprep.subr.mxu0 0.0
  %5785 = vmatpush1.msra.mxu0 0.0
  %5786 = vmatprep.subr.mxu0 0.0
  %5787 = vmatpush1.msra.mxu0 0.0
  %5788 = vmatprep.subr.mxu0 0.0
  %5789 = vmatpush1.msra.mxu0 0.0
  %5790 = vmatprep.subr.mxu0 0.0
  %5791 = vmatpush1.msra.mxu0 0.0
  %5792 = vmatprep.subr.mxu0 0.0
  %5793 = vmatpush1.msra.mxu0 0.0
  %5794 = vmatprep.subr.mxu0 0.0
  %5795 = vmatpush1.msra.mxu0 0.0
  %5796 = vmatprep.subr.mxu0 0.0
  %5797 = vmatpush1.msra.mxu0 0.0
  %5798 = vmatprep.subr.mxu0 0.0
  %5799 = vmatpush1.msra.mxu0 0.0
  %5800 = vmatprep.subr.mxu0 0.0
  %5801 = vmatpush1.msra.mxu0 0.0
  %5802 = vmatprep.subr.mxu0 %v5037
  %5803 = vmatpush1.msra.mxu0 %v5036
  %5804 = vmatprep.subr.mxu0 0.0
  %5805 = vmatpush2.msra.mxu0 0.0
  %5806 = vmatprep.subr.mxu0 0.0
  %5807 = vmatpush2.msra.mxu0 0.0
  %5808 = vmatprep.subr.mxu0 0.0
  %5809 = vmatpush2.msra.mxu0 0.0
  %5810 = vmatprep.subr.mxu0 0.0
  %5811 = vmatpush2.msra.mxu0 0.0
  %5812 = vmatprep.subr.mxu0 0.0
  %5813 = vmatpush2.msra.mxu0 0.0
  %5814 = vmatprep.subr.mxu0 0.0
  %5815 = vmatpush2.msra.mxu0 0.0
  %5816 = vmatprep.subr.mxu0 0.0
  %5817 = vmatpush2.msra.mxu0 0.0
  %5818 = vmatprep.subr.mxu0 0.0
  %5819 = vmatpush2.msra.mxu0 0.0
  %5820 = vmatprep.subr.mxu0 0.0
  %5821 = vmatpush2.msra.mxu0 0.0
  %5822 = vmatprep.subr.mxu0 0.0
  %5823 = vmatpush2.msra.mxu0 0.0
  %5824 = vmatprep.subr.mxu0 0.0
  %5825 = vmatpush2.msra.mxu0 0.0
  %5826 = vmatprep.subr.mxu0 0.0
  %5827 = vmatpush2.msra.mxu0 0.0
  %5828 = vmatprep.subr.mxu0 0.0
  %5829 = vmatpush2.msra.mxu0 0.0
  %5830 = vmatprep.subr.mxu0 0.0
  %5831 = vmatpush2.msra.mxu0 0.0
  %5832 = vmatprep.subr.mxu0 0.0
  %5833 = vmatpush2.msra.mxu0 0.0
  %5834 = vmatprep.subr.mxu0 0.0
  %5835 = vmatpush2.msra.mxu0 0.0
  %5836 = vmatprep.mubr.f32.mxu0 0.0
  %5837 = vmatmul.mubr.f32.gmra.mxu0 %v5557
  %v5838 = vpop.f32.mrf.mxu0
  %v5839 = vadd.f32 0.0, %v5838
  %v5840 = vpop.f32.mrf.mxu0
  %v5841 = vadd.f32 0.0, %v5840
  %5842 = vdwg.mxu0
  %5843 = vmatprep.subr.mxu0 0.0
  %5844 = vmatpush1.msra.mxu0 0.0
  %5845 = vmatprep.subr.mxu0 0.0
  %5846 = vmatpush1.msra.mxu0 0.0
  %5847 = vmatprep.subr.mxu0 0.0
  %5848 = vmatpush1.msra.mxu0 0.0
  %5849 = vmatprep.subr.mxu0 0.0
  %5850 = vmatpush1.msra.mxu0 0.0
  %5851 = vmatprep.subr.mxu0 0.0
  %5852 = vmatpush1.msra.mxu0 0.0
  %5853 = vmatprep.subr.mxu0 0.0
  %5854 = vmatpush1.msra.mxu0 0.0
  %5855 = vmatprep.subr.mxu0 0.0
  %5856 = vmatpush1.msra.mxu0 0.0
  %5857 = vmatprep.subr.mxu0 0.0
  %5858 = vmatpush1.msra.mxu0 0.0
  %5859 = vmatprep.subr.mxu0 0.0
  %5860 = vmatpush1.msra.mxu0 0.0
  %5861 = vmatprep.subr.mxu0 0.0
  %5862 = vmatpush1.msra.mxu0 0.0
  %5863 = vmatprep.subr.mxu0 0.0
  %5864 = vmatpush1.msra.mxu0 0.0
  %5865 = vmatprep.subr.mxu0 0.0
  %5866 = vmatpush1.msra.mxu0 0.0
  %5867 = vmatprep.subr.mxu0 0.0
  %5868 = vmatpush1.msra.mxu0 0.0
  %5869 = vmatprep.subr.mxu0 0.0
  %5870 = vmatpush1.msra.mxu0 0.0
  %5871 = vmatprep.subr.mxu0 0.0
  %5872 = vmatpush1.msra.mxu0 0.0
  %5873 = vmatprep.subr.mxu0 %v5039
  %5874 = vmatpush1.msra.mxu0 %v5038
  %5875 = vmatprep.subr.mxu0 0.0
  %5876 = vmatpush2.msra.mxu0 0.0
  %5877 = vmatprep.subr.mxu0 0.0
  %5878 = vmatpush2.msra.mxu0 0.0
  %5879 = vmatprep.subr.mxu0 0.0
  %5880 = vmatpush2.msra.mxu0 0.0
  %5881 = vmatprep.subr.mxu0 0.0
  %5882 = vmatpush2.msra.mxu0 0.0
  %5883 = vmatprep.subr.mxu0 0.0
  %5884 = vmatpush2.msra.mxu0 0.0
  %5885 = vmatprep.subr.mxu0 0.0
  %5886 = vmatpush2.msra.mxu0 0.0
  %5887 = vmatprep.subr.mxu0 0.0
  %5888 = vmatpush2.msra.mxu0 0.0
  %5889 = vmatprep.subr.mxu0 0.0
  %5890 = vmatpush2.msra.mxu0 0.0
  %5891 = vmatprep.subr.mxu0 0.0
  %5892 = vmatpush2.msra.mxu0 0.0
  %5893 = vmatprep.subr.mxu0 0.0
  %5894 = vmatpush2.msra.mxu0 0.0
  %5895 = vmatprep.subr.mxu0 0.0
  %5896 = vmatpush2.msra.mxu0 0.0
  %5897 = vmatprep.subr.mxu0 0.0
  %5898 = vmatpush2.msra.mxu0 0.0
  %5899 = vmatprep.subr.mxu0 0.0
  %5900 = vmatpush2.msra.mxu0 0.0
  %5901 = vmatprep.subr.mxu0 0.0
  %5902 = vmatpush2.msra.mxu0 0.0
  %5903 = vmatprep.subr.mxu0 0.0
  %5904 = vmatpush2.msra.mxu0 0.0
  %5905 = vmatprep.subr.mxu0 0.0
  %5906 = vmatpush2.msra.mxu0 0.0
  %5907 = vmatprep.mubr.f32.mxu0 0.0
  %5908 = vmatmul.mubr.f32.gmra.mxu0 %v5557
  %v5909 = vpop.f32.mrf.mxu0
  %v5910 = vadd.f32 0.0, %v5909
  %v5911 = vpop.f32.mrf.mxu0
  %v5912 = vadd.f32 0.0, %v5911
  %5913 = vdwg.mxu0
  %5914 = vmatprep.subr.mxu0 0.0
  %5915 = vmatpush1.msra.mxu0 0.0
  %5916 = vmatprep.subr.mxu0 0.0
  %5917 = vmatpush1.msra.mxu0 0.0
  %5918 = vmatprep.subr.mxu0 0.0
  %5919 = vmatpush1.msra.mxu0 0.0
  %5920 = vmatprep.subr.mxu0 0.0
  %5921 = vmatpush1.msra.mxu0 0.0
  %5922 = vmatprep.subr.mxu0 0.0
  %5923 = vmatpush1.msra.mxu0 0.0
  %5924 = vmatprep.subr.mxu0 0.0
  %5925 = vmatpush1.msra.mxu0 0.0
  %5926 = vmatprep.subr.mxu0 0.0
  %5927 = vmatpush1.msra.mxu0 0.0
  %5928 = vmatprep.subr.mxu0 0.0
  %5929 = vmatpush1.msra.mxu0 0.0
  %5930 = vmatprep.subr.mxu0 0.0
  %5931 = vmatpush1.msra.mxu0 0.0
  %5932 = vmatprep.subr.mxu0 0.0
  %5933 = vmatpush1.msra.mxu0 0.0
  %5934 = vmatprep.subr.mxu0 0.0
  %5935 = vmatpush1.msra.mxu0 0.0
  %5936 = vmatprep.subr.mxu0 0.0
  %5937 = vmatpush1.msra.mxu0 0.0
  %5938 = vmatprep.subr.mxu0 0.0
  %5939 = vmatpush1.msra.mxu0 0.0
  %5940 = vmatprep.subr.mxu0 0.0
  %5941 = vmatpush1.msra.mxu0 0.0
  %5942 = vmatprep.subr.mxu0 0.0
  %5943 = vmatpush1.msra.mxu0 0.0
  %5944 = vmatprep.subr.mxu0 %v5041
  %5945 = vmatpush1.msra.mxu0 %v5040
  %5946 = vmatprep.subr.mxu0 0.0
  %5947 = vmatpush2.msra.mxu0 0.0
  %5948 = vmatprep.subr.mxu0 0.0
  %5949 = vmatpush2.msra.mxu0 0.0
  %5950 = vmatprep.subr.mxu0 0.0
  %5951 = vmatpush2.msra.mxu0 0.0
  %5952 = vmatprep.subr.mxu0 0.0
  %5953 = vmatpush2.msra.mxu0 0.0
  %5954 = vmatprep.subr.mxu0 0.0
  %5955 = vmatpush2.msra.mxu0 0.0
  %5956 = vmatprep.subr.mxu0 0.0
  %5957 = vmatpush2.msra.mxu0 0.0
  %5958 = vmatprep.subr.mxu0 0.0
  %5959 = vmatpush2.msra.mxu0 0.0
  %5960 = vmatprep.subr.mxu0 0.0
  %5961 = vmatpush2.msra.mxu0 0.0
  %5962 = vmatprep.subr.mxu0 0.0
  %5963 = vmatpush2.msra.mxu0 0.0
  %5964 = vmatprep.subr.mxu0 0.0
  %5965 = vmatpush2.msra.mxu0 0.0
  %5966 = vmatprep.subr.mxu0 0.0
  %5967 = vmatpush2.msra.mxu0 0.0
  %5968 = vmatprep.subr.mxu0 0.0
  %5969 = vmatpush2.msra.mxu0 0.0
  %5970 = vmatprep.subr.mxu0 0.0
  %5971 = vmatpush2.msra.mxu0 0.0
  %5972 = vmatprep.subr.mxu0 0.0
  %5973 = vmatpush2.msra.mxu0 0.0
  %5974 = vmatprep.subr.mxu0 0.0
  %5975 = vmatpush2.msra.mxu0 0.0
  %5976 = vmatprep.subr.mxu0 0.0
  %5977 = vmatpush2.msra.mxu0 0.0
  %5978 = vmatprep.mubr.f32.mxu0 0.0
  %5979 = vmatmul.mubr.f32.gmra.mxu0 %v5557
  %v5980 = vpop.f32.mrf.mxu0
  %v5981 = vadd.f32 0.0, %v5980
  %v5982 = vpop.f32.mrf.mxu0
  %v5983 = vadd.f32 0.0, %v5982
  %5984 = vdwg.mxu0
  %5985 = vmatprep.subr.mxu0 0.0
  %5986 = vmatpush1.msra.mxu0 0.0
  %5987 = vmatprep.subr.mxu0 0.0
  %5988 = vmatpush1.msra.mxu0 0.0
  %5989 = vmatprep.subr.mxu0 0.0
  %5990 = vmatpush1.msra.mxu0 0.0
  %5991 = vmatprep.subr.mxu0 0.0
  %5992 = vmatpush1.msra.mxu0 0.0
  %5993 = vmatprep.subr.mxu0 0.0
  %5994 = vmatpush1.msra.mxu0 0.0
  %5995 = vmatprep.subr.mxu0 0.0
  %5996 = vmatpush1.msra.mxu0 0.0
  %5997 = vmatprep.subr.mxu0 0.0
  %5998 = vmatpush1.msra.mxu0 0.0
  %5999 = vmatprep.subr.mxu0 0.0
  %6000 = vmatpush1.msra.mxu0 0.0
  %6001 = vmatprep.subr.mxu0 0.0
  %6002 = vmatpush1.msra.mxu0 0.0
  %6003 = vmatprep.subr.mxu0 0.0
  %6004 = vmatpush1.msra.mxu0 0.0
  %6005 = vmatprep.subr.mxu0 0.0
  %6006 = vmatpush1.msra.mxu0 0.0
  %6007 = vmatprep.subr.mxu0 0.0
  %6008 = vmatpush1.msra.mxu0 0.0
  %6009 = vmatprep.subr.mxu0 0.0
  %6010 = vmatpush1.msra.mxu0 0.0
  %6011 = vmatprep.subr.mxu0 0.0
  %6012 = vmatpush1.msra.mxu0 0.0
  %6013 = vmatprep.subr.mxu0 0.0
  %6014 = vmatpush1.msra.mxu0 0.0
  %6015 = vmatprep.subr.mxu0 0.0
  %6016 = vmatpush1.msra.mxu0 %v5042
  %6017 = vmatprep.subr.mxu0 0.0
  %6018 = vmatpush2.msra.mxu0 0.0
  %6019 = vmatprep.subr.mxu0 0.0
  %6020 = vmatpush2.msra.mxu0 0.0
  %6021 = vmatprep.subr.mxu0 0.0
  %6022 = vmatpush2.msra.mxu0 0.0
  %6023 = vmatprep.subr.mxu0 0.0
  %6024 = vmatpush2.msra.mxu0 0.0
  %6025 = vmatprep.subr.mxu0 0.0
  %6026 = vmatpush2.msra.mxu0 0.0
  %6027 = vmatprep.subr.mxu0 0.0
  %6028 = vmatpush2.msra.mxu0 0.0
  %6029 = vmatprep.subr.mxu0 0.0
  %6030 = vmatpush2.msra.mxu0 0.0
  %6031 = vmatprep.subr.mxu0 0.0
  %6032 = vmatpush2.msra.mxu0 0.0
  %6033 = vmatprep.subr.mxu0 0.0
  %6034 = vmatpush2.msra.mxu0 0.0
  %6035 = vmatprep.subr.mxu0 0.0
  %6036 = vmatpush2.msra.mxu0 0.0
  %6037 = vmatprep.subr.mxu0 0.0
  %6038 = vmatpush2.msra.mxu0 0.0
  %6039 = vmatprep.subr.mxu0 0.0
  %6040 = vmatpush2.msra.mxu0 0.0
  %6041 = vmatprep.subr.mxu0 0.0
  %6042 = vmatpush2.msra.mxu0 0.0
  %6043 = vmatprep.subr.mxu0 0.0
  %6044 = vmatpush2.msra.mxu0 0.0
  %6045 = vmatprep.subr.mxu0 0.0
  %6046 = vmatpush2.msra.mxu0 0.0
  %6047 = vmatprep.subr.mxu0 0.0
  %6048 = vmatpush2.msra.mxu0 0.0
  %6049 = vmatprep.mubr.f32.mxu0 0.0
  %6050 = vmatmul.mubr.f32.gmra.mxu0 %v5557
  %v6051 = vpop.f32.mrf.mxu0
  %v6052 = vadd.f32 0.0, %v6051
  %v6053 = vpop.f32.mrf.mxu0
  %6054 = vdwg.mxu0
  %v6055 = vadd.f32 %v5543, %v5626
  %v6056 = vadd.f32 %v5544, %v5628
  %v6057 = vadd.f32 %v5545, %v5697
  %v6058 = vadd.f32 %v5546, %v5699
  %v6059 = vadd.f32 %v5547, %v5768
  %v6060 = vadd.f32 %v5548, %v5770
  %v6061 = vadd.f32 %v5549, %v5839
  %v6062 = vadd.f32 %v5550, %v5841
  %v6063 = vadd.f32 %v5551, %v5910
  %v6064 = vadd.f32 %v5552, %v5912
  %v6065 = vadd.f32 %v5553, %v5981
  %v6066 = vadd.f32 %v5554, %v5983
  %v6067 = vadd.f32 %v5555, %v6052
  %v6068 = vmax.f32 %v6055, 0.0
  %v6069 = vmax.f32 %v6056, 0.0
  %v6070 = vmax.f32 %v6057, 0.0
  %v6071 = vmax.f32 %v6058, 0.0
  %v6072 = vmax.f32 %v6059, 0.0
  %v6073 = vmax.f32 %v6060, 0.0
  %v6074 = vmax.f32 %v6061, 0.0
  %v6075 = vmax.f32 %v6062, 0.0
  %v6076 = vmax.f32 %v6063, 0.0
  %v6077 = vmax.f32 %v6064, 0.0
  %v6078 = vmax.f32 %v6065, 0.0
  %v6079 = vmax.f32 %v6066, 0.0
  %v6080 = vmax.f32 %v6067, 0.0
  %v6081 = vld [vmem:[%s7] sm:$0xff]
  %v6082 = vld [vmem:[%s7 + $0x8] sm:$0xff]
  %v6083 = vld [vmem:[%s7 + $0x10] sm:$0xff]
  %v6084 = vld [vmem:[%s7 + $0x18] sm:$0xff]
  %v6085 = vld [vmem:[%s7 + $0x20] sm:$0xff]
  %v6086 = vld [vmem:[%s7 + $0x28] sm:$0xff]
  %v6087 = vld [vmem:[%s7 + $0x30] sm:$0xff]
  %v6088 = vld [vmem:[%s7 + $0x38] sm:$0xff]
  %v6089 = vld [vmem:[%s7 + $0x40] sm:$0xff]
  %v6090 = vld [vmem:[%s7 + $0x48] sm:$0xff]
  %v6091 = vld [vmem:[%s7 + $0x50] sm:$0xff]
  %v6092 = vld [vmem:[%s7 + $0x58] sm:$0xff]
  %v6093 = vld [vmem:[%s7 + $0x60] sm:$0xff]
  %v6094 = vld [vmem:[%s7 + $0x68] sm:$0xff]
  %v6095 = vld [vmem:[%s7 + $0x70] sm:$0xff]
  %v6096 = vld [vmem:[%s7 + $0x78] sm:$0xff]
  %v6097 = vld [vmem:[%s7 + $0x80] sm:$0xff]
  %v6098 = vld [vmem:[%s7 + $0x88] sm:$0xff]
  %v6099 = vld [vmem:[%s7 + $0x90] sm:$0xff]
  %v6100 = vld [vmem:[%s7 + $0x98] sm:$0xff]
  %v6101 = vld [vmem:[%s7 + $0xa0] sm:$0xff]
  %v6102 = vld [vmem:[%s7 + $0xa8] sm:$0xff]
  %v6103 = vld [vmem:[%s7 + $0xb0] sm:$0xff]
  %v6104 = vld [vmem:[%s7 + $0xb8] sm:$0xff]
  %v6105 = vld [vmem:[%s7 + $0xc0] sm:$0xff]
  %v6106 = vld [vmem:[%s7 + $0xc8] sm:$0xff]
  %v6107 = vld [vmem:[%s7 + $0xd0] sm:$0xff]
  %v6108 = vld [vmem:[%s7 + $0xd8] sm:$0xff]
  %v6109 = vld [vmem:[%s7 + $0xe0] sm:$0xff]
  %v6110 = vld [vmem:[%s7 + $0xe8] sm:$0xff]
  %v6111 = vld [vmem:[%s7 + $0xf0] sm:$0xff]
  %v6112 = vld [vmem:[%s7 + $0xf8] sm:$0xff]
  %v6113 = vld [vmem:[%s7 + $0x100] sm:$0xff]
  %v6114 = vld [vmem:[%s7 + $0x108] sm:$0xff]
  %v6115 = vld [vmem:[%s7 + $0x110] sm:$0xff]
  %v6116 = vld [vmem:[%s7 + $0x118] sm:$0xff]
  %v6117 = vld [vmem:[%s7 + $0x120] sm:$0xff]
  %v6118 = vld [vmem:[%s7 + $0x128] sm:$0xff]
  %v6119 = vld [vmem:[%s7 + $0x130] sm:$0xff]
  %v6120 = vld [vmem:[%s7 + $0x138] sm:$0xff]
  %v6121 = vld [vmem:[%s7 + $0x140] sm:$0xff]
  %v6122 = vld [vmem:[%s7 + $0x148] sm:$0xff]
  %v6123 = vld [vmem:[%s7 + $0x150] sm:$0xff]
  %v6124 = vld [vmem:[%s7 + $0x158] sm:$0xff]
  %v6125 = vld [vmem:[%s7 + $0x160] sm:$0xff]
  %v6126 = vld [vmem:[%s7 + $0x168] sm:$0xff]
  %v6127 = vld [vmem:[%s7 + $0x170] sm:$0xff]
  %v6128 = vld [vmem:[%s7 + $0x178] sm:$0xff]
  %v6129 = vld [vmem:[%s7 + $0x180] sm:$0xff]
  %v6130 = vld [vmem:[%s7 + $0x188] sm:$0xff]
  %v6131 = vld [vmem:[%s7 + $0x190] sm:$0xff]
  %v6132 = vld [vmem:[%s7 + $0x198] sm:$0xff]
  %v6133 = vld [vmem:[%s7 + $0x1a0] sm:$0xff]
  %v6134 = vld [vmem:[%s7 + $0x1a8] sm:$0xff]
  %v6135 = vld [vmem:[%s7 + $0x1b0] sm:$0xff]
  %v6136 = vld [vmem:[%s7 + $0x1b8] sm:$0xff]
  %v6137 = vld [vmem:[%s7 + $0x1c0] sm:$0xff]
  %v6138 = vld [vmem:[%s7 + $0x1c8] sm:$0xff]
  %v6139 = vld [vmem:[%s7 + $0x1d0] sm:$0xff]
  %v6140 = vld [vmem:[%s7 + $0x1d8] sm:$0xff]
  %v6141 = vld [vmem:[%s7 + $0x1e0] sm:$0xff]
  %v6142 = vld [vmem:[%s7 + $0x1e8] sm:$0xff]
  %v6143 = vld [vmem:[%s7 + $0x1f0] sm:$0xff]
  %v6144 = vld [vmem:[%s7 + $0x1f8] sm:$0xff]
  %v6145 = vld [vmem:[%s7 + $0x200] sm:$0xff]
  %v6146 = vld [vmem:[%s7 + $0x208] sm:$0xff]
  %v6147 = vld [vmem:[%s7 + $0x210] sm:$0xff]
  %v6148 = vld [vmem:[%s7 + $0x218] sm:$0xff]
  %v6149 = vld [vmem:[%s7 + $0x220] sm:$0xff]
  %v6150 = vld [vmem:[%s7 + $0x228] sm:$0xff]
  %v6151 = vld [vmem:[%s7 + $0x230] sm:$0xff]
  %v6152 = vld [vmem:[%s7 + $0x238] sm:$0xff]
  %v6153 = vld [vmem:[%s7 + $0x240] sm:$0xff]
  %v6154 = vld [vmem:[%s7 + $0x248] sm:$0xff]
  %v6155 = vld [vmem:[%s7 + $0x250] sm:$0xff]
  %v6156 = vld [vmem:[%s7 + $0x258] sm:$0xff]
  %v6157 = vld [vmem:[%s7 + $0x260] sm:$0xff]
  %v6158 = vld [vmem:[%s7 + $0x268] sm:$0xff]
  %v6159 = vld [vmem:[%s7 + $0x270] sm:$0xff]
  %v6160 = vld [vmem:[%s7 + $0x278] sm:$0xff]
  %v6161 = vld [vmem:[%s7 + $0x280] sm:$0xff]
  %v6162 = vld [vmem:[%s7 + $0x288] sm:$0xff]
  %v6163 = vld [vmem:[%s7 + $0x290] sm:$0xff]
  %v6164 = vld [vmem:[%s7 + $0x298] sm:$0xff]
  %v6165 = vld [vmem:[%s7 + $0x2a0] sm:$0xff]
  %v6166 = vld [vmem:[%s7 + $0x2a8] sm:$0xff]
  %v6167 = vld [vmem:[%s7 + $0x2b0] sm:$0xff]
  %v6168 = vld [vmem:[%s7 + $0x2b8] sm:$0xff]
  %v6169 = vld [vmem:[%s7 + $0x2c0] sm:$0xff]
  %v6170 = vld [vmem:[%s7 + $0x2c8] sm:$0xff]
  %v6171 = vld [vmem:[%s7 + $0x2d0] sm:$0xff]
  %v6172 = vld [vmem:[%s7 + $0x2d8] sm:$0xff]
  %v6173 = vld [vmem:[%s7 + $0x2e0] sm:$0xff]
  %v6174 = vld [vmem:[%s7 + $0x2e8] sm:$0xff]
  %v6175 = vld [vmem:[%s7 + $0x2f0] sm:$0xff]
  %v6176 = vld [vmem:[%s7 + $0x2f8] sm:$0xff]
  %v6177 = vld [vmem:[%s7 + $0x300] sm:$0xff]
  %v6178 = vld [vmem:[%s7 + $0x308] sm:$0xff]
  %v6179 = vld [vmem:[%s7 + $0x310] sm:$0xff]
  %v6180 = vld [vmem:[%s7 + $0x318] sm:$0xff]
  %v6181 = vld [vmem:[%s7 + $0x320] sm:$0xff]
  %v6182 = vld [vmem:[%s7 + $0x328] sm:$0xff]
  %v6183 = vld [vmem:[%s7 + $0x330] sm:$0xff]
  %v6184 = vld [vmem:[%s7 + $0x338] sm:$0xff]
  %v6185 = vld [vmem:[%s7 + $0x340] sm:$0xff]
  %v6186 = vld [vmem:[%s7 + $0x348] sm:$0xff]
  %v6187 = vld [vmem:[%s7 + $0x350] sm:$0xff]
  %v6188 = vld [vmem:[%s7 + $0x358] sm:$0xff]
  %v6189 = vld [vmem:[%s7 + $0x360] sm:$0xff]
  %v6190 = vld [vmem:[%s7 + $0x368] sm:$0xff]
  %v6191 = vld [vmem:[%s7 + $0x370] sm:$0xff]
  %v6192 = vld [vmem:[%s7 + $0x378] sm:$0xff]
  %v6193 = vld [vmem:[%s7 + $0x380] sm:$0xff]
  %v6194 = vld [vmem:[%s7 + $0x388] sm:$0xff]
  %v6195 = vld [vmem:[%s7 + $0x390] sm:$0xff]
  %v6196 = vld [vmem:[%s7 + $0x398] sm:$0xff]
  %v6197 = vld [vmem:[%s7 + $0x3a0] sm:$0xff]
  %v6198 = vld [vmem:[%s7 + $0x3a8] sm:$0xff]
  %v6199 = vld [vmem:[%s7 + $0x3b0] sm:$0xff]
  %v6200 = vld [vmem:[%s7 + $0x3b8] sm:$0xff]
  %v6201 = vld [vmem:[%s7 + $0x3c0] sm:$0xff]
  %v6202 = vld [vmem:[%s7 + $0x3c8] sm:$0xff]
  %v6203 = vld [vmem:[%s7 + $0x3d0] sm:$0xff]
  %v6204 = vld [vmem:[%s7 + $0x3d8] sm:$0xff]
  %v6205 = vld [vmem:[%s7 + $0x3e0] sm:$0xff]
  %v6206 = vld [vmem:[%s7 + $0x3e8] sm:$0xff]
  %v6207 = vld [vmem:[%s7 + $0x3f0] sm:$0xff]
  %v6208 = vld [vmem:[%s7 + $0x3f8] sm:$0xff]
  %v6209 = vld [vmem:[%s7 + $0x400] sm:$0xff]
  %v6210 = vld [vmem:[%s7 + $0x408] sm:$0xff]
  %v6211 = vld [vmem:[%s7 + $0x410] sm:$0xff]
  %v6212 = vld [vmem:[%s7 + $0x418] sm:$0xff]
  %v6213 = vld [vmem:[%s7 + $0x420] sm:$0xff]
  %v6214 = vld [vmem:[%s7 + $0x428] sm:$0xff]
  %v6215 = vld [vmem:[%s7 + $0x430] sm:$0xff]
  %v6216 = vld [vmem:[%s7 + $0x438] sm:$0xff]
  %v6217 = vld [vmem:[%s7 + $0x440] sm:$0xff]
  %v6218 = vld [vmem:[%s7 + $0x448] sm:$0xff]
  %v6219 = vld [vmem:[%s7 + $0x450] sm:$0xff]
  %v6220 = vld [vmem:[%s7 + $0x458] sm:$0xff]
  %v6221 = vld [vmem:[%s7 + $0x460] sm:$0xff]
  %v6222 = vld [vmem:[%s7 + $0x468] sm:$0xff]
  %v6223 = vld [vmem:[%s7 + $0x470] sm:$0xff]
  %v6224 = vld [vmem:[%s7 + $0x478] sm:$0xff]
  %v6225 = vld [vmem:[%s7 + $0x480] sm:$0xff]
  %v6226 = vld [vmem:[%s7 + $0x488] sm:$0xff]
  %v6227 = vld [vmem:[%s7 + $0x490] sm:$0xff]
  %v6228 = vld [vmem:[%s7 + $0x498] sm:$0xff]
  %v6229 = vld [vmem:[%s7 + $0x4a0] sm:$0xff]
  %v6230 = vld [vmem:[%s7 + $0x4a8] sm:$0xff]
  %v6231 = vld [vmem:[%s7 + $0x4b0] sm:$0xff]
  %v6232 = vld [vmem:[%s7 + $0x4b8] sm:$0xff]
  %v6233 = vld [vmem:[%s7 + $0x4c0] sm:$0xff]
  %v6234 = vld [vmem:[%s7 + $0x4c8] sm:$0xff]
  %v6235 = vld [vmem:[%s7 + $0x4d0] sm:$0xff]
  %v6236 = vld [vmem:[%s7 + $0x4d8] sm:$0xff]
  %v6237 = vld [vmem:[%s7 + $0x4e0] sm:$0xff]
  %v6238 = vld [vmem:[%s7 + $0x4e8] sm:$0xff]
  %v6239 = vld [vmem:[%s7 + $0x4f0] sm:$0xff]
  %v6240 = vld [vmem:[%s7 + $0x4f8] sm:$0xff]
  %v6241 = vld [vmem:[%s7 + $0x500] sm:$0xff]
  %v6242 = vld [vmem:[%s7 + $0x508] sm:$0xff]
  %v6243 = vld [vmem:[%s7 + $0x510] sm:$0xff]
  %v6244 = vld [vmem:[%s7 + $0x518] sm:$0xff]
  %v6245 = vld [vmem:[%s7 + $0x520] sm:$0xff]
  %v6246 = vld [vmem:[%s7 + $0x528] sm:$0xff]
  %v6247 = vld [vmem:[%s7 + $0x530] sm:$0xff]
  %v6248 = vld [vmem:[%s7 + $0x538] sm:$0xff]
  %v6249 = vld [vmem:[%s7 + $0x540] sm:$0xff]
  %v6250 = vld [vmem:[%s7 + $0x548] sm:$0xff]
  %v6251 = vld [vmem:[%s7 + $0x550] sm:$0xff]
  %v6252 = vld [vmem:[%s7 + $0x558] sm:$0xff]
  %v6253 = vld [vmem:[%s7 + $0x560] sm:$0xff]
  %v6254 = vld [vmem:[%s7 + $0x568] sm:$0xff]
  %v6255 = vld [vmem:[%s7 + $0x570] sm:$0xff]
  %v6256 = vld [vmem:[%s7 + $0x578] sm:$0xff]
  %v6257 = vld [vmem:[%s7 + $0x580] sm:$0xff]
  %v6258 = vld [vmem:[%s7 + $0x588] sm:$0xff]
  %v6259 = vld [vmem:[%s7 + $0x590] sm:$0xff]
  %v6260 = vld [vmem:[%s7 + $0x598] sm:$0xff]
  %v6261 = vld [vmem:[%s7 + $0x5a0] sm:$0xff]
  %v6262 = vld [vmem:[%s7 + $0x5a8] sm:$0xff]
  %v6263 = vld [vmem:[%s7 + $0x5b0] sm:$0xff]
  %v6264 = vld [vmem:[%s7 + $0x5b8] sm:$0xff]
  %v6265 = vld [vmem:[%s7 + $0x5c0] sm:$0xff]
  %v6266 = vld [vmem:[%s7 + $0x5c8] sm:$0xff]
  %v6267 = vld [vmem:[%s7 + $0x5d0] sm:$0xff]
  %v6268 = vld [vmem:[%s7 + $0x5d8] sm:$0xff]
  %v6269 = vld [vmem:[%s7 + $0x5e0] sm:$0xff]
  %v6270 = vld [vmem:[%s7 + $0x5e8] sm:$0xff]
  %v6271 = vld [vmem:[%s7 + $0x5f0] sm:$0xff]
  %v6272 = vld [vmem:[%s7 + $0x5f8] sm:$0xff]
  %v6273 = vld [vmem:[%s7 + $0x600] sm:$0xff]
  %v6274 = vld [vmem:[%s7 + $0x608] sm:$0xff]
  %v6275 = vld [vmem:[%s7 + $0x610] sm:$0xff]
  %v6276 = vld [vmem:[%s7 + $0x618] sm:$0xff]
  %v6277 = vld [vmem:[%s7 + $0x620] sm:$0xff]
  %v6278 = vld [vmem:[%s7 + $0x628] sm:$0xff]
  %v6279 = vld [vmem:[%s7 + $0x630] sm:$0xff]
  %v6280 = vld [vmem:[%s7 + $0x638] sm:$0xff]
  %v6281 = vld [vmem:[%s7 + $0x640] sm:$0xff]
  %v6282 = vld [vmem:[%s7 + $0x648] sm:$0xff]
  %v6283 = vld [vmem:[%s7 + $0x650] sm:$0xff]
  %v6284 = vld [vmem:[%s7 + $0x658] sm:$0xff]
  %v6285 = vld [vmem:[%s7 + $0x660] sm:$0xff]
  %v6286 = vld [vmem:[%s7 + $0x668] sm:$0xff]
  %v6287 = vld [vmem:[%s7 + $0x670] sm:$0xff]
  %v6288 = vld [vmem:[%s7 + $0x678] sm:$0xff]
  %v6289 = vld [vmem:[%s7 + $0x680] sm:$0xff]
  %v6290 = vld [vmem:[%s7 + $0x688] sm:$0xff]
  %v6291 = vld [vmem:[%s7 + $0x690] sm:$0xff]
  %v6292 = vld [vmem:[%s7 + $0x698] sm:$0xff]
  %v6293 = vld [vmem:[%s7 + $0x6a0] sm:$0xff]
  %v6294 = vld [vmem:[%s7 + $0x6a8] sm:$0xff]
  %v6295 = vld [vmem:[%s7 + $0x6b0] sm:$0xff]
  %v6296 = vld [vmem:[%s7 + $0x6b8] sm:$0xff]
  %v6297 = vld [vmem:[%s7 + $0x6c0] sm:$0xff]
  %v6298 = vld [vmem:[%s7 + $0x6c8] sm:$0xff]
  %v6299 = vld [vmem:[%s7 + $0x6d0] sm:$0xff]
  %v6300 = vld [vmem:[%s7 + $0x6d8] sm:$0xff]
  %v6301 = vld [vmem:[%s7 + $0x6e0] sm:$0xff]
  %v6302 = vld [vmem:[%s7 + $0x6e8] sm:$0xff]
  %v6303 = vld [vmem:[%s7 + $0x6f0] sm:$0xff]
  %v6304 = vld [vmem:[%s7 + $0x6f8] sm:$0xff]
  %v6305 = vld [vmem:[%s7 + $0x700] sm:$0xff]
  %v6306 = vld [vmem:[%s7 + $0x708] sm:$0xff]
  %v6307 = vld [vmem:[%s7 + $0x710] sm:$0xff]
  %v6308 = vld [vmem:[%s7 + $0x718] sm:$0xff]
  %v6309 = vld [vmem:[%s7 + $0x720] sm:$0xff]
  %v6310 = vld [vmem:[%s7 + $0x728] sm:$0xff]
  %v6311 = vld [vmem:[%s7 + $0x730] sm:$0xff]
  %v6312 = vld [vmem:[%s7 + $0x738] sm:$0xff]
  %v6313 = vld [vmem:[%s7 + $0x740] sm:$0xff]
  %v6314 = vld [vmem:[%s7 + $0x748] sm:$0xff]
  %v6315 = vld [vmem:[%s7 + $0x750] sm:$0xff]
  %v6316 = vld [vmem:[%s7 + $0x758] sm:$0xff]
  %v6317 = vld [vmem:[%s7 + $0x760] sm:$0xff]
  %v6318 = vld [vmem:[%s7 + $0x768] sm:$0xff]
  %v6319 = vld [vmem:[%s7 + $0x770] sm:$0xff]
  %v6320 = vld [vmem:[%s7 + $0x778] sm:$0xff]
  %v6321 = vld [vmem:[%s7 + $0x780] sm:$0xff]
  %v6322 = vld [vmem:[%s7 + $0x788] sm:$0xff]
  %v6323 = vld [vmem:[%s7 + $0x790] sm:$0xff]
  %v6324 = vld [vmem:[%s7 + $0x798] sm:$0xff]
  %v6325 = vld [vmem:[%s7 + $0x7a0] sm:$0xff]
  %v6326 = vld [vmem:[%s7 + $0x7a8] sm:$0xff]
  %v6327 = vld [vmem:[%s7 + $0x7b0] sm:$0xff]
  %v6328 = vld [vmem:[%s7 + $0x7b8] sm:$0xff]
  %v6329 = vld [vmem:[%s7 + $0x7c0] sm:$0xff]
  %v6330 = vld [vmem:[%s7 + $0x7c8] sm:$0xff]
  %v6331 = vld [vmem:[%s7 + $0x7d0] sm:$0xff]
  %v6332 = vld [vmem:[%s7 + $0x7d8] sm:$0xff]
  %v6333 = vld [vmem:[%s7 + $0x7e0] sm:$0xff]
  %v6334 = vld [vmem:[%s7 + $0x7e8] sm:$0xff]
  %v6335 = vld [vmem:[%s7 + $0x7f0] sm:$0xff]
  %v6336 = vld [vmem:[%s7 + $0x7f8] sm:$0xff]
  %v6337 = vld [vmem:[%s7 + $0x800] sm:$0xff]
  %v6338 = vld [vmem:[%s7 + $0x808] sm:$0xff]
  %v6339 = vld [vmem:[%s7 + $0x810] sm:$0xff]
  %v6340 = vld [vmem:[%s7 + $0x818] sm:$0xff]
  %v6341 = vld [vmem:[%s7 + $0x820] sm:$0xff]
  %v6342 = vld [vmem:[%s7 + $0x828] sm:$0xff]
  %v6343 = vld [vmem:[%s7 + $0x830] sm:$0xff]
  %v6344 = vld [vmem:[%s7 + $0x838] sm:$0xff]
  %v6345 = vld [vmem:[%s7 + $0x840] sm:$0xff]
  %v6346 = vld [vmem:[%s7 + $0x848] sm:$0xff]
  %v6347 = vld [vmem:[%s7 + $0x850] sm:$0xff]
  %v6348 = vld [vmem:[%s7 + $0x858] sm:$0xff]
  %v6349 = vld [vmem:[%s7 + $0x860] sm:$0xff]
  %v6350 = vld [vmem:[%s7 + $0x868] sm:$0xff]
  %v6351 = vld [vmem:[%s7 + $0x870] sm:$0xff]
  %v6352 = vld [vmem:[%s7 + $0x878] sm:$0xff]
  %v6353 = vld [vmem:[%s7 + $0x880] sm:$0xff]
  %v6354 = vld [vmem:[%s7 + $0x888] sm:$0xff]
  %v6355 = vld [vmem:[%s7 + $0x890] sm:$0xff]
  %v6356 = vld [vmem:[%s7 + $0x898] sm:$0xff]
  %v6357 = vld [vmem:[%s7 + $0x8a0] sm:$0xff]
  %v6358 = vld [vmem:[%s7 + $0x8a8] sm:$0xff]
  %v6359 = vld [vmem:[%s7 + $0x8b0] sm:$0xff]
  %v6360 = vld [vmem:[%s7 + $0x8b8] sm:$0xff]
  %v6361 = vld [vmem:[%s7 + $0x8c0] sm:$0xff]
  %v6362 = vld [vmem:[%s7 + $0x8c8] sm:$0xff]
  %v6363 = vld [vmem:[%s7 + $0x8d0] sm:$0xff]
  %v6364 = vld [vmem:[%s7 + $0x8d8] sm:$0xff]
  %v6365 = vld [vmem:[%s7 + $0x8e0] sm:$0xff]
  %v6366 = vld [vmem:[%s7 + $0x8e8] sm:$0xff]
  %v6367 = vld [vmem:[%s7 + $0x8f0] sm:$0xff]
  %v6368 = vld [vmem:[%s7 + $0x8f8] sm:$0xff]
  %v6369 = vld [vmem:[%s7 + $0x900] sm:$0xff]
  %v6370 = vld [vmem:[%s7 + $0x908] sm:$0xff]
  %v6371 = vld [vmem:[%s7 + $0x910] sm:$0xff]
  %v6372 = vld [vmem:[%s7 + $0x918] sm:$0xff]
  %v6373 = vld [vmem:[%s7 + $0x920] sm:$0xff]
  %v6374 = vld [vmem:[%s7 + $0x928] sm:$0xff]
  %v6375 = vld [vmem:[%s7 + $0x930] sm:$0xff]
  %v6376 = vld [vmem:[%s7 + $0x938] sm:$0xff]
  %v6377 = vld [vmem:[%s7 + $0x940] sm:$0xff]
  %v6378 = vld [vmem:[%s7 + $0x948] sm:$0xff]
  %v6379 = vld [vmem:[%s7 + $0x950] sm:$0xff]
  %v6380 = vld [vmem:[%s7 + $0x958] sm:$0xff]
  %v6381 = vld [vmem:[%s7 + $0x960] sm:$0xff]
  %v6382 = vld [vmem:[%s7 + $0x968] sm:$0xff]
  %v6383 = vld [vmem:[%s7 + $0x970] sm:$0xff]
  %v6384 = vld [vmem:[%s7 + $0x978] sm:$0xff]
  %v6385 = vld [vmem:[%s7 + $0x980] sm:$0xff]
  %v6386 = vld [vmem:[%s7 + $0x988] sm:$0xff]
  %v6387 = vld [vmem:[%s7 + $0x990] sm:$0xff]
  %v6388 = vld [vmem:[%s7 + $0x998] sm:$0xff]
  %v6389 = vld [vmem:[%s7 + $0x9a0] sm:$0xff]
  %v6390 = vld [vmem:[%s7 + $0x9a8] sm:$0xff]
  %v6391 = vld [vmem:[%s7 + $0x9b0] sm:$0xff]
  %v6392 = vld [vmem:[%s7 + $0x9b8] sm:$0xff]
  %v6393 = vld [vmem:[%s7 + $0x9c0] sm:$0xff]
  %v6394 = vld [vmem:[%s7 + $0x9c8] sm:$0xff]
  %v6395 = vld [vmem:[%s7 + $0x9d0] sm:$0xff]
  %v6396 = vld [vmem:[%s7 + $0x9d8] sm:$0xff]
  %v6397 = vld [vmem:[%s7 + $0x9e0] sm:$0xff]
  %v6398 = vld [vmem:[%s7 + $0x9e8] sm:$0xff]
  %v6399 = vld [vmem:[%s7 + $0x9f0] sm:$0xff]
  %v6400 = vld [vmem:[%s7 + $0x9f8] sm:$0xff]
  %v6401 = vld [vmem:[%s7 + $0xa00] sm:$0xff]
  %v6402 = vld [vmem:[%s7 + $0xa08] sm:$0xff]
  %v6403 = vld [vmem:[%s7 + $0xa10] sm:$0xff]
  %v6404 = vld [vmem:[%s7 + $0xa18] sm:$0xff]
  %v6405 = vld [vmem:[%s7 + $0xa20] sm:$0xff]
  %v6406 = vld [vmem:[%s7 + $0xa28] sm:$0xff]
  %v6407 = vld [vmem:[%s7 + $0xa30] sm:$0xff]
  %v6408 = vld [vmem:[%s7 + $0xa38] sm:$0xff]
  %v6409 = vld [vmem:[%s7 + $0xa40] sm:$0xff]
  %v6410 = vld [vmem:[%s7 + $0xa48] sm:$0xff]
  %v6411 = vld [vmem:[%s7 + $0xa50] sm:$0xff]
  %v6412 = vld [vmem:[%s7 + $0xa58] sm:$0xff]
  %v6413 = vld [vmem:[%s7 + $0xa60] sm:$0xff]
  %v6414 = vld [vmem:[%s7 + $0xa68] sm:$0xff]
  %v6415 = vld [vmem:[%s7 + $0xa70] sm:$0xff]
  %v6416 = vld [vmem:[%s7 + $0xa78] sm:$0xff]
  %v6417 = vld [vmem:[%s7 + $0xa80] sm:$0xff]
  %v6418 = vld [vmem:[%s7 + $0xa88] sm:$0xff]
  %v6419 = vld [vmem:[%s7 + $0xa90] sm:$0xff]
  %v6420 = vld [vmem:[%s7 + $0xa98] sm:$0xff]
  %v6421 = vld [vmem:[%s7 + $0xaa0] sm:$0xff]
  %v6422 = vld [vmem:[%s7 + $0xaa8] sm:$0xff]
  %v6423 = vld [vmem:[%s7 + $0xab0] sm:$0xff]
  %v6424 = vld [vmem:[%s7 + $0xab8] sm:$0xff]
  %v6425 = vld [vmem:[%s7 + $0xac0] sm:$0xff]
  %v6426 = vld [vmem:[%s7 + $0xac8] sm:$0xff]
  %v6427 = vld [vmem:[%s7 + $0xad0] sm:$0xff]
  %v6428 = vld [vmem:[%s7 + $0xad8] sm:$0xff]
  %v6429 = vld [vmem:[%s7 + $0xae0] sm:$0xff]
  %v6430 = vld [vmem:[%s7 + $0xae8] sm:$0xff]
  %v6431 = vld [vmem:[%s7 + $0xaf0] sm:$0xff]
  %v6432 = vld [vmem:[%s7 + $0xaf8] sm:$0xff]
  %v6433 = vld [vmem:[%s7 + $0xb00] sm:$0xff]
  %v6434 = vld [vmem:[%s7 + $0xb08] sm:$0xff]
  %v6435 = vld [vmem:[%s7 + $0xb10] sm:$0xff]
  %v6436 = vld [vmem:[%s7 + $0xb18] sm:$0xff]
  %v6437 = vld [vmem:[%s7 + $0xb20] sm:$0xff]
  %v6438 = vld [vmem:[%s7 + $0xb28] sm:$0xff]
  %v6439 = vld [vmem:[%s7 + $0xb30] sm:$0xff]
  %v6440 = vld [vmem:[%s7 + $0xb38] sm:$0xff]
  %v6441 = vld [vmem:[%s7 + $0xb40] sm:$0xff]
  %v6442 = vld [vmem:[%s7 + $0xb48] sm:$0xff]
  %v6443 = vld [vmem:[%s7 + $0xb50] sm:$0xff]
  %v6444 = vld [vmem:[%s7 + $0xb58] sm:$0xff]
  %v6445 = vld [vmem:[%s7 + $0xb60] sm:$0xff]
  %v6446 = vld [vmem:[%s7 + $0xb68] sm:$0xff]
  %v6447 = vld [vmem:[%s7 + $0xb70] sm:$0xff]
  %v6448 = vld [vmem:[%s7 + $0xb78] sm:$0xff]
  %v6449 = vld [vmem:[%s7 + $0xb80] sm:$0xff]
  %v6450 = vld [vmem:[%s7 + $0xb88] sm:$0xff]
  %v6451 = vld [vmem:[%s7 + $0xb90] sm:$0xff]
  %v6452 = vld [vmem:[%s7 + $0xb98] sm:$0xff]
  %v6453 = vld [vmem:[%s7 + $0xba0] sm:$0xff]
  %v6454 = vld [vmem:[%s7 + $0xba8] sm:$0xff]
  %v6455 = vld [vmem:[%s7 + $0xbb0] sm:$0xff]
  %v6456 = vld [vmem:[%s7 + $0xbb8] sm:$0xff]
  %v6457 = vld [vmem:[%s7 + $0xbc0] sm:$0xff]
  %v6458 = vld [vmem:[%s7 + $0xbc8] sm:$0xff]
  %v6459 = vld [vmem:[%s7 + $0xbd0] sm:$0xff]
  %v6460 = vld [vmem:[%s7 + $0xbd8] sm:$0xff]
  %v6461 = vld [vmem:[%s7 + $0xbe0] sm:$0xff]
  %v6462 = vld [vmem:[%s7 + $0xbe8] sm:$0xff]
  %v6463 = vld [vmem:[%s7 + $0xbf0] sm:$0xff]
  %v6464 = vld [vmem:[%s7 + $0xbf8] sm:$0xff]
  %v6465 = vld [vmem:[%s7 + $0xc00] sm:$0xff]
  %v6466 = vld [vmem:[%s7 + $0xc08] sm:$0xff]
  %v6467 = vld [vmem:[%s7 + $0xc10] sm:$0xff]
  %v6468 = vld [vmem:[%s7 + $0xc18] sm:$0xff]
  %v6469 = vld [vmem:[%s7 + $0xc20] sm:$0xff]
  %v6470 = vld [vmem:[%s7 + $0xc28] sm:$0xff]
  %v6471 = vld [vmem:[%s7 + $0xc30] sm:$0xff]
  %v6472 = vld [vmem:[%s7 + $0xc38] sm:$0xff]
  %v6473 = vld [vmem:[%s7 + $0xc40] sm:$0xff]
  %v6474 = vld [vmem:[%s7 + $0xc48] sm:$0xff]
  %v6475 = vld [vmem:[%s7 + $0xc50] sm:$0xff]
  %v6476 = vld [vmem:[%s7 + $0xc58] sm:$0xff]
  %v6477 = vld [vmem:[%s7 + $0xc60] sm:$0xff]
  %v6478 = vld [vmem:[%s7 + $0xc68] sm:$0xff]
  %v6479 = vld [vmem:[%s7 + $0xc70] sm:$0xff]
  %v6480 = vld [vmem:[%s7 + $0xc78] sm:$0xff]
  %v6481 = vld [vmem:[%s7 + $0xc80] sm:$0xff]
  %v6482 = vld [vmem:[%s7 + $0xc88] sm:$0xff]
  %v6483 = vld [vmem:[%s7 + $0xc90] sm:$0xff]
  %v6484 = vld [vmem:[%s7 + $0xc98] sm:$0xff]
  %v6485 = vld [vmem:[%s7 + $0xca0] sm:$0xff]
  %v6486 = vld [vmem:[%s7 + $0xca8] sm:$0xff]
  %v6487 = vld [vmem:[%s7 + $0xcb0] sm:$0xff]
  %v6488 = vld [vmem:[%s7 + $0xcb8] sm:$0xff]
  %v6489 = vld [vmem:[%s7 + $0xcc0] sm:$0xff]
  %v6490 = vld [vmem:[%s7 + $0xcc8] sm:$0xff]
  %v6491 = vld [vmem:[%s7 + $0xcd0] sm:$0xff]
  %v6492 = vld [vmem:[%s7 + $0xcd8] sm:$0xff]
  %v6493 = vld [vmem:[%s7 + $0xce0] sm:$0xff]
  %v6494 = vld [vmem:[%s7 + $0xce8] sm:$0xff]
  %v6495 = vld [vmem:[%s7 + $0xcf0] sm:$0xff]
  %v6496 = vld [vmem:[%s7 + $0xcf8] sm:$0xff]
  %v6497 = vld [vmem:[%s7 + $0xd00] sm:$0xff]
  %v6498 = vld [vmem:[%s7 + $0xd08] sm:$0xff]
  %v6499 = vld [vmem:[%s7 + $0xd10] sm:$0xff]
  %v6500 = vld [vmem:[%s7 + $0xd18] sm:$0xff]
  %v6501 = vld [vmem:[%s7 + $0xd20] sm:$0xff]
  %v6502 = vld [vmem:[%s7 + $0xd28] sm:$0xff]
  %v6503 = vld [vmem:[%s7 + $0xd30] sm:$0xff]
  %v6504 = vld [vmem:[%s7 + $0xd38] sm:$0xff]
  %v6505 = vld [vmem:[%s7 + $0xd40] sm:$0xff]
  %v6506 = vld [vmem:[%s7 + $0xd48] sm:$0xff]
  %v6507 = vld [vmem:[%s7 + $0xd50] sm:$0xff]
  %v6508 = vld [vmem:[%s7 + $0xd58] sm:$0xff]
  %v6509 = vld [vmem:[%s7 + $0xd60] sm:$0xff]
  %v6510 = vld [vmem:[%s7 + $0xd68] sm:$0xff]
  %v6511 = vld [vmem:[%s7 + $0xd70] sm:$0xff]
  %v6512 = vld [vmem:[%s7 + $0xd78] sm:$0xff]
  %v6513 = vld [vmem:[%s7 + $0xd80] sm:$0xff]
  %v6514 = vld [vmem:[%s7 + $0xd88] sm:$0xff]
  %v6515 = vld [vmem:[%s7 + $0xd90] sm:$0xff]
  %v6516 = vld [vmem:[%s7 + $0xd98] sm:$0xff]
  %v6517 = vld [vmem:[%s7 + $0xda0] sm:$0xff]
  %v6518 = vld [vmem:[%s7 + $0xda8] sm:$0xff]
  %v6519 = vld [vmem:[%s7 + $0xdb0] sm:$0xff]
  %v6520 = vld [vmem:[%s7 + $0xdb8] sm:$0xff]
  %v6521 = vld [vmem:[%s7 + $0xdc0] sm:$0xff]
  %v6522 = vld [vmem:[%s7 + $0xdc8] sm:$0xff]
  %v6523 = vld [vmem:[%s7 + $0xdd0] sm:$0xff]
  %v6524 = vld [vmem:[%s7 + $0xdd8] sm:$0xff]
  %v6525 = vld [vmem:[%s7 + $0xde0] sm:$0xff]
  %v6526 = vld [vmem:[%s7 + $0xde8] sm:$0xff]
  %v6527 = vld [vmem:[%s7 + $0xdf0] sm:$0xff]
  %v6528 = vld [vmem:[%s7 + $0xdf8] sm:$0xff]
  %v6529 = vld [vmem:[%s7 + $0xe00] sm:$0xff]
  %v6530 = vld [vmem:[%s7 + $0xe08] sm:$0xff]
  %v6531 = vld [vmem:[%s7 + $0xe10] sm:$0xff]
  %v6532 = vld [vmem:[%s7 + $0xe18] sm:$0xff]
  %v6533 = vld [vmem:[%s7 + $0xe20] sm:$0xff]
  %v6534 = vld [vmem:[%s7 + $0xe28] sm:$0xff]
  %v6535 = vld [vmem:[%s7 + $0xe30] sm:$0xff]
  %v6536 = vld [vmem:[%s7 + $0xe38] sm:$0xff]
  %v6537 = vld [vmem:[%s7 + $0xe40] sm:$0xff]
  %v6538 = vld [vmem:[%s7 + $0xe48] sm:$0xff]
  %v6539 = vld [vmem:[%s7 + $0xe50] sm:$0xff]
  %v6540 = vld [vmem:[%s7 + $0xe58] sm:$0xff]
  %v6541 = vld [vmem:[%s7 + $0xe60] sm:$0xff]
  %v6542 = vld [vmem:[%s7 + $0xe68] sm:$0xff]
  %v6543 = vld [vmem:[%s7 + $0xe70] sm:$0xff]
  %v6544 = vld [vmem:[%s7 + $0xe78] sm:$0xff]
  %v6545 = vld [vmem:[%s7 + $0xe80] sm:$0xff]
  %v6546 = vld [vmem:[%s7 + $0xe88] sm:$0xff]
  %v6547 = vld [vmem:[%s7 + $0xe90] sm:$0xff]
  %v6548 = vld [vmem:[%s7 + $0xe98] sm:$0xff]
  %v6549 = vld [vmem:[%s7 + $0xea0] sm:$0xff]
  %v6550 = vld [vmem:[%s7 + $0xea8] sm:$0xff]
  %v6551 = vld [vmem:[%s7 + $0xeb0] sm:$0xff]
  %v6552 = vld [vmem:[%s7 + $0xeb8] sm:$0xff]
  %v6553 = vld [vmem:[%s7 + $0xec0] sm:$0xff]
  %v6554 = vld [vmem:[%s7 + $0xec8] sm:$0xff]
  %v6555 = vld [vmem:[%s7 + $0xed0] sm:$0xff]
  %v6556 = vld [vmem:[%s7 + $0xed8] sm:$0xff]
  %v6557 = vld [vmem:[%s7 + $0xee0] sm:$0xff]
  %v6558 = vld [vmem:[%s7 + $0xee8] sm:$0xff]
  %v6559 = vld [vmem:[%s7 + $0xef0] sm:$0xff]
  %v6560 = vld [vmem:[%s7 + $0xef8] sm:$0xff]
  %v6561 = vld [vmem:[%s7 + $0xf00] sm:$0xff]
  %v6562 = vld [vmem:[%s7 + $0xf08] sm:$0xff]
  %v6563 = vld [vmem:[%s7 + $0xf10] sm:$0xff]
  %v6564 = vld [vmem:[%s7 + $0xf18] sm:$0xff]
  %v6565 = vld [vmem:[%s7 + $0xf20] sm:$0xff]
  %v6566 = vld [vmem:[%s7 + $0xf28] sm:$0xff]
  %v6567 = vld [vmem:[%s7 + $0xf30] sm:$0xff]
  %v6568 = vld [vmem:[%s7 + $0xf38] sm:$0xff]
  %v6569 = vld [vmem:[%s7 + $0xf40] sm:$0xff]
  %v6570 = vld [vmem:[%s7 + $0xf48] sm:$0xff]
  %v6571 = vld [vmem:[%s7 + $0xf50] sm:$0xff]
  %v6572 = vld [vmem:[%s7 + $0xf58] sm:$0xff]
  %v6573 = vld [vmem:[%s7 + $0xf60] sm:$0xff]
  %v6574 = vld [vmem:[%s7 + $0xf68] sm:$0xff]
  %v6575 = vld [vmem:[%s7 + $0xf70] sm:$0xff]
  %v6576 = vld [vmem:[%s7 + $0xf78] sm:$0xff]
  %v6577 = vld [vmem:[%s7 + $0xf80] sm:$0xff]
  %v6578 = vld [vmem:[%s7 + $0xf88] sm:$0xff]
  %v6579 = vld [vmem:[%s7 + $0xf90] sm:$0xff]
  %v6580 = vld [vmem:[%s7 + $0xf98] sm:$0xff]
  %v6581 = vld [vmem:[%s7 + $0xfa0] sm:$0xff]
  %v6582 = vld [vmem:[%s7 + $0xfa8] sm:$0xff]
  %v6583 = vld [vmem:[%s7 + $0xfb0] sm:$0xff]
  %v6584 = vld [vmem:[%s7 + $0xfb8] sm:$0xff]
  %v6585 = vld [vmem:[%s7 + $0xfc0] sm:$0xff]
  %v6586 = vld [vmem:[%s7 + $0xfc8] sm:$0xff]
  %v6587 = vld [vmem:[%s7 + $0xfd0] sm:$0xff]
  %v6588 = vld [vmem:[%s7 + $0xfd8] sm:$0xff]
  %v6589 = vld [vmem:[%s7 + $0xfe0] sm:$0xff]
  %v6590 = vld [vmem:[%s7 + $0xfe8] sm:$0xff]
  %v6591 = vld [vmem:[%s7 + $0xff0] sm:$0xff]
  %v6592 = vld [vmem:[%s7 + $0xff8] sm:$0xff]
  %v6593 = vld [vmem:[%s7 + $0x1000] sm:$0xff]
  %v6594 = vld [vmem:[%s7 + $0x1008] sm:$0xff]
  %v6595 = vld [vmem:[%s7 + $0x1010] sm:$0xff]
  %v6596 = vld [vmem:[%s7 + $0x1018] sm:$0xff]
  %v6597 = vld [vmem:[%s7 + $0x1020] sm:$0xff]
  %v6598 = vld [vmem:[%s7 + $0x1028] sm:$0xff]
  %v6599 = vld [vmem:[%s7 + $0x1030] sm:$0xff]
  %v6600 = vld [vmem:[%s7 + $0x1038] sm:$0xff]
  %v6601 = vld [vmem:[%s7 + $0x1040] sm:$0xff]
  %v6602 = vld [vmem:[%s7 + $0x1048] sm:$0xff]
  %v6603 = vld [vmem:[%s7 + $0x1050] sm:$0xff]
  %v6604 = vld [vmem:[%s7 + $0x1058] sm:$0xff]
  %v6605 = vld [vmem:[%s7 + $0x1060] sm:$0xff]
  %v6606 = vld [vmem:[%s7 + $0x1068] sm:$0xff]
  %v6607 = vld [vmem:[%s7 + $0x1070] sm:$0xff]
  %v6608 = vld [vmem:[%s7 + $0x1078] sm:$0xff]
  %v6609 = vld [vmem:[%s7 + $0x1080] sm:$0xff]
  %v6610 = vld [vmem:[%s7 + $0x1088] sm:$0xff]
  %v6611 = vld [vmem:[%s7 + $0x1090] sm:$0xff]
  %v6612 = vld [vmem:[%s7 + $0x1098] sm:$0xff]
  %v6613 = vld [vmem:[%s7 + $0x10a0] sm:$0xff]
  %v6614 = vld [vmem:[%s7 + $0x10a8] sm:$0xff]
  %v6615 = vld [vmem:[%s7 + $0x10b0] sm:$0xff]
  %v6616 = vld [vmem:[%s7 + $0x10b8] sm:$0xff]
  %v6617 = vld [vmem:[%s7 + $0x10c0] sm:$0xff]
  %v6618 = vld [vmem:[%s7 + $0x10c8] sm:$0xff]
  %v6619 = vld [vmem:[%s7 + $0x10d0] sm:$0xff]
  %v6620 = vld [vmem:[%s7 + $0x10d8] sm:$0xff]
  %v6621 = vld [vmem:[%s7 + $0x10e0] sm:$0xff]
  %v6622 = vld [vmem:[%s7 + $0x10e8] sm:$0xff]
  %v6623 = vld [vmem:[%s7 + $0x10f0] sm:$0xff]
  %v6624 = vld [vmem:[%s7 + $0x10f8] sm:$0xff]
  %v6625 = vld [vmem:[%s7 + $0x1100] sm:$0xff]
  %v6626 = vld [vmem:[%s7 + $0x1108] sm:$0xff]
  %v6627 = vld [vmem:[%s7 + $0x1110] sm:$0xff]
  %v6628 = vld [vmem:[%s7 + $0x1118] sm:$0xff]
  %v6629 = vld [vmem:[%s7 + $0x1120] sm:$0xff]
  %v6630 = vld [vmem:[%s7 + $0x1128] sm:$0xff]
  %v6631 = vld [vmem:[%s7 + $0x1130] sm:$0xff]
  %v6632 = vld [vmem:[%s7 + $0x1138] sm:$0xff]
  %v6633 = vld [vmem:[%s7 + $0x1140] sm:$0xff]
  %v6634 = vld [vmem:[%s7 + $0x1148] sm:$0xff]
  %v6635 = vld [vmem:[%s7 + $0x1150] sm:$0xff]
  %v6636 = vld [vmem:[%s7 + $0x1158] sm:$0xff]
  %v6637 = vld [vmem:[%s7 + $0x1160] sm:$0xff]
  %v6638 = vld [vmem:[%s7 + $0x1168] sm:$0xff]
  %v6639 = vld [vmem:[%s7 + $0x1170] sm:$0xff]
  %v6640 = vld [vmem:[%s7 + $0x1178] sm:$0xff]
  %v6641 = vld [vmem:[%s7 + $0x1180] sm:$0xff]
  %v6642 = vld [vmem:[%s7 + $0x1188] sm:$0xff]
  %v6643 = vld [vmem:[%s7 + $0x1190] sm:$0xff]
  %v6644 = vld [vmem:[%s7 + $0x1198] sm:$0xff]
  %v6645 = vld [vmem:[%s7 + $0x11a0] sm:$0xff]
  %v6646 = vld [vmem:[%s7 + $0x11a8] sm:$0xff]
  %v6647 = vld [vmem:[%s7 + $0x11b0] sm:$0xff]
  %v6648 = vld [vmem:[%s7 + $0x11b8] sm:$0xff]
  %v6649 = vld [vmem:[%s7 + $0x11c0] sm:$0xff]
  %v6650 = vld [vmem:[%s7 + $0x11c8] sm:$0xff]
  %v6651 = vld [vmem:[%s7 + $0x11d0] sm:$0xff]
  %v6652 = vld [vmem:[%s7 + $0x11d8] sm:$0xff]
  %v6653 = vld [vmem:[%s7 + $0x11e0] sm:$0xff]
  %v6654 = vld [vmem:[%s7 + $0x11e8] sm:$0xff]
  %v6655 = vld [vmem:[%s7 + $0x11f0] sm:$0xff]
  %v6656 = vld [vmem:[%s7 + $0x11f8] sm:$0xff]
  %v6657 = vld [vmem:[%s7 + $0x1200] sm:$0xff]
  %v6658 = vld [vmem:[%s7 + $0x1208] sm:$0xff]
  %v6659 = vld [vmem:[%s7 + $0x1210] sm:$0xff]
  %v6660 = vld [vmem:[%s7 + $0x1218] sm:$0xff]
  %v6661 = vld [vmem:[%s7 + $0x1220] sm:$0xff]
  %v6662 = vld [vmem:[%s7 + $0x1228] sm:$0xff]
  %v6663 = vld [vmem:[%s7 + $0x1230] sm:$0xff]
  %v6664 = vld [vmem:[%s7 + $0x1238] sm:$0xff]
  %v6665 = vld [vmem:[%s7 + $0x1240] sm:$0xff]
  %v6666 = vld [vmem:[%s7 + $0x1248] sm:$0xff]
  %v6667 = vld [vmem:[%s7 + $0x1250] sm:$0xff]
  %v6668 = vld [vmem:[%s7 + $0x1258] sm:$0xff]
  %v6669 = vld [vmem:[%s7 + $0x1260] sm:$0xff]
  %v6670 = vld [vmem:[%s7 + $0x1268] sm:$0xff]
  %v6671 = vld [vmem:[%s7 + $0x1270] sm:$0xff]
  %v6672 = vld [vmem:[%s7 + $0x1278] sm:$0xff]
  %v6673 = vld [vmem:[%s7 + $0x1280] sm:$0xff]
  %v6674 = vld [vmem:[%s7 + $0x1288] sm:$0xff]
  %v6675 = vld [vmem:[%s7 + $0x1290] sm:$0xff]
  %v6676 = vld [vmem:[%s7 + $0x1298] sm:$0xff]
  %v6677 = vld [vmem:[%s7 + $0x12a0] sm:$0xff]
  %v6678 = vld [vmem:[%s7 + $0x12a8] sm:$0xff]
  %v6679 = vld [vmem:[%s7 + $0x12b0] sm:$0xff]
  %v6680 = vld [vmem:[%s7 + $0x12b8] sm:$0xff]
  %v6681 = vld [vmem:[%s7 + $0x12c0] sm:$0xff]
  %v6682 = vld [vmem:[%s7 + $0x12c8] sm:$0xff]
  %v6683 = vld [vmem:[%s7 + $0x12d0] sm:$0xff]
  %v6684 = vld [vmem:[%s7 + $0x12d8] sm:$0xff]
  %v6685 = vld [vmem:[%s7 + $0x12e0] sm:$0xff]
  %v6686 = vld [vmem:[%s7 + $0x12e8] sm:$0xff]
  %v6687 = vld [vmem:[%s7 + $0x12f0] sm:$0xff]
  %v6688 = vld [vmem:[%s7 + $0x12f8] sm:$0xff]
  %v6689 = vld [vmem:[%s7 + $0x1300] sm:$0xff]
  %v6690 = vld [vmem:[%s7 + $0x1308] sm:$0xff]
  %v6691 = vld [vmem:[%s7 + $0x1310] sm:$0xff]
  %v6692 = vld [vmem:[%s7 + $0x1318] sm:$0xff]
  %v6693 = vld [vmem:[%s7 + $0x1320] sm:$0xff]
  %v6694 = vld [vmem:[%s7 + $0x1328] sm:$0xff]
  %v6695 = vld [vmem:[%s7 + $0x1330] sm:$0xff]
  %v6696 = vld [vmem:[%s7 + $0x1338] sm:$0xff]
  %v6697 = vld [vmem:[%s7 + $0x1340] sm:$0xff]
  %v6698 = vld [vmem:[%s7 + $0x1348] sm:$0xff]
  %v6699 = vld [vmem:[%s7 + $0x1350] sm:$0xff]
  %v6700 = vld [vmem:[%s7 + $0x1358] sm:$0xff]
  %v6701 = vld [vmem:[%s7 + $0x1360] sm:$0xff]
  %v6702 = vld [vmem:[%s7 + $0x1368] sm:$0xff]
  %v6703 = vld [vmem:[%s7 + $0x1370] sm:$0xff]
  %v6704 = vld [vmem:[%s7 + $0x1378] sm:$0xff]
  %v6705 = vld [vmem:[%s7 + $0x1380] sm:$0xff]
  %v6706 = vld [vmem:[%s7 + $0x1388] sm:$0xff]
  %v6707 = vld [vmem:[%s7 + $0x1390] sm:$0xff]
  %v6708 = vld [vmem:[%s7 + $0x1398] sm:$0xff]
  %v6709 = vld [vmem:[%s7 + $0x13a0] sm:$0xff]
  %v6710 = vld [vmem:[%s7 + $0x13a8] sm:$0xff]
  %v6711 = vld [vmem:[%s7 + $0x13b0] sm:$0xff]
  %v6712 = vld [vmem:[%s7 + $0x13b8] sm:$0xff]
  %v6713 = vld [vmem:[%s7 + $0x13c0] sm:$0xff]
  %v6714 = vld [vmem:[%s7 + $0x13c8] sm:$0xff]
  %v6715 = vld [vmem:[%s7 + $0x13d0] sm:$0xff]
  %v6716 = vld [vmem:[%s7 + $0x13d8] sm:$0xff]
  %v6717 = vld [vmem:[%s7 + $0x13e0] sm:$0xff]
  %v6718 = vld [vmem:[%s7 + $0x13e8] sm:$0xff]
  %v6719 = vld [vmem:[%s7 + $0x13f0] sm:$0xff]
  %v6720 = vld [vmem:[%s7 + $0x13f8] sm:$0xff]
  %v6721 = vld [vmem:[%s7 + $0x1400] sm:$0xff]
  %v6722 = vld [vmem:[%s7 + $0x1408] sm:$0xff]
  %v6723 = vld [vmem:[%s7 + $0x1410] sm:$0xff]
  %v6724 = vld [vmem:[%s7 + $0x1418] sm:$0xff]
  %v6725 = vld [vmem:[%s7 + $0x1420] sm:$0xff]
  %v6726 = vld [vmem:[%s7 + $0x1428] sm:$0xff]
  %v6727 = vld [vmem:[%s7 + $0x1430] sm:$0xff]
  %v6728 = vld [vmem:[%s7 + $0x1438] sm:$0xff]
  %v6729 = vld [vmem:[%s7 + $0x1440] sm:$0xff]
  %v6730 = vld [vmem:[%s7 + $0x1448] sm:$0xff]
  %v6731 = vld [vmem:[%s7 + $0x1450] sm:$0xff]
  %v6732 = vld [vmem:[%s7 + $0x1458] sm:$0xff]
  %v6733 = vld [vmem:[%s7 + $0x1460] sm:$0xff]
  %v6734 = vld [vmem:[%s7 + $0x1468] sm:$0xff]
  %v6735 = vld [vmem:[%s7 + $0x1470] sm:$0xff]
  %v6736 = vld [vmem:[%s7 + $0x1478] sm:$0xff]
  %v6737 = vld [vmem:[%s7 + $0x1480] sm:$0xff]
  %v6738 = vld [vmem:[%s7 + $0x1488] sm:$0xff]
  %v6739 = vld [vmem:[%s7 + $0x1490] sm:$0xff]
  %v6740 = vld [vmem:[%s7 + $0x1498] sm:$0xff]
  %v6741 = vld [vmem:[%s7 + $0x14a0] sm:$0xff]
  %v6742 = vld [vmem:[%s7 + $0x14a8] sm:$0xff]
  %v6743 = vld [vmem:[%s7 + $0x14b0] sm:$0xff]
  %v6744 = vld [vmem:[%s7 + $0x14b8] sm:$0xff]
  %v6745 = vld [vmem:[%s7 + $0x14c0] sm:$0xff]
  %v6746 = vld [vmem:[%s7 + $0x14c8] sm:$0xff]
  %v6747 = vld [vmem:[%s7 + $0x14d0] sm:$0xff]
  %v6748 = vld [vmem:[%s7 + $0x14d8] sm:$0xff]
  %v6749 = vld [vmem:[%s7 + $0x14e0] sm:$0xff]
  %v6750 = vld [vmem:[%s7 + $0x14e8] sm:$0xff]
  %v6751 = vld [vmem:[%s7 + $0x14f0] sm:$0xff]
  %v6752 = vld [vmem:[%s7 + $0x14f8] sm:$0xff]
  %v6753 = vld [vmem:[%s7 + $0x1500] sm:$0xff]
  %v6754 = vld [vmem:[%s7 + $0x1508] sm:$0xff]
  %v6755 = vld [vmem:[%s7 + $0x1510] sm:$0xff]
  %v6756 = vld [vmem:[%s7 + $0x1518] sm:$0xff]
  %v6757 = vld [vmem:[%s7 + $0x1520] sm:$0xff]
  %v6758 = vld [vmem:[%s7 + $0x1528] sm:$0xff]
  %v6759 = vld [vmem:[%s7 + $0x1530] sm:$0xff]
  %v6760 = vld [vmem:[%s7 + $0x1538] sm:$0xff]
  %v6761 = vld [vmem:[%s7 + $0x1540] sm:$0xff]
  %v6762 = vld [vmem:[%s7 + $0x1548] sm:$0xff]
  %v6763 = vld [vmem:[%s7 + $0x1550] sm:$0xff]
  %v6764 = vld [vmem:[%s7 + $0x1558] sm:$0xff]
  %v6765 = vld [vmem:[%s7 + $0x1560] sm:$0xff]
  %v6766 = vld [vmem:[%s7 + $0x1568] sm:$0xff]
  %v6767 = vld [vmem:[%s7 + $0x1570] sm:$0xff]
  %v6768 = vld [vmem:[%s7 + $0x1578] sm:$0xff]
  %v6769 = vld [vmem:[%s7 + $0x1580] sm:$0xff]
  %v6770 = vld [vmem:[%s7 + $0x1588] sm:$0xff]
  %v6771 = vld [vmem:[%s7 + $0x1590] sm:$0xff]
  %v6772 = vld [vmem:[%s7 + $0x1598] sm:$0xff]
  %v6773 = vld [vmem:[%s7 + $0x15a0] sm:$0xff]
  %v6774 = vld [vmem:[%s7 + $0x15a8] sm:$0xff]
  %v6775 = vld [vmem:[%s7 + $0x15b0] sm:$0xff]
  %v6776 = vld [vmem:[%s7 + $0x15b8] sm:$0xff]
  %v6777 = vld [vmem:[%s7 + $0x15c0] sm:$0xff]
  %v6778 = vld [vmem:[%s7 + $0x15c8] sm:$0xff]
  %v6779 = vld [vmem:[%s7 + $0x15d0] sm:$0xff]
  %v6780 = vld [vmem:[%s7 + $0x15d8] sm:$0xff]
  %v6781 = vld [vmem:[%s7 + $0x15e0] sm:$0xff]
  %v6782 = vld [vmem:[%s7 + $0x15e8] sm:$0xff]
  %v6783 = vld [vmem:[%s7 + $0x15f0] sm:$0xff]
  %v6784 = vld [vmem:[%s7 + $0x15f8] sm:$0xff]
  %v6785 = vld [vmem:[%s7 + $0x1600] sm:$0xff]
  %v6786 = vld [vmem:[%s7 + $0x1608] sm:$0xff]
  %v6787 = vld [vmem:[%s7 + $0x1610] sm:$0xff]
  %v6788 = vld [vmem:[%s7 + $0x1618] sm:$0xff]
  %v6789 = vld [vmem:[%s7 + $0x1620] sm:$0xff]
  %v6790 = vld [vmem:[%s7 + $0x1628] sm:$0xff]
  %v6791 = vld [vmem:[%s7 + $0x1630] sm:$0xff]
  %v6792 = vld [vmem:[%s7 + $0x1638] sm:$0xff]
  %v6793 = vld [vmem:[%s7 + $0x1640] sm:$0xff]
  %v6794 = vld [vmem:[%s7 + $0x1648] sm:$0xff]
  %v6795 = vld [vmem:[%s7 + $0x1650] sm:$0xff]
  %v6796 = vld [vmem:[%s7 + $0x1658] sm:$0xff]
  %v6797 = vld [vmem:[%s7 + $0x1660] sm:$0xff]
  %v6798 = vld [vmem:[%s7 + $0x1668] sm:$0xff]
  %v6799 = vld [vmem:[%s7 + $0x1670] sm:$0xff]
  %v6800 = vld [vmem:[%s7 + $0x1678] sm:$0xff]
  %v6801 = vld [vmem:[%s7 + $0x1680] sm:$0xff]
  %v6802 = vld [vmem:[%s7 + $0x1688] sm:$0xff]
  %v6803 = vld [vmem:[%s7 + $0x1690] sm:$0xff]
  %v6804 = vld [vmem:[%s7 + $0x1698] sm:$0xff]
  %v6805 = vld [vmem:[%s7 + $0x16a0] sm:$0xff]
  %v6806 = vld [vmem:[%s7 + $0x16a8] sm:$0xff]
  %v6807 = vld [vmem:[%s7 + $0x16b0] sm:$0xff]
  %v6808 = vld [vmem:[%s7 + $0x16b8] sm:$0xff]
  %v6809 = vld [vmem:[%s7 + $0x16c0] sm:$0xff]
  %v6810 = vld [vmem:[%s7 + $0x16c8] sm:$0xff]
  %v6811 = vld [vmem:[%s7 + $0x16d0] sm:$0xff]
  %v6812 = vld [vmem:[%s7 + $0x16d8] sm:$0xff]
  %v6813 = vld [vmem:[%s7 + $0x16e0] sm:$0xff]
  %v6814 = vld [vmem:[%s7 + $0x16e8] sm:$0xff]
  %v6815 = vld [vmem:[%s7 + $0x16f0] sm:$0xff]
  %v6816 = vld [vmem:[%s7 + $0x16f8] sm:$0xff]
  %v6817 = vld [vmem:[%s7 + $0x1700] sm:$0xff]
  %v6818 = vld [vmem:[%s7 + $0x1708] sm:$0xff]
  %v6819 = vld [vmem:[%s7 + $0x1710] sm:$0xff]
  %v6820 = vld [vmem:[%s7 + $0x1718] sm:$0xff]
  %v6821 = vld [vmem:[%s7 + $0x1720] sm:$0xff]
  %v6822 = vld [vmem:[%s7 + $0x1728] sm:$0xff]
  %v6823 = vld [vmem:[%s7 + $0x1730] sm:$0xff]
  %v6824 = vld [vmem:[%s7 + $0x1738] sm:$0xff]
  %v6825 = vld [vmem:[%s7 + $0x1740] sm:$0xff]
  %v6826 = vld [vmem:[%s7 + $0x1748] sm:$0xff]
  %v6827 = vld [vmem:[%s7 + $0x1750] sm:$0xff]
  %v6828 = vld [vmem:[%s7 + $0x1758] sm:$0xff]
  %v6829 = vld [vmem:[%s7 + $0x1760] sm:$0xff]
  %v6830 = vld [vmem:[%s7 + $0x1768] sm:$0xff]
  %v6831 = vld [vmem:[%s7 + $0x1770] sm:$0xff]
  %v6832 = vld [vmem:[%s7 + $0x1778] sm:$0xff]
  %v6833 = vld [vmem:[%s7 + $0x1780] sm:$0xff]
  %v6834 = vld [vmem:[%s7 + $0x1788] sm:$0xff]
  %v6835 = vld [vmem:[%s7 + $0x1790] sm:$0xff]
  %v6836 = vld [vmem:[%s7 + $0x1798] sm:$0xff]
  %v6837 = vld [vmem:[%s7 + $0x17a0] sm:$0xff]
  %v6838 = vld [vmem:[%s7 + $0x17a8] sm:$0xff]
  %v6839 = vld [vmem:[%s7 + $0x17b0] sm:$0xff]
  %v6840 = vld [vmem:[%s7 + $0x17b8] sm:$0xff]
  %v6841 = vld [vmem:[%s7 + $0x17c0] sm:$0xff]
  %v6842 = vld [vmem:[%s7 + $0x17c8] sm:$0xff]
  %v6843 = vld [vmem:[%s7 + $0x17d0] sm:$0xff]
  %v6844 = vld [vmem:[%s7 + $0x17d8] sm:$0xff]
  %v6845 = vld [vmem:[%s7 + $0x17e0] sm:$0xff]
  %v6846 = vld [vmem:[%s7 + $0x17e8] sm:$0xff]
  %v6847 = vld [vmem:[%s7 + $0x17f0] sm:$0xff]
  %v6848 = vld [vmem:[%s7 + $0x17f8] sm:$0xff]
  %v6849 = vld [vmem:[%s7 + $0x1800] sm:$0xff]
  %v6850 = vld [vmem:[%s7 + $0x1808] sm:$0xff]
  %v6851 = vld [vmem:[%s7 + $0x1810] sm:$0xff]
  %v6852 = vld [vmem:[%s7 + $0x1818] sm:$0xff]
  %v6853 = vld [vmem:[%s7 + $0x1820] sm:$0xff]
  %v6854 = vld [vmem:[%s7 + $0x1828] sm:$0xff]
  %v6855 = vld [vmem:[%s7 + $0x1830] sm:$0xff]
  %v6856 = vld [vmem:[%s7 + $0x1838] sm:$0xff]
  %v6857 = vld [vmem:[%s7 + $0x1840] sm:$0xff]
  %v6858 = vld [vmem:[%s7 + $0x1848] sm:$0xff]
  %v6859 = vld [vmem:[%s7 + $0x1850] sm:$0xff]
  %v6860 = vld [vmem:[%s7 + $0x1858] sm:$0xff]
  %v6861 = vld [vmem:[%s7 + $0x1860] sm:$0xff]
  %v6862 = vld [vmem:[%s7 + $0x1868] sm:$0xff]
  %v6863 = vld [vmem:[%s7 + $0x1870] sm:$0xff]
  %v6864 = vld [vmem:[%s7 + $0x1878] sm:$0xff]
  %v6865 = vld [vmem:[%s8] sm:$0xf]
  %v6867 = vlaneseq
  %v6868 = vshrl.u32 %v6867, 7
  %v6869 = vsub.s32 0, %v6868
  %v6870 = vrot.slane %v6865, %v6869
  %v6871 = vlaneseq
  %v6872 = vshrl.u32 %v6871, 7
  %v6873 = vsub.s32 1, %v6872
  %v6874 = vrot.slane %v6865, %v6873
  %v6875 = vlaneseq
  %v6876 = vshrl.u32 %v6875, 7
  %v6877 = vsub.s32 2, %v6876
  %v6878 = vrot.slane %v6865, %v6877
  %v6879 = vlaneseq
  %v6880 = vshrl.u32 %v6879, 7
  %v6881 = vsub.s32 3, %v6880
  %v6882 = vrot.slane %v6865, %v6881
  %v6888 = vsel %vm4009, %v6080, 0
  %6890 = vmatprep.subr.mxu0 %v6142
  %6891 = vmatpush1.msra.mxu0 %v6141
  %6892 = vmatprep.subr.mxu0 %v6138
  %6893 = vmatpush1.msra.mxu0 %v6137
  %6894 = vmatprep.subr.mxu0 %v6134
  %6895 = vmatpush1.msra.mxu0 %v6133
  %6896 = vmatprep.subr.mxu0 %v6130
  %6897 = vmatpush1.msra.mxu0 %v6129
  %6898 = vmatprep.subr.mxu0 %v6126
  %6899 = vmatpush1.msra.mxu0 %v6125
  %6900 = vmatprep.subr.mxu0 %v6122
  %6901 = vmatpush1.msra.mxu0 %v6121
  %6902 = vmatprep.subr.mxu0 %v6118
  %6903 = vmatpush1.msra.mxu0 %v6117
  %6904 = vmatprep.subr.mxu0 %v6114
  %6905 = vmatpush1.msra.mxu0 %v6113
  %6906 = vmatprep.subr.mxu0 %v6110
  %6907 = vmatpush1.msra.mxu0 %v6109
  %6908 = vmatprep.subr.mxu0 %v6106
  %6909 = vmatpush1.msra.mxu0 %v6105
  %6910 = vmatprep.subr.mxu0 %v6102
  %6911 = vmatpush1.msra.mxu0 %v6101
  %6912 = vmatprep.subr.mxu0 %v6098
  %6913 = vmatpush1.msra.mxu0 %v6097
  %6914 = vmatprep.subr.mxu0 %v6094
  %6915 = vmatpush1.msra.mxu0 %v6093
  %6916 = vmatprep.subr.mxu0 %v6090
  %6917 = vmatpush1.msra.mxu0 %v6089
  %6918 = vmatprep.subr.mxu0 %v6086
  %6919 = vmatpush1.msra.mxu0 %v6085
  %6920 = vmatprep.subr.mxu0 %v6082
  %6921 = vmatpush1.msra.mxu0 %v6081
  %6922 = vmatprep.subr.mxu0 %v6206
  %6923 = vmatpush2.msra.mxu0 %v6205
  %6924 = vmatprep.subr.mxu0 %v6202
  %6925 = vmatpush2.msra.mxu0 %v6201
  %6926 = vmatprep.subr.mxu0 %v6198
  %6927 = vmatpush2.msra.mxu0 %v6197
  %6928 = vmatprep.subr.mxu0 %v6194
  %6929 = vmatpush2.msra.mxu0 %v6193
  %6930 = vmatprep.subr.mxu0 %v6190
  %6931 = vmatpush2.msra.mxu0 %v6189
  %6932 = vmatprep.subr.mxu0 %v6186
  %6933 = vmatpush2.msra.mxu0 %v6185
  %6934 = vmatprep.subr.mxu0 %v6182
  %6935 = vmatpush2.msra.mxu0 %v6181
  %6936 = vmatprep.subr.mxu0 %v6178
  %6937 = vmatpush2.msra.mxu0 %v6177
  %6938 = vmatprep.subr.mxu0 %v6174
  %6939 = vmatpush2.msra.mxu0 %v6173
  %6940 = vmatprep.subr.mxu0 %v6170
  %6941 = vmatpush2.msra.mxu0 %v6169
  %6942 = vmatprep.subr.mxu0 %v6166
  %6943 = vmatpush2.msra.mxu0 %v6165
  %6944 = vmatprep.subr.mxu0 %v6162
  %6945 = vmatpush2.msra.mxu0 %v6161
  %6946 = vmatprep.subr.mxu0 %v6158
  %6947 = vmatpush2.msra.mxu0 %v6157
  %6948 = vmatprep.subr.mxu0 %v6154
  %6949 = vmatpush2.msra.mxu0 %v6153
  %6950 = vmatprep.subr.mxu0 %v6150
  %6951 = vmatpush2.msra.mxu0 %v6149
  %6952 = vmatprep.subr.mxu0 %v6146
  %6953 = vmatpush2.msra.mxu0 %v6145
  %6954 = vmatprep.mubr.f32.mxu0 %v6069
  %6955 = vmatmul.mubr.f32.gmra.mxu0 %v6068
  %v6956 = vpop.f32.mrf.mxu0
  %v6957 = vadd.f32 %v6870, %v6956
  %v6958 = vpop.f32.mrf.mxu0
  %v6959 = vadd.f32 %v6874, %v6958
  %6960 = vdwg.mxu0
  %6961 = vmatprep.subr.mxu0 %v6270
  %6962 = vmatpush1.msra.mxu0 %v6269
  %6963 = vmatprep.subr.mxu0 %v6266
  %6964 = vmatpush1.msra.mxu0 %v6265
  %6965 = vmatprep.subr.mxu0 %v6262
  %6966 = vmatpush1.msra.mxu0 %v6261
  %6967 = vmatprep.subr.mxu0 %v6258
  %6968 = vmatpush1.msra.mxu0 %v6257
  %6969 = vmatprep.subr.mxu0 %v6254
  %6970 = vmatpush1.msra.mxu0 %v6253
  %6971 = vmatprep.subr.mxu0 %v6250
  %6972 = vmatpush1.msra.mxu0 %v6249
  %6973 = vmatprep.subr.mxu0 %v6246
  %6974 = vmatpush1.msra.mxu0 %v6245
  %6975 = vmatprep.subr.mxu0 %v6242
  %6976 = vmatpush1.msra.mxu0 %v6241
  %6977 = vmatprep.subr.mxu0 %v6238
  %6978 = vmatpush1.msra.mxu0 %v6237
  %6979 = vmatprep.subr.mxu0 %v6234
  %6980 = vmatpush1.msra.mxu0 %v6233
  %6981 = vmatprep.subr.mxu0 %v6230
  %6982 = vmatpush1.msra.mxu0 %v6229
  %6983 = vmatprep.subr.mxu0 %v6226
  %6984 = vmatpush1.msra.mxu0 %v6225
  %6985 = vmatprep.subr.mxu0 %v6222
  %6986 = vmatpush1.msra.mxu0 %v6221
  %6987 = vmatprep.subr.mxu0 %v6218
  %6988 = vmatpush1.msra.mxu0 %v6217
  %6989 = vmatprep.subr.mxu0 %v6214
  %6990 = vmatpush1.msra.mxu0 %v6213
  %6991 = vmatprep.subr.mxu0 %v6210
  %6992 = vmatpush1.msra.mxu0 %v6209
  %6993 = vmatprep.subr.mxu0 %v6334
  %6994 = vmatpush2.msra.mxu0 %v6333
  %6995 = vmatprep.subr.mxu0 %v6330
  %6996 = vmatpush2.msra.mxu0 %v6329
  %6997 = vmatprep.subr.mxu0 %v6326
  %6998 = vmatpush2.msra.mxu0 %v6325
  %6999 = vmatprep.subr.mxu0 %v6322
  %7000 = vmatpush2.msra.mxu0 %v6321
  %7001 = vmatprep.subr.mxu0 %v6318
  %7002 = vmatpush2.msra.mxu0 %v6317
  %7003 = vmatprep.subr.mxu0 %v6314
  %7004 = vmatpush2.msra.mxu0 %v6313
  %7005 = vmatprep.subr.mxu0 %v6310
  %7006 = vmatpush2.msra.mxu0 %v6309
  %7007 = vmatprep.subr.mxu0 %v6306
  %7008 = vmatpush2.msra.mxu0 %v6305
  %7009 = vmatprep.subr.mxu0 %v6302
  %7010 = vmatpush2.msra.mxu0 %v6301
  %7011 = vmatprep.subr.mxu0 %v6298
  %7012 = vmatpush2.msra.mxu0 %v6297
  %7013 = vmatprep.subr.mxu0 %v6294
  %7014 = vmatpush2.msra.mxu0 %v6293
  %7015 = vmatprep.subr.mxu0 %v6290
  %7016 = vmatpush2.msra.mxu0 %v6289
  %7017 = vmatprep.subr.mxu0 %v6286
  %7018 = vmatpush2.msra.mxu0 %v6285
  %7019 = vmatprep.subr.mxu0 %v6282
  %7020 = vmatpush2.msra.mxu0 %v6281
  %7021 = vmatprep.subr.mxu0 %v6278
  %7022 = vmatpush2.msra.mxu0 %v6277
  %7023 = vmatprep.subr.mxu0 %v6274
  %7024 = vmatpush2.msra.mxu0 %v6273
  %7025 = vmatprep.mubr.f32.mxu0 %v6071
  %7026 = vmatmul.mubr.f32.gmra.mxu0 %v6070
  %v7027 = vpop.f32.mrf.mxu0
  %v7028 = vadd.f32 %v6957, %v7027
  %v7029 = vpop.f32.mrf.mxu0
  %v7030 = vadd.f32 %v6959, %v7029
  %7031 = vdwg.mxu0
  %7032 = vmatprep.subr.mxu0 %v6398
  %7033 = vmatpush1.msra.mxu0 %v6397
  %7034 = vmatprep.subr.mxu0 %v6394
  %7035 = vmatpush1.msra.mxu0 %v6393
  %7036 = vmatprep.subr.mxu0 %v6390
  %7037 = vmatpush1.msra.mxu0 %v6389
  %7038 = vmatprep.subr.mxu0 %v6386
  %7039 = vmatpush1.msra.mxu0 %v6385
  %7040 = vmatprep.subr.mxu0 %v6382
  %7041 = vmatpush1.msra.mxu0 %v6381
  %7042 = vmatprep.subr.mxu0 %v6378
  %7043 = vmatpush1.msra.mxu0 %v6377
  %7044 = vmatprep.subr.mxu0 %v6374
  %7045 = vmatpush1.msra.mxu0 %v6373
  %7046 = vmatprep.subr.mxu0 %v6370
  %7047 = vmatpush1.msra.mxu0 %v6369
  %7048 = vmatprep.subr.mxu0 %v6366
  %7049 = vmatpush1.msra.mxu0 %v6365
  %7050 = vmatprep.subr.mxu0 %v6362
  %7051 = vmatpush1.msra.mxu0 %v6361
  %7052 = vmatprep.subr.mxu0 %v6358
  %7053 = vmatpush1.msra.mxu0 %v6357
  %7054 = vmatprep.subr.mxu0 %v6354
  %7055 = vmatpush1.msra.mxu0 %v6353
  %7056 = vmatprep.subr.mxu0 %v6350
  %7057 = vmatpush1.msra.mxu0 %v6349
  %7058 = vmatprep.subr.mxu0 %v6346
  %7059 = vmatpush1.msra.mxu0 %v6345
  %7060 = vmatprep.subr.mxu0 %v6342
  %7061 = vmatpush1.msra.mxu0 %v6341
  %7062 = vmatprep.subr.mxu0 %v6338
  %7063 = vmatpush1.msra.mxu0 %v6337
  %7064 = vmatprep.subr.mxu0 %v6462
  %7065 = vmatpush2.msra.mxu0 %v6461
  %7066 = vmatprep.subr.mxu0 %v6458
  %7067 = vmatpush2.msra.mxu0 %v6457
  %7068 = vmatprep.subr.mxu0 %v6454
  %7069 = vmatpush2.msra.mxu0 %v6453
  %7070 = vmatprep.subr.mxu0 %v6450
  %7071 = vmatpush2.msra.mxu0 %v6449
  %7072 = vmatprep.subr.mxu0 %v6446
  %7073 = vmatpush2.msra.mxu0 %v6445
  %7074 = vmatprep.subr.mxu0 %v6442
  %7075 = vmatpush2.msra.mxu0 %v6441
  %7076 = vmatprep.subr.mxu0 %v6438
  %7077 = vmatpush2.msra.mxu0 %v6437
  %7078 = vmatprep.subr.mxu0 %v6434
  %7079 = vmatpush2.msra.mxu0 %v6433
  %7080 = vmatprep.subr.mxu0 %v6430
  %7081 = vmatpush2.msra.mxu0 %v6429
  %7082 = vmatprep.subr.mxu0 %v6426
  %7083 = vmatpush2.msra.mxu0 %v6425
  %7084 = vmatprep.subr.mxu0 %v6422
  %7085 = vmatpush2.msra.mxu0 %v6421
  %7086 = vmatprep.subr.mxu0 %v6418
  %7087 = vmatpush2.msra.mxu0 %v6417
  %7088 = vmatprep.subr.mxu0 %v6414
  %7089 = vmatpush2.msra.mxu0 %v6413
  %7090 = vmatprep.subr.mxu0 %v6410
  %7091 = vmatpush2.msra.mxu0 %v6409
  %7092 = vmatprep.subr.mxu0 %v6406
  %7093 = vmatpush2.msra.mxu0 %v6405
  %7094 = vmatprep.subr.mxu0 %v6402
  %7095 = vmatpush2.msra.mxu0 %v6401
  %7096 = vmatprep.mubr.f32.mxu0 %v6073
  %7097 = vmatmul.mubr.f32.gmra.mxu0 %v6072
  %v7098 = vpop.f32.mrf.mxu0
  %v7099 = vadd.f32 %v7028, %v7098
  %v7100 = vpop.f32.mrf.mxu0
  %v7101 = vadd.f32 %v7030, %v7100
  %7102 = vdwg.mxu0
  %7103 = vmatprep.subr.mxu0 %v6526
  %7104 = vmatpush1.msra.mxu0 %v6525
  %7105 = vmatprep.subr.mxu0 %v6522
  %7106 = vmatpush1.msra.mxu0 %v6521
  %7107 = vmatprep.subr.mxu0 %v6518
  %7108 = vmatpush1.msra.mxu0 %v6517
  %7109 = vmatprep.subr.mxu0 %v6514
  %7110 = vmatpush1.msra.mxu0 %v6513
  %7111 = vmatprep.subr.mxu0 %v6510
  %7112 = vmatpush1.msra.mxu0 %v6509
  %7113 = vmatprep.subr.mxu0 %v6506
  %7114 = vmatpush1.msra.mxu0 %v6505
  %7115 = vmatprep.subr.mxu0 %v6502
  %7116 = vmatpush1.msra.mxu0 %v6501
  %7117 = vmatprep.subr.mxu0 %v6498
  %7118 = vmatpush1.msra.mxu0 %v6497
  %7119 = vmatprep.subr.mxu0 %v6494
  %7120 = vmatpush1.msra.mxu0 %v6493
  %7121 = vmatprep.subr.mxu0 %v6490
  %7122 = vmatpush1.msra.mxu0 %v6489
  %7123 = vmatprep.subr.mxu0 %v6486
  %7124 = vmatpush1.msra.mxu0 %v6485
  %7125 = vmatprep.subr.mxu0 %v6482
  %7126 = vmatpush1.msra.mxu0 %v6481
  %7127 = vmatprep.subr.mxu0 %v6478
  %7128 = vmatpush1.msra.mxu0 %v6477
  %7129 = vmatprep.subr.mxu0 %v6474
  %7130 = vmatpush1.msra.mxu0 %v6473
  %7131 = vmatprep.subr.mxu0 %v6470
  %7132 = vmatpush1.msra.mxu0 %v6469
  %7133 = vmatprep.subr.mxu0 %v6466
  %7134 = vmatpush1.msra.mxu0 %v6465
  %7135 = vmatprep.subr.mxu0 %v6590
  %7136 = vmatpush2.msra.mxu0 %v6589
  %7137 = vmatprep.subr.mxu0 %v6586
  %7138 = vmatpush2.msra.mxu0 %v6585
  %7139 = vmatprep.subr.mxu0 %v6582
  %7140 = vmatpush2.msra.mxu0 %v6581
  %7141 = vmatprep.subr.mxu0 %v6578
  %7142 = vmatpush2.msra.mxu0 %v6577
  %7143 = vmatprep.subr.mxu0 %v6574
  %7144 = vmatpush2.msra.mxu0 %v6573
  %7145 = vmatprep.subr.mxu0 %v6570
  %7146 = vmatpush2.msra.mxu0 %v6569
  %7147 = vmatprep.subr.mxu0 %v6566
  %7148 = vmatpush2.msra.mxu0 %v6565
  %7149 = vmatprep.subr.mxu0 %v6562
  %7150 = vmatpush2.msra.mxu0 %v6561
  %7151 = vmatprep.subr.mxu0 %v6558
  %7152 = vmatpush2.msra.mxu0 %v6557
  %7153 = vmatprep.subr.mxu0 %v6554
  %7154 = vmatpush2.msra.mxu0 %v6553
  %7155 = vmatprep.subr.mxu0 %v6550
  %7156 = vmatpush2.msra.mxu0 %v6549
  %7157 = vmatprep.subr.mxu0 %v6546
  %7158 = vmatpush2.msra.mxu0 %v6545
  %7159 = vmatprep.subr.mxu0 %v6542
  %7160 = vmatpush2.msra.mxu0 %v6541
  %7161 = vmatprep.subr.mxu0 %v6538
  %7162 = vmatpush2.msra.mxu0 %v6537
  %7163 = vmatprep.subr.mxu0 %v6534
  %7164 = vmatpush2.msra.mxu0 %v6533
  %7165 = vmatprep.subr.mxu0 %v6530
  %7166 = vmatpush2.msra.mxu0 %v6529
  %7167 = vmatprep.mubr.f32.mxu0 %v6075
  %7168 = vmatmul.mubr.f32.gmra.mxu0 %v6074
  %v7169 = vpop.f32.mrf.mxu0
  %v7170 = vadd.f32 %v7099, %v7169
  %v7171 = vpop.f32.mrf.mxu0
  %v7172 = vadd.f32 %v7101, %v7171
  %7173 = vdwg.mxu0
  %7174 = vmatprep.subr.mxu0 %v6654
  %7175 = vmatpush1.msra.mxu0 %v6653
  %7176 = vmatprep.subr.mxu0 %v6650
  %7177 = vmatpush1.msra.mxu0 %v6649
  %7178 = vmatprep.subr.mxu0 %v6646
  %7179 = vmatpush1.msra.mxu0 %v6645
  %7180 = vmatprep.subr.mxu0 %v6642
  %7181 = vmatpush1.msra.mxu0 %v6641
  %7182 = vmatprep.subr.mxu0 %v6638
  %7183 = vmatpush1.msra.mxu0 %v6637
  %7184 = vmatprep.subr.mxu0 %v6634
  %7185 = vmatpush1.msra.mxu0 %v6633
  %7186 = vmatprep.subr.mxu0 %v6630
  %7187 = vmatpush1.msra.mxu0 %v6629
  %7188 = vmatprep.subr.mxu0 %v6626
  %7189 = vmatpush1.msra.mxu0 %v6625
  %7190 = vmatprep.subr.mxu0 %v6622
  %7191 = vmatpush1.msra.mxu0 %v6621
  %7192 = vmatprep.subr.mxu0 %v6618
  %7193 = vmatpush1.msra.mxu0 %v6617
  %7194 = vmatprep.subr.mxu0 %v6614
  %7195 = vmatpush1.msra.mxu0 %v6613
  %7196 = vmatprep.subr.mxu0 %v6610
  %7197 = vmatpush1.msra.mxu0 %v6609
  %7198 = vmatprep.subr.mxu0 %v6606
  %7199 = vmatpush1.msra.mxu0 %v6605
  %7200 = vmatprep.subr.mxu0 %v6602
  %7201 = vmatpush1.msra.mxu0 %v6601
  %7202 = vmatprep.subr.mxu0 %v6598
  %7203 = vmatpush1.msra.mxu0 %v6597
  %7204 = vmatprep.subr.mxu0 %v6594
  %7205 = vmatpush1.msra.mxu0 %v6593
  %7206 = vmatprep.subr.mxu0 %v6718
  %7207 = vmatpush2.msra.mxu0 %v6717
  %7208 = vmatprep.subr.mxu0 %v6714
  %7209 = vmatpush2.msra.mxu0 %v6713
  %7210 = vmatprep.subr.mxu0 %v6710
  %7211 = vmatpush2.msra.mxu0 %v6709
  %7212 = vmatprep.subr.mxu0 %v6706
  %7213 = vmatpush2.msra.mxu0 %v6705
  %7214 = vmatprep.subr.mxu0 %v6702
  %7215 = vmatpush2.msra.mxu0 %v6701
  %7216 = vmatprep.subr.mxu0 %v6698
  %7217 = vmatpush2.msra.mxu0 %v6697
  %7218 = vmatprep.subr.mxu0 %v6694
  %7219 = vmatpush2.msra.mxu0 %v6693
  %7220 = vmatprep.subr.mxu0 %v6690
  %7221 = vmatpush2.msra.mxu0 %v6689
  %7222 = vmatprep.subr.mxu0 %v6686
  %7223 = vmatpush2.msra.mxu0 %v6685
  %7224 = vmatprep.subr.mxu0 %v6682
  %7225 = vmatpush2.msra.mxu0 %v6681
  %7226 = vmatprep.subr.mxu0 %v6678
  %7227 = vmatpush2.msra.mxu0 %v6677
  %7228 = vmatprep.subr.mxu0 %v6674
  %7229 = vmatpush2.msra.mxu0 %v6673
  %7230 = vmatprep.subr.mxu0 %v6670
  %7231 = vmatpush2.msra.mxu0 %v6669
  %7232 = vmatprep.subr.mxu0 %v6666
  %7233 = vmatpush2.msra.mxu0 %v6665
  %7234 = vmatprep.subr.mxu0 %v6662
  %7235 = vmatpush2.msra.mxu0 %v6661
  %7236 = vmatprep.subr.mxu0 %v6658
  %7237 = vmatpush2.msra.mxu0 %v6657
  %7238 = vmatprep.mubr.f32.mxu0 %v6077
  %7239 = vmatmul.mubr.f32.gmra.mxu0 %v6076
  %v7240 = vpop.f32.mrf.mxu0
  %v7241 = vadd.f32 %v7170, %v7240
  %v7242 = vpop.f32.mrf.mxu0
  %v7243 = vadd.f32 %v7172, %v7242
  %7244 = vdwg.mxu0
  %7245 = vmatprep.subr.mxu0 %v6782
  %7246 = vmatpush1.msra.mxu0 %v6781
  %7247 = vmatprep.subr.mxu0 %v6778
  %7248 = vmatpush1.msra.mxu0 %v6777
  %7249 = vmatprep.subr.mxu0 %v6774
  %7250 = vmatpush1.msra.mxu0 %v6773
  %7251 = vmatprep.subr.mxu0 %v6770
  %7252 = vmatpush1.msra.mxu0 %v6769
  %7253 = vmatprep.subr.mxu0 %v6766
  %7254 = vmatpush1.msra.mxu0 %v6765
  %7255 = vmatprep.subr.mxu0 %v6762
  %7256 = vmatpush1.msra.mxu0 %v6761
  %7257 = vmatprep.subr.mxu0 %v6758
  %7258 = vmatpush1.msra.mxu0 %v6757
  %7259 = vmatprep.subr.mxu0 %v6754
  %7260 = vmatpush1.msra.mxu0 %v6753
  %7261 = vmatprep.subr.mxu0 %v6750
  %7262 = vmatpush1.msra.mxu0 %v6749
  %7263 = vmatprep.subr.mxu0 %v6746
  %7264 = vmatpush1.msra.mxu0 %v6745
  %7265 = vmatprep.subr.mxu0 %v6742
  %7266 = vmatpush1.msra.mxu0 %v6741
  %7267 = vmatprep.subr.mxu0 %v6738
  %7268 = vmatpush1.msra.mxu0 %v6737
  %7269 = vmatprep.subr.mxu0 %v6734
  %7270 = vmatpush1.msra.mxu0 %v6733
  %7271 = vmatprep.subr.mxu0 %v6730
  %7272 = vmatpush1.msra.mxu0 %v6729
  %7273 = vmatprep.subr.mxu0 %v6726
  %7274 = vmatpush1.msra.mxu0 %v6725
  %7275 = vmatprep.subr.mxu0 %v6722
  %7276 = vmatpush1.msra.mxu0 %v6721
  %7277 = vmatprep.subr.mxu0 %v6846
  %7278 = vmatpush2.msra.mxu0 %v6845
  %7279 = vmatprep.subr.mxu0 %v6842
  %7280 = vmatpush2.msra.mxu0 %v6841
  %7281 = vmatprep.subr.mxu0 %v6838
  %7282 = vmatpush2.msra.mxu0 %v6837
  %7283 = vmatprep.subr.mxu0 %v6834
  %7284 = vmatpush2.msra.mxu0 %v6833
  %7285 = vmatprep.subr.mxu0 %v6830
  %7286 = vmatpush2.msra.mxu0 %v6829
  %7287 = vmatprep.subr.mxu0 %v6826
  %7288 = vmatpush2.msra.mxu0 %v6825
  %7289 = vmatprep.subr.mxu0 %v6822
  %7290 = vmatpush2.msra.mxu0 %v6821
  %7291 = vmatprep.subr.mxu0 %v6818
  %7292 = vmatpush2.msra.mxu0 %v6817
  %7293 = vmatprep.subr.mxu0 %v6814
  %7294 = vmatpush2.msra.mxu0 %v6813
  %7295 = vmatprep.subr.mxu0 %v6810
  %7296 = vmatpush2.msra.mxu0 %v6809
  %7297 = vmatprep.subr.mxu0 %v6806
  %7298 = vmatpush2.msra.mxu0 %v6805
  %7299 = vmatprep.subr.mxu0 %v6802
  %7300 = vmatpush2.msra.mxu0 %v6801
  %7301 = vmatprep.subr.mxu0 %v6798
  %7302 = vmatpush2.msra.mxu0 %v6797
  %7303 = vmatprep.subr.mxu0 %v6794
  %7304 = vmatpush2.msra.mxu0 %v6793
  %7305 = vmatprep.subr.mxu0 %v6790
  %7306 = vmatpush2.msra.mxu0 %v6789
  %7307 = vmatprep.subr.mxu0 %v6786
  %7308 = vmatpush2.msra.mxu0 %v6785
  %7309 = vmatprep.mubr.f32.mxu0 %v6079
  %7310 = vmatmul.mubr.f32.gmra.mxu0 %v6078
  %v7311 = vpop.f32.mrf.mxu0
  %v7312 = vadd.f32 %v7241, %v7311
  %v7313 = vpop.f32.mrf.mxu0
  %v7314 = vadd.f32 %v7243, %v7313
  %7315 = vdwg.mxu0
  %7316 = vmatprep.subr.mxu0 0.0
  %7317 = vmatpush1.msra.mxu0 0.0
  %7318 = vmatprep.subr.mxu0 0.0
  %7319 = vmatpush1.msra.mxu0 0.0
  %7320 = vmatprep.subr.mxu0 0.0
  %7321 = vmatpush1.msra.mxu0 0.0
  %7322 = vmatprep.subr.mxu0 0.0
  %7323 = vmatpush1.msra.mxu0 0.0
  %7324 = vmatprep.subr.mxu0 0.0
  %7325 = vmatpush1.msra.mxu0 0.0
  %7326 = vmatprep.subr.mxu0 0.0
  %7327 = vmatpush1.msra.mxu0 0.0
  %7328 = vmatprep.subr.mxu0 0.0
  %7329 = vmatpush1.msra.mxu0 0.0
  %7330 = vmatprep.subr.mxu0 0.0
  %7331 = vmatpush1.msra.mxu0 0.0
  %7332 = vmatprep.subr.mxu0 0.0
  %7333 = vmatpush1.msra.mxu0 0.0
  %7334 = vmatprep.subr.mxu0 0.0
  %7335 = vmatpush1.msra.mxu0 0.0
  %7336 = vmatprep.subr.mxu0 0.0
  %7337 = vmatpush1.msra.mxu0 0.0
  %7338 = vmatprep.subr.mxu0 0.0
  %7339 = vmatpush1.msra.mxu0 0.0
  %7340 = vmatprep.subr.mxu0 %v6862
  %7341 = vmatpush1.msra.mxu0 %v6861
  %7342 = vmatprep.subr.mxu0 %v6858
  %7343 = vmatpush1.msra.mxu0 %v6857
  %7344 = vmatprep.subr.mxu0 %v6854
  %7345 = vmatpush1.msra.mxu0 %v6853
  %7346 = vmatprep.subr.mxu0 %v6850
  %7347 = vmatpush1.msra.mxu0 %v6849
  %7348 = vmatprep.subr.mxu0 0.0
  %7349 = vmatpush2.msra.mxu0 0.0
  %7350 = vmatprep.subr.mxu0 0.0
  %7351 = vmatpush2.msra.mxu0 0.0
  %7352 = vmatprep.subr.mxu0 0.0
  %7353 = vmatpush2.msra.mxu0 0.0
  %7354 = vmatprep.subr.mxu0 0.0
  %7355 = vmatpush2.msra.mxu0 0.0
  %7356 = vmatprep.subr.mxu0 0.0
  %7357 = vmatpush2.msra.mxu0 0.0
  %7358 = vmatprep.subr.mxu0 0.0
  %7359 = vmatpush2.msra.mxu0 0.0
  %7360 = vmatprep.subr.mxu0 0.0
  %7361 = vmatpush2.msra.mxu0 0.0
  %7362 = vmatprep.subr.mxu0 0.0
  %7363 = vmatpush2.msra.mxu0 0.0
  %7364 = vmatprep.subr.mxu0 0.0
  %7365 = vmatpush2.msra.mxu0 0.0
  %7366 = vmatprep.subr.mxu0 0.0
  %7367 = vmatpush2.msra.mxu0 0.0
  %7368 = vmatprep.subr.mxu0 0.0
  %7369 = vmatpush2.msra.mxu0 0.0
  %7370 = vmatprep.subr.mxu0 0.0
  %7371 = vmatpush2.msra.mxu0 0.0
  %7372 = vmatprep.subr.mxu0 0.0
  %7373 = vmatpush2.msra.mxu0 0.0
  %7374 = vmatprep.subr.mxu0 0.0
  %7375 = vmatpush2.msra.mxu0 0.0
  %7376 = vmatprep.subr.mxu0 0.0
  %7377 = vmatpush2.msra.mxu0 0.0
  %7378 = vmatprep.subr.mxu0 0.0
  %7379 = vmatpush2.msra.mxu0 0.0
  %7380 = vmatprep.mubr.f32.mxu0 0.0
  %7381 = vmatmul.mubr.f32.gmra.mxu0 %v6888
  %v7382 = vpop.f32.mrf.mxu0
  %v7383 = vadd.f32 %v7312, %v7382
  %v7384 = vpop.f32.mrf.mxu0
  %v7385 = vadd.f32 %v7314, %v7384
  %7386 = vdwg.mxu0
  %7387 = vmatprep.subr.mxu0 %v6144
  %7388 = vmatpush1.msra.mxu0 %v6143
  %7389 = vmatprep.subr.mxu0 %v6140
  %7390 = vmatpush1.msra.mxu0 %v6139
  %7391 = vmatprep.subr.mxu0 %v6136
  %7392 = vmatpush1.msra.mxu0 %v6135
  %7393 = vmatprep.subr.mxu0 %v6132
  %7394 = vmatpush1.msra.mxu0 %v6131
  %7395 = vmatprep.subr.mxu0 %v6128
  %7396 = vmatpush1.msra.mxu0 %v6127
  %7397 = vmatprep.subr.mxu0 %v6124
  %7398 = vmatpush1.msra.mxu0 %v6123
  %7399 = vmatprep.subr.mxu0 %v6120
  %7400 = vmatpush1.msra.mxu0 %v6119
  %7401 = vmatprep.subr.mxu0 %v6116
  %7402 = vmatpush1.msra.mxu0 %v6115
  %7403 = vmatprep.subr.mxu0 %v6112
  %7404 = vmatpush1.msra.mxu0 %v6111
  %7405 = vmatprep.subr.mxu0 %v6108
  %7406 = vmatpush1.msra.mxu0 %v6107
  %7407 = vmatprep.subr.mxu0 %v6104
  %7408 = vmatpush1.msra.mxu0 %v6103
  %7409 = vmatprep.subr.mxu0 %v6100
  %7410 = vmatpush1.msra.mxu0 %v6099
  %7411 = vmatprep.subr.mxu0 %v6096
  %7412 = vmatpush1.msra.mxu0 %v6095
  %7413 = vmatprep.subr.mxu0 %v6092
  %7414 = vmatpush1.msra.mxu0 %v6091
  %7415 = vmatprep.subr.mxu0 %v6088
  %7416 = vmatpush1.msra.mxu0 %v6087
  %7417 = vmatprep.subr.mxu0 %v6084
  %7418 = vmatpush1.msra.mxu0 %v6083
  %7419 = vmatprep.subr.mxu0 %v6208
  %7420 = vmatpush2.msra.mxu0 %v6207
  %7421 = vmatprep.subr.mxu0 %v6204
  %7422 = vmatpush2.msra.mxu0 %v6203
  %7423 = vmatprep.subr.mxu0 %v6200
  %7424 = vmatpush2.msra.mxu0 %v6199
  %7425 = vmatprep.subr.mxu0 %v6196
  %7426 = vmatpush2.msra.mxu0 %v6195
  %7427 = vmatprep.subr.mxu0 %v6192
  %7428 = vmatpush2.msra.mxu0 %v6191
  %7429 = vmatprep.subr.mxu0 %v6188
  %7430 = vmatpush2.msra.mxu0 %v6187
  %7431 = vmatprep.subr.mxu0 %v6184
  %7432 = vmatpush2.msra.mxu0 %v6183
  %7433 = vmatprep.subr.mxu0 %v6180
  %7434 = vmatpush2.msra.mxu0 %v6179
  %7435 = vmatprep.subr.mxu0 %v6176
  %7436 = vmatpush2.msra.mxu0 %v6175
  %7437 = vmatprep.subr.mxu0 %v6172
  %7438 = vmatpush2.msra.mxu0 %v6171
  %7439 = vmatprep.subr.mxu0 %v6168
  %7440 = vmatpush2.msra.mxu0 %v6167
  %7441 = vmatprep.subr.mxu0 %v6164
  %7442 = vmatpush2.msra.mxu0 %v6163
  %7443 = vmatprep.subr.mxu0 %v6160
  %7444 = vmatpush2.msra.mxu0 %v6159
  %7445 = vmatprep.subr.mxu0 %v6156
  %7446 = vmatpush2.msra.mxu0 %v6155
  %7447 = vmatprep.subr.mxu0 %v6152
  %7448 = vmatpush2.msra.mxu0 %v6151
  %7449 = vmatprep.subr.mxu0 %v6148
  %7450 = vmatpush2.msra.mxu0 %v6147
  %7451 = vmatprep.mubr.f32.mxu0 %v6069
  %7452 = vmatmul.mubr.f32.gmra.mxu0 %v6068
  %v7453 = vpop.f32.mrf.mxu0
  %v7454 = vadd.f32 %v6878, %v7453
  %v7455 = vpop.f32.mrf.mxu0
  %v7456 = vadd.f32 %v6882, %v7455
  %7457 = vdwg.mxu0
  %7458 = vmatprep.subr.mxu0 %v6272
  %7459 = vmatpush1.msra.mxu0 %v6271
  %7460 = vmatprep.subr.mxu0 %v6268
  %7461 = vmatpush1.msra.mxu0 %v6267
  %7462 = vmatprep.subr.mxu0 %v6264
  %7463 = vmatpush1.msra.mxu0 %v6263
  %7464 = vmatprep.subr.mxu0 %v6260
  %7465 = vmatpush1.msra.mxu0 %v6259
  %7466 = vmatprep.subr.mxu0 %v6256
  %7467 = vmatpush1.msra.mxu0 %v6255
  %7468 = vmatprep.subr.mxu0 %v6252
  %7469 = vmatpush1.msra.mxu0 %v6251
  %7470 = vmatprep.subr.mxu0 %v6248
  %7471 = vmatpush1.msra.mxu0 %v6247
  %7472 = vmatprep.subr.mxu0 %v6244
  %7473 = vmatpush1.msra.mxu0 %v6243
  %7474 = vmatprep.subr.mxu0 %v6240
  %7475 = vmatpush1.msra.mxu0 %v6239
  %7476 = vmatprep.subr.mxu0 %v6236
  %7477 = vmatpush1.msra.mxu0 %v6235
  %7478 = vmatprep.subr.mxu0 %v6232
  %7479 = vmatpush1.msra.mxu0 %v6231
  %7480 = vmatprep.subr.mxu0 %v6228
  %7481 = vmatpush1.msra.mxu0 %v6227
  %7482 = vmatprep.subr.mxu0 %v6224
  %7483 = vmatpush1.msra.mxu0 %v6223
  %7484 = vmatprep.subr.mxu0 %v6220
  %7485 = vmatpush1.msra.mxu0 %v6219
  %7486 = vmatprep.subr.mxu0 %v6216
  %7487 = vmatpush1.msra.mxu0 %v6215
  %7488 = vmatprep.subr.mxu0 %v6212
  %7489 = vmatpush1.msra.mxu0 %v6211
  %7490 = vmatprep.subr.mxu0 %v6336
  %7491 = vmatpush2.msra.mxu0 %v6335
  %7492 = vmatprep.subr.mxu0 %v6332
  %7493 = vmatpush2.msra.mxu0 %v6331
  %7494 = vmatprep.subr.mxu0 %v6328
  %7495 = vmatpush2.msra.mxu0 %v6327
  %7496 = vmatprep.subr.mxu0 %v6324
  %7497 = vmatpush2.msra.mxu0 %v6323
  %7498 = vmatprep.subr.mxu0 %v6320
  %7499 = vmatpush2.msra.mxu0 %v6319
  %7500 = vmatprep.subr.mxu0 %v6316
  %7501 = vmatpush2.msra.mxu0 %v6315
  %7502 = vmatprep.subr.mxu0 %v6312
  %7503 = vmatpush2.msra.mxu0 %v6311
  %7504 = vmatprep.subr.mxu0 %v6308
  %7505 = vmatpush2.msra.mxu0 %v6307
  %7506 = vmatprep.subr.mxu0 %v6304
  %7507 = vmatpush2.msra.mxu0 %v6303
  %7508 = vmatprep.subr.mxu0 %v6300
  %7509 = vmatpush2.msra.mxu0 %v6299
  %7510 = vmatprep.subr.mxu0 %v6296
  %7511 = vmatpush2.msra.mxu0 %v6295
  %7512 = vmatprep.subr.mxu0 %v6292
  %7513 = vmatpush2.msra.mxu0 %v6291
  %7514 = vmatprep.subr.mxu0 %v6288
  %7515 = vmatpush2.msra.mxu0 %v6287
  %7516 = vmatprep.subr.mxu0 %v6284
  %7517 = vmatpush2.msra.mxu0 %v6283
  %7518 = vmatprep.subr.mxu0 %v6280
  %7519 = vmatpush2.msra.mxu0 %v6279
  %7520 = vmatprep.subr.mxu0 %v6276
  %7521 = vmatpush2.msra.mxu0 %v6275
  %7522 = vmatprep.mubr.f32.mxu0 %v6071
  %7523 = vmatmul.mubr.f32.gmra.mxu0 %v6070
  %v7524 = vpop.f32.mrf.mxu0
  %v7525 = vadd.f32 %v7454, %v7524
  %v7526 = vpop.f32.mrf.mxu0
  %v7527 = vadd.f32 %v7456, %v7526
  %7528 = vdwg.mxu0
  %7529 = vmatprep.subr.mxu0 %v6400
  %7530 = vmatpush1.msra.mxu0 %v6399
  %7531 = vmatprep.subr.mxu0 %v6396
  %7532 = vmatpush1.msra.mxu0 %v6395
  %7533 = vmatprep.subr.mxu0 %v6392
  %7534 = vmatpush1.msra.mxu0 %v6391
  %7535 = vmatprep.subr.mxu0 %v6388
  %7536 = vmatpush1.msra.mxu0 %v6387
  %7537 = vmatprep.subr.mxu0 %v6384
  %7538 = vmatpush1.msra.mxu0 %v6383
  %7539 = vmatprep.subr.mxu0 %v6380
  %7540 = vmatpush1.msra.mxu0 %v6379
  %7541 = vmatprep.subr.mxu0 %v6376
  %7542 = vmatpush1.msra.mxu0 %v6375
  %7543 = vmatprep.subr.mxu0 %v6372
  %7544 = vmatpush1.msra.mxu0 %v6371
  %7545 = vmatprep.subr.mxu0 %v6368
  %7546 = vmatpush1.msra.mxu0 %v6367
  %7547 = vmatprep.subr.mxu0 %v6364
  %7548 = vmatpush1.msra.mxu0 %v6363
  %7549 = vmatprep.subr.mxu0 %v6360
  %7550 = vmatpush1.msra.mxu0 %v6359
  %7551 = vmatprep.subr.mxu0 %v6356
  %7552 = vmatpush1.msra.mxu0 %v6355
  %7553 = vmatprep.subr.mxu0 %v6352
  %7554 = vmatpush1.msra.mxu0 %v6351
  %7555 = vmatprep.subr.mxu0 %v6348
  %7556 = vmatpush1.msra.mxu0 %v6347
  %7557 = vmatprep.subr.mxu0 %v6344
  %7558 = vmatpush1.msra.mxu0 %v6343
  %7559 = vmatprep.subr.mxu0 %v6340
  %7560 = vmatpush1.msra.mxu0 %v6339
  %7561 = vmatprep.subr.mxu0 %v6464
  %7562 = vmatpush2.msra.mxu0 %v6463
  %7563 = vmatprep.subr.mxu0 %v6460
  %7564 = vmatpush2.msra.mxu0 %v6459
  %7565 = vmatprep.subr.mxu0 %v6456
  %7566 = vmatpush2.msra.mxu0 %v6455
  %7567 = vmatprep.subr.mxu0 %v6452
  %7568 = vmatpush2.msra.mxu0 %v6451
  %7569 = vmatprep.subr.mxu0 %v6448
  %7570 = vmatpush2.msra.mxu0 %v6447
  %7571 = vmatprep.subr.mxu0 %v6444
  %7572 = vmatpush2.msra.mxu0 %v6443
  %7573 = vmatprep.subr.mxu0 %v6440
  %7574 = vmatpush2.msra.mxu0 %v6439
  %7575 = vmatprep.subr.mxu0 %v6436
  %7576 = vmatpush2.msra.mxu0 %v6435
  %7577 = vmatprep.subr.mxu0 %v6432
  %7578 = vmatpush2.msra.mxu0 %v6431
  %7579 = vmatprep.subr.mxu0 %v6428
  %7580 = vmatpush2.msra.mxu0 %v6427
  %7581 = vmatprep.subr.mxu0 %v6424
  %7582 = vmatpush2.msra.mxu0 %v6423
  %7583 = vmatprep.subr.mxu0 %v6420
  %7584 = vmatpush2.msra.mxu0 %v6419
  %7585 = vmatprep.subr.mxu0 %v6416
  %7586 = vmatpush2.msra.mxu0 %v6415
  %7587 = vmatprep.subr.mxu0 %v6412
  %7588 = vmatpush2.msra.mxu0 %v6411
  %7589 = vmatprep.subr.mxu0 %v6408
  %7590 = vmatpush2.msra.mxu0 %v6407
  %7591 = vmatprep.subr.mxu0 %v6404
  %7592 = vmatpush2.msra.mxu0 %v6403
  %7593 = vmatprep.mubr.f32.mxu0 %v6073
  %7594 = vmatmul.mubr.f32.gmra.mxu0 %v6072
  %v7595 = vpop.f32.mrf.mxu0
  %v7596 = vadd.f32 %v7525, %v7595
  %v7597 = vpop.f32.mrf.mxu0
  %v7598 = vadd.f32 %v7527, %v7597
  %7599 = vdwg.mxu0
  %7600 = vmatprep.subr.mxu0 %v6528
  %7601 = vmatpush1.msra.mxu0 %v6527
  %7602 = vmatprep.subr.mxu0 %v6524
  %7603 = vmatpush1.msra.mxu0 %v6523
  %7604 = vmatprep.subr.mxu0 %v6520
  %7605 = vmatpush1.msra.mxu0 %v6519
  %7606 = vmatprep.subr.mxu0 %v6516
  %7607 = vmatpush1.msra.mxu0 %v6515
  %7608 = vmatprep.subr.mxu0 %v6512
  %7609 = vmatpush1.msra.mxu0 %v6511
  %7610 = vmatprep.subr.mxu0 %v6508
  %7611 = vmatpush1.msra.mxu0 %v6507
  %7612 = vmatprep.subr.mxu0 %v6504
  %7613 = vmatpush1.msra.mxu0 %v6503
  %7614 = vmatprep.subr.mxu0 %v6500
  %7615 = vmatpush1.msra.mxu0 %v6499
  %7616 = vmatprep.subr.mxu0 %v6496
  %7617 = vmatpush1.msra.mxu0 %v6495
  %7618 = vmatprep.subr.mxu0 %v6492
  %7619 = vmatpush1.msra.mxu0 %v6491
  %7620 = vmatprep.subr.mxu0 %v6488
  %7621 = vmatpush1.msra.mxu0 %v6487
  %7622 = vmatprep.subr.mxu0 %v6484
  %7623 = vmatpush1.msra.mxu0 %v6483
  %7624 = vmatprep.subr.mxu0 %v6480
  %7625 = vmatpush1.msra.mxu0 %v6479
  %7626 = vmatprep.subr.mxu0 %v6476
  %7627 = vmatpush1.msra.mxu0 %v6475
  %7628 = vmatprep.subr.mxu0 %v6472
  %7629 = vmatpush1.msra.mxu0 %v6471
  %7630 = vmatprep.subr.mxu0 %v6468
  %7631 = vmatpush1.msra.mxu0 %v6467
  %7632 = vmatprep.subr.mxu0 %v6592
  %7633 = vmatpush2.msra.mxu0 %v6591
  %7634 = vmatprep.subr.mxu0 %v6588
  %7635 = vmatpush2.msra.mxu0 %v6587
  %7636 = vmatprep.subr.mxu0 %v6584
  %7637 = vmatpush2.msra.mxu0 %v6583
  %7638 = vmatprep.subr.mxu0 %v6580
  %7639 = vmatpush2.msra.mxu0 %v6579
  %7640 = vmatprep.subr.mxu0 %v6576
  %7641 = vmatpush2.msra.mxu0 %v6575
  %7642 = vmatprep.subr.mxu0 %v6572
  %7643 = vmatpush2.msra.mxu0 %v6571
  %7644 = vmatprep.subr.mxu0 %v6568
  %7645 = vmatpush2.msra.mxu0 %v6567
  %7646 = vmatprep.subr.mxu0 %v6564
  %7647 = vmatpush2.msra.mxu0 %v6563
  %7648 = vmatprep.subr.mxu0 %v6560
  %7649 = vmatpush2.msra.mxu0 %v6559
  %7650 = vmatprep.subr.mxu0 %v6556
  %7651 = vmatpush2.msra.mxu0 %v6555
  %7652 = vmatprep.subr.mxu0 %v6552
  %7653 = vmatpush2.msra.mxu0 %v6551
  %7654 = vmatprep.subr.mxu0 %v6548
  %7655 = vmatpush2.msra.mxu0 %v6547
  %7656 = vmatprep.subr.mxu0 %v6544
  %7657 = vmatpush2.msra.mxu0 %v6543
  %7658 = vmatprep.subr.mxu0 %v6540
  %7659 = vmatpush2.msra.mxu0 %v6539
  %7660 = vmatprep.subr.mxu0 %v6536
  %7661 = vmatpush2.msra.mxu0 %v6535
  %7662 = vmatprep.subr.mxu0 %v6532
  %7663 = vmatpush2.msra.mxu0 %v6531
  %7664 = vmatprep.mubr.f32.mxu0 %v6075
  %7665 = vmatmul.mubr.f32.gmra.mxu0 %v6074
  %v7666 = vpop.f32.mrf.mxu0
  %v7667 = vadd.f32 %v7596, %v7666
  %v7668 = vpop.f32.mrf.mxu0
  %v7669 = vadd.f32 %v7598, %v7668
  %7670 = vdwg.mxu0
  %7671 = vmatprep.subr.mxu0 %v6656
  %7672 = vmatpush1.msra.mxu0 %v6655
  %7673 = vmatprep.subr.mxu0 %v6652
  %7674 = vmatpush1.msra.mxu0 %v6651
  %7675 = vmatprep.subr.mxu0 %v6648
  %7676 = vmatpush1.msra.mxu0 %v6647
  %7677 = vmatprep.subr.mxu0 %v6644
  %7678 = vmatpush1.msra.mxu0 %v6643
  %7679 = vmatprep.subr.mxu0 %v6640
  %7680 = vmatpush1.msra.mxu0 %v6639
  %7681 = vmatprep.subr.mxu0 %v6636
  %7682 = vmatpush1.msra.mxu0 %v6635
  %7683 = vmatprep.subr.mxu0 %v6632
  %7684 = vmatpush1.msra.mxu0 %v6631
  %7685 = vmatprep.subr.mxu0 %v6628
  %7686 = vmatpush1.msra.mxu0 %v6627
  %7687 = vmatprep.subr.mxu0 %v6624
  %7688 = vmatpush1.msra.mxu0 %v6623
  %7689 = vmatprep.subr.mxu0 %v6620
  %7690 = vmatpush1.msra.mxu0 %v6619
  %7691 = vmatprep.subr.mxu0 %v6616
  %7692 = vmatpush1.msra.mxu0 %v6615
  %7693 = vmatprep.subr.mxu0 %v6612
  %7694 = vmatpush1.msra.mxu0 %v6611
  %7695 = vmatprep.subr.mxu0 %v6608
  %7696 = vmatpush1.msra.mxu0 %v6607
  %7697 = vmatprep.subr.mxu0 %v6604
  %7698 = vmatpush1.msra.mxu0 %v6603
  %7699 = vmatprep.subr.mxu0 %v6600
  %7700 = vmatpush1.msra.mxu0 %v6599
  %7701 = vmatprep.subr.mxu0 %v6596
  %7702 = vmatpush1.msra.mxu0 %v6595
  %7703 = vmatprep.subr.mxu0 %v6720
  %7704 = vmatpush2.msra.mxu0 %v6719
  %7705 = vmatprep.subr.mxu0 %v6716
  %7706 = vmatpush2.msra.mxu0 %v6715
  %7707 = vmatprep.subr.mxu0 %v6712
  %7708 = vmatpush2.msra.mxu0 %v6711
  %7709 = vmatprep.subr.mxu0 %v6708
  %7710 = vmatpush2.msra.mxu0 %v6707
  %7711 = vmatprep.subr.mxu0 %v6704
  %7712 = vmatpush2.msra.mxu0 %v6703
  %7713 = vmatprep.subr.mxu0 %v6700
  %7714 = vmatpush2.msra.mxu0 %v6699
  %7715 = vmatprep.subr.mxu0 %v6696
  %7716 = vmatpush2.msra.mxu0 %v6695
  %7717 = vmatprep.subr.mxu0 %v6692
  %7718 = vmatpush2.msra.mxu0 %v6691
  %7719 = vmatprep.subr.mxu0 %v6688
  %7720 = vmatpush2.msra.mxu0 %v6687
  %7721 = vmatprep.subr.mxu0 %v6684
  %7722 = vmatpush2.msra.mxu0 %v6683
  %7723 = vmatprep.subr.mxu0 %v6680
  %7724 = vmatpush2.msra.mxu0 %v6679
  %7725 = vmatprep.subr.mxu0 %v6676
  %7726 = vmatpush2.msra.mxu0 %v6675
  %7727 = vmatprep.subr.mxu0 %v6672
  %7728 = vmatpush2.msra.mxu0 %v6671
  %7729 = vmatprep.subr.mxu0 %v6668
  %7730 = vmatpush2.msra.mxu0 %v6667
  %7731 = vmatprep.subr.mxu0 %v6664
  %7732 = vmatpush2.msra.mxu0 %v6663
  %7733 = vmatprep.subr.mxu0 %v6660
  %7734 = vmatpush2.msra.mxu0 %v6659
  %7735 = vmatprep.mubr.f32.mxu0 %v6077
  %7736 = vmatmul.mubr.f32.gmra.mxu0 %v6076
  %v7737 = vpop.f32.mrf.mxu0
  %v7738 = vadd.f32 %v7667, %v7737
  %v7739 = vpop.f32.mrf.mxu0
  %v7740 = vadd.f32 %v7669, %v7739
  %7741 = vdwg.mxu0
  %7742 = vmatprep.subr.mxu0 %v6784
  %7743 = vmatpush1.msra.mxu0 %v6783
  %7744 = vmatprep.subr.mxu0 %v6780
  %7745 = vmatpush1.msra.mxu0 %v6779
  %7746 = vmatprep.subr.mxu0 %v6776
  %7747 = vmatpush1.msra.mxu0 %v6775
  %7748 = vmatprep.subr.mxu0 %v6772
  %7749 = vmatpush1.msra.mxu0 %v6771
  %7750 = vmatprep.subr.mxu0 %v6768
  %7751 = vmatpush1.msra.mxu0 %v6767
  %7752 = vmatprep.subr.mxu0 %v6764
  %7753 = vmatpush1.msra.mxu0 %v6763
  %7754 = vmatprep.subr.mxu0 %v6760
  %7755 = vmatpush1.msra.mxu0 %v6759
  %7756 = vmatprep.subr.mxu0 %v6756
  %7757 = vmatpush1.msra.mxu0 %v6755
  %7758 = vmatprep.subr.mxu0 %v6752
  %7759 = vmatpush1.msra.mxu0 %v6751
  %7760 = vmatprep.subr.mxu0 %v6748
  %7761 = vmatpush1.msra.mxu0 %v6747
  %7762 = vmatprep.subr.mxu0 %v6744
  %7763 = vmatpush1.msra.mxu0 %v6743
  %7764 = vmatprep.subr.mxu0 %v6740
  %7765 = vmatpush1.msra.mxu0 %v6739
  %7766 = vmatprep.subr.mxu0 %v6736
  %7767 = vmatpush1.msra.mxu0 %v6735
  %7768 = vmatprep.subr.mxu0 %v6732
  %7769 = vmatpush1.msra.mxu0 %v6731
  %7770 = vmatprep.subr.mxu0 %v6728
  %7771 = vmatpush1.msra.mxu0 %v6727
  %7772 = vmatprep.subr.mxu0 %v6724
  %7773 = vmatpush1.msra.mxu0 %v6723
  %7774 = vmatprep.subr.mxu0 %v6848
  %7775 = vmatpush2.msra.mxu0 %v6847
  %7776 = vmatprep.subr.mxu0 %v6844
  %7777 = vmatpush2.msra.mxu0 %v6843
  %7778 = vmatprep.subr.mxu0 %v6840
  %7779 = vmatpush2.msra.mxu0 %v6839
  %7780 = vmatprep.subr.mxu0 %v6836
  %7781 = vmatpush2.msra.mxu0 %v6835
  %7782 = vmatprep.subr.mxu0 %v6832
  %7783 = vmatpush2.msra.mxu0 %v6831
  %7784 = vmatprep.subr.mxu0 %v6828
  %7785 = vmatpush2.msra.mxu0 %v6827
  %7786 = vmatprep.subr.mxu0 %v6824
  %7787 = vmatpush2.msra.mxu0 %v6823
  %7788 = vmatprep.subr.mxu0 %v6820
  %7789 = vmatpush2.msra.mxu0 %v6819
  %7790 = vmatprep.subr.mxu0 %v6816
  %7791 = vmatpush2.msra.mxu0 %v6815
  %7792 = vmatprep.subr.mxu0 %v6812
  %7793 = vmatpush2.msra.mxu0 %v6811
  %7794 = vmatprep.subr.mxu0 %v6808
  %7795 = vmatpush2.msra.mxu0 %v6807
  %7796 = vmatprep.subr.mxu0 %v6804
  %7797 = vmatpush2.msra.mxu0 %v6803
  %7798 = vmatprep.subr.mxu0 %v6800
  %7799 = vmatpush2.msra.mxu0 %v6799
  %7800 = vmatprep.subr.mxu0 %v6796
  %7801 = vmatpush2.msra.mxu0 %v6795
  %7802 = vmatprep.subr.mxu0 %v6792
  %7803 = vmatpush2.msra.mxu0 %v6791
  %7804 = vmatprep.subr.mxu0 %v6788
  %7805 = vmatpush2.msra.mxu0 %v6787
  %7806 = vmatprep.mubr.f32.mxu0 %v6079
  %7807 = vmatmul.mubr.f32.gmra.mxu0 %v6078
  %v7808 = vpop.f32.mrf.mxu0
  %v7809 = vadd.f32 %v7738, %v7808
  %v7810 = vpop.f32.mrf.mxu0
  %v7811 = vadd.f32 %v7740, %v7810
  %7812 = vdwg.mxu0
  %7813 = vmatprep.subr.mxu0 0.0
  %7814 = vmatpush1.msra.mxu0 0.0
  %7815 = vmatprep.subr.mxu0 0.0
  %7816 = vmatpush1.msra.mxu0 0.0
  %7817 = vmatprep.subr.mxu0 0.0
  %7818 = vmatpush1.msra.mxu0 0.0
  %7819 = vmatprep.subr.mxu0 0.0
  %7820 = vmatpush1.msra.mxu0 0.0
  %7821 = vmatprep.subr.mxu0 0.0
  %7822 = vmatpush1.msra.mxu0 0.0
  %7823 = vmatprep.subr.mxu0 0.0
  %7824 = vmatpush1.msra.mxu0 0.0
  %7825 = vmatprep.subr.mxu0 0.0
  %7826 = vmatpush1.msra.mxu0 0.0
  %7827 = vmatprep.subr.mxu0 0.0
  %7828 = vmatpush1.msra.mxu0 0.0
  %7829 = vmatprep.subr.mxu0 0.0
  %7830 = vmatpush1.msra.mxu0 0.0
  %7831 = vmatprep.subr.mxu0 0.0
  %7832 = vmatpush1.msra.mxu0 0.0
  %7833 = vmatprep.subr.mxu0 0.0
  %7834 = vmatpush1.msra.mxu0 0.0
  %7835 = vmatprep.subr.mxu0 0.0
  %7836 = vmatpush1.msra.mxu0 0.0
  %7837 = vmatprep.subr.mxu0 %v6864
  %7838 = vmatpush1.msra.mxu0 %v6863
  %7839 = vmatprep.subr.mxu0 %v6860
  %7840 = vmatpush1.msra.mxu0 %v6859
  %7841 = vmatprep.subr.mxu0 %v6856
  %7842 = vmatpush1.msra.mxu0 %v6855
  %7843 = vmatprep.subr.mxu0 %v6852
  %7844 = vmatpush1.msra.mxu0 %v6851
  %7845 = vmatprep.subr.mxu0 0.0
  %7846 = vmatpush2.msra.mxu0 0.0
  %7847 = vmatprep.subr.mxu0 0.0
  %7848 = vmatpush2.msra.mxu0 0.0
  %7849 = vmatprep.subr.mxu0 0.0
  %7850 = vmatpush2.msra.mxu0 0.0
  %7851 = vmatprep.subr.mxu0 0.0
  %7852 = vmatpush2.msra.mxu0 0.0
  %7853 = vmatprep.subr.mxu0 0.0
  %7854 = vmatpush2.msra.mxu0 0.0
  %7855 = vmatprep.subr.mxu0 0.0
  %7856 = vmatpush2.msra.mxu0 0.0
  %7857 = vmatprep.subr.mxu0 0.0
  %7858 = vmatpush2.msra.mxu0 0.0
  %7859 = vmatprep.subr.mxu0 0.0
  %7860 = vmatpush2.msra.mxu0 0.0
  %7861 = vmatprep.subr.mxu0 0.0
  %7862 = vmatpush2.msra.mxu0 0.0
  %7863 = vmatprep.subr.mxu0 0.0
  %7864 = vmatpush2.msra.mxu0 0.0
  %7865 = vmatprep.subr.mxu0 0.0
  %7866 = vmatpush2.msra.mxu0 0.0
  %7867 = vmatprep.subr.mxu0 0.0
  %7868 = vmatpush2.msra.mxu0 0.0
  %7869 = vmatprep.subr.mxu0 0.0
  %7870 = vmatpush2.msra.mxu0 0.0
  %7871 = vmatprep.subr.mxu0 0.0
  %7872 = vmatpush2.msra.mxu0 0.0
  %7873 = vmatprep.subr.mxu0 0.0
  %7874 = vmatpush2.msra.mxu0 0.0
  %7875 = vmatprep.subr.mxu0 0.0
  %7876 = vmatpush2.msra.mxu0 0.0
  %7877 = vmatprep.mubr.f32.mxu0 0.0
  %7878 = vmatmul.mubr.f32.gmra.mxu0 %v6888
  %v7879 = vpop.f32.mrf.mxu0
  %v7880 = vadd.f32 %v7809, %v7879
  %v7881 = vpop.f32.mrf.mxu0
  %v7882 = vadd.f32 %v7811, %v7881
  %7883 = vdwg.mxu0
  %v7884 = vld [vmem:[%s9] sm:$0xff]
  %v7885 = vld [vmem:[%s9 + $0x8] sm:$0xff]
  %v7886 = vld [vmem:[%s9 + $0x10] sm:$0xff]
  %v7887 = vld [vmem:[%s9 + $0x18] sm:$0xff]
  %v7888 = vld [vmem:[%s9 + $0x20] sm:$0xff]
  %v7889 = vld [vmem:[%s9 + $0x28] sm:$0xff]
  %v7890 = vld [vmem:[%s9 + $0x30] sm:$0xff]
  %v7891 = vld [vmem:[%s9 + $0x38] sm:$0xff]
  %v7892 = vld [vmem:[%s9 + $0x40] sm:$0xff]
  %v7893 = vld [vmem:[%s9 + $0x48] sm:$0xff]
  %v7894 = vld [vmem:[%s9 + $0x50] sm:$0xff]
  %v7895 = vld [vmem:[%s9 + $0x58] sm:$0xff]
  %v7896 = vld [vmem:[%s9 + $0x60] sm:$0xff]
  %v7897 = vld [vmem:[%s9 + $0x68] sm:$0xff]
  %v7898 = vld [vmem:[%s9 + $0x70] sm:$0xff]
  %v7899 = vld [vmem:[%s9 + $0x78] sm:$0xff]
  %v7900 = vld [vmem:[%s9 + $0x80] sm:$0xff]
  %v7901 = vld [vmem:[%s9 + $0x88] sm:$0xff]
  %v7902 = vld [vmem:[%s9 + $0x90] sm:$0xff]
  %v7903 = vld [vmem:[%s9 + $0x98] sm:$0xff]
  %v7904 = vld [vmem:[%s9 + $0xa0] sm:$0xff]
  %v7905 = vld [vmem:[%s9 + $0xa8] sm:$0xff]
  %v7906 = vld [vmem:[%s9 + $0xb0] sm:$0xff]
  %v7907 = vld [vmem:[%s9 + $0xb8] sm:$0xff]
  %v7908 = vld [vmem:[%s9 + $0xc0] sm:$0xff]
  %v7909 = vld [vmem:[%s9 + $0xc8] sm:$0xff]
  %v7910 = vld [vmem:[%s9 + $0xd0] sm:$0xff]
  %v7911 = vld [vmem:[%s9 + $0xd8] sm:$0xff]
  %v7912 = vld [vmem:[%s9 + $0xe0] sm:$0xff]
  %v7913 = vld [vmem:[%s9 + $0xe8] sm:$0xff]
  %v7914 = vld [vmem:[%s9 + $0xf0] sm:$0xff]
  %v7915 = vld [vmem:[%s9 + $0xf8] sm:$0xff]
  %v7916 = vld [vmem:[%s9 + $0x100] sm:$0xff]
  %v7917 = vld [vmem:[%s9 + $0x108] sm:$0xff]
  %v7918 = vld [vmem:[%s9 + $0x110] sm:$0xff]
  %v7919 = vld [vmem:[%s9 + $0x118] sm:$0xff]
  %v7920 = vld [vmem:[%s9 + $0x120] sm:$0xff]
  %v7921 = vld [vmem:[%s9 + $0x128] sm:$0xff]
  %v7922 = vld [vmem:[%s9 + $0x130] sm:$0xff]
  %v7923 = vld [vmem:[%s9 + $0x138] sm:$0xff]
  %v7924 = vld [vmem:[%s9 + $0x140] sm:$0xff]
  %v7925 = vld [vmem:[%s9 + $0x148] sm:$0xff]
  %v7926 = vld [vmem:[%s9 + $0x150] sm:$0xff]
  %v7927 = vld [vmem:[%s9 + $0x158] sm:$0xff]
  %v7928 = vld [vmem:[%s9 + $0x160] sm:$0xff]
  %v7929 = vld [vmem:[%s9 + $0x168] sm:$0xff]
  %v7930 = vld [vmem:[%s9 + $0x170] sm:$0xff]
  %v7931 = vld [vmem:[%s9 + $0x178] sm:$0xff]
  %v7932 = vld [vmem:[%s9 + $0x180] sm:$0xff]
  %v7934 = vsel %vm5043, %v7882, 0
  %7936 = vmatprep.subr.mxu0 0.0
  %7937 = vmatpush1.msra.mxu0 %v7899
  %7938 = vmatprep.subr.mxu0 0.0
  %7939 = vmatpush1.msra.mxu0 %v7898
  %7940 = vmatprep.subr.mxu0 0.0
  %7941 = vmatpush1.msra.mxu0 %v7897
  %7942 = vmatprep.subr.mxu0 0.0
  %7943 = vmatpush1.msra.mxu0 %v7896
  %7944 = vmatprep.subr.mxu0 0.0
  %7945 = vmatpush1.msra.mxu0 %v7895
  %7946 = vmatprep.subr.mxu0 0.0
  %7947 = vmatpush1.msra.mxu0 %v7894
  %7948 = vmatprep.subr.mxu0 0.0
  %7949 = vmatpush1.msra.mxu0 %v7893
  %7950 = vmatprep.subr.mxu0 0.0
  %7951 = vmatpush1.msra.mxu0 %v7892
  %7952 = vmatprep.subr.mxu0 0.0
  %7953 = vmatpush1.msra.mxu0 %v7891
  %7954 = vmatprep.subr.mxu0 0.0
  %7955 = vmatpush1.msra.mxu0 %v7890
  %7956 = vmatprep.subr.mxu0 0.0
  %7957 = vmatpush1.msra.mxu0 %v7889
  %7958 = vmatprep.subr.mxu0 0.0
  %7959 = vmatpush1.msra.mxu0 %v7888
  %7960 = vmatprep.subr.mxu0 0.0
  %7961 = vmatpush1.msra.mxu0 %v7887
  %7962 = vmatprep.subr.mxu0 0.0
  %7963 = vmatpush1.msra.mxu0 %v7886
  %7964 = vmatprep.subr.mxu0 0.0
  %7965 = vmatpush1.msra.mxu0 %v7885
  %7966 = vmatprep.subr.mxu0 0.0
  %7967 = vmatpush1.msra.mxu0 %v7884
  %7968 = vmatprep.subr.mxu0 0.0
  %7969 = vmatpush2.msra.mxu0 %v7915
  %7970 = vmatprep.subr.mxu0 0.0
  %7971 = vmatpush2.msra.mxu0 %v7914
  %7972 = vmatprep.subr.mxu0 0.0
  %7973 = vmatpush2.msra.mxu0 %v7913
  %7974 = vmatprep.subr.mxu0 0.0
  %7975 = vmatpush2.msra.mxu0 %v7912
  %7976 = vmatprep.subr.mxu0 0.0
  %7977 = vmatpush2.msra.mxu0 %v7911
  %7978 = vmatprep.subr.mxu0 0.0
  %7979 = vmatpush2.msra.mxu0 %v7910
  %7980 = vmatprep.subr.mxu0 0.0
  %7981 = vmatpush2.msra.mxu0 %v7909
  %7982 = vmatprep.subr.mxu0 0.0
  %7983 = vmatpush2.msra.mxu0 %v7908
  %7984 = vmatprep.subr.mxu0 0.0
  %7985 = vmatpush2.msra.mxu0 %v7907
  %7986 = vmatprep.subr.mxu0 0.0
  %7987 = vmatpush2.msra.mxu0 %v7906
  %7988 = vmatprep.subr.mxu0 0.0
  %7989 = vmatpush2.msra.mxu0 %v7905
  %7990 = vmatprep.subr.mxu0 0.0
  %7991 = vmatpush2.msra.mxu0 %v7904
  %7992 = vmatprep.subr.mxu0 0.0
  %7993 = vmatpush2.msra.mxu0 %v7903
  %7994 = vmatprep.subr.mxu0 0.0
  %7995 = vmatpush2.msra.mxu0 %v7902
  %7996 = vmatprep.subr.mxu0 0.0
  %7997 = vmatpush2.msra.mxu0 %v7901
  %7998 = vmatprep.subr.mxu0 0.0
  %7999 = vmatpush2.msra.mxu0 %v7900
  %8000 = vmatprep.mubr.f32.mxu0 %v7385
  %8001 = vmatmul.mubr.f32.gmra.mxu0 %v7383
  %v8002 = vpop.f32.mrf.mxu0
  %v8003 = vadd.f32 0.0, %v8002
  %v8004 = vpop.f32.mrf.mxu0
  %8005 = vdwg.mxu0
  %8006 = vmatprep.subr.mxu0 0.0
  %8007 = vmatpush1.msra.mxu0 %v7931
  %8008 = vmatprep.subr.mxu0 0.0
  %8009 = vmatpush1.msra.mxu0 %v7930
  %8010 = vmatprep.subr.mxu0 0.0
  %8011 = vmatpush1.msra.mxu0 %v7929
  %8012 = vmatprep.subr.mxu0 0.0
  %8013 = vmatpush1.msra.mxu0 %v7928
  %8014 = vmatprep.subr.mxu0 0.0
  %8015 = vmatpush1.msra.mxu0 %v7927
  %8016 = vmatprep.subr.mxu0 0.0
  %8017 = vmatpush1.msra.mxu0 %v7926
  %8018 = vmatprep.subr.mxu0 0.0
  %8019 = vmatpush1.msra.mxu0 %v7925
  %8020 = vmatprep.subr.mxu0 0.0
  %8021 = vmatpush1.msra.mxu0 %v7924
  %8022 = vmatprep.subr.mxu0 0.0
  %8023 = vmatpush1.msra.mxu0 %v7923
  %8024 = vmatprep.subr.mxu0 0.0
  %8025 = vmatpush1.msra.mxu0 %v7922
  %8026 = vmatprep.subr.mxu0 0.0
  %8027 = vmatpush1.msra.mxu0 %v7921
  %8028 = vmatprep.subr.mxu0 0.0
  %8029 = vmatpush1.msra.mxu0 %v7920
  %8030 = vmatprep.subr.mxu0 0.0
  %8031 = vmatpush1.msra.mxu0 %v7919
  %8032 = vmatprep.subr.mxu0 0.0
  %8033 = vmatpush1.msra.mxu0 %v7918
  %8034 = vmatprep.subr.mxu0 0.0
  %8035 = vmatpush1.msra.mxu0 %v7917
  %8036 = vmatprep.subr.mxu0 0.0
  %8037 = vmatpush1.msra.mxu0 %v7916
  %8038 = vmatprep.subr.mxu0 0.0
  %8039 = vmatpush2.msra.mxu0 0.0
  %8040 = vmatprep.subr.mxu0 0.0
  %8041 = vmatpush2.msra.mxu0 0.0
  %8042 = vmatprep.subr.mxu0 0.0
  %8043 = vmatpush2.msra.mxu0 0.0
  %8044 = vmatprep.subr.mxu0 0.0
  %8045 = vmatpush2.msra.mxu0 0.0
  %8046 = vmatprep.subr.mxu0 0.0
  %8047 = vmatpush2.msra.mxu0 0.0
  %8048 = vmatprep.subr.mxu0 0.0
  %8049 = vmatpush2.msra.mxu0 0.0
  %8050 = vmatprep.subr.mxu0 0.0
  %8051 = vmatpush2.msra.mxu0 0.0
  %8052 = vmatprep.subr.mxu0 0.0
  %8053 = vmatpush2.msra.mxu0 0.0
  %8054 = vmatprep.subr.mxu0 0.0
  %8055 = vmatpush2.msra.mxu0 0.0
  %8056 = vmatprep.subr.mxu0 0.0
  %8057 = vmatpush2.msra.mxu0 0.0
  %8058 = vmatprep.subr.mxu0 0.0
  %8059 = vmatpush2.msra.mxu0 0.0
  %8060 = vmatprep.subr.mxu0 0.0
  %8061 = vmatpush2.msra.mxu0 0.0
  %8062 = vmatprep.subr.mxu0 0.0
  %8063 = vmatpush2.msra.mxu0 0.0
  %8064 = vmatprep.subr.mxu0 0.0
  %8065 = vmatpush2.msra.mxu0 0.0
  %8066 = vmatprep.subr.mxu0 0.0
  %8067 = vmatpush2.msra.mxu0 0.0
  %8068 = vmatprep.subr.mxu0 0.0
  %8069 = vmatpush2.msra.mxu0 %v7932
  %8070 = vmatprep.mubr.f32.mxu0 %v7934
  %8071 = vmatmul.mubr.f32.gmra.mxu0 %v7880
  %v8072 = vpop.f32.mrf.mxu0
  %v8073 = vadd.f32 %v8003, %v8072
  %v8074 = vpop.f32.mrf.mxu0
  %8075 = vdwg.mxu0
  %v8076 = vmul.f32 %v7383, %v7383
  %v8077 = vmul.f32 %v7385, %v7385
  %v8078 = vmul.f32 %v7880, %v7880
  %v8079 = vmul.f32 %v7882, %v7882
  %v8081 = vsel %vm5043, %v8079, 0
  %8083 = vmatprep.subr.mxu0 0.0
  %8084 = vmatpush1.msra.mxu0 %v7899
  %8085 = vmatprep.subr.mxu0 0.0
  %8086 = vmatpush1.msra.mxu0 %v7898
  %8087 = vmatprep.subr.mxu0 0.0
  %8088 = vmatpush1.msra.mxu0 %v7897
  %8089 = vmatprep.subr.mxu0 0.0
  %8090 = vmatpush1.msra.mxu0 %v7896
  %8091 = vmatprep.subr.mxu0 0.0
  %8092 = vmatpush1.msra.mxu0 %v7895
  %8093 = vmatprep.subr.mxu0 0.0
  %8094 = vmatpush1.msra.mxu0 %v7894
  %8095 = vmatprep.subr.mxu0 0.0
  %8096 = vmatpush1.msra.mxu0 %v7893
  %8097 = vmatprep.subr.mxu0 0.0
  %8098 = vmatpush1.msra.mxu0 %v7892
  %8099 = vmatprep.subr.mxu0 0.0
  %8100 = vmatpush1.msra.mxu0 %v7891
  %8101 = vmatprep.subr.mxu0 0.0
  %8102 = vmatpush1.msra.mxu0 %v7890
  %8103 = vmatprep.subr.mxu0 0.0
  %8104 = vmatpush1.msra.mxu0 %v7889
  %8105 = vmatprep.subr.mxu0 0.0
  %8106 = vmatpush1.msra.mxu0 %v7888
  %8107 = vmatprep.subr.mxu0 0.0
  %8108 = vmatpush1.msra.mxu0 %v7887
  %8109 = vmatprep.subr.mxu0 0.0
  %8110 = vmatpush1.msra.mxu0 %v7886
  %8111 = vmatprep.subr.mxu0 0.0
  %8112 = vmatpush1.msra.mxu0 %v7885
  %8113 = vmatprep.subr.mxu0 0.0
  %8114 = vmatpush1.msra.mxu0 %v7884
  %8115 = vmatprep.subr.mxu0 0.0
  %8116 = vmatpush2.msra.mxu0 %v7915
  %8117 = vmatprep.subr.mxu0 0.0
  %8118 = vmatpush2.msra.mxu0 %v7914
  %8119 = vmatprep.subr.mxu0 0.0
  %8120 = vmatpush2.msra.mxu0 %v7913
  %8121 = vmatprep.subr.mxu0 0.0
  %8122 = vmatpush2.msra.mxu0 %v7912
  %8123 = vmatprep.subr.mxu0 0.0
  %8124 = vmatpush2.msra.mxu0 %v7911
  %8125 = vmatprep.subr.mxu0 0.0
  %8126 = vmatpush2.msra.mxu0 %v7910
  %8127 = vmatprep.subr.mxu0 0.0
  %8128 = vmatpush2.msra.mxu0 %v7909
  %8129 = vmatprep.subr.mxu0 0.0
  %8130 = vmatpush2.msra.mxu0 %v7908
  %8131 = vmatprep.subr.mxu0 0.0
  %8132 = vmatpush2.msra.mxu0 %v7907
  %8133 = vmatprep.subr.mxu0 0.0
  %8134 = vmatpush2.msra.mxu0 %v7906
  %8135 = vmatprep.subr.mxu0 0.0
  %8136 = vmatpush2.msra.mxu0 %v7905
  %8137 = vmatprep.subr.mxu0 0.0
  %8138 = vmatpush2.msra.mxu0 %v7904
  %8139 = vmatprep.subr.mxu0 0.0
  %8140 = vmatpush2.msra.mxu0 %v7903
  %8141 = vmatprep.subr.mxu0 0.0
  %8142 = vmatpush2.msra.mxu0 %v7902
  %8143 = vmatprep.subr.mxu0 0.0
  %8144 = vmatpush2.msra.mxu0 %v7901
  %8145 = vmatprep.subr.mxu0 0.0
  %8146 = vmatpush2.msra.mxu0 %v7900
  %8147 = vmatprep.mubr.f32.mxu0 %v8077
  %8148 = vmatmul.mubr.f32.gmra.mxu0 %v8076
  %v8149 = vpop.f32.mrf.mxu0
  %v8150 = vadd.f32 0.0, %v8149
  %v8151 = vpop.f32.mrf.mxu0
  %8152 = vdwg.mxu0
  %8153 = vmatprep.subr.mxu0 0.0
  %8154 = vmatpush1.msra.mxu0 %v7931
  %8155 = vmatprep.subr.mxu0 0.0
  %8156 = vmatpush1.msra.mxu0 %v7930
  %8157 = vmatprep.subr.mxu0 0.0
  %8158 = vmatpush1.msra.mxu0 %v7929
  %8159 = vmatprep.subr.mxu0 0.0
  %8160 = vmatpush1.msra.mxu0 %v7928
  %8161 = vmatprep.subr.mxu0 0.0
  %8162 = vmatpush1.msra.mxu0 %v7927
  %8163 = vmatprep.subr.mxu0 0.0
  %8164 = vmatpush1.msra.mxu0 %v7926
  %8165 = vmatprep.subr.mxu0 0.0
  %8166 = vmatpush1.msra.mxu0 %v7925
  %8167 = vmatprep.subr.mxu0 0.0
  %8168 = vmatpush1.msra.mxu0 %v7924
  %8169 = vmatprep.subr.mxu0 0.0
  %8170 = vmatpush1.msra.mxu0 %v7923
  %8171 = vmatprep.subr.mxu0 0.0
  %8172 = vmatpush1.msra.mxu0 %v7922
  %8173 = vmatprep.subr.mxu0 0.0
  %8174 = vmatpush1.msra.mxu0 %v7921
  %8175 = vmatprep.subr.mxu0 0.0
  %8176 = vmatpush1.msra.mxu0 %v7920
  %8177 = vmatprep.subr.mxu0 0.0
  %8178 = vmatpush1.msra.mxu0 %v7919
  %8179 = vmatprep.subr.mxu0 0.0
  %8180 = vmatpush1.msra.mxu0 %v7918
  %8181 = vmatprep.subr.mxu0 0.0
  %8182 = vmatpush1.msra.mxu0 %v7917
  %8183 = vmatprep.subr.mxu0 0.0
  %8184 = vmatpush1.msra.mxu0 %v7916
  %8185 = vmatprep.subr.mxu0 0.0
  %8186 = vmatpush2.msra.mxu0 0.0
  %8187 = vmatprep.subr.mxu0 0.0
  %8188 = vmatpush2.msra.mxu0 0.0
  %8189 = vmatprep.subr.mxu0 0.0
  %8190 = vmatpush2.msra.mxu0 0.0
  %8191 = vmatprep.subr.mxu0 0.0
  %8192 = vmatpush2.msra.mxu0 0.0
  %8193 = vmatprep.subr.mxu0 0.0
  %8194 = vmatpush2.msra.mxu0 0.0
  %8195 = vmatprep.subr.mxu0 0.0
  %8196 = vmatpush2.msra.mxu0 0.0
  %8197 = vmatprep.subr.mxu0 0.0
  %8198 = vmatpush2.msra.mxu0 0.0
  %8199 = vmatprep.subr.mxu0 0.0
  %8200 = vmatpush2.msra.mxu0 0.0
  %8201 = vmatprep.subr.mxu0 0.0
  %8202 = vmatpush2.msra.mxu0 0.0
  %8203 = vmatprep.subr.mxu0 0.0
  %8204 = vmatpush2.msra.mxu0 0.0
  %8205 = vmatprep.subr.mxu0 0.0
  %8206 = vmatpush2.msra.mxu0 0.0
  %8207 = vmatprep.subr.mxu0 0.0
  %8208 = vmatpush2.msra.mxu0 0.0
  %8209 = vmatprep.subr.mxu0 0.0
  %8210 = vmatpush2.msra.mxu0 0.0
  %8211 = vmatprep.subr.mxu0 0.0
  %8212 = vmatpush2.msra.mxu0 0.0
  %8213 = vmatprep.subr.mxu0 0.0
  %8214 = vmatpush2.msra.mxu0 0.0
  %8215 = vmatprep.subr.mxu0 0.0
  %8216 = vmatpush2.msra.mxu0 %v7932
  %8217 = vmatprep.mubr.f32.mxu0 %v8081
  %8218 = vmatmul.mubr.f32.gmra.mxu0 %v8078
  %v8219 = vpop.f32.mrf.mxu0
  %v8220 = vadd.f32 %v8150, %v8219
  %v8221 = vpop.f32.mrf.mxu0
  %8222 = vdwg.mxu0
  %v8223 = vmul.f32 %v8073, %v8073
  %v8224 = vsub.f32 %v8220, %v8223
  %v8225 = vld [vmem:[%s11] sm:$0x1]
  %v8226 = vadd.f32 %v8224, 1e-05
  %v8227 = vrsqrt.pop %v8226
  %v8229 = vlaneseq
  %v8230 = vshrl.u32 %v8229, 7
  %v8231 = vsub.s32 0, %v8230
  %v8232 = vrot.slane %v8225, %v8231
  %v8234 = vmul.f32 %v8232, %v8227
  %v8235 = vld [vmem:[%s12] sm:$0x1]
  %v8236 = vmul.f32 %v8073, %v8234
  %v8238 = vlaneseq
  %v8239 = vshrl.u32 %v8238, 7
  %v8240 = vsub.s32 0, %v8239
  %v8241 = vrot.slane %v8235, %v8240
  %v8243 = vsub.f32 %v8241, %v8236
  %v8244 = vld [vmem:[%s10] sm:$0xff]
  %v8245 = vld [vmem:[%s10 + $0x8] sm:$0xff]
  %v8246 = vld [vmem:[%s10 + $0x10] sm:$0xff]
  %v8247 = vld [vmem:[%s10 + $0x18] sm:$0xff]
  %v8249 = vsel %vm5043, %v8234, 0
  %8251 = vmatprep.subr.mxu0 0.0
  %8252 = vmatpush1.msra.mxu0 0.0
  %8253 = vmatprep.subr.mxu0 0.0
  %8254 = vmatpush1.msra.mxu0 0.0
  %8255 = vmatprep.subr.mxu0 0.0
  %8256 = vmatpush1.msra.mxu0 0.0
  %8257 = vmatprep.subr.mxu0 0.0
  %8258 = vmatpush1.msra.mxu0 0.0
  %8259 = vmatprep.subr.mxu0 0.0
  %8260 = vmatpush1.msra.mxu0 0.0
  %8261 = vmatprep.subr.mxu0 0.0
  %8262 = vmatpush1.msra.mxu0 0.0
  %8263 = vmatprep.subr.mxu0 0.0
  %8264 = vmatpush1.msra.mxu0 0.0
  %8265 = vmatprep.subr.mxu0 0.0
  %8266 = vmatpush1.msra.mxu0 0.0
  %8267 = vmatprep.subr.mxu0 0.0
  %8268 = vmatpush1.msra.mxu0 0.0
  %8269 = vmatprep.subr.mxu0 0.0
  %8270 = vmatpush1.msra.mxu0 0.0
  %8271 = vmatprep.subr.mxu0 0.0
  %8272 = vmatpush1.msra.mxu0 0.0
  %8273 = vmatprep.subr.mxu0 0.0
  %8274 = vmatpush1.msra.mxu0 0.0
  %8275 = vmatprep.subr.mxu0 0.0
  %8276 = vmatpush1.msra.mxu0 0.0
  %8277 = vmatprep.subr.mxu0 0.0
  %8278 = vmatpush1.msra.mxu0 0.0
  %8279 = vmatprep.subr.mxu0 0.0
  %8280 = vmatpush1.msra.mxu0 0.0
  %8281 = vmatprep.subr.mxu0 %v8245
  %8282 = vmatpush1.msra.mxu0 %v8244
  %8283 = vmatprep.subr.mxu0 0.0
  %8284 = vmatpush2.msra.mxu0 0.0
  %8285 = vmatprep.subr.mxu0 0.0
  %8286 = vmatpush2.msra.mxu0 0.0
  %8287 = vmatprep.subr.mxu0 0.0
  %8288 = vmatpush2.msra.mxu0 0.0
  %8289 = vmatprep.subr.mxu0 0.0
  %8290 = vmatpush2.msra.mxu0 0.0
  %8291 = vmatprep.subr.mxu0 0.0
  %8292 = vmatpush2.msra.mxu0 0.0
  %8293 = vmatprep.subr.mxu0 0.0
  %8294 = vmatpush2.msra.mxu0 0.0
  %8295 = vmatprep.subr.mxu0 0.0
  %8296 = vmatpush2.msra.mxu0 0.0
  %8297 = vmatprep.subr.mxu0 0.0
  %8298 = vmatpush2.msra.mxu0 0.0
  %8299 = vmatprep.subr.mxu0 0.0
  %8300 = vmatpush2.msra.mxu0 0.0
  %8301 = vmatprep.subr.mxu0 0.0
  %8302 = vmatpush2.msra.mxu0 0.0
  %8303 = vmatprep.subr.mxu0 0.0
  %8304 = vmatpush2.msra.mxu0 0.0
  %8305 = vmatprep.subr.mxu0 0.0
  %8306 = vmatpush2.msra.mxu0 0.0
  %8307 = vmatprep.subr.mxu0 0.0
  %8308 = vmatpush2.msra.mxu0 0.0
  %8309 = vmatprep.subr.mxu0 0.0
  %8310 = vmatpush2.msra.mxu0 0.0
  %8311 = vmatprep.subr.mxu0 0.0
  %8312 = vmatpush2.msra.mxu0 0.0
  %8313 = vmatprep.subr.mxu0 0.0
  %8314 = vmatpush2.msra.mxu0 0.0
  %8315 = vmatprep.mubr.f32.mxu0 0.0
  %8316 = vmatmul.mubr.f32.gmra.mxu0 %v8249
  %v8317 = vpop.f32.mrf.mxu0
  %v8318 = vadd.f32 0.0, %v8317
  %v8319 = vpop.f32.mrf.mxu0
  %v8320 = vadd.f32 0.0, %v8319
  %8321 = vdwg.mxu0
  %8322 = vmatprep.subr.mxu0 0.0
  %8323 = vmatpush1.msra.mxu0 0.0
  %8324 = vmatprep.subr.mxu0 0.0
  %8325 = vmatpush1.msra.mxu0 0.0
  %8326 = vmatprep.subr.mxu0 0.0
  %8327 = vmatpush1.msra.mxu0 0.0
  %8328 = vmatprep.subr.mxu0 0.0
  %8329 = vmatpush1.msra.mxu0 0.0
  %8330 = vmatprep.subr.mxu0 0.0
  %8331 = vmatpush1.msra.mxu0 0.0
  %8332 = vmatprep.subr.mxu0 0.0
  %8333 = vmatpush1.msra.mxu0 0.0
  %8334 = vmatprep.subr.mxu0 0.0
  %8335 = vmatpush1.msra.mxu0 0.0
  %8336 = vmatprep.subr.mxu0 0.0
  %8337 = vmatpush1.msra.mxu0 0.0
  %8338 = vmatprep.subr.mxu0 0.0
  %8339 = vmatpush1.msra.mxu0 0.0
  %8340 = vmatprep.subr.mxu0 0.0
  %8341 = vmatpush1.msra.mxu0 0.0
  %8342 = vmatprep.subr.mxu0 0.0
  %8343 = vmatpush1.msra.mxu0 0.0
  %8344 = vmatprep.subr.mxu0 0.0
  %8345 = vmatpush1.msra.mxu0 0.0
  %8346 = vmatprep.subr.mxu0 0.0
  %8347 = vmatpush1.msra.mxu0 0.0
  %8348 = vmatprep.subr.mxu0 0.0
  %8349 = vmatpush1.msra.mxu0 0.0
  %8350 = vmatprep.subr.mxu0 0.0
  %8351 = vmatpush1.msra.mxu0 0.0
  %8352 = vmatprep.subr.mxu0 %v8247
  %8353 = vmatpush1.msra.mxu0 %v8246
  %8354 = vmatprep.subr.mxu0 0.0
  %8355 = vmatpush2.msra.mxu0 0.0
  %8356 = vmatprep.subr.mxu0 0.0
  %8357 = vmatpush2.msra.mxu0 0.0
  %8358 = vmatprep.subr.mxu0 0.0
  %8359 = vmatpush2.msra.mxu0 0.0
  %8360 = vmatprep.subr.mxu0 0.0
  %8361 = vmatpush2.msra.mxu0 0.0
  %8362 = vmatprep.subr.mxu0 0.0
  %8363 = vmatpush2.msra.mxu0 0.0
  %8364 = vmatprep.subr.mxu0 0.0
  %8365 = vmatpush2.msra.mxu0 0.0
  %8366 = vmatprep.subr.mxu0 0.0
  %8367 = vmatpush2.msra.mxu0 0.0
  %8368 = vmatprep.subr.mxu0 0.0
  %8369 = vmatpush2.msra.mxu0 0.0
  %8370 = vmatprep.subr.mxu0 0.0
  %8371 = vmatpush2.msra.mxu0 0.0
  %8372 = vmatprep.subr.mxu0 0.0
  %8373 = vmatpush2.msra.mxu0 0.0
  %8374 = vmatprep.subr.mxu0 0.0
  %8375 = vmatpush2.msra.mxu0 0.0
  %8376 = vmatprep.subr.mxu0 0.0
  %8377 = vmatpush2.msra.mxu0 0.0
  %8378 = vmatprep.subr.mxu0 0.0
  %8379 = vmatpush2.msra.mxu0 0.0
  %8380 = vmatprep.subr.mxu0 0.0
  %8381 = vmatpush2.msra.mxu0 0.0
  %8382 = vmatprep.subr.mxu0 0.0
  %8383 = vmatpush2.msra.mxu0 0.0
  %8384 = vmatprep.subr.mxu0 0.0
  %8385 = vmatpush2.msra.mxu0 0.0
  %8386 = vmatprep.mubr.f32.mxu0 0.0
  %8387 = vmatmul.mubr.f32.gmra.mxu0 %v8249
  %v8388 = vpop.f32.mrf.mxu0
  %v8389 = vadd.f32 0.0, %v8388
  %v8390 = vpop.f32.mrf.mxu0
  %v8391 = vadd.f32 0.0, %v8390
  %8392 = vdwg.mxu0
  %v8393 = vmul.f32 %v7383, %v8318
  %v8394 = vmul.f32 %v7385, %v8320
  %v8395 = vmul.f32 %v7880, %v8389
  %v8396 = vmul.f32 %v7882, %v8391
  %v8398 = vsel %vm5043, %v8243, 0
  %8400 = vmatprep.subr.mxu0 0.0
  %8401 = vmatpush1.msra.mxu0 0.0
  %8402 = vmatprep.subr.mxu0 0.0
  %8403 = vmatpush1.msra.mxu0 0.0
  %8404 = vmatprep.subr.mxu0 0.0
  %8405 = vmatpush1.msra.mxu0 0.0
  %8406 = vmatprep.subr.mxu0 0.0
  %8407 = vmatpush1.msra.mxu0 0.0
  %8408 = vmatprep.subr.mxu0 0.0
  %8409 = vmatpush1.msra.mxu0 0.0
  %8410 = vmatprep.subr.mxu0 0.0
  %8411 = vmatpush1.msra.mxu0 0.0
  %8412 = vmatprep.subr.mxu0 0.0
  %8413 = vmatpush1.msra.mxu0 0.0
  %8414 = vmatprep.subr.mxu0 0.0
  %8415 = vmatpush1.msra.mxu0 0.0
  %8416 = vmatprep.subr.mxu0 0.0
  %8417 = vmatpush1.msra.mxu0 0.0
  %8418 = vmatprep.subr.mxu0 0.0
  %8419 = vmatpush1.msra.mxu0 0.0
  %8420 = vmatprep.subr.mxu0 0.0
  %8421 = vmatpush1.msra.mxu0 0.0
  %8422 = vmatprep.subr.mxu0 0.0
  %8423 = vmatpush1.msra.mxu0 0.0
  %8424 = vmatprep.subr.mxu0 0.0
  %8425 = vmatpush1.msra.mxu0 0.0
  %8426 = vmatprep.subr.mxu0 0.0
  %8427 = vmatpush1.msra.mxu0 0.0
  %8428 = vmatprep.subr.mxu0 0.0
  %8429 = vmatpush1.msra.mxu0 0.0
  %8430 = vmatprep.subr.mxu0 %v8245
  %8431 = vmatpush1.msra.mxu0 %v8244
  %8432 = vmatprep.subr.mxu0 0.0
  %8433 = vmatpush2.msra.mxu0 0.0
  %8434 = vmatprep.subr.mxu0 0.0
  %8435 = vmatpush2.msra.mxu0 0.0
  %8436 = vmatprep.subr.mxu0 0.0
  %8437 = vmatpush2.msra.mxu0 0.0
  %8438 = vmatprep.subr.mxu0 0.0
  %8439 = vmatpush2.msra.mxu0 0.0
  %8440 = vmatprep.subr.mxu0 0.0
  %8441 = vmatpush2.msra.mxu0 0.0
  %8442 = vmatprep.subr.mxu0 0.0
  %8443 = vmatpush2.msra.mxu0 0.0
  %8444 = vmatprep.subr.mxu0 0.0
  %8445 = vmatpush2.msra.mxu0 0.0
  %8446 = vmatprep.subr.mxu0 0.0
  %8447 = vmatpush2.msra.mxu0 0.0
  %8448 = vmatprep.subr.mxu0 0.0
  %8449 = vmatpush2.msra.mxu0 0.0
  %8450 = vmatprep.subr.mxu0 0.0
  %8451 = vmatpush2.msra.mxu0 0.0
  %8452 = vmatprep.subr.mxu0 0.0
  %8453 = vmatpush2.msra.mxu0 0.0
  %8454 = vmatprep.subr.mxu0 0.0
  %8455 = vmatpush2.msra.mxu0 0.0
  %8456 = vmatprep.subr.mxu0 0.0
  %8457 = vmatpush2.msra.mxu0 0.0
  %8458 = vmatprep.subr.mxu0 0.0
  %8459 = vmatpush2.msra.mxu0 0.0
  %8460 = vmatprep.subr.mxu0 0.0
  %8461 = vmatpush2.msra.mxu0 0.0
  %8462 = vmatprep.subr.mxu0 0.0
  %8463 = vmatpush2.msra.mxu0 0.0
  %8464 = vmatprep.mubr.f32.mxu0 0.0
  %8465 = vmatmul.mubr.f32.gmra.mxu0 %v8398
  %v8466 = vpop.f32.mrf.mxu0
  %v8467 = vadd.f32 0.0, %v8466
  %v8468 = vpop.f32.mrf.mxu0
  %v8469 = vadd.f32 0.0, %v8468
  %8470 = vdwg.mxu0
  %8471 = vmatprep.subr.mxu0 0.0
  %8472 = vmatpush1.msra.mxu0 0.0
  %8473 = vmatprep.subr.mxu0 0.0
  %8474 = vmatpush1.msra.mxu0 0.0
  %8475 = vmatprep.subr.mxu0 0.0
  %8476 = vmatpush1.msra.mxu0 0.0
  %8477 = vmatprep.subr.mxu0 0.0
  %8478 = vmatpush1.msra.mxu0 0.0
  %8479 = vmatprep.subr.mxu0 0.0
  %8480 = vmatpush1.msra.mxu0 0.0
  %8481 = vmatprep.subr.mxu0 0.0
  %8482 = vmatpush1.msra.mxu0 0.0
  %8483 = vmatprep.subr.mxu0 0.0
  %8484 = vmatpush1.msra.mxu0 0.0
  %8485 = vmatprep.subr.mxu0 0.0
  %8486 = vmatpush1.msra.mxu0 0.0
  %8487 = vmatprep.subr.mxu0 0.0
  %8488 = vmatpush1.msra.mxu0 0.0
  %8489 = vmatprep.subr.mxu0 0.0
  %8490 = vmatpush1.msra.mxu0 0.0
  %8491 = vmatprep.subr.mxu0 0.0
  %8492 = vmatpush1.msra.mxu0 0.0
  %8493 = vmatprep.subr.mxu0 0.0
  %8494 = vmatpush1.msra.mxu0 0.0
  %8495 = vmatprep.subr.mxu0 0.0
  %8496 = vmatpush1.msra.mxu0 0.0
  %8497 = vmatprep.subr.mxu0 0.0
  %8498 = vmatpush1.msra.mxu0 0.0
  %8499 = vmatprep.subr.mxu0 0.0
  %8500 = vmatpush1.msra.mxu0 0.0
  %8501 = vmatprep.subr.mxu0 %v8247
  %8502 = vmatpush1.msra.mxu0 %v8246
  %8503 = vmatprep.subr.mxu0 0.0
  %8504 = vmatpush2.msra.mxu0 0.0
  %8505 = vmatprep.subr.mxu0 0.0
  %8506 = vmatpush2.msra.mxu0 0.0
  %8507 = vmatprep.subr.mxu0 0.0
  %8508 = vmatpush2.msra.mxu0 0.0
  %8509 = vmatprep.subr.mxu0 0.0
  %8510 = vmatpush2.msra.mxu0 0.0
  %8511 = vmatprep.subr.mxu0 0.0
  %8512 = vmatpush2.msra.mxu0 0.0
  %8513 = vmatprep.subr.mxu0 0.0
  %8514 = vmatpush2.msra.mxu0 0.0
  %8515 = vmatprep.subr.mxu0 0.0
  %8516 = vmatpush2.msra.mxu0 0.0
  %8517 = vmatprep.subr.mxu0 0.0
  %8518 = vmatpush2.msra.mxu0 0.0
  %8519 = vmatprep.subr.mxu0 0.0
  %8520 = vmatpush2.msra.mxu0 0.0
  %8521 = vmatprep.subr.mxu0 0.0
  %8522 = vmatpush2.msra.mxu0 0.0
  %8523 = vmatprep.subr.mxu0 0.0
  %8524 = vmatpush2.msra.mxu0 0.0
  %8525 = vmatprep.subr.mxu0 0.0
  %8526 = vmatpush2.msra.mxu0 0.0
  %8527 = vmatprep.subr.mxu0 0.0
  %8528 = vmatpush2.msra.mxu0 0.0
  %8529 = vmatprep.subr.mxu0 0.0
  %8530 = vmatpush2.msra.mxu0 0.0
  %8531 = vmatprep.subr.mxu0 0.0
  %8532 = vmatpush2.msra.mxu0 0.0
  %8533 = vmatprep.subr.mxu0 0.0
  %8534 = vmatpush2.msra.mxu0 0.0
  %8535 = vmatprep.mubr.f32.mxu0 0.0
  %8536 = vmatmul.mubr.f32.gmra.mxu0 %v8398
  %v8537 = vpop.f32.mrf.mxu0
  %v8538 = vadd.f32 0.0, %v8537
  %v8539 = vpop.f32.mrf.mxu0
  %v8540 = vadd.f32 0.0, %v8539
  %8541 = vdwg.mxu0
  %v8542 = vadd.f32 %v8393, %v8467
  %v8543 = vadd.f32 %v8394, %v8469
  %v8544 = vadd.f32 %v8395, %v8538
  %v8545 = vadd.f32 %v8396, %v8540
  %v8546 = vmax.f32 %v8542, 0.0
  %v8547 = vmax.f32 %v8543, 0.0
  %v8548 = vmax.f32 %v8544, 0.0
  %v8549 = vmax.f32 %v8545, 0.0
  %v8550 = vld [vmem:[%s13] sm:$0xff]
  %v8551 = vld [vmem:[%s13 + $0x8] sm:$0xff]
  %v8552 = vld [vmem:[%s13 + $0x10] sm:$0xff]
  %v8553 = vld [vmem:[%s13 + $0x18] sm:$0xff]
  %v8554 = vld [vmem:[%s13 + $0x20] sm:$0xff]
  %v8555 = vld [vmem:[%s13 + $0x28] sm:$0xff]
  %v8556 = vld [vmem:[%s13 + $0x30] sm:$0xff]
  %v8557 = vld [vmem:[%s13 + $0x38] sm:$0xff]
  %v8558 = vld [vmem:[%s13 + $0x40] sm:$0xff]
  %v8559 = vld [vmem:[%s13 + $0x48] sm:$0xff]
  %v8560 = vld [vmem:[%s13 + $0x50] sm:$0xff]
  %v8561 = vld [vmem:[%s13 + $0x58] sm:$0xff]
  %v8562 = vld [vmem:[%s13 + $0x60] sm:$0xff]
  %v8563 = vld [vmem:[%s13 + $0x68] sm:$0xff]
  %v8564 = vld [vmem:[%s13 + $0x70] sm:$0xff]
  %v8565 = vld [vmem:[%s13 + $0x78] sm:$0xff]
  %v8566 = vld [vmem:[%s13 + $0x80] sm:$0xff]
  %v8567 = vld [vmem:[%s13 + $0x88] sm:$0xff]
  %v8568 = vld [vmem:[%s13 + $0x90] sm:$0xff]
  %v8569 = vld [vmem:[%s13 + $0x98] sm:$0xff]
  %v8570 = vld [vmem:[%s13 + $0xa0] sm:$0xff]
  %v8571 = vld [vmem:[%s13 + $0xa8] sm:$0xff]
  %v8572 = vld [vmem:[%s13 + $0xb0] sm:$0xff]
  %v8573 = vld [vmem:[%s13 + $0xb8] sm:$0xff]
  %v8574 = vld [vmem:[%s13 + $0xc0] sm:$0xff]
  %v8575 = vld [vmem:[%s13 + $0xc8] sm:$0xff]
  %v8576 = vld [vmem:[%s13 + $0xd0] sm:$0xff]
  %v8577 = vld [vmem:[%s13 + $0xd8] sm:$0xff]
  %v8578 = vld [vmem:[%s13 + $0xe0] sm:$0xff]
  %v8579 = vld [vmem:[%s13 + $0xe8] sm:$0xff]
  %v8580 = vld [vmem:[%s13 + $0xf0] sm:$0xff]
  %v8581 = vld [vmem:[%s13 + $0xf8] sm:$0xff]
  %v8582 = vld [vmem:[%s13 + $0x100] sm:$0xff]
  %v8583 = vld [vmem:[%s13 + $0x108] sm:$0xff]
  %v8584 = vld [vmem:[%s13 + $0x110] sm:$0xff]
  %v8585 = vld [vmem:[%s13 + $0x118] sm:$0xff]
  %v8586 = vld [vmem:[%s13 + $0x120] sm:$0xff]
  %v8587 = vld [vmem:[%s13 + $0x128] sm:$0xff]
  %v8588 = vld [vmem:[%s13 + $0x130] sm:$0xff]
  %v8589 = vld [vmem:[%s13 + $0x138] sm:$0xff]
  %v8590 = vld [vmem:[%s13 + $0x140] sm:$0xff]
  %v8591 = vld [vmem:[%s13 + $0x148] sm:$0xff]
  %v8592 = vld [vmem:[%s13 + $0x150] sm:$0xff]
  %v8593 = vld [vmem:[%s13 + $0x158] sm:$0xff]
  %v8594 = vld [vmem:[%s13 + $0x160] sm:$0xff]
  %v8595 = vld [vmem:[%s13 + $0x168] sm:$0xff]
  %v8596 = vld [vmem:[%s13 + $0x170] sm:$0xff]
  %v8597 = vld [vmem:[%s13 + $0x178] sm:$0xff]
  %v8598 = vld [vmem:[%s13 + $0x180] sm:$0xff]
  %v8599 = vld [vmem:[%s14] sm:$0x1]
  %v8601 = vlaneseq
  %v8602 = vshrl.u32 %v8601, 7
  %v8603 = vsub.s32 0, %v8602
  %v8604 = vrot.slane %v8599, %v8603
  %v8607 = vsel %vm5043, %v8549, 0
  %8609 = vmatprep.subr.mxu0 0.0
  %8610 = vmatpush1.msra.mxu0 %v8565
  %8611 = vmatprep.subr.mxu0 0.0
  %8612 = vmatpush1.msra.mxu0 %v8564
  %8613 = vmatprep.subr.mxu0 0.0
  %8614 = vmatpush1.msra.mxu0 %v8563
  %8615 = vmatprep.subr.mxu0 0.0
  %8616 = vmatpush1.msra.mxu0 %v8562
  %8617 = vmatprep.subr.mxu0 0.0
  %8618 = vmatpush1.msra.mxu0 %v8561
  %8619 = vmatprep.subr.mxu0 0.0
  %8620 = vmatpush1.msra.mxu0 %v8560
  %8621 = vmatprep.subr.mxu0 0.0
  %8622 = vmatpush1.msra.mxu0 %v8559
  %8623 = vmatprep.subr.mxu0 0.0
  %8624 = vmatpush1.msra.mxu0 %v8558
  %8625 = vmatprep.subr.mxu0 0.0
  %8626 = vmatpush1.msra.mxu0 %v8557
  %8627 = vmatprep.subr.mxu0 0.0
  %8628 = vmatpush1.msra.mxu0 %v8556
  %8629 = vmatprep.subr.mxu0 0.0
  %8630 = vmatpush1.msra.mxu0 %v8555
  %8631 = vmatprep.subr.mxu0 0.0
  %8632 = vmatpush1.msra.mxu0 %v8554
  %8633 = vmatprep.subr.mxu0 0.0
  %8634 = vmatpush1.msra.mxu0 %v8553
  %8635 = vmatprep.subr.mxu0 0.0
  %8636 = vmatpush1.msra.mxu0 %v8552
  %8637 = vmatprep.subr.mxu0 0.0
  %8638 = vmatpush1.msra.mxu0 %v8551
  %8639 = vmatprep.subr.mxu0 0.0
  %8640 = vmatpush1.msra.mxu0 %v8550
  %8641 = vmatprep.subr.mxu0 0.0
  %8642 = vmatpush2.msra.mxu0 %v8581
  %8643 = vmatprep.subr.mxu0 0.0
  %8644 = vmatpush2.msra.mxu0 %v8580
  %8645 = vmatprep.subr.mxu0 0.0
  %8646 = vmatpush2.msra.mxu0 %v8579
  %8647 = vmatprep.subr.mxu0 0.0
  %8648 = vmatpush2.msra.mxu0 %v8578
  %8649 = vmatprep.subr.mxu0 0.0
  %8650 = vmatpush2.msra.mxu0 %v8577
  %8651 = vmatprep.subr.mxu0 0.0
  %8652 = vmatpush2.msra.mxu0 %v8576
  %8653 = vmatprep.subr.mxu0 0.0
  %8654 = vmatpush2.msra.mxu0 %v8575
  %8655 = vmatprep.subr.mxu0 0.0
  %8656 = vmatpush2.msra.mxu0 %v8574
  %8657 = vmatprep.subr.mxu0 0.0
  %8658 = vmatpush2.msra.mxu0 %v8573
  %8659 = vmatprep.subr.mxu0 0.0
  %8660 = vmatpush2.msra.mxu0 %v8572
  %8661 = vmatprep.subr.mxu0 0.0
  %8662 = vmatpush2.msra.mxu0 %v8571
  %8663 = vmatprep.subr.mxu0 0.0
  %8664 = vmatpush2.msra.mxu0 %v8570
  %8665 = vmatprep.subr.mxu0 0.0
  %8666 = vmatpush2.msra.mxu0 %v8569
  %8667 = vmatprep.subr.mxu0 0.0
  %8668 = vmatpush2.msra.mxu0 %v8568
  %8669 = vmatprep.subr.mxu0 0.0
  %8670 = vmatpush2.msra.mxu0 %v8567
  %8671 = vmatprep.subr.mxu0 0.0
  %8672 = vmatpush2.msra.mxu0 %v8566
  %8673 = vmatprep.mubr.f32.mxu0 %v8547
  %8674 = vmatmul.mubr.f32.gmra.mxu0 %v8546
  %v8675 = vpop.f32.mrf.mxu0
  %v8676 = vadd.f32 %v8604, %v8675
  %v8677 = vpop.f32.mrf.mxu0
  %8678 = vdwg.mxu0
  %8679 = vmatprep.subr.mxu0 0.0
  %8680 = vmatpush1.msra.mxu0 %v8597
  %8681 = vmatprep.subr.mxu0 0.0
  %8682 = vmatpush1.msra.mxu0 %v8596
  %8683 = vmatprep.subr.mxu0 0.0
  %8684 = vmatpush1.msra.mxu0 %v8595
  %8685 = vmatprep.subr.mxu0 0.0
  %8686 = vmatpush1.msra.mxu0 %v8594
  %8687 = vmatprep.subr.mxu0 0.0
  %8688 = vmatpush1.msra.mxu0 %v8593
  %8689 = vmatprep.subr.mxu0 0.0
  %8690 = vmatpush1.msra.mxu0 %v8592
  %8691 = vmatprep.subr.mxu0 0.0
  %8692 = vmatpush1.msra.mxu0 %v8591
  %8693 = vmatprep.subr.mxu0 0.0
  %8694 = vmatpush1.msra.mxu0 %v8590
  %8695 = vmatprep.subr.mxu0 0.0
  %8696 = vmatpush1.msra.mxu0 %v8589
  %8697 = vmatprep.subr.mxu0 0.0
  %8698 = vmatpush1.msra.mxu0 %v8588
  %8699 = vmatprep.subr.mxu0 0.0
  %8700 = vmatpush1.msra.mxu0 %v8587
  %8701 = vmatprep.subr.mxu0 0.0
  %8702 = vmatpush1.msra.mxu0 %v8586
  %8703 = vmatprep.subr.mxu0 0.0
  %8704 = vmatpush1.msra.mxu0 %v8585
  %8705 = vmatprep.subr.mxu0 0.0
  %8706 = vmatpush1.msra.mxu0 %v8584
  %8707 = vmatprep.subr.mxu0 0.0
  %8708 = vmatpush1.msra.mxu0 %v8583
  %8709 = vmatprep.subr.mxu0 0.0
  %8710 = vmatpush1.msra.mxu0 %v8582
  %8711 = vmatprep.subr.mxu0 0.0
  %8712 = vmatpush2.msra.mxu0 0.0
  %8713 = vmatprep.subr.mxu0 0.0
  %8714 = vmatpush2.msra.mxu0 0.0
  %8715 = vmatprep.subr.mxu0 0.0
  %8716 = vmatpush2.msra.mxu0 0.0
  %8717 = vmatprep.subr.mxu0 0.0
  %8718 = vmatpush2.msra.mxu0 0.0
  %8719 = vmatprep.subr.mxu0 0.0
  %8720 = vmatpush2.msra.mxu0 0.0
  %8721 = vmatprep.subr.mxu0 0.0
  %8722 = vmatpush2.msra.mxu0 0.0
  %8723 = vmatprep.subr.mxu0 0.0
  %8724 = vmatpush2.msra.mxu0 0.0
  %8725 = vmatprep.subr.mxu0 0.0
  %8726 = vmatpush2.msra.mxu0 0.0
  %8727 = vmatprep.subr.mxu0 0.0
  %8728 = vmatpush2.msra.mxu0 0.0
  %8729 = vmatprep.subr.mxu0 0.0
  %8730 = vmatpush2.msra.mxu0 0.0
  %8731 = vmatprep.subr.mxu0 0.0
  %8732 = vmatpush2.msra.mxu0 0.0
  %8733 = vmatprep.subr.mxu0 0.0
  %8734 = vmatpush2.msra.mxu0 0.0
  %8735 = vmatprep.subr.mxu0 0.0
  %8736 = vmatpush2.msra.mxu0 0.0
  %8737 = vmatprep.subr.mxu0 0.0
  %8738 = vmatpush2.msra.mxu0 0.0
  %8739 = vmatprep.subr.mxu0 0.0
  %8740 = vmatpush2.msra.mxu0 0.0
  %8741 = vmatprep.subr.mxu0 0.0
  %8742 = vmatpush2.msra.mxu0 %v8598
  %8743 = vmatprep.mubr.f32.mxu0 %v8607
  %8744 = vmatmul.mubr.f32.gmra.mxu0 %v8548
  %v8745 = vpop.f32.mrf.mxu0
  %v8746 = vadd.f32 %v8676, %v8745
  %v8747 = vpop.f32.mrf.mxu0
  %8748 = vdwg.mxu0
  %8749 = vst [vmem:[%s15] sm:$0x3] %v8746
  // Predicated region
  $region62: #{conv_downsampler_forward.1} parent=0 // pred_check
    _
  $region63: #{conv_downsampler_forward.1} parent=0 // pred_check_branch
    %8751 = sbr.rel (0) target = $region65
  $region64: #{conv_downsampler_forward.1} parent=0 // pred_region
    _
  $region65: #{conv_downsampler_forward.1} parent=0 // pred_fallthru
    _
  // Predicated region
  $region66: #{conv_downsampler_forward.1} parent=0 // pred_check
    _
  $region67: #{conv_downsampler_forward.1} parent=0 // pred_check_branch
    %8753 = sbr.rel (0) target = $region69
  $region68: #{conv_downsampler_forward.1} parent=0 // pred_region
    _
  $region69: #{conv_downsampler_forward.1} parent=0 // pred_fallthru
    _

</llo_original>
